<compile_context>
chip_gen: v7x
topology: tpu7x:2x2x1
jax: 0.10.0
libtpu: 0.0.40
codegen_flags: <defaults>
</compile_context>

<pallas_src>
import functools

import jax
import jax.numpy as jnp
from jax.experimental import pallas as pl
from jax.experimental.pallas import tpu as pltpu

# ----- constants from the PyTorch module -----
MAX_EDGE_WEIGHT = 15.286330223083496
NODE_DIMS = 38
HIDDEN = 512
ALPHA = 0.2  # GCN2Conv alpha
# TODO(synk): protein_config['interaction_labels'] is unavailable; linear2 is
# dead in the reference forward (its output `o` is discarded), so it is omitted.

_FUSED_ROW_TILE = 256   # inner row tile of the fused kernel (multiple of 128)
_TILED_TM = 256         # destination-row tile of the large-graph fallback
_TILED_TK = 512         # source-node (K) tile of the large-graph fallback


def _round_up(x, m):
    return ((x + m - 1) // m) * m


def _vmem_budget():
    """Generation-aware VMEM budget and vmem_limit_bytes (bytes)."""
    cap = 64 << 20  # conservative default: v7x per-TensorCore VMEM
    try:
        cap = int(pltpu.get_tpu_info().vmem_capacity_bytes)
    except Exception:
        pass
    budget = min(int(cap * 0.65), 96 << 20)               # ~42 MiB v7x, ~83 MiB v5e/v6e
    limit = max(min(int(cap * 0.85), 112 << 20), 32 << 20)
    return budget, limit


# --------------------------------------------------------------------------
# Fused path: all 3 GCN2Conv(+ReLU) layers in one pallas_call, adj resident.
# --------------------------------------------------------------------------
def _fused_kernel(adj_ref, h0_ref, w1_ref, w2_ref, w3_ref,
                  out_ref, ha_ref, hb_ref, *, tm):
    """adj_ref: (N,N) bf16 normalized adjacency with (1-alpha) pre-folded.
    h0_ref:  (N,H) bf16 linear1 output (layer-1 input AND residual).
    w*_ref:  (H,H) bf16 conv weights (beta = 1).
    out_ref: (N,H) f32 final h. ha/hb: (N,H) bf16 ping-pong scratch."""
    n_tiles = adj_ref.shape[0] // tm

    def layer(h_in_ref, w_ref, h_out_ref):
        def row_tile(r, carry):
            row0 = pl.multiple_of(r * tm, tm)
            rows = pl.ds(row0, tm)
            agg = jnp.dot(adj_ref[rows, :], h_in_ref[...],
                          preferred_element_type=jnp.float32)
            mixed = agg + ALPHA * h0_ref[rows, :].astype(jnp.float32)
            o = jnp.dot(mixed.astype(jnp.bfloat16), w_ref[...],
                        preferred_element_type=jnp.float32)
            h_out_ref[rows, :] = jnp.maximum(o, 0.0).astype(h_out_ref.dtype)
            return carry

        jax.lax.fori_loop(0, n_tiles, row_tile, 0)

    layer(h0_ref, w1_ref, ha_ref)
    layer(ha_ref, w2_ref, hb_ref)
    layer(hb_ref, w3_ref, out_ref)


def _gcn_fused(adj, h0, w1, w2, w3, *, tm, vmem_limit):
    n_pad = adj.shape[0]
    vmem = pl.BlockSpec(memory_space=pltpu.MemorySpace.VMEM)  # whole array, single copy
    return pl.pallas_call(
        functools.partial(_fused_kernel, tm=tm),
        out_shape=jax.ShapeDtypeStruct((n_pad, HIDDEN), jnp.float32),
        in_specs=[vmem, vmem, vmem, vmem, vmem],
        out_specs=vmem,
        scratch_shapes=[pltpu.VMEM((n_pad, HIDDEN), jnp.bfloat16),
                        pltpu.VMEM((n_pad, HIDDEN), jnp.bfloat16)],
        compiler_params=pltpu.CompilerParams(vmem_limit_bytes=vmem_limit),
    )(adj, h0, w1, w2, w3)


# --------------------------------------------------------------------------
# Fallback path: per-layer kernel, K-axis tiled aggregation (large graphs).
# --------------------------------------------------------------------------
def _layer_tiled_kernel(adj_ref, h_ref, ah0_ref, w_ref, out_ref, acc_ref):
    k = pl.program_id(1)

    @pl.when(k == 0)
    def _():
        acc_ref[...] = jnp.zeros_like(acc_ref)

    acc_ref[...] += jnp.dot(adj_ref[...], h_ref[...],
                            preferred_element_type=jnp.float32)

    @pl.when(k == pl.num_programs(1) - 1)
    def _():
        mixed = acc_ref[...] + ah0_ref[...].astype(jnp.float32)
        o = jnp.dot(mixed.astype(jnp.bfloat16), w_ref[...],
                    preferred_element_type=jnp.float32)
        out_ref[...] = jnp.maximum(o, 0.0).astype(out_ref.dtype)


def _gcn_layer_tiled(adj, h, ah0, w, *, tm, tk, vmem_limit, out_dtype):
    n_pad = adj.shape[0]
    grid = (n_pad // tm, n_pad // tk)
    return pl.pallas_call(
        _layer_tiled_kernel,
        out_shape=jax.ShapeDtypeStruct((n_pad, HIDDEN), out_dtype),
        grid_spec=pltpu.PrefetchScalarGridSpec(
            num_scalar_prefetch=0,
            grid=grid,
            in_specs=[
                pl.BlockSpec((tm, tk), lambda i, k: (i, k)),          # adj tile (streamed)
                pl.BlockSpec((tk, HIDDEN), lambda i, k: (k, 0)),      # source features
                pl.BlockSpec((tm, HIDDEN), lambda i, k: (i, 0)),      # alpha*h0 residual rows
                pl.BlockSpec((HIDDEN, HIDDEN), lambda i, k: (0, 0)),  # conv weight (resident)
            ],
            out_specs=pl.BlockSpec((tm, HIDDEN), lambda i, k: (i, 0)),
            scratch_shapes=[pltpu.VMEM((tm, HIDDEN), jnp.float32)],
        ),
        compiler_params=pltpu.CompilerParams(
            dimension_semantics=("parallel", "arbitrary"),
            vmem_limit_bytes=vmem_limit,
        ),
    )(adj, h, ah0, w)


# --------------------------------------------------------------------------
# Parameters and forward pass
# --------------------------------------------------------------------------
def init_params(key):
    """Deterministic synthetic parameters (PyTorch Linear semantics, weights
    stored as [in, out]). linear2 omitted: its output is discarded."""
    ks = jax.random.split(key, 5)

    def uni(k, shape, fan_in):
        bound = 1.0 / (fan_in ** 0.5)
        return jax.random.uniform(k, shape, jnp.float32, -bound, bound)

    return dict(
        w_lin1=uni(ks[0], (NODE_DIMS, HIDDEN), NODE_DIMS),
        b_lin1=uni(ks[1], (1, HIDDEN), NODE_DIMS),
        w_conv1=uni(ks[2], (HIDDEN, HIDDEN), HIDDEN),
        w_conv2=uni(ks[3], (HIDDEN, HIDDEN), HIDDEN),
        w_conv3=uni(ks[4], (HIDDEN, HIDDEN), HIDDEN),
    )


@jax.jit
def gcn_forward(x_full, edge_index, edge_attr, params):
    """x_full: [N, NODE_DIMS+3]; edge_index: [2, E] int32 (src, dst);
    edge_attr: [E, A] (last column = raw edge distance). Returns h: [N, HIDDEN] f32."""
    n = x_full.shape[0]
    budget, vmem_limit = _vmem_budget()

    # --- glue (XLA): feature slice, gcn_norm dense adjacency (no self loops) ---
    x = x_full[:, :-3].astype(jnp.float32)
    w_edge = edge_attr[:, -1].astype(jnp.float32) / MAX_EDGE_WEIGHT
    src = edge_index[0]
    dst = edge_index[1]
    deg = jnp.zeros((n,), jnp.float32).at[dst].add(w_edge)
    dinv = jnp.where(deg > 0.0, jax.lax.rsqrt(jnp.maximum(deg, 1e-30)), 0.0)
    # (1 - alpha) folded into the edge-level norm -> kernel computes agg + alpha*h0.
    norm = (1.0 - ALPHA) * dinv[src] * w_edge * dinv[dst]

    # --- pick fused (adjacency resident in VMEM) vs K-tiled fallback ---
    n_pad_fused = max(_FUSED_ROW_TILE, _round_up(n, _FUSED_ROW_TILE))
    fused_bytes = (2 * n_pad_fused * n_pad_fused                 # adj bf16
                   + n_pad_fused * HIDDEN * (2 + 4 + 2 + 2)      # h0, out f32, 2 ping-pong
                   + 3 * HIDDEN * HIDDEN * 2)                    # 3 conv weights
    use_fused = fused_bytes + (8 << 20) <= budget
    n_pad = n_pad_fused if use_fused else _round_up(n, max(_TILED_TM, _TILED_TK))

    # f32 scatter-add (duplicate edges accumulate exactly), one cast to bf16.
    # Padded rows/cols stay zero so padding never contaminates real rows.
    adj = (jnp.zeros((n_pad, n_pad), jnp.float32)
           .at[dst, src].add(norm)
           .astype(jnp.bfloat16))

    # linear1 stays in XLA (tiny ragged K=38 GEMM; keeps kernel blocks lane-dense).
    h0 = jnp.dot(x, params["w_lin1"], preferred_element_type=jnp.float32) + params["b_lin1"]
    h0 = jnp.pad(h0, ((0, n_pad - n), (0, 0)))

    w1 = params["w_conv1"].astype(jnp.bfloat16)
    w2 = params["w_conv2"].astype(jnp.bfloat16)
    w3 = params["w_conv3"].astype(jnp.bfloat16)

    if use_fused:
        h = _gcn_fused(adj, h0.astype(jnp.bfloat16), w1, w2, w3,
                       tm=_FUSED_ROW_TILE, vmem_limit=vmem_limit)
    else:
        # TODO(synk): very large pockets would be better served by a sparse
        # (CSR / scalar-prefetch gather) aggregation than a dense adjacency.
        ah0 = (ALPHA * h0).astype(jnp.bfloat16)
        h = h0.astype(jnp.bfloat16)
        layer = functools.partial(_gcn_layer_tiled, tm=_TILED_TM, tk=_TILED_TK,
                                  vmem_limit=vmem_limit)
        h = layer(adj, h, ah0, w1, out_dtype=jnp.bfloat16)
        h = layer(adj, h, ah0, w2, out_dtype=jnp.bfloat16)
        h = layer(adj, h, ah0, w3, out_dtype=jnp.float32)

    # reference forward returns h (linear2 output is discarded -> not computed)
    return h[:n]


@jax.jit
def _reference_forward(x_full, edge_index, edge_attr, params):
    """Pure-JAX f32 reference of the PyTorch forward (tolerance check only)."""
    n = x_full.shape[0]
    x = x_full[:, :-3].astype(jnp.float32)
    w_edge = edge_attr[:, -1].astype(jnp.float32) / MAX_EDGE_WEIGHT
    src, dst = edge_index[0], edge_index[1]
    deg = jnp.zeros((n,), jnp.float32).at[dst].add(w_edge)
    dinv = jnp.where(deg > 0.0, jax.lax.rsqrt(jnp.maximum(deg, 1e-30)), 0.0)
    norm = dinv[src] * w_edge * dinv[dst]
    adj = jnp.zeros((n, n), jnp.float32).at[dst, src].add(norm)
    h0 = x @ params["w_lin1"] + params["b_lin1"]
    h = h0
    for w in (params["w_conv1"], params["w_conv2"], params["w_conv3"]):
        h = jnp.maximum(((1.0 - ALPHA) * (adj @ h) + ALPHA * h0) @ w, 0.0)
    return h


if __name__ == "__main__":
    key = jax.random.PRNGKey(0)
    k_param, k_x, k_ei, k_ea = jax.random.split(key, 4)

    N, E = 32, 64  # small synthetic pocket graph
    params = init_params(k_param)

    x_full = jax.random.normal(k_x, (N, NODE_DIMS + 3), jnp.float32)
    edge_index = jax.random.randint(k_ei, (2, E), 0, N, dtype=jnp.int32)
    edge_attr = jax.random.uniform(k_ea, (E, 4), jnp.float32, 0.0, MAX_EDGE_WEIGHT)

    h = gcn_forward(x_full, edge_index, edge_attr, params)
    jax.block_until_ready(h)
    assert h.shape == (N, HIDDEN) and h.dtype == jnp.float32
    assert bool(jnp.all(jnp.isfinite(h)))

    h_ref = _reference_forward(x_full, edge_index, edge_attr, params)
    max_err = float(jnp.max(jnp.abs(h - h_ref)))
    assert max_err < 0.1, f"max |pallas - reference| = {max_err}"
    print("KERNEL_OK")
</pallas_src>

<mosaic_0001>
module attributes {stable_mosaic.version = 11 : i64} {
  func.func private @main(%arg0: i32) attributes {dimension_semantics = [#tpu.dimension_semantics<core_parallel>], iteration_bounds = array<i64: 2>, tpu.core_type = #tpu.core_type<sc_scalar_subcore>, window_params = []} {
    return
  }
}

module attributes {stable_mosaic.version = 11 : i64} {
  func.func private @main(%arg0: i32) attributes {dimension_semantics = [#tpu.dimension_semantics<core_parallel>], iteration_bounds = array<i64: 2>, tpu.core_type = #tpu.core_type<sc_scalar_subcore>, window_params = []} {
    return
  }
}

module attributes {stable_mosaic.version = 11 : i64} {
  func.func @_fused_kernel(%arg0: memref<256x256xbf16, #tpu.memory_space<vmem>>, %arg1: memref<256x512xbf16, #tpu.memory_space<vmem>>, %arg2: memref<512x512xbf16, #tpu.memory_space<vmem>>, %arg3: memref<512x512xbf16, #tpu.memory_space<vmem>>, %arg4: memref<512x512xbf16, #tpu.memory_space<vmem>>, %arg5: memref<256x512xf32, #tpu.memory_space<vmem>>, %arg6: memref<256x512xbf16, #tpu.memory_space<vmem>>, %arg7: memref<256x512xbf16, #tpu.memory_space<vmem>>) attributes {dimension_semantics = [], scalar_prefetch = 0 : i64, scratch_operands = 2 : i64, tpu.core_type = #tpu.core_type<tc>} {
    %c0_i32 = arith.constant 0 : i32
    %c256_i32 = arith.constant 256 : i32
    %0 = arith.muli %c0_i32, %c256_i32 : i32
    %1 = tpu.assume_multiple %0, 256 : i32
    %2 = arith.index_cast %1 : i32 to index
    %c0 = arith.constant 0 : index
    %3 = vector.load %arg0[%2, %c0] : memref<256x256xbf16, #tpu.memory_space<vmem>>, vector<256x256xbf16>
    %c0_0 = arith.constant 0 : index
    %c0_1 = arith.constant 0 : index
    %4 = vector.load %arg1[%c0_0, %c0_1] : memref<256x512xbf16, #tpu.memory_space<vmem>>, vector<256x512xbf16>
    %cst = arith.constant dense<0.000000e+00> : vector<256x512xf32>
    %5 = tpu.matmul %3, %4, %cst {dimension_numbers = #tpu.dot_dimension_numbers<[1], [0], [0], [1], [0, 0, 1, 1], [], []>} : vector<256x256xbf16>, vector<256x512xbf16>, vector<256x512xf32> -> vector<256x512xf32>
    %6 = arith.index_cast %1 : i32 to index
    %c0_2 = arith.constant 0 : index
    %7 = vector.load %arg1[%6, %c0_2] : memref<256x512xbf16, #tpu.memory_space<vmem>>, vector<256x512xbf16>
    %8 = arith.extf %7 : vector<256x512xbf16> to vector<256x512xf32>
    %cst_3 = arith.constant 2.000000e-01 : f32
    %9 = vector.broadcast %cst_3 : f32 to vector<256x512xf32>
    %10 = arith.mulf %9, %8 : vector<256x512xf32>
    %11 = arith.addf %5, %10 : vector<256x512xf32>
    %12 = arith.truncf %11 : vector<256x512xf32> to vector<256x512xbf16>
    %c0_4 = arith.constant 0 : index
    %c0_5 = arith.constant 0 : index
    %13 = vector.load %arg2[%c0_4, %c0_5] : memref<512x512xbf16, #tpu.memory_space<vmem>>, vector<512x512xbf16>
    %cst_6 = arith.constant dense<0.000000e+00> : vector<256x512xf32>
    %14 = tpu.matmul %12, %13, %cst_6 {dimension_numbers = #tpu.dot_dimension_numbers<[1], [0], [0], [1], [0, 0, 1, 1], [], []>} : vector<256x512xbf16>, vector<512x512xbf16>, vector<256x512xf32> -> vector<256x512xf32>
    %cst_7 = arith.constant 0.000000e+00 : f32
    %15 = vector.broadcast %cst_7 : f32 to vector<256x512xf32>
    %16 = arith.maximumf %14, %15 : vector<256x512xf32>
    %17 = arith.truncf %16 : vector<256x512xf32> to vector<256x512xbf16>
    %18 = arith.index_cast %1 : i32 to index
    %c0_8 = arith.constant 0 : index
    %19 = vector.load %arg6[%18, %c0_8] : memref<256x512xbf16, #tpu.memory_space<vmem>>, vector<256x512xbf16>
    tpu.vector_store %arg6[%18, %c0_8], %17 {strides = array<i32>} : memref<256x512xbf16, #tpu.memory_space<vmem>>, vector<256x512xbf16>,
    %c1_i32 = arith.constant 1 : i32
    %c0_i32_9 = arith.constant 0 : i32
    %c256_i32_10 = arith.constant 256 : i32
    %20 = arith.muli %c0_i32_9, %c256_i32_10 : i32
    %21 = tpu.assume_multiple %20, 256 : i32
    %22 = arith.index_cast %21 : i32 to index
    %c0_11 = arith.constant 0 : index
    %23 = vector.load %arg0[%22, %c0_11] : memref<256x256xbf16, #tpu.memory_space<vmem>>, vector<256x256xbf16>
    %c0_12 = arith.constant 0 : index
    %c0_13 = arith.constant 0 : index
    %24 = vector.load %arg6[%c0_12, %c0_13] : memref<256x512xbf16, #tpu.memory_space<vmem>>, vector<256x512xbf16>
    %cst_14 = arith.constant dense<0.000000e+00> : vector<256x512xf32>
    %25 = tpu.matmul %23, %24, %cst_14 {dimension_numbers = #tpu.dot_dimension_numbers<[1], [0], [0], [1], [0, 0, 1, 1], [], []>} : vector<256x256xbf16>, vector<256x512xbf16>, vector<256x512xf32> -> vector<256x512xf32>
    %26 = arith.index_cast %21 : i32 to index
    %c0_15 = arith.constant 0 : index
    %27 = vector.load %arg1[%26, %c0_15] : memref<256x512xbf16, #tpu.memory_space<vmem>>, vector<256x512xbf16>
    %28 = arith.extf %27 : vector<256x512xbf16> to vector<256x512xf32>
    %cst_16 = arith.constant 2.000000e-01 : f32
    %29 = vector.broadcast %cst_16 : f32 to vector<256x512xf32>
    %30 = arith.mulf %29, %28 : vector<256x512xf32>
    %31 = arith.addf %25, %30 : vector<256x512xf32>
    %32 = arith.truncf %31 : vector<256x512xf32> to vector<256x512xbf16>
    %c0_17 = arith.constant 0 : index
    %c0_18 = arith.constant 0 : index
    %33 = vector.load %arg3[%c0_17, %c0_18] : memref<512x512xbf16, #tpu.memory_space<vmem>>, vector<512x512xbf16>
    %cst_19 = arith.constant dense<0.000000e+00> : vector<256x512xf32>
    %34 = tpu.matmul %32, %33, %cst_19 {dimension_numbers = #tpu.dot_dimension_numbers<[1], [0], [0], [1], [0, 0, 1, 1], [], []>} : vector<256x512xbf16>, vector<512x512xbf16>, vector<256x512xf32> -> vector<256x512xf32>
    %cst_20 = arith.constant 0.000000e+00 : f32
    %35 = vector.broadcast %cst_20 : f32 to vector<256x512xf32>
    %36 = arith.maximumf %34, %35 : vector<256x512xf32>
    %37 = arith.truncf %36 : vector<256x512xf32> to vector<256x512xbf16>
    %38 = arith.index_cast %21 : i32 to index
    %c0_21 = arith.constant 0 : index
    %39 = vector.load %arg7[%38, %c0_21] : memref<256x512xbf16, #tpu.memory_space<vmem>>, vector<256x512xbf16>
    tpu.vector_store %arg7[%38, %c0_21], %37 {strides = array<i32>} : memref<256x512xbf16, #tpu.memory_space<vmem>>, vector<256x512xbf16>,
    %c1_i32_22 = arith.constant 1 : i32
    %c0_i32_23 = arith.constant 0 : i32
    %c256_i32_24 = arith.constant 256 : i32
    %40 = arith.muli %c0_i32_23, %c256_i32_24 : i32
    %41 = tpu.assume_multiple %40, 256 : i32
    %42 = arith.index_cast %41 : i32 to index
    %c0_25 = arith.constant 0 : index
    %43 = vector.load %arg0[%42, %c0_25] : memref<256x256xbf16, #tpu.memory_space<vmem>>, vector<256x256xbf16>
    %c0_26 = arith.constant 0 : index
    %c0_27 = arith.constant 0 : index
    %44 = vector.load %arg7[%c0_26, %c0_27] : memref<256x512xbf16, #tpu.memory_space<vmem>>, vector<256x512xbf16>
    %cst_28 = arith.constant dense<0.000000e+00> : vector<256x512xf32>
    %45 = tpu.matmul %43, %44, %cst_28 {dimension_numbers = #tpu.dot_dimension_numbers<[1], [0], [0], [1], [0, 0, 1, 1], [], []>} : vector<256x256xbf16>, vector<256x512xbf16>, vector<256x512xf32> -> vector<256x512xf32>
    %46 = arith.index_cast %41 : i32 to index
    %c0_29 = arith.constant 0 : index
    %47 = vector.load %arg1[%46, %c0_29] : memref<256x512xbf16, #tpu.memory_space<vmem>>, vector<256x512xbf16>
    %48 = arith.extf %47 : vector<256x512xbf16> to vector<256x512xf32>
    %cst_30 = arith.constant 2.000000e-01 : f32
    %49 = vector.broadcast %cst_30 : f32 to vector<256x512xf32>
    %50 = arith.mulf %49, %48 : vector<256x512xf32>
    %51 = arith.addf %45, %50 : vector<256x512xf32>
    %52 = arith.truncf %51 : vector<256x512xf32> to vector<256x512xbf16>
    %c0_31 = arith.constant 0 : index
    %c0_32 = arith.constant 0 : index
    %53 = vector.load %arg4[%c0_31, %c0_32] : memref<512x512xbf16, #tpu.memory_space<vmem>>, vector<512x512xbf16>
    %cst_33 = arith.constant dense<0.000000e+00> : vector<256x512xf32>
    %54 = tpu.matmul %52, %53, %cst_33 {dimension_numbers = #tpu.dot_dimension_numbers<[1], [0], [0], [1], [0, 0, 1, 1], [], []>} : vector<256x512xbf16>, vector<512x512xbf16>, vector<256x512xf32> -> vector<256x512xf32>
    %cst_34 = arith.constant 0.000000e+00 : f32
    %55 = vector.broadcast %cst_34 : f32 to vector<256x512xf32>
    %56 = arith.maximumf %54, %55 : vector<256x512xf32>
    %57 = arith.index_cast %41 : i32 to index
    %c0_35 = arith.constant 0 : index
    %58 = vector.load %arg5[%57, %c0_35] : memref<256x512xf32, #tpu.memory_space<vmem>>, vector<256x512xf32>
    tpu.vector_store %arg5[%57, %c0_35], %56 {strides = array<i32>} : memref<256x512xf32, #tpu.memory_space<vmem>>, vector<256x512xf32>,
    %c1_i32_36 = arith.constant 1 : i32
    return
  }
}

</mosaic_0001>

<llo_original>
// kernel: gcn_forward.1
$region0: #{gcn_forward.1}
  #allocation0 [shape = 'u32[]', space=smem, size = 0x4, offset = 0x4, fixed_abs, tag = 'smem constant byte address 0x4 - core index']
  #allocation1 [shape = 'u32[144,128]{1,0:T(1,128)}', space=vmem, size = 0x12000, scoped, tag = 'internal scratch']
  #allocation2 [shape = 'bf16[256,512]{1,0:T(16,128)(2,1)}', space=vmem, size = 0x40000, scoped, tag = 'scratch operand']
  #allocation3 [shape = 'bf16[256,512]{1,0:T(16,128)(2,1)}', space=vmem, size = 0x40000, scoped, tag = 'scratch operand']
  %s0 = inlined_call_operand.vmem [shape: bf16[256,256], index: 0, kind: input, shape index: {}]
  %s1 = inlined_call_operand.vmem [shape: bf16[256,512], index: 1, kind: input, shape index: {}]
  %s2 = inlined_call_operand.vmem [shape: bf16[512,512], index: 2, kind: input, shape index: {}]
  %s3 = inlined_call_operand.vmem [shape: bf16[512,512], index: 3, kind: input, shape index: {}]
  %s4 = inlined_call_operand.vmem [shape: bf16[512,512], index: 4, kind: input, shape index: {}]
  %s5 = inlined_call_operand.vmem [shape: f32[256,512], index: 5, kind: output, shape index: {}]
  %s6 = sld [smem:[#allocation0]]
  $region30: #{gcn_forward.1} parent=0
    _
  %s8 = ssub.s32 1, %s6
  %s9 = scalar_select 0, %s8, %s6
  // Predicated region
  $region2: #{gcn_forward.1} parent=0 // pred_check
    _
  $region3: #{gcn_forward.1} parent=0 // pred_check_branch
    %11 = sbr.rel (0) target = $region5
  $region4: #{gcn_forward.1} parent=0 // pred_region
    _
  $region5: #{gcn_forward.1} parent=0 // pred_fallthru
    _
  // Predicated region
  $region6: #{gcn_forward.1} parent=0 // pred_check
    _
  $region7: #{gcn_forward.1} parent=0 // pred_check_branch
    %13 = sbr.rel (0) target = $region9
  $region8: #{gcn_forward.1} parent=0 // pred_region
    _
  $region9: #{gcn_forward.1} parent=0 // pred_fallthru
    _
  // Predicated region
  $region10: #{gcn_forward.1} parent=0 // pred_check
    _
  $region11: #{gcn_forward.1} parent=0 // pred_check_branch
    %15 = sbr.rel (0) target = $region13
  $region12: #{gcn_forward.1} parent=0 // pred_region
    _
  $region13: #{gcn_forward.1} parent=0 // pred_fallthru
    _
  // Predicated region
  $region14: #{gcn_forward.1} parent=0 // pred_check
    _
  $region15: #{gcn_forward.1} parent=0 // pred_check_branch
    %17 = sbr.rel (0) target = $region17
  $region16: #{gcn_forward.1} parent=0 // pred_region
    _
  $region17: #{gcn_forward.1} parent=0 // pred_fallthru
    _
  // Predicated region
  $region18: #{gcn_forward.1} parent=0 // pred_check
    _
  $region19: #{gcn_forward.1} parent=0 // pred_check_branch
    %19 = sbr.rel (0) target = $region21
  $region20: #{gcn_forward.1} parent=0 // pred_region
    _
  $region21: #{gcn_forward.1} parent=0 // pred_fallthru
    _
  %s20 = smul.u32 0, 2
  %s21 = smul.addr %s20, 4
  %s22 = scalar_lea.vmem %s0, %s21
  %v23 = vld [vmem:[%s22] sm:$0xff]
  %v24 = vld [vmem:[%s22 + $0x8] sm:$0xff]
  %v25 = vld [vmem:[%s22 + $0x10] sm:$0xff]
  %v26 = vld [vmem:[%s22 + $0x18] sm:$0xff]
  %v27 = vld [vmem:[%s22 + $0x20] sm:$0xff]
  %v28 = vld [vmem:[%s22 + $0x28] sm:$0xff]
  %v29 = vld [vmem:[%s22 + $0x30] sm:$0xff]
  %v30 = vld [vmem:[%s22 + $0x38] sm:$0xff]
  %v31 = vld [vmem:[%s22 + $0x40] sm:$0xff]
  %v32 = vld [vmem:[%s22 + $0x48] sm:$0xff]
  %v33 = vld [vmem:[%s22 + $0x50] sm:$0xff]
  %v34 = vld [vmem:[%s22 + $0x58] sm:$0xff]
  %v35 = vld [vmem:[%s22 + $0x60] sm:$0xff]
  %v36 = vld [vmem:[%s22 + $0x68] sm:$0xff]
  %v37 = vld [vmem:[%s22 + $0x70] sm:$0xff]
  %v38 = vld [vmem:[%s22 + $0x78] sm:$0xff]
  %v39 = vld [vmem:[%s22 + $0x80] sm:$0xff]
  %v40 = vld [vmem:[%s22 + $0x88] sm:$0xff]
  %v41 = vld [vmem:[%s22 + $0x90] sm:$0xff]
  %v42 = vld [vmem:[%s22 + $0x98] sm:$0xff]
  %v43 = vld [vmem:[%s22 + $0xa0] sm:$0xff]
  %v44 = vld [vmem:[%s22 + $0xa8] sm:$0xff]
  %v45 = vld [vmem:[%s22 + $0xb0] sm:$0xff]
  %v46 = vld [vmem:[%s22 + $0xb8] sm:$0xff]
  %v47 = vld [vmem:[%s22 + $0xc0] sm:$0xff]
  %v48 = vld [vmem:[%s22 + $0xc8] sm:$0xff]
  %v49 = vld [vmem:[%s22 + $0xd0] sm:$0xff]
  %v50 = vld [vmem:[%s22 + $0xd8] sm:$0xff]
  %v51 = vld [vmem:[%s22 + $0xe0] sm:$0xff]
  %v52 = vld [vmem:[%s22 + $0xe8] sm:$0xff]
  %v53 = vld [vmem:[%s22 + $0xf0] sm:$0xff]
  %v54 = vld [vmem:[%s22 + $0xf8] sm:$0xff]
  %v55 = vld [vmem:[%s1] sm:$0xff]
  %v56 = vld [vmem:[%s1 + $0x8] sm:$0xff]
  %v57 = vld [vmem:[%s1 + $0x10] sm:$0xff]
  %v58 = vld [vmem:[%s1 + $0x18] sm:$0xff]
  %v59 = vld [vmem:[%s1 + $0x20] sm:$0xff]
  %v60 = vld [vmem:[%s1 + $0x28] sm:$0xff]
  %v61 = vld [vmem:[%s1 + $0x30] sm:$0xff]
  %v62 = vld [vmem:[%s1 + $0x38] sm:$0xff]
  %v63 = vld [vmem:[%s1 + $0x40] sm:$0xff]
  %v64 = vld [vmem:[%s1 + $0x48] sm:$0xff]
  %v65 = vld [vmem:[%s1 + $0x50] sm:$0xff]
  %v66 = vld [vmem:[%s1 + $0x58] sm:$0xff]
  %v67 = vld [vmem:[%s1 + $0x60] sm:$0xff]
  %v68 = vld [vmem:[%s1 + $0x68] sm:$0xff]
  %v69 = vld [vmem:[%s1 + $0x70] sm:$0xff]
  %v70 = vld [vmem:[%s1 + $0x78] sm:$0xff]
  %v71 = vld [vmem:[%s1 + $0x80] sm:$0xff]
  %v72 = vld [vmem:[%s1 + $0x88] sm:$0xff]
  %v73 = vld [vmem:[%s1 + $0x90] sm:$0xff]
  %v74 = vld [vmem:[%s1 + $0x98] sm:$0xff]
  %v75 = vld [vmem:[%s1 + $0xa0] sm:$0xff]
  %v76 = vld [vmem:[%s1 + $0xa8] sm:$0xff]
  %v77 = vld [vmem:[%s1 + $0xb0] sm:$0xff]
  %v78 = vld [vmem:[%s1 + $0xb8] sm:$0xff]
  %v79 = vld [vmem:[%s1 + $0xc0] sm:$0xff]
  %v80 = vld [vmem:[%s1 + $0xc8] sm:$0xff]
  %v81 = vld [vmem:[%s1 + $0xd0] sm:$0xff]
  %v82 = vld [vmem:[%s1 + $0xd8] sm:$0xff]
  %v83 = vld [vmem:[%s1 + $0xe0] sm:$0xff]
  %v84 = vld [vmem:[%s1 + $0xe8] sm:$0xff]
  %v85 = vld [vmem:[%s1 + $0xf0] sm:$0xff]
  %v86 = vld [vmem:[%s1 + $0xf8] sm:$0xff]
  %v87 = vld [vmem:[%s1 + $0x100] sm:$0xff]
  %v88 = vld [vmem:[%s1 + $0x108] sm:$0xff]
  %v89 = vld [vmem:[%s1 + $0x110] sm:$0xff]
  %v90 = vld [vmem:[%s1 + $0x118] sm:$0xff]
  %v91 = vld [vmem:[%s1 + $0x120] sm:$0xff]
  %v92 = vld [vmem:[%s1 + $0x128] sm:$0xff]
  %v93 = vld [vmem:[%s1 + $0x130] sm:$0xff]
  %v94 = vld [vmem:[%s1 + $0x138] sm:$0xff]
  %v95 = vld [vmem:[%s1 + $0x140] sm:$0xff]
  %v96 = vld [vmem:[%s1 + $0x148] sm:$0xff]
  %v97 = vld [vmem:[%s1 + $0x150] sm:$0xff]
  %v98 = vld [vmem:[%s1 + $0x158] sm:$0xff]
  %v99 = vld [vmem:[%s1 + $0x160] sm:$0xff]
  %v100 = vld [vmem:[%s1 + $0x168] sm:$0xff]
  %v101 = vld [vmem:[%s1 + $0x170] sm:$0xff]
  %v102 = vld [vmem:[%s1 + $0x178] sm:$0xff]
  %v103 = vld [vmem:[%s1 + $0x180] sm:$0xff]
  %v104 = vld [vmem:[%s1 + $0x188] sm:$0xff]
  %v105 = vld [vmem:[%s1 + $0x190] sm:$0xff]
  %v106 = vld [vmem:[%s1 + $0x198] sm:$0xff]
  %v107 = vld [vmem:[%s1 + $0x1a0] sm:$0xff]
  %v108 = vld [vmem:[%s1 + $0x1a8] sm:$0xff]
  %v109 = vld [vmem:[%s1 + $0x1b0] sm:$0xff]
  %v110 = vld [vmem:[%s1 + $0x1b8] sm:$0xff]
  %v111 = vld [vmem:[%s1 + $0x1c0] sm:$0xff]
  %v112 = vld [vmem:[%s1 + $0x1c8] sm:$0xff]
  %v113 = vld [vmem:[%s1 + $0x1d0] sm:$0xff]
  %v114 = vld [vmem:[%s1 + $0x1d8] sm:$0xff]
  %v115 = vld [vmem:[%s1 + $0x1e0] sm:$0xff]
  %v116 = vld [vmem:[%s1 + $0x1e8] sm:$0xff]
  %v117 = vld [vmem:[%s1 + $0x1f0] sm:$0xff]
  %v118 = vld [vmem:[%s1 + $0x1f8] sm:$0xff]
  %s119 = smul.u32 0, 4
  %s120 = smul.addr %s119, 4
  %s121 = scalar_lea.vmem %s1, %s120
  %v122 = vld [vmem:[%s121] sm:$0xff]
  %v123 = vld [vmem:[%s121 + $0x8] sm:$0xff]
  %v124 = vld [vmem:[%s121 + $0x10] sm:$0xff]
  %v125 = vld [vmem:[%s121 + $0x18] sm:$0xff]
  %v126 = vld [vmem:[%s121 + $0x20] sm:$0xff]
  %v127 = vld [vmem:[%s121 + $0x28] sm:$0xff]
  %v128 = vld [vmem:[%s121 + $0x30] sm:$0xff]
  %v129 = vld [vmem:[%s121 + $0x38] sm:$0xff]
  %v130 = vld [vmem:[%s121 + $0x40] sm:$0xff]
  %v131 = vld [vmem:[%s121 + $0x48] sm:$0xff]
  %v132 = vld [vmem:[%s121 + $0x50] sm:$0xff]
  %v133 = vld [vmem:[%s121 + $0x58] sm:$0xff]
  %v134 = vld [vmem:[%s121 + $0x60] sm:$0xff]
  %v135 = vld [vmem:[%s121 + $0x68] sm:$0xff]
  %v136 = vld [vmem:[%s121 + $0x70] sm:$0xff]
  %v137 = vld [vmem:[%s121 + $0x78] sm:$0xff]
  %v138 = vld [vmem:[%s121 + $0x80] sm:$0xff]
  %v139 = vld [vmem:[%s121 + $0x88] sm:$0xff]
  %v140 = vld [vmem:[%s121 + $0x90] sm:$0xff]
  %v141 = vld [vmem:[%s121 + $0x98] sm:$0xff]
  %v142 = vld [vmem:[%s121 + $0xa0] sm:$0xff]
  %v143 = vld [vmem:[%s121 + $0xa8] sm:$0xff]
  %v144 = vld [vmem:[%s121 + $0xb0] sm:$0xff]
  %v145 = vld [vmem:[%s121 + $0xb8] sm:$0xff]
  %v146 = vld [vmem:[%s121 + $0xc0] sm:$0xff]
  %v147 = vld [vmem:[%s121 + $0xc8] sm:$0xff]
  %v148 = vld [vmem:[%s121 + $0xd0] sm:$0xff]
  %v149 = vld [vmem:[%s121 + $0xd8] sm:$0xff]
  %v150 = vld [vmem:[%s121 + $0xe0] sm:$0xff]
  %v151 = vld [vmem:[%s121 + $0xe8] sm:$0xff]
  %v152 = vld [vmem:[%s121 + $0xf0] sm:$0xff]
  %v153 = vld [vmem:[%s121 + $0xf8] sm:$0xff]
  %v154 = vld [vmem:[%s121 + $0x100] sm:$0xff]
  %v155 = vld [vmem:[%s121 + $0x108] sm:$0xff]
  %v156 = vld [vmem:[%s121 + $0x110] sm:$0xff]
  %v157 = vld [vmem:[%s121 + $0x118] sm:$0xff]
  %v158 = vld [vmem:[%s121 + $0x120] sm:$0xff]
  %v159 = vld [vmem:[%s121 + $0x128] sm:$0xff]
  %v160 = vld [vmem:[%s121 + $0x130] sm:$0xff]
  %v161 = vld [vmem:[%s121 + $0x138] sm:$0xff]
  %v162 = vld [vmem:[%s121 + $0x140] sm:$0xff]
  %v163 = vld [vmem:[%s121 + $0x148] sm:$0xff]
  %v164 = vld [vmem:[%s121 + $0x150] sm:$0xff]
  %v165 = vld [vmem:[%s121 + $0x158] sm:$0xff]
  %v166 = vld [vmem:[%s121 + $0x160] sm:$0xff]
  %v167 = vld [vmem:[%s121 + $0x168] sm:$0xff]
  %v168 = vld [vmem:[%s121 + $0x170] sm:$0xff]
  %v169 = vld [vmem:[%s121 + $0x178] sm:$0xff]
  %v170 = vld [vmem:[%s121 + $0x180] sm:$0xff]
  %v171 = vld [vmem:[%s121 + $0x188] sm:$0xff]
  %v172 = vld [vmem:[%s121 + $0x190] sm:$0xff]
  %v173 = vld [vmem:[%s121 + $0x198] sm:$0xff]
  %v174 = vld [vmem:[%s121 + $0x1a0] sm:$0xff]
  %v175 = vld [vmem:[%s121 + $0x1a8] sm:$0xff]
  %v176 = vld [vmem:[%s121 + $0x1b0] sm:$0xff]
  %v177 = vld [vmem:[%s121 + $0x1b8] sm:$0xff]
  %v178 = vld [vmem:[%s121 + $0x1c0] sm:$0xff]
  %v179 = vld [vmem:[%s121 + $0x1c8] sm:$0xff]
  %v180 = vld [vmem:[%s121 + $0x1d0] sm:$0xff]
  %v181 = vld [vmem:[%s121 + $0x1d8] sm:$0xff]
  %v182 = vld [vmem:[%s121 + $0x1e0] sm:$0xff]
  %v183 = vld [vmem:[%s121 + $0x1e8] sm:$0xff]
  %v184 = vld [vmem:[%s121 + $0x1f0] sm:$0xff]
  %v185 = vld [vmem:[%s121 + $0x1f8] sm:$0xff]
  %v186 = vunpack.c.l.bf16 %v122
  %v187 = vunpack.c.h.bf16 %v122
  %v188 = vunpack.c.l.bf16 %v123
  %v189 = vunpack.c.h.bf16 %v123
  %v190 = vunpack.c.l.bf16 %v124
  %v191 = vunpack.c.h.bf16 %v124
  %v192 = vunpack.c.l.bf16 %v125
  %v193 = vunpack.c.h.bf16 %v125
  %v194 = vunpack.c.l.bf16 %v126
  %v195 = vunpack.c.h.bf16 %v126
  %v196 = vunpack.c.l.bf16 %v127
  %v197 = vunpack.c.h.bf16 %v127
  %v198 = vunpack.c.l.bf16 %v128
  %v199 = vunpack.c.h.bf16 %v128
  %v200 = vunpack.c.l.bf16 %v129
  %v201 = vunpack.c.h.bf16 %v129
  %v202 = vunpack.c.l.bf16 %v130
  %v203 = vunpack.c.h.bf16 %v130
  %v204 = vunpack.c.l.bf16 %v131
  %v205 = vunpack.c.h.bf16 %v131
  %v206 = vunpack.c.l.bf16 %v132
  %v207 = vunpack.c.h.bf16 %v132
  %v208 = vunpack.c.l.bf16 %v133
  %v209 = vunpack.c.h.bf16 %v133
  %v210 = vunpack.c.l.bf16 %v134
  %v211 = vunpack.c.h.bf16 %v134
  %v212 = vunpack.c.l.bf16 %v135
  %v213 = vunpack.c.h.bf16 %v135
  %v214 = vunpack.c.l.bf16 %v136
  %v215 = vunpack.c.h.bf16 %v136
  %v216 = vunpack.c.l.bf16 %v137
  %v217 = vunpack.c.h.bf16 %v137
  %v218 = vunpack.c.l.bf16 %v138
  %v219 = vunpack.c.h.bf16 %v138
  %v220 = vunpack.c.l.bf16 %v139
  %v221 = vunpack.c.h.bf16 %v139
  %v222 = vunpack.c.l.bf16 %v140
  %v223 = vunpack.c.h.bf16 %v140
  %v224 = vunpack.c.l.bf16 %v141
  %v225 = vunpack.c.h.bf16 %v141
  %v226 = vunpack.c.l.bf16 %v142
  %v227 = vunpack.c.h.bf16 %v142
  %v228 = vunpack.c.l.bf16 %v143
  %v229 = vunpack.c.h.bf16 %v143
  %v230 = vunpack.c.l.bf16 %v144
  %v231 = vunpack.c.h.bf16 %v144
  %v232 = vunpack.c.l.bf16 %v145
  %v233 = vunpack.c.h.bf16 %v145
  %v234 = vunpack.c.l.bf16 %v146
  %v235 = vunpack.c.h.bf16 %v146
  %v236 = vunpack.c.l.bf16 %v147
  %v237 = vunpack.c.h.bf16 %v147
  %v238 = vunpack.c.l.bf16 %v148
  %v239 = vunpack.c.h.bf16 %v148
  %v240 = vunpack.c.l.bf16 %v149
  %v241 = vunpack.c.h.bf16 %v149
  %v242 = vunpack.c.l.bf16 %v150
  %v243 = vunpack.c.h.bf16 %v150
  %v244 = vunpack.c.l.bf16 %v151
  %v245 = vunpack.c.h.bf16 %v151
  %v246 = vunpack.c.l.bf16 %v152
  %v247 = vunpack.c.h.bf16 %v152
  %v248 = vunpack.c.l.bf16 %v153
  %v249 = vunpack.c.h.bf16 %v153
  %v250 = vunpack.c.l.bf16 %v154
  %v251 = vunpack.c.h.bf16 %v154
  %v252 = vunpack.c.l.bf16 %v155
  %v253 = vunpack.c.h.bf16 %v155
  %v254 = vunpack.c.l.bf16 %v156
  %v255 = vunpack.c.h.bf16 %v156
  %v256 = vunpack.c.l.bf16 %v157
  %v257 = vunpack.c.h.bf16 %v157
  %v258 = vunpack.c.l.bf16 %v158
  %v259 = vunpack.c.h.bf16 %v158
  %v260 = vunpack.c.l.bf16 %v159
  %v261 = vunpack.c.h.bf16 %v159
  %v262 = vunpack.c.l.bf16 %v160
  %v263 = vunpack.c.h.bf16 %v160
  %v264 = vunpack.c.l.bf16 %v161
  %v265 = vunpack.c.h.bf16 %v161
  %v266 = vunpack.c.l.bf16 %v162
  %v267 = vunpack.c.h.bf16 %v162
  %v268 = vunpack.c.l.bf16 %v163
  %v269 = vunpack.c.h.bf16 %v163
  %v270 = vunpack.c.l.bf16 %v164
  %v271 = vunpack.c.h.bf16 %v164
  %v272 = vunpack.c.l.bf16 %v165
  %v273 = vunpack.c.h.bf16 %v165
  %v274 = vunpack.c.l.bf16 %v166
  %v275 = vunpack.c.h.bf16 %v166
  %v276 = vunpack.c.l.bf16 %v167
  %v277 = vunpack.c.h.bf16 %v167
  %v278 = vunpack.c.l.bf16 %v168
  %v279 = vunpack.c.h.bf16 %v168
  %v280 = vunpack.c.l.bf16 %v169
  %v281 = vunpack.c.h.bf16 %v169
  %v282 = vunpack.c.l.bf16 %v170
  %v283 = vunpack.c.h.bf16 %v170
  %v284 = vunpack.c.l.bf16 %v171
  %v285 = vunpack.c.h.bf16 %v171
  %v286 = vunpack.c.l.bf16 %v172
  %v287 = vunpack.c.h.bf16 %v172
  %v288 = vunpack.c.l.bf16 %v173
  %v289 = vunpack.c.h.bf16 %v173
  %v290 = vunpack.c.l.bf16 %v174
  %v291 = vunpack.c.h.bf16 %v174
  %v292 = vunpack.c.l.bf16 %v175
  %v293 = vunpack.c.h.bf16 %v175
  %v294 = vunpack.c.l.bf16 %v176
  %v295 = vunpack.c.h.bf16 %v176
  %v296 = vunpack.c.l.bf16 %v177
  %v297 = vunpack.c.h.bf16 %v177
  %v298 = vunpack.c.l.bf16 %v178
  %v299 = vunpack.c.h.bf16 %v178
  %v300 = vunpack.c.l.bf16 %v179
  %v301 = vunpack.c.h.bf16 %v179
  %v302 = vunpack.c.l.bf16 %v180
  %v303 = vunpack.c.h.bf16 %v180
  %v304 = vunpack.c.l.bf16 %v181
  %v305 = vunpack.c.h.bf16 %v181
  %v306 = vunpack.c.l.bf16 %v182
  %v307 = vunpack.c.h.bf16 %v182
  %v308 = vunpack.c.l.bf16 %v183
  %v309 = vunpack.c.h.bf16 %v183
  %v310 = vunpack.c.l.bf16 %v184
  %v311 = vunpack.c.h.bf16 %v184
  %v312 = vunpack.c.l.bf16 %v185
  %v313 = vunpack.c.h.bf16 %v185
  %v314 = vmul.f32 %v186, 0.2
  %v315 = vmul.f32 %v187, 0.2
  %v316 = vmul.f32 %v188, 0.2
  %v317 = vmul.f32 %v189, 0.2
  %v318 = vmul.f32 %v190, 0.2
  %v319 = vmul.f32 %v191, 0.2
  %v320 = vmul.f32 %v192, 0.2
  %v321 = vmul.f32 %v193, 0.2
  %v322 = vmul.f32 %v194, 0.2
  %v323 = vmul.f32 %v195, 0.2
  %v324 = vmul.f32 %v196, 0.2
  %v325 = vmul.f32 %v197, 0.2
  %v326 = vmul.f32 %v198, 0.2
  %v327 = vmul.f32 %v199, 0.2
  %v328 = vmul.f32 %v200, 0.2
  %v329 = vmul.f32 %v201, 0.2
  %v330 = vmul.f32 %v202, 0.2
  %v331 = vmul.f32 %v203, 0.2
  %v332 = vmul.f32 %v204, 0.2
  %v333 = vmul.f32 %v205, 0.2
  %v334 = vmul.f32 %v206, 0.2
  %v335 = vmul.f32 %v207, 0.2
  %v336 = vmul.f32 %v208, 0.2
  %v337 = vmul.f32 %v209, 0.2
  %v338 = vmul.f32 %v210, 0.2
  %v339 = vmul.f32 %v211, 0.2
  %v340 = vmul.f32 %v212, 0.2
  %v341 = vmul.f32 %v213, 0.2
  %v342 = vmul.f32 %v214, 0.2
  %v343 = vmul.f32 %v215, 0.2
  %v344 = vmul.f32 %v216, 0.2
  %v345 = vmul.f32 %v217, 0.2
  %v346 = vmul.f32 %v218, 0.2
  %v347 = vmul.f32 %v219, 0.2
  %v348 = vmul.f32 %v220, 0.2
  %v349 = vmul.f32 %v221, 0.2
  %v350 = vmul.f32 %v222, 0.2
  %v351 = vmul.f32 %v223, 0.2
  %v352 = vmul.f32 %v224, 0.2
  %v353 = vmul.f32 %v225, 0.2
  %v354 = vmul.f32 %v226, 0.2
  %v355 = vmul.f32 %v227, 0.2
  %v356 = vmul.f32 %v228, 0.2
  %v357 = vmul.f32 %v229, 0.2
  %v358 = vmul.f32 %v230, 0.2
  %v359 = vmul.f32 %v231, 0.2
  %v360 = vmul.f32 %v232, 0.2
  %v361 = vmul.f32 %v233, 0.2
  %v362 = vmul.f32 %v234, 0.2
  %v363 = vmul.f32 %v235, 0.2
  %v364 = vmul.f32 %v236, 0.2
  %v365 = vmul.f32 %v237, 0.2
  %v366 = vmul.f32 %v238, 0.2
  %v367 = vmul.f32 %v239, 0.2
  %v368 = vmul.f32 %v240, 0.2
  %v369 = vmul.f32 %v241, 0.2
  %v370 = vmul.f32 %v242, 0.2
  %v371 = vmul.f32 %v243, 0.2
  %v372 = vmul.f32 %v244, 0.2
  %v373 = vmul.f32 %v245, 0.2
  %v374 = vmul.f32 %v246, 0.2
  %v375 = vmul.f32 %v247, 0.2
  %v376 = vmul.f32 %v248, 0.2
  %v377 = vmul.f32 %v249, 0.2
  %v378 = vmul.f32 %v250, 0.2
  %v379 = vmul.f32 %v251, 0.2
  %v380 = vmul.f32 %v252, 0.2
  %v381 = vmul.f32 %v253, 0.2
  %v382 = vmul.f32 %v254, 0.2
  %v383 = vmul.f32 %v255, 0.2
  %v384 = vmul.f32 %v256, 0.2
  %v385 = vmul.f32 %v257, 0.2
  %v386 = vmul.f32 %v258, 0.2
  %v387 = vmul.f32 %v259, 0.2
  %v388 = vmul.f32 %v260, 0.2
  %v389 = vmul.f32 %v261, 0.2
  %v390 = vmul.f32 %v262, 0.2
  %v391 = vmul.f32 %v263, 0.2
  %v392 = vmul.f32 %v264, 0.2
  %v393 = vmul.f32 %v265, 0.2
  %v394 = vmul.f32 %v266, 0.2
  %v395 = vmul.f32 %v267, 0.2
  %v396 = vmul.f32 %v268, 0.2
  %v397 = vmul.f32 %v269, 0.2
  %v398 = vmul.f32 %v270, 0.2
  %v399 = vmul.f32 %v271, 0.2
  %v400 = vmul.f32 %v272, 0.2
  %v401 = vmul.f32 %v273, 0.2
  %v402 = vmul.f32 %v274, 0.2
  %v403 = vmul.f32 %v275, 0.2
  %v404 = vmul.f32 %v276, 0.2
  %v405 = vmul.f32 %v277, 0.2
  %v406 = vmul.f32 %v278, 0.2
  %v407 = vmul.f32 %v279, 0.2
  %v408 = vmul.f32 %v280, 0.2
  %v409 = vmul.f32 %v281, 0.2
  %v410 = vmul.f32 %v282, 0.2
  %v411 = vmul.f32 %v283, 0.2
  %v412 = vmul.f32 %v284, 0.2
  %v413 = vmul.f32 %v285, 0.2
  %v414 = vmul.f32 %v286, 0.2
  %v415 = vmul.f32 %v287, 0.2
  %v416 = vmul.f32 %v288, 0.2
  %v417 = vmul.f32 %v289, 0.2
  %v418 = vmul.f32 %v290, 0.2
  %v419 = vmul.f32 %v291, 0.2
  %v420 = vmul.f32 %v292, 0.2
  %v421 = vmul.f32 %v293, 0.2
  %v422 = vmul.f32 %v294, 0.2
  %v423 = vmul.f32 %v295, 0.2
  %v424 = vmul.f32 %v296, 0.2
  %v425 = vmul.f32 %v297, 0.2
  %v426 = vmul.f32 %v298, 0.2
  %v427 = vmul.f32 %v299, 0.2
  %v428 = vmul.f32 %v300, 0.2
  %v429 = vmul.f32 %v301, 0.2
  %v430 = vmul.f32 %v302, 0.2
  %v431 = vmul.f32 %v303, 0.2
  %v432 = vmul.f32 %v304, 0.2
  %v433 = vmul.f32 %v305, 0.2
  %v434 = vmul.f32 %v306, 0.2
  %v435 = vmul.f32 %v307, 0.2
  %v436 = vmul.f32 %v308, 0.2
  %v437 = vmul.f32 %v309, 0.2
  %v438 = vmul.f32 %v310, 0.2
  %v439 = vmul.f32 %v311, 0.2
  %v440 = vmul.f32 %v312, 0.2
  %v441 = vmul.f32 %v313, 0.2
  %v474 = vunpack.c.l.b16 %v23
  %v475 = vunpack.c.h.b16 %v23
  %v476 = vunpack.c.l.b16 %v24
  %v477 = vunpack.c.h.b16 %v24
  %v478 = vunpack.c.l.b16 %v25
  %v479 = vunpack.c.h.b16 %v25
  %v480 = vunpack.c.l.b16 %v26
  %v481 = vunpack.c.h.b16 %v26
  %v482 = vunpack.c.l.b16 %v27
  %v483 = vunpack.c.h.b16 %v27
  %v484 = vunpack.c.l.b16 %v28
  %v485 = vunpack.c.h.b16 %v28
  %v486 = vunpack.c.l.b16 %v29
  %v487 = vunpack.c.h.b16 %v29
  %v488 = vunpack.c.l.b16 %v30
  %v489 = vunpack.c.h.b16 %v30
  %v490 = vunpack.c.l.b16 %v31
  %v491 = vunpack.c.h.b16 %v31
  %v492 = vunpack.c.l.b16 %v32
  %v493 = vunpack.c.h.b16 %v32
  %v494 = vunpack.c.l.b16 %v33
  %v495 = vunpack.c.h.b16 %v33
  %v496 = vunpack.c.l.b16 %v34
  %v497 = vunpack.c.h.b16 %v34
  %v498 = vunpack.c.l.b16 %v35
  %v499 = vunpack.c.h.b16 %v35
  %v500 = vunpack.c.l.b16 %v36
  %v501 = vunpack.c.h.b16 %v36
  %v502 = vunpack.c.l.b16 %v37
  %v503 = vunpack.c.h.b16 %v37
  %v504 = vunpack.c.l.b16 %v38
  %v505 = vunpack.c.h.b16 %v38
  %v506 = vunpack.c.l.b16 %v39
  %v507 = vunpack.c.h.b16 %v39
  %v508 = vunpack.c.l.b16 %v40
  %v509 = vunpack.c.h.b16 %v40
  %v510 = vunpack.c.l.b16 %v41
  %v511 = vunpack.c.h.b16 %v41
  %v512 = vunpack.c.l.b16 %v42
  %v513 = vunpack.c.h.b16 %v42
  %v514 = vunpack.c.l.b16 %v43
  %v515 = vunpack.c.h.b16 %v43
  %v516 = vunpack.c.l.b16 %v44
  %v517 = vunpack.c.h.b16 %v44
  %v518 = vunpack.c.l.b16 %v45
  %v519 = vunpack.c.h.b16 %v45
  %v520 = vunpack.c.l.b16 %v46
  %v521 = vunpack.c.h.b16 %v46
  %v522 = vunpack.c.l.b16 %v47
  %v523 = vunpack.c.h.b16 %v47
  %v524 = vunpack.c.l.b16 %v48
  %v525 = vunpack.c.h.b16 %v48
  %v526 = vunpack.c.l.b16 %v49
  %v527 = vunpack.c.h.b16 %v49
  %v528 = vunpack.c.l.b16 %v50
  %v529 = vunpack.c.h.b16 %v50
  %v530 = vunpack.c.l.b16 %v51
  %v531 = vunpack.c.h.b16 %v51
  %v532 = vunpack.c.l.b16 %v52
  %v533 = vunpack.c.h.b16 %v52
  %v534 = vunpack.c.l.b16 %v53
  %v535 = vunpack.c.h.b16 %v53
  %v536 = vunpack.c.l.b16 %v54
  %v537 = vunpack.c.h.b16 %v54
  %v538 = vpack.c.b16 %v476, %v474
  %v539 = vpack.c.b16 %v477, %v475
  %v540 = vpack.c.b16 %v480, %v478
  %v541 = vpack.c.b16 %v481, %v479
  %v542 = vpack.c.b16 %v484, %v482
  %v543 = vpack.c.b16 %v485, %v483
  %v544 = vpack.c.b16 %v488, %v486
  %v545 = vpack.c.b16 %v489, %v487
  %v546 = vpack.c.b16 %v492, %v490
  %v547 = vpack.c.b16 %v493, %v491
  %v548 = vpack.c.b16 %v496, %v494
  %v549 = vpack.c.b16 %v497, %v495
  %v550 = vpack.c.b16 %v500, %v498
  %v551 = vpack.c.b16 %v501, %v499
  %v552 = vpack.c.b16 %v504, %v502
  %v553 = vpack.c.b16 %v505, %v503
  %v554 = vpack.c.b16 %v508, %v506
  %v555 = vpack.c.b16 %v509, %v507
  %v556 = vpack.c.b16 %v512, %v510
  %v557 = vpack.c.b16 %v513, %v511
  %v558 = vpack.c.b16 %v516, %v514
  %v559 = vpack.c.b16 %v517, %v515
  %v560 = vpack.c.b16 %v520, %v518
  %v561 = vpack.c.b16 %v521, %v519
  %v562 = vpack.c.b16 %v524, %v522
  %v563 = vpack.c.b16 %v525, %v523
  %v564 = vpack.c.b16 %v528, %v526
  %v565 = vpack.c.b16 %v529, %v527
  %v566 = vpack.c.b16 %v532, %v530
  %v567 = vpack.c.b16 %v533, %v531
  %v568 = vpack.c.b16 %v536, %v534
  %v569 = vpack.c.b16 %v537, %v535
  %v666 = vunpack.c.l.b16 %v55
  %v667 = vunpack.c.h.b16 %v55
  %v668 = vunpack.c.l.b16 %v56
  %v669 = vunpack.c.h.b16 %v56
  %v670 = vunpack.c.l.b16 %v57
  %v671 = vunpack.c.h.b16 %v57
  %v672 = vunpack.c.l.b16 %v58
  %v673 = vunpack.c.h.b16 %v58
  %v674 = vunpack.c.l.b16 %v59
  %v675 = vunpack.c.h.b16 %v59
  %v676 = vunpack.c.l.b16 %v60
  %v677 = vunpack.c.h.b16 %v60
  %v678 = vunpack.c.l.b16 %v61
  %v679 = vunpack.c.h.b16 %v61
  %v680 = vunpack.c.l.b16 %v62
  %v681 = vunpack.c.h.b16 %v62
  %v682 = vunpack.c.l.b16 %v63
  %v683 = vunpack.c.h.b16 %v63
  %v684 = vunpack.c.l.b16 %v64
  %v685 = vunpack.c.h.b16 %v64
  %v686 = vunpack.c.l.b16 %v65
  %v687 = vunpack.c.h.b16 %v65
  %v688 = vunpack.c.l.b16 %v66
  %v689 = vunpack.c.h.b16 %v66
  %v690 = vunpack.c.l.b16 %v67
  %v691 = vunpack.c.h.b16 %v67
  %v692 = vunpack.c.l.b16 %v68
  %v693 = vunpack.c.h.b16 %v68
  %v694 = vunpack.c.l.b16 %v69
  %v695 = vunpack.c.h.b16 %v69
  %v696 = vunpack.c.l.b16 %v70
  %v697 = vunpack.c.h.b16 %v70
  %v698 = vunpack.c.l.b16 %v71
  %v699 = vunpack.c.h.b16 %v71
  %v700 = vunpack.c.l.b16 %v72
  %v701 = vunpack.c.h.b16 %v72
  %v702 = vunpack.c.l.b16 %v73
  %v703 = vunpack.c.h.b16 %v73
  %v704 = vunpack.c.l.b16 %v74
  %v705 = vunpack.c.h.b16 %v74
  %v706 = vunpack.c.l.b16 %v75
  %v707 = vunpack.c.h.b16 %v75
  %v708 = vunpack.c.l.b16 %v76
  %v709 = vunpack.c.h.b16 %v76
  %v710 = vunpack.c.l.b16 %v77
  %v711 = vunpack.c.h.b16 %v77
  %v712 = vunpack.c.l.b16 %v78
  %v713 = vunpack.c.h.b16 %v78
  %v714 = vunpack.c.l.b16 %v79
  %v715 = vunpack.c.h.b16 %v79
  %v716 = vunpack.c.l.b16 %v80
  %v717 = vunpack.c.h.b16 %v80
  %v718 = vunpack.c.l.b16 %v81
  %v719 = vunpack.c.h.b16 %v81
  %v720 = vunpack.c.l.b16 %v82
  %v721 = vunpack.c.h.b16 %v82
  %v722 = vunpack.c.l.b16 %v83
  %v723 = vunpack.c.h.b16 %v83
  %v724 = vunpack.c.l.b16 %v84
  %v725 = vunpack.c.h.b16 %v84
  %v726 = vunpack.c.l.b16 %v85
  %v727 = vunpack.c.h.b16 %v85
  %v728 = vunpack.c.l.b16 %v86
  %v729 = vunpack.c.h.b16 %v86
  %v730 = vunpack.c.l.b16 %v87
  %v731 = vunpack.c.h.b16 %v87
  %v732 = vunpack.c.l.b16 %v88
  %v733 = vunpack.c.h.b16 %v88
  %v734 = vunpack.c.l.b16 %v89
  %v735 = vunpack.c.h.b16 %v89
  %v736 = vunpack.c.l.b16 %v90
  %v737 = vunpack.c.h.b16 %v90
  %v738 = vunpack.c.l.b16 %v91
  %v739 = vunpack.c.h.b16 %v91
  %v740 = vunpack.c.l.b16 %v92
  %v741 = vunpack.c.h.b16 %v92
  %v742 = vunpack.c.l.b16 %v93
  %v743 = vunpack.c.h.b16 %v93
  %v744 = vunpack.c.l.b16 %v94
  %v745 = vunpack.c.h.b16 %v94
  %v746 = vunpack.c.l.b16 %v95
  %v747 = vunpack.c.h.b16 %v95
  %v748 = vunpack.c.l.b16 %v96
  %v749 = vunpack.c.h.b16 %v96
  %v750 = vunpack.c.l.b16 %v97
  %v751 = vunpack.c.h.b16 %v97
  %v752 = vunpack.c.l.b16 %v98
  %v753 = vunpack.c.h.b16 %v98
  %v754 = vunpack.c.l.b16 %v99
  %v755 = vunpack.c.h.b16 %v99
  %v756 = vunpack.c.l.b16 %v100
  %v757 = vunpack.c.h.b16 %v100
  %v758 = vunpack.c.l.b16 %v101
  %v759 = vunpack.c.h.b16 %v101
  %v760 = vunpack.c.l.b16 %v102
  %v761 = vunpack.c.h.b16 %v102
  %v762 = vunpack.c.l.b16 %v103
  %v763 = vunpack.c.h.b16 %v103
  %v764 = vunpack.c.l.b16 %v104
  %v765 = vunpack.c.h.b16 %v104
  %v766 = vunpack.c.l.b16 %v105
  %v767 = vunpack.c.h.b16 %v105
  %v768 = vunpack.c.l.b16 %v106
  %v769 = vunpack.c.h.b16 %v106
  %v770 = vunpack.c.l.b16 %v107
  %v771 = vunpack.c.h.b16 %v107
  %v772 = vunpack.c.l.b16 %v108
  %v773 = vunpack.c.h.b16 %v108
  %v774 = vunpack.c.l.b16 %v109
  %v775 = vunpack.c.h.b16 %v109
  %v776 = vunpack.c.l.b16 %v110
  %v777 = vunpack.c.h.b16 %v110
  %v778 = vunpack.c.l.b16 %v111
  %v779 = vunpack.c.h.b16 %v111
  %v780 = vunpack.c.l.b16 %v112
  %v781 = vunpack.c.h.b16 %v112
  %v782 = vunpack.c.l.b16 %v113
  %v783 = vunpack.c.h.b16 %v113
  %v784 = vunpack.c.l.b16 %v114
  %v785 = vunpack.c.h.b16 %v114
  %v786 = vunpack.c.l.b16 %v115
  %v787 = vunpack.c.h.b16 %v115
  %v788 = vunpack.c.l.b16 %v116
  %v789 = vunpack.c.h.b16 %v116
  %v790 = vunpack.c.l.b16 %v117
  %v791 = vunpack.c.h.b16 %v117
  %v792 = vunpack.c.l.b16 %v118
  %v793 = vunpack.c.h.b16 %v118
  %v794 = vpack.c.b16 %v670, %v666
  %v795 = vpack.c.b16 %v671, %v667
  %v796 = vpack.c.b16 %v672, %v668
  %v797 = vpack.c.b16 %v673, %v669
  %v798 = vpack.c.b16 %v678, %v674
  %v799 = vpack.c.b16 %v679, %v675
  %v800 = vpack.c.b16 %v680, %v676
  %v801 = vpack.c.b16 %v681, %v677
  %v802 = vpack.c.b16 %v686, %v682
  %v803 = vpack.c.b16 %v687, %v683
  %v804 = vpack.c.b16 %v688, %v684
  %v805 = vpack.c.b16 %v689, %v685
  %v806 = vpack.c.b16 %v694, %v690
  %v807 = vpack.c.b16 %v695, %v691
  %v808 = vpack.c.b16 %v696, %v692
  %v809 = vpack.c.b16 %v697, %v693
  %v810 = vpack.c.b16 %v702, %v698
  %v811 = vpack.c.b16 %v703, %v699
  %v812 = vpack.c.b16 %v704, %v700
  %v813 = vpack.c.b16 %v705, %v701
  %v814 = vpack.c.b16 %v710, %v706
  %v815 = vpack.c.b16 %v711, %v707
  %v816 = vpack.c.b16 %v712, %v708
  %v817 = vpack.c.b16 %v713, %v709
  %v818 = vpack.c.b16 %v718, %v714
  %v819 = vpack.c.b16 %v719, %v715
  %v820 = vpack.c.b16 %v720, %v716
  %v821 = vpack.c.b16 %v721, %v717
  %v822 = vpack.c.b16 %v726, %v722
  %v823 = vpack.c.b16 %v727, %v723
  %v824 = vpack.c.b16 %v728, %v724
  %v825 = vpack.c.b16 %v729, %v725
  %v826 = vpack.c.b16 %v734, %v730
  %v827 = vpack.c.b16 %v735, %v731
  %v828 = vpack.c.b16 %v736, %v732
  %v829 = vpack.c.b16 %v737, %v733
  %v830 = vpack.c.b16 %v742, %v738
  %v831 = vpack.c.b16 %v743, %v739
  %v832 = vpack.c.b16 %v744, %v740
  %v833 = vpack.c.b16 %v745, %v741
  %v834 = vpack.c.b16 %v750, %v746
  %v835 = vpack.c.b16 %v751, %v747
  %v836 = vpack.c.b16 %v752, %v748
  %v837 = vpack.c.b16 %v753, %v749
  %v838 = vpack.c.b16 %v758, %v754
  %v839 = vpack.c.b16 %v759, %v755
  %v840 = vpack.c.b16 %v760, %v756
  %v841 = vpack.c.b16 %v761, %v757
  %v842 = vpack.c.b16 %v766, %v762
  %v843 = vpack.c.b16 %v767, %v763
  %v844 = vpack.c.b16 %v768, %v764
  %v845 = vpack.c.b16 %v769, %v765
  %v846 = vpack.c.b16 %v774, %v770
  %v847 = vpack.c.b16 %v775, %v771
  %v848 = vpack.c.b16 %v776, %v772
  %v849 = vpack.c.b16 %v777, %v773
  %v850 = vpack.c.b16 %v782, %v778
  %v851 = vpack.c.b16 %v783, %v779
  %v852 = vpack.c.b16 %v784, %v780
  %v853 = vpack.c.b16 %v785, %v781
  %v854 = vpack.c.b16 %v790, %v786
  %v855 = vpack.c.b16 %v791, %v787
  %v856 = vpack.c.b16 %v792, %v788
  %v857 = vpack.c.b16 %v793, %v789
  %922 = vmatprep.subr.bf16.mxu0 %v795
  %923 = vmatpush1.bf16.msra.mxu0 %v794
  %924 = vmatprep.subr.bf16.mxu0 %v799
  %925 = vmatpush1.bf16.msra.mxu0 %v798
  %926 = vmatprep.subr.bf16.mxu0 %v803
  %927 = vmatpush1.bf16.msra.mxu0 %v802
  %928 = vmatprep.subr.bf16.mxu0 %v807
  %929 = vmatpush1.bf16.msra.mxu0 %v806
  %930 = vmatprep.subr.bf16.mxu0 %v811
  %931 = vmatpush1.bf16.msra.mxu0 %v810
  %932 = vmatprep.subr.bf16.mxu0 %v815
  %933 = vmatpush1.bf16.msra.mxu0 %v814
  %934 = vmatprep.subr.bf16.mxu0 %v819
  %935 = vmatpush1.bf16.msra.mxu0 %v818
  %936 = vmatprep.subr.bf16.mxu0 %v823
  %937 = vmatpush1.bf16.msra.mxu0 %v822
  %938 = vmatprep.subr.bf16.mxu0 %v827
  %939 = vmatpush1.bf16.msra.mxu0 %v826
  %940 = vmatprep.subr.bf16.mxu0 %v831
  %941 = vmatpush1.bf16.msra.mxu0 %v830
  %942 = vmatprep.subr.bf16.mxu0 %v835
  %943 = vmatpush1.bf16.msra.mxu0 %v834
  %944 = vmatprep.subr.bf16.mxu0 %v839
  %945 = vmatpush1.bf16.msra.mxu0 %v838
  %946 = vmatprep.subr.bf16.mxu0 %v843
  %947 = vmatpush1.bf16.msra.mxu0 %v842
  %948 = vmatprep.subr.bf16.mxu0 %v847
  %949 = vmatpush1.bf16.msra.mxu0 %v846
  %950 = vmatprep.subr.bf16.mxu0 %v851
  %951 = vmatpush1.bf16.msra.mxu0 %v850
  %952 = vmatprep.subr.bf16.mxu0 %v855
  %953 = vmatpush1.bf16.msra.mxu0 %v854
  %954 = vmatprep.mubr.bf16.mxu0 %v539
  %955 = vmatmul.mubr.bf16.gmra.mrb[0].mxu0 %v538
  %v956 = vpop.f32.mrb[0].mxu0
  %v957 = vadd.f32 %v314, %v956
  %v958 = vpop.f32.mrb[0].mxu0
  %v959 = vadd.f32 %v315, %v958
  %v960 = vpop.f32.mrb[0].mxu0
  %v961 = vadd.f32 %v318, %v960
  %v962 = vpop.f32.mrb[0].mxu0
  %v963 = vadd.f32 %v319, %v962
  %964 = vmatprep.mubr.bf16.mxu0 %v541
  %965 = vmatmul.mubr.bf16.gmra.mrb[0].mxu0 %v540
  %v966 = vpop.f32.mrb[0].mxu0
  %v967 = vadd.f32 %v322, %v966
  %v968 = vpop.f32.mrb[0].mxu0
  %v969 = vadd.f32 %v323, %v968
  %v970 = vpop.f32.mrb[0].mxu0
  %v971 = vadd.f32 %v326, %v970
  %v972 = vpop.f32.mrb[0].mxu0
  %v973 = vadd.f32 %v327, %v972
  %974 = vmatprep.mubr.bf16.mxu0 %v543
  %975 = vmatmul.mubr.bf16.gmra.mrb[0].mxu0 %v542
  %v976 = vpop.f32.mrb[0].mxu0
  %v977 = vadd.f32 %v330, %v976
  %v978 = vpop.f32.mrb[0].mxu0
  %v979 = vadd.f32 %v331, %v978
  %v980 = vpop.f32.mrb[0].mxu0
  %v981 = vadd.f32 %v334, %v980
  %v982 = vpop.f32.mrb[0].mxu0
  %v983 = vadd.f32 %v335, %v982
  %984 = vmatprep.mubr.bf16.mxu0 %v545
  %985 = vmatmul.mubr.bf16.gmra.mrb[0].mxu0 %v544
  %v986 = vpop.f32.mrb[0].mxu0
  %v987 = vadd.f32 %v338, %v986
  %v988 = vpop.f32.mrb[0].mxu0
  %v989 = vadd.f32 %v339, %v988
  %v990 = vpop.f32.mrb[0].mxu0
  %v991 = vadd.f32 %v342, %v990
  %v992 = vpop.f32.mrb[0].mxu0
  %v993 = vadd.f32 %v343, %v992
  %994 = vmatprep.mubr.bf16.mxu0 %v547
  %995 = vmatmul.mubr.bf16.gmra.mrb[0].mxu0 %v546
  %v996 = vpop.f32.mrb[0].mxu0
  %v997 = vadd.f32 %v346, %v996
  %v998 = vpop.f32.mrb[0].mxu0
  %v999 = vadd.f32 %v347, %v998
  %v1000 = vpop.f32.mrb[0].mxu0
  %v1001 = vadd.f32 %v350, %v1000
  %v1002 = vpop.f32.mrb[0].mxu0
  %v1003 = vadd.f32 %v351, %v1002
  %1004 = vmatprep.mubr.bf16.mxu0 %v549
  %1005 = vmatmul.mubr.bf16.gmra.mrb[0].mxu0 %v548
  %v1006 = vpop.f32.mrb[0].mxu0
  %v1007 = vadd.f32 %v354, %v1006
  %v1008 = vpop.f32.mrb[0].mxu0
  %v1009 = vadd.f32 %v355, %v1008
  %v1010 = vpop.f32.mrb[0].mxu0
  %v1011 = vadd.f32 %v358, %v1010
  %v1012 = vpop.f32.mrb[0].mxu0
  %v1013 = vadd.f32 %v359, %v1012
  %1014 = vmatprep.mubr.bf16.mxu0 %v551
  %1015 = vmatmul.mubr.bf16.gmra.mrb[0].mxu0 %v550
  %v1016 = vpop.f32.mrb[0].mxu0
  %v1017 = vadd.f32 %v362, %v1016
  %v1018 = vpop.f32.mrb[0].mxu0
  %v1019 = vadd.f32 %v363, %v1018
  %v1020 = vpop.f32.mrb[0].mxu0
  %v1021 = vadd.f32 %v366, %v1020
  %v1022 = vpop.f32.mrb[0].mxu0
  %v1023 = vadd.f32 %v367, %v1022
  %1024 = vmatprep.mubr.bf16.mxu0 %v553
  %1025 = vmatmul.mubr.bf16.gmra.mrb[0].mxu0 %v552
  %v1026 = vpop.f32.mrb[0].mxu0
  %v1027 = vadd.f32 %v370, %v1026
  %v1028 = vpop.f32.mrb[0].mxu0
  %v1029 = vadd.f32 %v371, %v1028
  %v1030 = vpop.f32.mrb[0].mxu0
  %v1031 = vadd.f32 %v374, %v1030
  %v1032 = vpop.f32.mrb[0].mxu0
  %v1033 = vadd.f32 %v375, %v1032
  %1034 = vmatprep.mubr.bf16.mxu0 %v555
  %1035 = vmatmul.mubr.bf16.gmra.mrb[0].mxu0 %v554
  %v1036 = vpop.f32.mrb[0].mxu0
  %v1037 = vadd.f32 %v378, %v1036
  %v1038 = vpop.f32.mrb[0].mxu0
  %v1039 = vadd.f32 %v379, %v1038
  %v1040 = vpop.f32.mrb[0].mxu0
  %v1041 = vadd.f32 %v382, %v1040
  %v1042 = vpop.f32.mrb[0].mxu0
  %v1043 = vadd.f32 %v383, %v1042
  %1044 = vmatprep.mubr.bf16.mxu0 %v557
  %1045 = vmatmul.mubr.bf16.gmra.mrb[0].mxu0 %v556
  %v1046 = vpop.f32.mrb[0].mxu0
  %v1047 = vadd.f32 %v386, %v1046
  %v1048 = vpop.f32.mrb[0].mxu0
  %v1049 = vadd.f32 %v387, %v1048
  %v1050 = vpop.f32.mrb[0].mxu0
  %v1051 = vadd.f32 %v390, %v1050
  %v1052 = vpop.f32.mrb[0].mxu0
  %v1053 = vadd.f32 %v391, %v1052
  %1054 = vmatprep.mubr.bf16.mxu0 %v559
  %1055 = vmatmul.mubr.bf16.gmra.mrb[0].mxu0 %v558
  %v1056 = vpop.f32.mrb[0].mxu0
  %v1057 = vadd.f32 %v394, %v1056
  %v1058 = vpop.f32.mrb[0].mxu0
  %v1059 = vadd.f32 %v395, %v1058
  %v1060 = vpop.f32.mrb[0].mxu0
  %v1061 = vadd.f32 %v398, %v1060
  %v1062 = vpop.f32.mrb[0].mxu0
  %v1063 = vadd.f32 %v399, %v1062
  %1064 = vmatprep.mubr.bf16.mxu0 %v561
  %1065 = vmatmul.mubr.bf16.gmra.mrb[0].mxu0 %v560
  %v1066 = vpop.f32.mrb[0].mxu0
  %v1067 = vadd.f32 %v402, %v1066
  %v1068 = vpop.f32.mrb[0].mxu0
  %v1069 = vadd.f32 %v403, %v1068
  %v1070 = vpop.f32.mrb[0].mxu0
  %v1071 = vadd.f32 %v406, %v1070
  %v1072 = vpop.f32.mrb[0].mxu0
  %v1073 = vadd.f32 %v407, %v1072
  %1074 = vmatprep.mubr.bf16.mxu0 %v563
  %1075 = vmatmul.mubr.bf16.gmra.mrb[0].mxu0 %v562
  %v1076 = vpop.f32.mrb[0].mxu0
  %v1077 = vadd.f32 %v410, %v1076
  %v1078 = vpop.f32.mrb[0].mxu0
  %v1079 = vadd.f32 %v411, %v1078
  %v1080 = vpop.f32.mrb[0].mxu0
  %v1081 = vadd.f32 %v414, %v1080
  %v1082 = vpop.f32.mrb[0].mxu0
  %v1083 = vadd.f32 %v415, %v1082
  %1084 = vmatprep.mubr.bf16.mxu0 %v565
  %1085 = vmatmul.mubr.bf16.gmra.mrb[0].mxu0 %v564
  %v1086 = vpop.f32.mrb[0].mxu0
  %v1087 = vadd.f32 %v418, %v1086
  %v1088 = vpop.f32.mrb[0].mxu0
  %v1089 = vadd.f32 %v419, %v1088
  %v1090 = vpop.f32.mrb[0].mxu0
  %v1091 = vadd.f32 %v422, %v1090
  %v1092 = vpop.f32.mrb[0].mxu0
  %v1093 = vadd.f32 %v423, %v1092
  %1094 = vmatprep.mubr.bf16.mxu0 %v567
  %1095 = vmatmul.mubr.bf16.gmra.mrb[0].mxu0 %v566
  %v1096 = vpop.f32.mrb[0].mxu0
  %v1097 = vadd.f32 %v426, %v1096
  %v1098 = vpop.f32.mrb[0].mxu0
  %v1099 = vadd.f32 %v427, %v1098
  %v1100 = vpop.f32.mrb[0].mxu0
  %v1101 = vadd.f32 %v430, %v1100
  %v1102 = vpop.f32.mrb[0].mxu0
  %v1103 = vadd.f32 %v431, %v1102
  %1104 = vmatprep.mubr.bf16.mxu0 %v569
  %1105 = vmatmul.mubr.bf16.gmra.mrb[0].mxu0 %v568
  %v1106 = vpop.f32.mrb[0].mxu0
  %v1107 = vadd.f32 %v434, %v1106
  %v1108 = vpop.f32.mrb[0].mxu0
  %v1109 = vadd.f32 %v435, %v1108
  %v1110 = vpop.f32.mrb[0].mxu0
  %v1111 = vadd.f32 %v438, %v1110
  %v1112 = vpop.f32.mrb[0].mxu0
  %v1113 = vadd.f32 %v439, %v1112
  %1114 = vdwg.mxu0
  %1115 = vmatprep.subr.bf16.mxu0 %v797
  %1116 = vmatpush1.bf16.msra.mxu0 %v796
  %1117 = vmatprep.subr.bf16.mxu0 %v801
  %1118 = vmatpush1.bf16.msra.mxu0 %v800
  %1119 = vmatprep.subr.bf16.mxu0 %v805
  %1120 = vmatpush1.bf16.msra.mxu0 %v804
  %1121 = vmatprep.subr.bf16.mxu0 %v809
  %1122 = vmatpush1.bf16.msra.mxu0 %v808
  %1123 = vmatprep.subr.bf16.mxu0 %v813
  %1124 = vmatpush1.bf16.msra.mxu0 %v812
  %1125 = vmatprep.subr.bf16.mxu0 %v817
  %1126 = vmatpush1.bf16.msra.mxu0 %v816
  %1127 = vmatprep.subr.bf16.mxu0 %v821
  %1128 = vmatpush1.bf16.msra.mxu0 %v820
  %1129 = vmatprep.subr.bf16.mxu0 %v825
  %1130 = vmatpush1.bf16.msra.mxu0 %v824
  %1131 = vmatprep.subr.bf16.mxu0 %v829
  %1132 = vmatpush1.bf16.msra.mxu0 %v828
  %1133 = vmatprep.subr.bf16.mxu0 %v833
  %1134 = vmatpush1.bf16.msra.mxu0 %v832
  %1135 = vmatprep.subr.bf16.mxu0 %v837
  %1136 = vmatpush1.bf16.msra.mxu0 %v836
  %1137 = vmatprep.subr.bf16.mxu0 %v841
  %1138 = vmatpush1.bf16.msra.mxu0 %v840
  %1139 = vmatprep.subr.bf16.mxu0 %v845
  %1140 = vmatpush1.bf16.msra.mxu0 %v844
  %1141 = vmatprep.subr.bf16.mxu0 %v849
  %1142 = vmatpush1.bf16.msra.mxu0 %v848
  %1143 = vmatprep.subr.bf16.mxu0 %v853
  %1144 = vmatpush1.bf16.msra.mxu0 %v852
  %1145 = vmatprep.subr.bf16.mxu0 %v857
  %1146 = vmatpush1.bf16.msra.mxu0 %v856
  %1147 = vmatprep.mubr.bf16.mxu0 %v539
  %1148 = vmatmul.mubr.bf16.gmra.mrb[0].mxu0 %v538
  %v1149 = vpop.f32.mrb[0].mxu0
  %v1150 = vadd.f32 %v316, %v1149
  %v1151 = vpop.f32.mrb[0].mxu0
  %v1152 = vadd.f32 %v317, %v1151
  %v1153 = vpop.f32.mrb[0].mxu0
  %v1154 = vadd.f32 %v320, %v1153
  %v1155 = vpop.f32.mrb[0].mxu0
  %v1156 = vadd.f32 %v321, %v1155
  %1157 = vmatprep.mubr.bf16.mxu0 %v541
  %1158 = vmatmul.mubr.bf16.gmra.mrb[0].mxu0 %v540
  %v1159 = vpop.f32.mrb[0].mxu0
  %v1160 = vadd.f32 %v324, %v1159
  %v1161 = vpop.f32.mrb[0].mxu0
  %v1162 = vadd.f32 %v325, %v1161
  %v1163 = vpop.f32.mrb[0].mxu0
  %v1164 = vadd.f32 %v328, %v1163
  %v1165 = vpop.f32.mrb[0].mxu0
  %v1166 = vadd.f32 %v329, %v1165
  %1167 = vmatprep.mubr.bf16.mxu0 %v543
  %1168 = vmatmul.mubr.bf16.gmra.mrb[0].mxu0 %v542
  %v1169 = vpop.f32.mrb[0].mxu0
  %v1170 = vadd.f32 %v332, %v1169
  %v1171 = vpop.f32.mrb[0].mxu0
  %v1172 = vadd.f32 %v333, %v1171
  %v1173 = vpop.f32.mrb[0].mxu0
  %v1174 = vadd.f32 %v336, %v1173
  %v1175 = vpop.f32.mrb[0].mxu0
  %v1176 = vadd.f32 %v337, %v1175
  %1177 = vmatprep.mubr.bf16.mxu0 %v545
  %1178 = vmatmul.mubr.bf16.gmra.mrb[0].mxu0 %v544
  %v1179 = vpop.f32.mrb[0].mxu0
  %v1180 = vadd.f32 %v340, %v1179
  %v1181 = vpop.f32.mrb[0].mxu0
  %v1182 = vadd.f32 %v341, %v1181
  %v1183 = vpop.f32.mrb[0].mxu0
  %v1184 = vadd.f32 %v344, %v1183
  %v1185 = vpop.f32.mrb[0].mxu0
  %v1186 = vadd.f32 %v345, %v1185
  %1187 = vmatprep.mubr.bf16.mxu0 %v547
  %1188 = vmatmul.mubr.bf16.gmra.mrb[0].mxu0 %v546
  %v1189 = vpop.f32.mrb[0].mxu0
  %v1190 = vadd.f32 %v348, %v1189
  %v1191 = vpop.f32.mrb[0].mxu0
  %v1192 = vadd.f32 %v349, %v1191
  %v1193 = vpop.f32.mrb[0].mxu0
  %v1194 = vadd.f32 %v352, %v1193
  %v1195 = vpop.f32.mrb[0].mxu0
  %v1196 = vadd.f32 %v353, %v1195
  %1197 = vmatprep.mubr.bf16.mxu0 %v549
  %1198 = vmatmul.mubr.bf16.gmra.mrb[0].mxu0 %v548
  %v1199 = vpop.f32.mrb[0].mxu0
  %v1200 = vadd.f32 %v356, %v1199
  %v1201 = vpop.f32.mrb[0].mxu0
  %v1202 = vadd.f32 %v357, %v1201
  %v1203 = vpop.f32.mrb[0].mxu0
  %v1204 = vadd.f32 %v360, %v1203
  %v1205 = vpop.f32.mrb[0].mxu0
  %v1206 = vadd.f32 %v361, %v1205
  %1207 = vmatprep.mubr.bf16.mxu0 %v551
  %1208 = vmatmul.mubr.bf16.gmra.mrb[0].mxu0 %v550
  %v1209 = vpop.f32.mrb[0].mxu0
  %v1210 = vadd.f32 %v364, %v1209
  %v1211 = vpop.f32.mrb[0].mxu0
  %v1212 = vadd.f32 %v365, %v1211
  %v1213 = vpop.f32.mrb[0].mxu0
  %v1214 = vadd.f32 %v368, %v1213
  %v1215 = vpop.f32.mrb[0].mxu0
  %v1216 = vadd.f32 %v369, %v1215
  %1217 = vmatprep.mubr.bf16.mxu0 %v553
  %1218 = vmatmul.mubr.bf16.gmra.mrb[0].mxu0 %v552
  %v1219 = vpop.f32.mrb[0].mxu0
  %v1220 = vadd.f32 %v372, %v1219
  %v1221 = vpop.f32.mrb[0].mxu0
  %v1222 = vadd.f32 %v373, %v1221
  %v1223 = vpop.f32.mrb[0].mxu0
  %v1224 = vadd.f32 %v376, %v1223
  %v1225 = vpop.f32.mrb[0].mxu0
  %v1226 = vadd.f32 %v377, %v1225
  %1227 = vmatprep.mubr.bf16.mxu0 %v555
  %1228 = vmatmul.mubr.bf16.gmra.mrb[0].mxu0 %v554
  %v1229 = vpop.f32.mrb[0].mxu0
  %v1230 = vadd.f32 %v380, %v1229
  %v1231 = vpop.f32.mrb[0].mxu0
  %v1232 = vadd.f32 %v381, %v1231
  %v1233 = vpop.f32.mrb[0].mxu0
  %v1234 = vadd.f32 %v384, %v1233
  %v1235 = vpop.f32.mrb[0].mxu0
  %v1236 = vadd.f32 %v385, %v1235
  %1237 = vmatprep.mubr.bf16.mxu0 %v557
  %1238 = vmatmul.mubr.bf16.gmra.mrb[0].mxu0 %v556
  %v1239 = vpop.f32.mrb[0].mxu0
  %v1240 = vadd.f32 %v388, %v1239
  %v1241 = vpop.f32.mrb[0].mxu0
  %v1242 = vadd.f32 %v389, %v1241
  %v1243 = vpop.f32.mrb[0].mxu0
  %v1244 = vadd.f32 %v392, %v1243
  %v1245 = vpop.f32.mrb[0].mxu0
  %v1246 = vadd.f32 %v393, %v1245
  %1247 = vmatprep.mubr.bf16.mxu0 %v559
  %1248 = vmatmul.mubr.bf16.gmra.mrb[0].mxu0 %v558
  %v1249 = vpop.f32.mrb[0].mxu0
  %v1250 = vadd.f32 %v396, %v1249
  %v1251 = vpop.f32.mrb[0].mxu0
  %v1252 = vadd.f32 %v397, %v1251
  %v1253 = vpop.f32.mrb[0].mxu0
  %v1254 = vadd.f32 %v400, %v1253
  %v1255 = vpop.f32.mrb[0].mxu0
  %v1256 = vadd.f32 %v401, %v1255
  %1257 = vmatprep.mubr.bf16.mxu0 %v561
  %1258 = vmatmul.mubr.bf16.gmra.mrb[0].mxu0 %v560
  %v1259 = vpop.f32.mrb[0].mxu0
  %v1260 = vadd.f32 %v404, %v1259
  %v1261 = vpop.f32.mrb[0].mxu0
  %v1262 = vadd.f32 %v405, %v1261
  %v1263 = vpop.f32.mrb[0].mxu0
  %v1264 = vadd.f32 %v408, %v1263
  %v1265 = vpop.f32.mrb[0].mxu0
  %v1266 = vadd.f32 %v409, %v1265
  %1267 = vmatprep.mubr.bf16.mxu0 %v563
  %1268 = vmatmul.mubr.bf16.gmra.mrb[0].mxu0 %v562
  %v1269 = vpop.f32.mrb[0].mxu0
  %v1270 = vadd.f32 %v412, %v1269
  %v1271 = vpop.f32.mrb[0].mxu0
  %v1272 = vadd.f32 %v413, %v1271
  %v1273 = vpop.f32.mrb[0].mxu0
  %v1274 = vadd.f32 %v416, %v1273
  %v1275 = vpop.f32.mrb[0].mxu0
  %v1276 = vadd.f32 %v417, %v1275
  %1277 = vmatprep.mubr.bf16.mxu0 %v565
  %1278 = vmatmul.mubr.bf16.gmra.mrb[0].mxu0 %v564
  %v1279 = vpop.f32.mrb[0].mxu0
  %v1280 = vadd.f32 %v420, %v1279
  %v1281 = vpop.f32.mrb[0].mxu0
  %v1282 = vadd.f32 %v421, %v1281
  %v1283 = vpop.f32.mrb[0].mxu0
  %v1284 = vadd.f32 %v424, %v1283
  %v1285 = vpop.f32.mrb[0].mxu0
  %v1286 = vadd.f32 %v425, %v1285
  %1287 = vmatprep.mubr.bf16.mxu0 %v567
  %1288 = vmatmul.mubr.bf16.gmra.mrb[0].mxu0 %v566
  %v1289 = vpop.f32.mrb[0].mxu0
  %v1290 = vadd.f32 %v428, %v1289
  %v1291 = vpop.f32.mrb[0].mxu0
  %v1292 = vadd.f32 %v429, %v1291
  %v1293 = vpop.f32.mrb[0].mxu0
  %v1294 = vadd.f32 %v432, %v1293
  %v1295 = vpop.f32.mrb[0].mxu0
  %v1296 = vadd.f32 %v433, %v1295
  %1297 = vmatprep.mubr.bf16.mxu0 %v569
  %1298 = vmatmul.mubr.bf16.gmra.mrb[0].mxu0 %v568
  %v1299 = vpop.f32.mrb[0].mxu0
  %v1300 = vadd.f32 %v436, %v1299
  %v1301 = vpop.f32.mrb[0].mxu0
  %v1302 = vadd.f32 %v437, %v1301
  %v1303 = vpop.f32.mrb[0].mxu0
  %v1304 = vadd.f32 %v440, %v1303
  %v1305 = vpop.f32.mrb[0].mxu0
  %v1306 = vadd.f32 %v441, %v1305
  %1307 = vdwg.mxu0
  %v1308 = vpack.c.bf16 %v961, %v957
  %v1309 = vpack.c.bf16 %v963, %v959
  %v1310 = vpack.c.bf16 %v1154, %v1150
  %v1311 = vpack.c.bf16 %v1156, %v1152
  %v1312 = vpack.c.bf16 %v971, %v967
  %v1313 = vpack.c.bf16 %v973, %v969
  %v1314 = vpack.c.bf16 %v1164, %v1160
  %v1315 = vpack.c.bf16 %v1166, %v1162
  %v1316 = vpack.c.bf16 %v981, %v977
  %v1317 = vpack.c.bf16 %v983, %v979
  %v1318 = vpack.c.bf16 %v1174, %v1170
  %v1319 = vpack.c.bf16 %v1176, %v1172
  %v1320 = vpack.c.bf16 %v991, %v987
  %v1321 = vpack.c.bf16 %v993, %v989
  %v1322 = vpack.c.bf16 %v1184, %v1180
  %v1323 = vpack.c.bf16 %v1186, %v1182
  %v1324 = vpack.c.bf16 %v1001, %v997
  %v1325 = vpack.c.bf16 %v1003, %v999
  %v1326 = vpack.c.bf16 %v1194, %v1190
  %v1327 = vpack.c.bf16 %v1196, %v1192
  %v1328 = vpack.c.bf16 %v1011, %v1007
  %v1329 = vpack.c.bf16 %v1013, %v1009
  %v1330 = vpack.c.bf16 %v1204, %v1200
  %v1331 = vpack.c.bf16 %v1206, %v1202
  %v1332 = vpack.c.bf16 %v1021, %v1017
  %v1333 = vpack.c.bf16 %v1023, %v1019
  %v1334 = vpack.c.bf16 %v1214, %v1210
  %v1335 = vpack.c.bf16 %v1216, %v1212
  %v1336 = vpack.c.bf16 %v1031, %v1027
  %v1337 = vpack.c.bf16 %v1033, %v1029
  %v1338 = vpack.c.bf16 %v1224, %v1220
  %v1339 = vpack.c.bf16 %v1226, %v1222
  %v1340 = vpack.c.bf16 %v1041, %v1037
  %v1341 = vpack.c.bf16 %v1043, %v1039
  %v1342 = vpack.c.bf16 %v1234, %v1230
  %v1343 = vpack.c.bf16 %v1236, %v1232
  %v1344 = vpack.c.bf16 %v1051, %v1047
  %v1345 = vpack.c.bf16 %v1053, %v1049
  %v1346 = vpack.c.bf16 %v1244, %v1240
  %v1347 = vpack.c.bf16 %v1246, %v1242
  %v1348 = vpack.c.bf16 %v1061, %v1057
  %v1349 = vpack.c.bf16 %v1063, %v1059
  %v1350 = vpack.c.bf16 %v1254, %v1250
  %v1351 = vpack.c.bf16 %v1256, %v1252
  %v1352 = vpack.c.bf16 %v1071, %v1067
  %v1353 = vpack.c.bf16 %v1073, %v1069
  %v1354 = vpack.c.bf16 %v1264, %v1260
  %v1355 = vpack.c.bf16 %v1266, %v1262
  %v1356 = vpack.c.bf16 %v1081, %v1077
  %v1357 = vpack.c.bf16 %v1083, %v1079
  %v1358 = vpack.c.bf16 %v1274, %v1270
  %v1359 = vpack.c.bf16 %v1276, %v1272
  %v1360 = vpack.c.bf16 %v1091, %v1087
  %v1361 = vpack.c.bf16 %v1093, %v1089
  %v1362 = vpack.c.bf16 %v1284, %v1280
  %v1363 = vpack.c.bf16 %v1286, %v1282
  %v1364 = vpack.c.bf16 %v1101, %v1097
  %v1365 = vpack.c.bf16 %v1103, %v1099
  %v1366 = vpack.c.bf16 %v1294, %v1290
  %v1367 = vpack.c.bf16 %v1296, %v1292
  %v1368 = vpack.c.bf16 %v1111, %v1107
  %v1369 = vpack.c.bf16 %v1113, %v1109
  %v1370 = vpack.c.bf16 %v1304, %v1300
  %v1371 = vpack.c.bf16 %v1306, %v1302
  %v1372 = vld [vmem:[%s2] sm:$0xff]
  %v1373 = vld [vmem:[%s2 + $0x8] sm:$0xff]
  %v1374 = vld [vmem:[%s2 + $0x10] sm:$0xff]
  %v1375 = vld [vmem:[%s2 + $0x18] sm:$0xff]
  %v1376 = vld [vmem:[%s2 + $0x20] sm:$0xff]
  %v1377 = vld [vmem:[%s2 + $0x28] sm:$0xff]
  %v1378 = vld [vmem:[%s2 + $0x30] sm:$0xff]
  %v1379 = vld [vmem:[%s2 + $0x38] sm:$0xff]
  %v1380 = vld [vmem:[%s2 + $0x40] sm:$0xff]
  %v1381 = vld [vmem:[%s2 + $0x48] sm:$0xff]
  %v1382 = vld [vmem:[%s2 + $0x50] sm:$0xff]
  %v1383 = vld [vmem:[%s2 + $0x58] sm:$0xff]
  %v1384 = vld [vmem:[%s2 + $0x60] sm:$0xff]
  %v1385 = vld [vmem:[%s2 + $0x68] sm:$0xff]
  %v1386 = vld [vmem:[%s2 + $0x70] sm:$0xff]
  %v1387 = vld [vmem:[%s2 + $0x78] sm:$0xff]
  %v1388 = vld [vmem:[%s2 + $0x80] sm:$0xff]
  %v1389 = vld [vmem:[%s2 + $0x88] sm:$0xff]
  %v1390 = vld [vmem:[%s2 + $0x90] sm:$0xff]
  %v1391 = vld [vmem:[%s2 + $0x98] sm:$0xff]
  %v1392 = vld [vmem:[%s2 + $0xa0] sm:$0xff]
  %v1393 = vld [vmem:[%s2 + $0xa8] sm:$0xff]
  %v1394 = vld [vmem:[%s2 + $0xb0] sm:$0xff]
  %v1395 = vld [vmem:[%s2 + $0xb8] sm:$0xff]
  %v1396 = vld [vmem:[%s2 + $0xc0] sm:$0xff]
  %v1397 = vld [vmem:[%s2 + $0xc8] sm:$0xff]
  %v1398 = vld [vmem:[%s2 + $0xd0] sm:$0xff]
  %v1399 = vld [vmem:[%s2 + $0xd8] sm:$0xff]
  %v1400 = vld [vmem:[%s2 + $0xe0] sm:$0xff]
  %v1401 = vld [vmem:[%s2 + $0xe8] sm:$0xff]
  %v1402 = vld [vmem:[%s2 + $0xf0] sm:$0xff]
  %v1403 = vld [vmem:[%s2 + $0xf8] sm:$0xff]
  %v1404 = vld [vmem:[%s2 + $0x100] sm:$0xff]
  %v1405 = vld [vmem:[%s2 + $0x108] sm:$0xff]
  %v1406 = vld [vmem:[%s2 + $0x110] sm:$0xff]
  %v1407 = vld [vmem:[%s2 + $0x118] sm:$0xff]
  %v1408 = vld [vmem:[%s2 + $0x120] sm:$0xff]
  %v1409 = vld [vmem:[%s2 + $0x128] sm:$0xff]
  %v1410 = vld [vmem:[%s2 + $0x130] sm:$0xff]
  %v1411 = vld [vmem:[%s2 + $0x138] sm:$0xff]
  %v1412 = vld [vmem:[%s2 + $0x140] sm:$0xff]
  %v1413 = vld [vmem:[%s2 + $0x148] sm:$0xff]
  %v1414 = vld [vmem:[%s2 + $0x150] sm:$0xff]
  %v1415 = vld [vmem:[%s2 + $0x158] sm:$0xff]
  %v1416 = vld [vmem:[%s2 + $0x160] sm:$0xff]
  %v1417 = vld [vmem:[%s2 + $0x168] sm:$0xff]
  %v1418 = vld [vmem:[%s2 + $0x170] sm:$0xff]
  %v1419 = vld [vmem:[%s2 + $0x178] sm:$0xff]
  %v1420 = vld [vmem:[%s2 + $0x180] sm:$0xff]
  %v1421 = vld [vmem:[%s2 + $0x188] sm:$0xff]
  %v1422 = vld [vmem:[%s2 + $0x190] sm:$0xff]
  %v1423 = vld [vmem:[%s2 + $0x198] sm:$0xff]
  %v1424 = vld [vmem:[%s2 + $0x1a0] sm:$0xff]
  %v1425 = vld [vmem:[%s2 + $0x1a8] sm:$0xff]
  %v1426 = vld [vmem:[%s2 + $0x1b0] sm:$0xff]
  %v1427 = vld [vmem:[%s2 + $0x1b8] sm:$0xff]
  %v1428 = vld [vmem:[%s2 + $0x1c0] sm:$0xff]
  %v1429 = vld [vmem:[%s2 + $0x1c8] sm:$0xff]
  %v1430 = vld [vmem:[%s2 + $0x1d0] sm:$0xff]
  %v1431 = vld [vmem:[%s2 + $0x1d8] sm:$0xff]
  %v1432 = vld [vmem:[%s2 + $0x1e0] sm:$0xff]
  %v1433 = vld [vmem:[%s2 + $0x1e8] sm:$0xff]
  %v1434 = vld [vmem:[%s2 + $0x1f0] sm:$0xff]
  %v1435 = vld [vmem:[%s2 + $0x1f8] sm:$0xff]
  %v1436 = vld [vmem:[%s2 + $0x200] sm:$0xff]
  %v1437 = vld [vmem:[%s2 + $0x208] sm:$0xff]
  %v1438 = vld [vmem:[%s2 + $0x210] sm:$0xff]
  %v1439 = vld [vmem:[%s2 + $0x218] sm:$0xff]
  %v1440 = vld [vmem:[%s2 + $0x220] sm:$0xff]
  %v1441 = vld [vmem:[%s2 + $0x228] sm:$0xff]
  %v1442 = vld [vmem:[%s2 + $0x230] sm:$0xff]
  %v1443 = vld [vmem:[%s2 + $0x238] sm:$0xff]
  %v1444 = vld [vmem:[%s2 + $0x240] sm:$0xff]
  %v1445 = vld [vmem:[%s2 + $0x248] sm:$0xff]
  %v1446 = vld [vmem:[%s2 + $0x250] sm:$0xff]
  %v1447 = vld [vmem:[%s2 + $0x258] sm:$0xff]
  %v1448 = vld [vmem:[%s2 + $0x260] sm:$0xff]
  %v1449 = vld [vmem:[%s2 + $0x268] sm:$0xff]
  %v1450 = vld [vmem:[%s2 + $0x270] sm:$0xff]
  %v1451 = vld [vmem:[%s2 + $0x278] sm:$0xff]
  %v1452 = vld [vmem:[%s2 + $0x280] sm:$0xff]
  %v1453 = vld [vmem:[%s2 + $0x288] sm:$0xff]
  %v1454 = vld [vmem:[%s2 + $0x290] sm:$0xff]
  %v1455 = vld [vmem:[%s2 + $0x298] sm:$0xff]
  %v1456 = vld [vmem:[%s2 + $0x2a0] sm:$0xff]
  %v1457 = vld [vmem:[%s2 + $0x2a8] sm:$0xff]
  %v1458 = vld [vmem:[%s2 + $0x2b0] sm:$0xff]
  %v1459 = vld [vmem:[%s2 + $0x2b8] sm:$0xff]
  %v1460 = vld [vmem:[%s2 + $0x2c0] sm:$0xff]
  %v1461 = vld [vmem:[%s2 + $0x2c8] sm:$0xff]
  %v1462 = vld [vmem:[%s2 + $0x2d0] sm:$0xff]
  %v1463 = vld [vmem:[%s2 + $0x2d8] sm:$0xff]
  %v1464 = vld [vmem:[%s2 + $0x2e0] sm:$0xff]
  %v1465 = vld [vmem:[%s2 + $0x2e8] sm:$0xff]
  %v1466 = vld [vmem:[%s2 + $0x2f0] sm:$0xff]
  %v1467 = vld [vmem:[%s2 + $0x2f8] sm:$0xff]
  %v1468 = vld [vmem:[%s2 + $0x300] sm:$0xff]
  %v1469 = vld [vmem:[%s2 + $0x308] sm:$0xff]
  %v1470 = vld [vmem:[%s2 + $0x310] sm:$0xff]
  %v1471 = vld [vmem:[%s2 + $0x318] sm:$0xff]
  %v1472 = vld [vmem:[%s2 + $0x320] sm:$0xff]
  %v1473 = vld [vmem:[%s2 + $0x328] sm:$0xff]
  %v1474 = vld [vmem:[%s2 + $0x330] sm:$0xff]
  %v1475 = vld [vmem:[%s2 + $0x338] sm:$0xff]
  %v1476 = vld [vmem:[%s2 + $0x340] sm:$0xff]
  %v1477 = vld [vmem:[%s2 + $0x348] sm:$0xff]
  %v1478 = vld [vmem:[%s2 + $0x350] sm:$0xff]
  %v1479 = vld [vmem:[%s2 + $0x358] sm:$0xff]
  %v1480 = vld [vmem:[%s2 + $0x360] sm:$0xff]
  %v1481 = vld [vmem:[%s2 + $0x368] sm:$0xff]
  %v1482 = vld [vmem:[%s2 + $0x370] sm:$0xff]
  %v1483 = vld [vmem:[%s2 + $0x378] sm:$0xff]
  %v1484 = vld [vmem:[%s2 + $0x380] sm:$0xff]
  %v1485 = vld [vmem:[%s2 + $0x388] sm:$0xff]
  %v1486 = vld [vmem:[%s2 + $0x390] sm:$0xff]
  %v1487 = vld [vmem:[%s2 + $0x398] sm:$0xff]
  %v1488 = vld [vmem:[%s2 + $0x3a0] sm:$0xff]
  %v1489 = vld [vmem:[%s2 + $0x3a8] sm:$0xff]
  %v1490 = vld [vmem:[%s2 + $0x3b0] sm:$0xff]
  %v1491 = vld [vmem:[%s2 + $0x3b8] sm:$0xff]
  %v1492 = vld [vmem:[%s2 + $0x3c0] sm:$0xff]
  %v1493 = vld [vmem:[%s2 + $0x3c8] sm:$0xff]
  %v1494 = vld [vmem:[%s2 + $0x3d0] sm:$0xff]
  %v1495 = vld [vmem:[%s2 + $0x3d8] sm:$0xff]
  %v1496 = vld [vmem:[%s2 + $0x3e0] sm:$0xff]
  %v1497 = vld [vmem:[%s2 + $0x3e8] sm:$0xff]
  %v1498 = vld [vmem:[%s2 + $0x3f0] sm:$0xff]
  %v1499 = vld [vmem:[%s2 + $0x3f8] sm:$0xff]
  %v1628 = vunpack.c.l.b16 %v1372
  %v1629 = vunpack.c.h.b16 %v1372
  %v1630 = vunpack.c.l.b16 %v1373
  %v1631 = vunpack.c.h.b16 %v1373
  %v1632 = vunpack.c.l.b16 %v1374
  %v1633 = vunpack.c.h.b16 %v1374
  %v1634 = vunpack.c.l.b16 %v1375
  %v1635 = vunpack.c.h.b16 %v1375
  %v1636 = vunpack.c.l.b16 %v1376
  %v1637 = vunpack.c.h.b16 %v1376
  %v1638 = vunpack.c.l.b16 %v1377
  %v1639 = vunpack.c.h.b16 %v1377
  %v1640 = vunpack.c.l.b16 %v1378
  %v1641 = vunpack.c.h.b16 %v1378
  %v1642 = vunpack.c.l.b16 %v1379
  %v1643 = vunpack.c.h.b16 %v1379
  %v1644 = vunpack.c.l.b16 %v1380
  %v1645 = vunpack.c.h.b16 %v1380
  %v1646 = vunpack.c.l.b16 %v1381
  %v1647 = vunpack.c.h.b16 %v1381
  %v1648 = vunpack.c.l.b16 %v1382
  %v1649 = vunpack.c.h.b16 %v1382
  %v1650 = vunpack.c.l.b16 %v1383
  %v1651 = vunpack.c.h.b16 %v1383
  %v1652 = vunpack.c.l.b16 %v1384
  %v1653 = vunpack.c.h.b16 %v1384
  %v1654 = vunpack.c.l.b16 %v1385
  %v1655 = vunpack.c.h.b16 %v1385
  %v1656 = vunpack.c.l.b16 %v1386
  %v1657 = vunpack.c.h.b16 %v1386
  %v1658 = vunpack.c.l.b16 %v1387
  %v1659 = vunpack.c.h.b16 %v1387
  %v1660 = vunpack.c.l.b16 %v1388
  %v1661 = vunpack.c.h.b16 %v1388
  %v1662 = vunpack.c.l.b16 %v1389
  %v1663 = vunpack.c.h.b16 %v1389
  %v1664 = vunpack.c.l.b16 %v1390
  %v1665 = vunpack.c.h.b16 %v1390
  %v1666 = vunpack.c.l.b16 %v1391
  %v1667 = vunpack.c.h.b16 %v1391
  %v1668 = vunpack.c.l.b16 %v1392
  %v1669 = vunpack.c.h.b16 %v1392
  %v1670 = vunpack.c.l.b16 %v1393
  %v1671 = vunpack.c.h.b16 %v1393
  %v1672 = vunpack.c.l.b16 %v1394
  %v1673 = vunpack.c.h.b16 %v1394
  %v1674 = vunpack.c.l.b16 %v1395
  %v1675 = vunpack.c.h.b16 %v1395
  %v1676 = vunpack.c.l.b16 %v1396
  %v1677 = vunpack.c.h.b16 %v1396
  %v1678 = vunpack.c.l.b16 %v1397
  %v1679 = vunpack.c.h.b16 %v1397
  %v1680 = vunpack.c.l.b16 %v1398
  %v1681 = vunpack.c.h.b16 %v1398
  %v1682 = vunpack.c.l.b16 %v1399
  %v1683 = vunpack.c.h.b16 %v1399
  %v1684 = vunpack.c.l.b16 %v1400
  %v1685 = vunpack.c.h.b16 %v1400
  %v1686 = vunpack.c.l.b16 %v1401
  %v1687 = vunpack.c.h.b16 %v1401
  %v1688 = vunpack.c.l.b16 %v1402
  %v1689 = vunpack.c.h.b16 %v1402
  %v1690 = vunpack.c.l.b16 %v1403
  %v1691 = vunpack.c.h.b16 %v1403
  %v1692 = vunpack.c.l.b16 %v1404
  %v1693 = vunpack.c.h.b16 %v1404
  %v1694 = vunpack.c.l.b16 %v1405
  %v1695 = vunpack.c.h.b16 %v1405
  %v1696 = vunpack.c.l.b16 %v1406
  %v1697 = vunpack.c.h.b16 %v1406
  %v1698 = vunpack.c.l.b16 %v1407
  %v1699 = vunpack.c.h.b16 %v1407
  %v1700 = vunpack.c.l.b16 %v1408
  %v1701 = vunpack.c.h.b16 %v1408
  %v1702 = vunpack.c.l.b16 %v1409
  %v1703 = vunpack.c.h.b16 %v1409
  %v1704 = vunpack.c.l.b16 %v1410
  %v1705 = vunpack.c.h.b16 %v1410
  %v1706 = vunpack.c.l.b16 %v1411
  %v1707 = vunpack.c.h.b16 %v1411
  %v1708 = vunpack.c.l.b16 %v1412
  %v1709 = vunpack.c.h.b16 %v1412
  %v1710 = vunpack.c.l.b16 %v1413
  %v1711 = vunpack.c.h.b16 %v1413
  %v1712 = vunpack.c.l.b16 %v1414
  %v1713 = vunpack.c.h.b16 %v1414
  %v1714 = vunpack.c.l.b16 %v1415
  %v1715 = vunpack.c.h.b16 %v1415
  %v1716 = vunpack.c.l.b16 %v1416
  %v1717 = vunpack.c.h.b16 %v1416
  %v1718 = vunpack.c.l.b16 %v1417
  %v1719 = vunpack.c.h.b16 %v1417
  %v1720 = vunpack.c.l.b16 %v1418
  %v1721 = vunpack.c.h.b16 %v1418
  %v1722 = vunpack.c.l.b16 %v1419
  %v1723 = vunpack.c.h.b16 %v1419
  %v1724 = vunpack.c.l.b16 %v1420
  %v1725 = vunpack.c.h.b16 %v1420
  %v1726 = vunpack.c.l.b16 %v1421
  %v1727 = vunpack.c.h.b16 %v1421
  %v1728 = vunpack.c.l.b16 %v1422
  %v1729 = vunpack.c.h.b16 %v1422
  %v1730 = vunpack.c.l.b16 %v1423
  %v1731 = vunpack.c.h.b16 %v1423
  %v1732 = vunpack.c.l.b16 %v1424
  %v1733 = vunpack.c.h.b16 %v1424
  %v1734 = vunpack.c.l.b16 %v1425
  %v1735 = vunpack.c.h.b16 %v1425
  %v1736 = vunpack.c.l.b16 %v1426
  %v1737 = vunpack.c.h.b16 %v1426
  %v1738 = vunpack.c.l.b16 %v1427
  %v1739 = vunpack.c.h.b16 %v1427
  %v1740 = vunpack.c.l.b16 %v1428
  %v1741 = vunpack.c.h.b16 %v1428
  %v1742 = vunpack.c.l.b16 %v1429
  %v1743 = vunpack.c.h.b16 %v1429
  %v1744 = vunpack.c.l.b16 %v1430
  %v1745 = vunpack.c.h.b16 %v1430
  %v1746 = vunpack.c.l.b16 %v1431
  %v1747 = vunpack.c.h.b16 %v1431
  %v1748 = vunpack.c.l.b16 %v1432
  %v1749 = vunpack.c.h.b16 %v1432
  %v1750 = vunpack.c.l.b16 %v1433
  %v1751 = vunpack.c.h.b16 %v1433
  %v1752 = vunpack.c.l.b16 %v1434
  %v1753 = vunpack.c.h.b16 %v1434
  %v1754 = vunpack.c.l.b16 %v1435
  %v1755 = vunpack.c.h.b16 %v1435
  %v1756 = vunpack.c.l.b16 %v1436
  %v1757 = vunpack.c.h.b16 %v1436
  %v1758 = vunpack.c.l.b16 %v1437
  %v1759 = vunpack.c.h.b16 %v1437
  %v1760 = vunpack.c.l.b16 %v1438
  %v1761 = vunpack.c.h.b16 %v1438
  %v1762 = vunpack.c.l.b16 %v1439
  %v1763 = vunpack.c.h.b16 %v1439
  %v1764 = vunpack.c.l.b16 %v1440
  %v1765 = vunpack.c.h.b16 %v1440
  %v1766 = vunpack.c.l.b16 %v1441
  %v1767 = vunpack.c.h.b16 %v1441
  %v1768 = vunpack.c.l.b16 %v1442
  %v1769 = vunpack.c.h.b16 %v1442
  %v1770 = vunpack.c.l.b16 %v1443
  %v1771 = vunpack.c.h.b16 %v1443
  %v1772 = vunpack.c.l.b16 %v1444
  %v1773 = vunpack.c.h.b16 %v1444
  %v1774 = vunpack.c.l.b16 %v1445
  %v1775 = vunpack.c.h.b16 %v1445
  %v1776 = vunpack.c.l.b16 %v1446
  %v1777 = vunpack.c.h.b16 %v1446
  %v1778 = vunpack.c.l.b16 %v1447
  %v1779 = vunpack.c.h.b16 %v1447
  %v1780 = vunpack.c.l.b16 %v1448
  %v1781 = vunpack.c.h.b16 %v1448
  %v1782 = vunpack.c.l.b16 %v1449
  %v1783 = vunpack.c.h.b16 %v1449
  %v1784 = vunpack.c.l.b16 %v1450
  %v1785 = vunpack.c.h.b16 %v1450
  %v1786 = vunpack.c.l.b16 %v1451
  %v1787 = vunpack.c.h.b16 %v1451
  %v1788 = vunpack.c.l.b16 %v1452
  %v1789 = vunpack.c.h.b16 %v1452
  %v1790 = vunpack.c.l.b16 %v1453
  %v1791 = vunpack.c.h.b16 %v1453
  %v1792 = vunpack.c.l.b16 %v1454
  %v1793 = vunpack.c.h.b16 %v1454
  %v1794 = vunpack.c.l.b16 %v1455
  %v1795 = vunpack.c.h.b16 %v1455
  %v1796 = vunpack.c.l.b16 %v1456
  %v1797 = vunpack.c.h.b16 %v1456
  %v1798 = vunpack.c.l.b16 %v1457
  %v1799 = vunpack.c.h.b16 %v1457
  %v1800 = vunpack.c.l.b16 %v1458
  %v1801 = vunpack.c.h.b16 %v1458
  %v1802 = vunpack.c.l.b16 %v1459
  %v1803 = vunpack.c.h.b16 %v1459
  %v1804 = vunpack.c.l.b16 %v1460
  %v1805 = vunpack.c.h.b16 %v1460
  %v1806 = vunpack.c.l.b16 %v1461
  %v1807 = vunpack.c.h.b16 %v1461
  %v1808 = vunpack.c.l.b16 %v1462
  %v1809 = vunpack.c.h.b16 %v1462
  %v1810 = vunpack.c.l.b16 %v1463
  %v1811 = vunpack.c.h.b16 %v1463
  %v1812 = vunpack.c.l.b16 %v1464
  %v1813 = vunpack.c.h.b16 %v1464
  %v1814 = vunpack.c.l.b16 %v1465
  %v1815 = vunpack.c.h.b16 %v1465
  %v1816 = vunpack.c.l.b16 %v1466
  %v1817 = vunpack.c.h.b16 %v1466
  %v1818 = vunpack.c.l.b16 %v1467
  %v1819 = vunpack.c.h.b16 %v1467
  %v1820 = vunpack.c.l.b16 %v1468
  %v1821 = vunpack.c.h.b16 %v1468
  %v1822 = vunpack.c.l.b16 %v1469
  %v1823 = vunpack.c.h.b16 %v1469
  %v1824 = vunpack.c.l.b16 %v1470
  %v1825 = vunpack.c.h.b16 %v1470
  %v1826 = vunpack.c.l.b16 %v1471
  %v1827 = vunpack.c.h.b16 %v1471
  %v1828 = vunpack.c.l.b16 %v1472
  %v1829 = vunpack.c.h.b16 %v1472
  %v1830 = vunpack.c.l.b16 %v1473
  %v1831 = vunpack.c.h.b16 %v1473
  %v1832 = vunpack.c.l.b16 %v1474
  %v1833 = vunpack.c.h.b16 %v1474
  %v1834 = vunpack.c.l.b16 %v1475
  %v1835 = vunpack.c.h.b16 %v1475
  %v1836 = vunpack.c.l.b16 %v1476
  %v1837 = vunpack.c.h.b16 %v1476
  %v1838 = vunpack.c.l.b16 %v1477
  %v1839 = vunpack.c.h.b16 %v1477
  %v1840 = vunpack.c.l.b16 %v1478
  %v1841 = vunpack.c.h.b16 %v1478
  %v1842 = vunpack.c.l.b16 %v1479
  %v1843 = vunpack.c.h.b16 %v1479
  %v1844 = vunpack.c.l.b16 %v1480
  %v1845 = vunpack.c.h.b16 %v1480
  %v1846 = vunpack.c.l.b16 %v1481
  %v1847 = vunpack.c.h.b16 %v1481
  %v1848 = vunpack.c.l.b16 %v1482
  %v1849 = vunpack.c.h.b16 %v1482
  %v1850 = vunpack.c.l.b16 %v1483
  %v1851 = vunpack.c.h.b16 %v1483
  %v1852 = vunpack.c.l.b16 %v1484
  %v1853 = vunpack.c.h.b16 %v1484
  %v1854 = vunpack.c.l.b16 %v1485
  %v1855 = vunpack.c.h.b16 %v1485
  %v1856 = vunpack.c.l.b16 %v1486
  %v1857 = vunpack.c.h.b16 %v1486
  %v1858 = vunpack.c.l.b16 %v1487
  %v1859 = vunpack.c.h.b16 %v1487
  %v1860 = vunpack.c.l.b16 %v1488
  %v1861 = vunpack.c.h.b16 %v1488
  %v1862 = vunpack.c.l.b16 %v1489
  %v1863 = vunpack.c.h.b16 %v1489
  %v1864 = vunpack.c.l.b16 %v1490
  %v1865 = vunpack.c.h.b16 %v1490
  %v1866 = vunpack.c.l.b16 %v1491
  %v1867 = vunpack.c.h.b16 %v1491
  %v1868 = vunpack.c.l.b16 %v1492
  %v1869 = vunpack.c.h.b16 %v1492
  %v1870 = vunpack.c.l.b16 %v1493
  %v1871 = vunpack.c.h.b16 %v1493
  %v1872 = vunpack.c.l.b16 %v1494
  %v1873 = vunpack.c.h.b16 %v1494
  %v1874 = vunpack.c.l.b16 %v1495
  %v1875 = vunpack.c.h.b16 %v1495
  %v1876 = vunpack.c.l.b16 %v1496
  %v1877 = vunpack.c.h.b16 %v1496
  %v1878 = vunpack.c.l.b16 %v1497
  %v1879 = vunpack.c.h.b16 %v1497
  %v1880 = vunpack.c.l.b16 %v1498
  %v1881 = vunpack.c.h.b16 %v1498
  %v1882 = vunpack.c.l.b16 %v1499
  %v1883 = vunpack.c.h.b16 %v1499
  %v1884 = vpack.c.b16 %v1632, %v1628
  %v1885 = vpack.c.b16 %v1633, %v1629
  %v1886 = vpack.c.b16 %v1634, %v1630
  %v1887 = vpack.c.b16 %v1635, %v1631
  %v1888 = vpack.c.b16 %v1640, %v1636
  %v1889 = vpack.c.b16 %v1641, %v1637
  %v1890 = vpack.c.b16 %v1642, %v1638
  %v1891 = vpack.c.b16 %v1643, %v1639
  %v1892 = vpack.c.b16 %v1648, %v1644
  %v1893 = vpack.c.b16 %v1649, %v1645
  %v1894 = vpack.c.b16 %v1650, %v1646
  %v1895 = vpack.c.b16 %v1651, %v1647
  %v1896 = vpack.c.b16 %v1656, %v1652
  %v1897 = vpack.c.b16 %v1657, %v1653
  %v1898 = vpack.c.b16 %v1658, %v1654
  %v1899 = vpack.c.b16 %v1659, %v1655
  %v1900 = vpack.c.b16 %v1664, %v1660
  %v1901 = vpack.c.b16 %v1665, %v1661
  %v1902 = vpack.c.b16 %v1666, %v1662
  %v1903 = vpack.c.b16 %v1667, %v1663
  %v1904 = vpack.c.b16 %v1672, %v1668
  %v1905 = vpack.c.b16 %v1673, %v1669
  %v1906 = vpack.c.b16 %v1674, %v1670
  %v1907 = vpack.c.b16 %v1675, %v1671
  %v1908 = vpack.c.b16 %v1680, %v1676
  %v1909 = vpack.c.b16 %v1681, %v1677
  %v1910 = vpack.c.b16 %v1682, %v1678
  %v1911 = vpack.c.b16 %v1683, %v1679
  %v1912 = vpack.c.b16 %v1688, %v1684
  %v1913 = vpack.c.b16 %v1689, %v1685
  %v1914 = vpack.c.b16 %v1690, %v1686
  %v1915 = vpack.c.b16 %v1691, %v1687
  %v1916 = vpack.c.b16 %v1696, %v1692
  %v1917 = vpack.c.b16 %v1697, %v1693
  %v1918 = vpack.c.b16 %v1698, %v1694
  %v1919 = vpack.c.b16 %v1699, %v1695
  %v1920 = vpack.c.b16 %v1704, %v1700
  %v1921 = vpack.c.b16 %v1705, %v1701
  %v1922 = vpack.c.b16 %v1706, %v1702
  %v1923 = vpack.c.b16 %v1707, %v1703
  %v1924 = vpack.c.b16 %v1712, %v1708
  %v1925 = vpack.c.b16 %v1713, %v1709
  %v1926 = vpack.c.b16 %v1714, %v1710
  %v1927 = vpack.c.b16 %v1715, %v1711
  %v1928 = vpack.c.b16 %v1720, %v1716
  %v1929 = vpack.c.b16 %v1721, %v1717
  %v1930 = vpack.c.b16 %v1722, %v1718
  %v1931 = vpack.c.b16 %v1723, %v1719
  %v1932 = vpack.c.b16 %v1728, %v1724
  %v1933 = vpack.c.b16 %v1729, %v1725
  %v1934 = vpack.c.b16 %v1730, %v1726
  %v1935 = vpack.c.b16 %v1731, %v1727
  %v1936 = vpack.c.b16 %v1736, %v1732
  %v1937 = vpack.c.b16 %v1737, %v1733
  %v1938 = vpack.c.b16 %v1738, %v1734
  %v1939 = vpack.c.b16 %v1739, %v1735
  %v1940 = vpack.c.b16 %v1744, %v1740
  %v1941 = vpack.c.b16 %v1745, %v1741
  %v1942 = vpack.c.b16 %v1746, %v1742
  %v1943 = vpack.c.b16 %v1747, %v1743
  %v1944 = vpack.c.b16 %v1752, %v1748
  %v1945 = vpack.c.b16 %v1753, %v1749
  %v1946 = vpack.c.b16 %v1754, %v1750
  %v1947 = vpack.c.b16 %v1755, %v1751
  %v1948 = vpack.c.b16 %v1760, %v1756
  %v1949 = vpack.c.b16 %v1761, %v1757
  %v1950 = vpack.c.b16 %v1762, %v1758
  %v1951 = vpack.c.b16 %v1763, %v1759
  %v1952 = vpack.c.b16 %v1768, %v1764
  %v1953 = vpack.c.b16 %v1769, %v1765
  %v1954 = vpack.c.b16 %v1770, %v1766
  %v1955 = vpack.c.b16 %v1771, %v1767
  %v1956 = vpack.c.b16 %v1776, %v1772
  %v1957 = vpack.c.b16 %v1777, %v1773
  %v1958 = vpack.c.b16 %v1778, %v1774
  %v1959 = vpack.c.b16 %v1779, %v1775
  %v1960 = vpack.c.b16 %v1784, %v1780
  %v1961 = vpack.c.b16 %v1785, %v1781
  %v1962 = vpack.c.b16 %v1786, %v1782
  %v1963 = vpack.c.b16 %v1787, %v1783
  %v1964 = vpack.c.b16 %v1792, %v1788
  %v1965 = vpack.c.b16 %v1793, %v1789
  %v1966 = vpack.c.b16 %v1794, %v1790
  %v1967 = vpack.c.b16 %v1795, %v1791
  %v1968 = vpack.c.b16 %v1800, %v1796
  %v1969 = vpack.c.b16 %v1801, %v1797
  %v1970 = vpack.c.b16 %v1802, %v1798
  %v1971 = vpack.c.b16 %v1803, %v1799
  %v1972 = vpack.c.b16 %v1808, %v1804
  %v1973 = vpack.c.b16 %v1809, %v1805
  %v1974 = vpack.c.b16 %v1810, %v1806
  %v1975 = vpack.c.b16 %v1811, %v1807
  %v1976 = vpack.c.b16 %v1816, %v1812
  %v1977 = vpack.c.b16 %v1817, %v1813
  %v1978 = vpack.c.b16 %v1818, %v1814
  %v1979 = vpack.c.b16 %v1819, %v1815
  %v1980 = vpack.c.b16 %v1824, %v1820
  %v1981 = vpack.c.b16 %v1825, %v1821
  %v1982 = vpack.c.b16 %v1826, %v1822
  %v1983 = vpack.c.b16 %v1827, %v1823
  %v1984 = vpack.c.b16 %v1832, %v1828
  %v1985 = vpack.c.b16 %v1833, %v1829
  %v1986 = vpack.c.b16 %v1834, %v1830
  %v1987 = vpack.c.b16 %v1835, %v1831
  %v1988 = vpack.c.b16 %v1840, %v1836
  %v1989 = vpack.c.b16 %v1841, %v1837
  %v1990 = vpack.c.b16 %v1842, %v1838
  %v1991 = vpack.c.b16 %v1843, %v1839
  %v1992 = vpack.c.b16 %v1848, %v1844
  %v1993 = vpack.c.b16 %v1849, %v1845
  %v1994 = vpack.c.b16 %v1850, %v1846
  %v1995 = vpack.c.b16 %v1851, %v1847
  %v1996 = vpack.c.b16 %v1856, %v1852
  %v1997 = vpack.c.b16 %v1857, %v1853
  %v1998 = vpack.c.b16 %v1858, %v1854
  %v1999 = vpack.c.b16 %v1859, %v1855
  %v2000 = vpack.c.b16 %v1864, %v1860
  %v2001 = vpack.c.b16 %v1865, %v1861
  %v2002 = vpack.c.b16 %v1866, %v1862
  %v2003 = vpack.c.b16 %v1867, %v1863
  %v2004 = vpack.c.b16 %v1872, %v1868
  %v2005 = vpack.c.b16 %v1873, %v1869
  %v2006 = vpack.c.b16 %v1874, %v1870
  %v2007 = vpack.c.b16 %v1875, %v1871
  %v2008 = vpack.c.b16 %v1880, %v1876
  %v2009 = vpack.c.b16 %v1881, %v1877
  %v2010 = vpack.c.b16 %v1882, %v1878
  %v2011 = vpack.c.b16 %v1883, %v1879
  %2140 = vmatprep.subr.bf16.mxu0 %v1885
  %2141 = vmatpush1.bf16.msra.mxu0 %v1884
  %2142 = vmatprep.subr.bf16.mxu0 %v1889
  %2143 = vmatpush1.bf16.msra.mxu0 %v1888
  %2144 = vmatprep.subr.bf16.mxu0 %v1893
  %2145 = vmatpush1.bf16.msra.mxu0 %v1892
  %2146 = vmatprep.subr.bf16.mxu0 %v1897
  %2147 = vmatpush1.bf16.msra.mxu0 %v1896
  %2148 = vmatprep.subr.bf16.mxu0 %v1901
  %2149 = vmatpush1.bf16.msra.mxu0 %v1900
  %2150 = vmatprep.subr.bf16.mxu0 %v1905
  %2151 = vmatpush1.bf16.msra.mxu0 %v1904
  %2152 = vmatprep.subr.bf16.mxu0 %v1909
  %2153 = vmatpush1.bf16.msra.mxu0 %v1908
  %2154 = vmatprep.subr.bf16.mxu0 %v1913
  %2155 = vmatpush1.bf16.msra.mxu0 %v1912
  %2156 = vmatprep.subr.bf16.mxu0 %v1917
  %2157 = vmatpush1.bf16.msra.mxu0 %v1916
  %2158 = vmatprep.subr.bf16.mxu0 %v1921
  %2159 = vmatpush1.bf16.msra.mxu0 %v1920
  %2160 = vmatprep.subr.bf16.mxu0 %v1925
  %2161 = vmatpush1.bf16.msra.mxu0 %v1924
  %2162 = vmatprep.subr.bf16.mxu0 %v1929
  %2163 = vmatpush1.bf16.msra.mxu0 %v1928
  %2164 = vmatprep.subr.bf16.mxu0 %v1933
  %2165 = vmatpush1.bf16.msra.mxu0 %v1932
  %2166 = vmatprep.subr.bf16.mxu0 %v1937
  %2167 = vmatpush1.bf16.msra.mxu0 %v1936
  %2168 = vmatprep.subr.bf16.mxu0 %v1941
  %2169 = vmatpush1.bf16.msra.mxu0 %v1940
  %2170 = vmatprep.subr.bf16.mxu0 %v1945
  %2171 = vmatpush1.bf16.msra.mxu0 %v1944
  %2172 = vmatprep.mubr.bf16.mxu0 %v1309
  %2173 = vmatmul.mubr.bf16.gmra.mrb[0].mxu0 %v1308
  %v2174 = vpop.f32.mrb[0].mxu0
  %v2175 = vadd.f32 0.0, %v2174
  %v2176 = vpop.f32.mrb[0].mxu0
  %v2177 = vadd.f32 0.0, %v2176
  %v2178 = vpop.f32.mrb[0].mxu0
  %v2179 = vadd.f32 0.0, %v2178
  %v2180 = vpop.f32.mrb[0].mxu0
  %v2181 = vadd.f32 0.0, %v2180
  %2182 = vmatprep.mubr.bf16.mxu0 %v1313
  %2183 = vmatmul.mubr.bf16.gmra.mrb[0].mxu0 %v1312
  %v2184 = vpop.f32.mrb[0].mxu0
  %v2185 = vadd.f32 0.0, %v2184
  %v2186 = vpop.f32.mrb[0].mxu0
  %v2187 = vadd.f32 0.0, %v2186
  %v2188 = vpop.f32.mrb[0].mxu0
  %v2189 = vadd.f32 0.0, %v2188
  %v2190 = vpop.f32.mrb[0].mxu0
  %v2191 = vadd.f32 0.0, %v2190
  %2192 = vmatprep.mubr.bf16.mxu0 %v1317
  %2193 = vmatmul.mubr.bf16.gmra.mrb[0].mxu0 %v1316
  %v2194 = vpop.f32.mrb[0].mxu0
  %v2195 = vadd.f32 0.0, %v2194
  %v2196 = vpop.f32.mrb[0].mxu0
  %v2197 = vadd.f32 0.0, %v2196
  %v2198 = vpop.f32.mrb[0].mxu0
  %v2199 = vadd.f32 0.0, %v2198
  %v2200 = vpop.f32.mrb[0].mxu0
  %v2201 = vadd.f32 0.0, %v2200
  %2202 = vmatprep.mubr.bf16.mxu0 %v1321
  %2203 = vmatmul.mubr.bf16.gmra.mrb[0].mxu0 %v1320
  %v2204 = vpop.f32.mrb[0].mxu0
  %v2205 = vadd.f32 0.0, %v2204
  %v2206 = vpop.f32.mrb[0].mxu0
  %v2207 = vadd.f32 0.0, %v2206
  %v2208 = vpop.f32.mrb[0].mxu0
  %v2209 = vadd.f32 0.0, %v2208
  %v2210 = vpop.f32.mrb[0].mxu0
  %v2211 = vadd.f32 0.0, %v2210
  %2212 = vmatprep.mubr.bf16.mxu0 %v1325
  %2213 = vmatmul.mubr.bf16.gmra.mrb[0].mxu0 %v1324
  %v2214 = vpop.f32.mrb[0].mxu0
  %v2215 = vadd.f32 0.0, %v2214
  %v2216 = vpop.f32.mrb[0].mxu0
  %v2217 = vadd.f32 0.0, %v2216
  %v2218 = vpop.f32.mrb[0].mxu0
  %v2219 = vadd.f32 0.0, %v2218
  %v2220 = vpop.f32.mrb[0].mxu0
  %v2221 = vadd.f32 0.0, %v2220
  %2222 = vmatprep.mubr.bf16.mxu0 %v1329
  %2223 = vmatmul.mubr.bf16.gmra.mrb[0].mxu0 %v1328
  %v2224 = vpop.f32.mrb[0].mxu0
  %v2225 = vadd.f32 0.0, %v2224
  %v2226 = vpop.f32.mrb[0].mxu0
  %v2227 = vadd.f32 0.0, %v2226
  %v2228 = vpop.f32.mrb[0].mxu0
  %v2229 = vadd.f32 0.0, %v2228
  %v2230 = vpop.f32.mrb[0].mxu0
  %v2231 = vadd.f32 0.0, %v2230
  %2232 = vmatprep.mubr.bf16.mxu0 %v1333
  %2233 = vmatmul.mubr.bf16.gmra.mrb[0].mxu0 %v1332
  %v2234 = vpop.f32.mrb[0].mxu0
  %v2235 = vadd.f32 0.0, %v2234
  %v2236 = vpop.f32.mrb[0].mxu0
  %v2237 = vadd.f32 0.0, %v2236
  %v2238 = vpop.f32.mrb[0].mxu0
  %v2239 = vadd.f32 0.0, %v2238
  %v2240 = vpop.f32.mrb[0].mxu0
  %v2241 = vadd.f32 0.0, %v2240
  %2242 = vmatprep.mubr.bf16.mxu0 %v1337
  %2243 = vmatmul.mubr.bf16.gmra.mrb[0].mxu0 %v1336
  %v2244 = vpop.f32.mrb[0].mxu0
  %v2245 = vadd.f32 0.0, %v2244
  %v2246 = vpop.f32.mrb[0].mxu0
  %v2247 = vadd.f32 0.0, %v2246
  %v2248 = vpop.f32.mrb[0].mxu0
  %v2249 = vadd.f32 0.0, %v2248
  %v2250 = vpop.f32.mrb[0].mxu0
  %v2251 = vadd.f32 0.0, %v2250
  %2252 = vmatprep.mubr.bf16.mxu0 %v1341
  %2253 = vmatmul.mubr.bf16.gmra.mrb[0].mxu0 %v1340
  %v2254 = vpop.f32.mrb[0].mxu0
  %v2255 = vadd.f32 0.0, %v2254
  %v2256 = vpop.f32.mrb[0].mxu0
  %v2257 = vadd.f32 0.0, %v2256
  %v2258 = vpop.f32.mrb[0].mxu0
  %v2259 = vadd.f32 0.0, %v2258
  %v2260 = vpop.f32.mrb[0].mxu0
  %v2261 = vadd.f32 0.0, %v2260
  %2262 = vmatprep.mubr.bf16.mxu0 %v1345
  %2263 = vmatmul.mubr.bf16.gmra.mrb[0].mxu0 %v1344
  %v2264 = vpop.f32.mrb[0].mxu0
  %v2265 = vadd.f32 0.0, %v2264
  %v2266 = vpop.f32.mrb[0].mxu0
  %v2267 = vadd.f32 0.0, %v2266
  %v2268 = vpop.f32.mrb[0].mxu0
  %v2269 = vadd.f32 0.0, %v2268
  %v2270 = vpop.f32.mrb[0].mxu0
  %v2271 = vadd.f32 0.0, %v2270
  %2272 = vmatprep.mubr.bf16.mxu0 %v1349
  %2273 = vmatmul.mubr.bf16.gmra.mrb[0].mxu0 %v1348
  %v2274 = vpop.f32.mrb[0].mxu0
  %v2275 = vadd.f32 0.0, %v2274
  %v2276 = vpop.f32.mrb[0].mxu0
  %v2277 = vadd.f32 0.0, %v2276
  %v2278 = vpop.f32.mrb[0].mxu0
  %v2279 = vadd.f32 0.0, %v2278
  %v2280 = vpop.f32.mrb[0].mxu0
  %v2281 = vadd.f32 0.0, %v2280
  %2282 = vmatprep.mubr.bf16.mxu0 %v1353
  %2283 = vmatmul.mubr.bf16.gmra.mrb[0].mxu0 %v1352
  %v2284 = vpop.f32.mrb[0].mxu0
  %v2285 = vadd.f32 0.0, %v2284
  %v2286 = vpop.f32.mrb[0].mxu0
  %v2287 = vadd.f32 0.0, %v2286
  %v2288 = vpop.f32.mrb[0].mxu0
  %v2289 = vadd.f32 0.0, %v2288
  %v2290 = vpop.f32.mrb[0].mxu0
  %v2291 = vadd.f32 0.0, %v2290
  %2292 = vmatprep.mubr.bf16.mxu0 %v1357
  %2293 = vmatmul.mubr.bf16.gmra.mrb[0].mxu0 %v1356
  %v2294 = vpop.f32.mrb[0].mxu0
  %v2295 = vadd.f32 0.0, %v2294
  %v2296 = vpop.f32.mrb[0].mxu0
  %v2297 = vadd.f32 0.0, %v2296
  %v2298 = vpop.f32.mrb[0].mxu0
  %v2299 = vadd.f32 0.0, %v2298
  %v2300 = vpop.f32.mrb[0].mxu0
  %v2301 = vadd.f32 0.0, %v2300
  %2302 = vmatprep.mubr.bf16.mxu0 %v1361
  %2303 = vmatmul.mubr.bf16.gmra.mrb[0].mxu0 %v1360
  %v2304 = vpop.f32.mrb[0].mxu0
  %v2305 = vadd.f32 0.0, %v2304
  %v2306 = vpop.f32.mrb[0].mxu0
  %v2307 = vadd.f32 0.0, %v2306
  %v2308 = vpop.f32.mrb[0].mxu0
  %v2309 = vadd.f32 0.0, %v2308
  %v2310 = vpop.f32.mrb[0].mxu0
  %v2311 = vadd.f32 0.0, %v2310
  %2312 = vmatprep.mubr.bf16.mxu0 %v1365
  %2313 = vmatmul.mubr.bf16.gmra.mrb[0].mxu0 %v1364
  %v2314 = vpop.f32.mrb[0].mxu0
  %v2315 = vadd.f32 0.0, %v2314
  %v2316 = vpop.f32.mrb[0].mxu0
  %v2317 = vadd.f32 0.0, %v2316
  %v2318 = vpop.f32.mrb[0].mxu0
  %v2319 = vadd.f32 0.0, %v2318
  %v2320 = vpop.f32.mrb[0].mxu0
  %v2321 = vadd.f32 0.0, %v2320
  %2322 = vmatprep.mubr.bf16.mxu0 %v1369
  %2323 = vmatmul.mubr.bf16.gmra.mrb[0].mxu0 %v1368
  %v2324 = vpop.f32.mrb[0].mxu0
  %v2325 = vadd.f32 0.0, %v2324
  %v2326 = vpop.f32.mrb[0].mxu0
  %v2327 = vadd.f32 0.0, %v2326
  %v2328 = vpop.f32.mrb[0].mxu0
  %v2329 = vadd.f32 0.0, %v2328
  %v2330 = vpop.f32.mrb[0].mxu0
  %v2331 = vadd.f32 0.0, %v2330
  %2332 = vdwg.mxu0
  %2333 = vmatprep.subr.bf16.mxu0 %v1949
  %2334 = vmatpush1.bf16.msra.mxu0 %v1948
  %2335 = vmatprep.subr.bf16.mxu0 %v1953
  %2336 = vmatpush1.bf16.msra.mxu0 %v1952
  %2337 = vmatprep.subr.bf16.mxu0 %v1957
  %2338 = vmatpush1.bf16.msra.mxu0 %v1956
  %2339 = vmatprep.subr.bf16.mxu0 %v1961
  %2340 = vmatpush1.bf16.msra.mxu0 %v1960
  %2341 = vmatprep.subr.bf16.mxu0 %v1965
  %2342 = vmatpush1.bf16.msra.mxu0 %v1964
  %2343 = vmatprep.subr.bf16.mxu0 %v1969
  %2344 = vmatpush1.bf16.msra.mxu0 %v1968
  %2345 = vmatprep.subr.bf16.mxu0 %v1973
  %2346 = vmatpush1.bf16.msra.mxu0 %v1972
  %2347 = vmatprep.subr.bf16.mxu0 %v1977
  %2348 = vmatpush1.bf16.msra.mxu0 %v1976
  %2349 = vmatprep.subr.bf16.mxu0 %v1981
  %2350 = vmatpush1.bf16.msra.mxu0 %v1980
  %2351 = vmatprep.subr.bf16.mxu0 %v1985
  %2352 = vmatpush1.bf16.msra.mxu0 %v1984
  %2353 = vmatprep.subr.bf16.mxu0 %v1989
  %2354 = vmatpush1.bf16.msra.mxu0 %v1988
  %2355 = vmatprep.subr.bf16.mxu0 %v1993
  %2356 = vmatpush1.bf16.msra.mxu0 %v1992
  %2357 = vmatprep.subr.bf16.mxu0 %v1997
  %2358 = vmatpush1.bf16.msra.mxu0 %v1996
  %2359 = vmatprep.subr.bf16.mxu0 %v2001
  %2360 = vmatpush1.bf16.msra.mxu0 %v2000
  %2361 = vmatprep.subr.bf16.mxu0 %v2005
  %2362 = vmatpush1.bf16.msra.mxu0 %v2004
  %2363 = vmatprep.subr.bf16.mxu0 %v2009
  %2364 = vmatpush1.bf16.msra.mxu0 %v2008
  %2365 = vmatprep.mubr.bf16.mxu0 %v1311
  %2366 = vmatmul.mubr.bf16.gmra.mrb[0].mxu0 %v1310
  %v2367 = vpop.f32.mrb[0].mxu0
  %v2368 = vadd.f32 %v2175, %v2367
  %v2369 = vpop.f32.mrb[0].mxu0
  %v2370 = vadd.f32 %v2177, %v2369
  %v2371 = vpop.f32.mrb[0].mxu0
  %v2372 = vadd.f32 %v2179, %v2371
  %v2373 = vpop.f32.mrb[0].mxu0
  %v2374 = vadd.f32 %v2181, %v2373
  %2375 = vmatprep.mubr.bf16.mxu0 %v1315
  %2376 = vmatmul.mubr.bf16.gmra.mrb[0].mxu0 %v1314
  %v2377 = vpop.f32.mrb[0].mxu0
  %v2378 = vadd.f32 %v2185, %v2377
  %v2379 = vpop.f32.mrb[0].mxu0
  %v2380 = vadd.f32 %v2187, %v2379
  %v2381 = vpop.f32.mrb[0].mxu0
  %v2382 = vadd.f32 %v2189, %v2381
  %v2383 = vpop.f32.mrb[0].mxu0
  %v2384 = vadd.f32 %v2191, %v2383
  %2385 = vmatprep.mubr.bf16.mxu0 %v1319
  %2386 = vmatmul.mubr.bf16.gmra.mrb[0].mxu0 %v1318
  %v2387 = vpop.f32.mrb[0].mxu0
  %v2388 = vadd.f32 %v2195, %v2387
  %v2389 = vpop.f32.mrb[0].mxu0
  %v2390 = vadd.f32 %v2197, %v2389
  %v2391 = vpop.f32.mrb[0].mxu0
  %v2392 = vadd.f32 %v2199, %v2391
  %v2393 = vpop.f32.mrb[0].mxu0
  %v2394 = vadd.f32 %v2201, %v2393
  %2395 = vmatprep.mubr.bf16.mxu0 %v1323
  %2396 = vmatmul.mubr.bf16.gmra.mrb[0].mxu0 %v1322
  %v2397 = vpop.f32.mrb[0].mxu0
  %v2398 = vadd.f32 %v2205, %v2397
  %v2399 = vpop.f32.mrb[0].mxu0
  %v2400 = vadd.f32 %v2207, %v2399
  %v2401 = vpop.f32.mrb[0].mxu0
  %v2402 = vadd.f32 %v2209, %v2401
  %v2403 = vpop.f32.mrb[0].mxu0
  %v2404 = vadd.f32 %v2211, %v2403
  %2405 = vmatprep.mubr.bf16.mxu0 %v1327
  %2406 = vmatmul.mubr.bf16.gmra.mrb[0].mxu0 %v1326
  %v2407 = vpop.f32.mrb[0].mxu0
  %v2408 = vadd.f32 %v2215, %v2407
  %v2409 = vpop.f32.mrb[0].mxu0
  %v2410 = vadd.f32 %v2217, %v2409
  %v2411 = vpop.f32.mrb[0].mxu0
  %v2412 = vadd.f32 %v2219, %v2411
  %v2413 = vpop.f32.mrb[0].mxu0
  %v2414 = vadd.f32 %v2221, %v2413
  %2415 = vmatprep.mubr.bf16.mxu0 %v1331
  %2416 = vmatmul.mubr.bf16.gmra.mrb[0].mxu0 %v1330
  %v2417 = vpop.f32.mrb[0].mxu0
  %v2418 = vadd.f32 %v2225, %v2417
  %v2419 = vpop.f32.mrb[0].mxu0
  %v2420 = vadd.f32 %v2227, %v2419
  %v2421 = vpop.f32.mrb[0].mxu0
  %v2422 = vadd.f32 %v2229, %v2421
  %v2423 = vpop.f32.mrb[0].mxu0
  %v2424 = vadd.f32 %v2231, %v2423
  %2425 = vmatprep.mubr.bf16.mxu0 %v1335
  %2426 = vmatmul.mubr.bf16.gmra.mrb[0].mxu0 %v1334
  %v2427 = vpop.f32.mrb[0].mxu0
  %v2428 = vadd.f32 %v2235, %v2427
  %v2429 = vpop.f32.mrb[0].mxu0
  %v2430 = vadd.f32 %v2237, %v2429
  %v2431 = vpop.f32.mrb[0].mxu0
  %v2432 = vadd.f32 %v2239, %v2431
  %v2433 = vpop.f32.mrb[0].mxu0
  %v2434 = vadd.f32 %v2241, %v2433
  %2435 = vmatprep.mubr.bf16.mxu0 %v1339
  %2436 = vmatmul.mubr.bf16.gmra.mrb[0].mxu0 %v1338
  %v2437 = vpop.f32.mrb[0].mxu0
  %v2438 = vadd.f32 %v2245, %v2437
  %v2439 = vpop.f32.mrb[0].mxu0
  %v2440 = vadd.f32 %v2247, %v2439
  %v2441 = vpop.f32.mrb[0].mxu0
  %v2442 = vadd.f32 %v2249, %v2441
  %v2443 = vpop.f32.mrb[0].mxu0
  %v2444 = vadd.f32 %v2251, %v2443
  %2445 = vmatprep.mubr.bf16.mxu0 %v1343
  %2446 = vmatmul.mubr.bf16.gmra.mrb[0].mxu0 %v1342
  %v2447 = vpop.f32.mrb[0].mxu0
  %v2448 = vadd.f32 %v2255, %v2447
  %v2449 = vpop.f32.mrb[0].mxu0
  %v2450 = vadd.f32 %v2257, %v2449
  %v2451 = vpop.f32.mrb[0].mxu0
  %v2452 = vadd.f32 %v2259, %v2451
  %v2453 = vpop.f32.mrb[0].mxu0
  %v2454 = vadd.f32 %v2261, %v2453
  %2455 = vmatprep.mubr.bf16.mxu0 %v1347
  %2456 = vmatmul.mubr.bf16.gmra.mrb[0].mxu0 %v1346
  %v2457 = vpop.f32.mrb[0].mxu0
  %v2458 = vadd.f32 %v2265, %v2457
  %v2459 = vpop.f32.mrb[0].mxu0
  %v2460 = vadd.f32 %v2267, %v2459
  %v2461 = vpop.f32.mrb[0].mxu0
  %v2462 = vadd.f32 %v2269, %v2461
  %v2463 = vpop.f32.mrb[0].mxu0
  %v2464 = vadd.f32 %v2271, %v2463
  %2465 = vmatprep.mubr.bf16.mxu0 %v1351
  %2466 = vmatmul.mubr.bf16.gmra.mrb[0].mxu0 %v1350
  %v2467 = vpop.f32.mrb[0].mxu0
  %v2468 = vadd.f32 %v2275, %v2467
  %v2469 = vpop.f32.mrb[0].mxu0
  %v2470 = vadd.f32 %v2277, %v2469
  %v2471 = vpop.f32.mrb[0].mxu0
  %v2472 = vadd.f32 %v2279, %v2471
  %v2473 = vpop.f32.mrb[0].mxu0
  %v2474 = vadd.f32 %v2281, %v2473
  %2475 = vmatprep.mubr.bf16.mxu0 %v1355
  %2476 = vmatmul.mubr.bf16.gmra.mrb[0].mxu0 %v1354
  %v2477 = vpop.f32.mrb[0].mxu0
  %v2478 = vadd.f32 %v2285, %v2477
  %v2479 = vpop.f32.mrb[0].mxu0
  %v2480 = vadd.f32 %v2287, %v2479
  %v2481 = vpop.f32.mrb[0].mxu0
  %v2482 = vadd.f32 %v2289, %v2481
  %v2483 = vpop.f32.mrb[0].mxu0
  %v2484 = vadd.f32 %v2291, %v2483
  %2485 = vmatprep.mubr.bf16.mxu0 %v1359
  %2486 = vmatmul.mubr.bf16.gmra.mrb[0].mxu0 %v1358
  %v2487 = vpop.f32.mrb[0].mxu0
  %v2488 = vadd.f32 %v2295, %v2487
  %v2489 = vpop.f32.mrb[0].mxu0
  %v2490 = vadd.f32 %v2297, %v2489
  %v2491 = vpop.f32.mrb[0].mxu0
  %v2492 = vadd.f32 %v2299, %v2491
  %v2493 = vpop.f32.mrb[0].mxu0
  %v2494 = vadd.f32 %v2301, %v2493
  %2495 = vmatprep.mubr.bf16.mxu0 %v1363
  %2496 = vmatmul.mubr.bf16.gmra.mrb[0].mxu0 %v1362
  %v2497 = vpop.f32.mrb[0].mxu0
  %v2498 = vadd.f32 %v2305, %v2497
  %v2499 = vpop.f32.mrb[0].mxu0
  %v2500 = vadd.f32 %v2307, %v2499
  %v2501 = vpop.f32.mrb[0].mxu0
  %v2502 = vadd.f32 %v2309, %v2501
  %v2503 = vpop.f32.mrb[0].mxu0
  %v2504 = vadd.f32 %v2311, %v2503
  %2505 = vmatprep.mubr.bf16.mxu0 %v1367
  %2506 = vmatmul.mubr.bf16.gmra.mrb[0].mxu0 %v1366
  %v2507 = vpop.f32.mrb[0].mxu0
  %v2508 = vadd.f32 %v2315, %v2507
  %v2509 = vpop.f32.mrb[0].mxu0
  %v2510 = vadd.f32 %v2317, %v2509
  %v2511 = vpop.f32.mrb[0].mxu0
  %v2512 = vadd.f32 %v2319, %v2511
  %v2513 = vpop.f32.mrb[0].mxu0
  %v2514 = vadd.f32 %v2321, %v2513
  %2515 = vmatprep.mubr.bf16.mxu0 %v1371
  %2516 = vmatmul.mubr.bf16.gmra.mrb[0].mxu0 %v1370
  %v2517 = vpop.f32.mrb[0].mxu0
  %v2518 = vadd.f32 %v2325, %v2517
  %v2519 = vpop.f32.mrb[0].mxu0
  %v2520 = vadd.f32 %v2327, %v2519
  %v2521 = vpop.f32.mrb[0].mxu0
  %v2522 = vadd.f32 %v2329, %v2521
  %v2523 = vpop.f32.mrb[0].mxu0
  %v2524 = vadd.f32 %v2331, %v2523
  %2525 = vdwg.mxu0
  %2526 = vmatprep.subr.bf16.mxu0 %v1887
  %2527 = vmatpush1.bf16.msra.mxu0 %v1886
  %2528 = vmatprep.subr.bf16.mxu0 %v1891
  %2529 = vmatpush1.bf16.msra.mxu0 %v1890
  %2530 = vmatprep.subr.bf16.mxu0 %v1895
  %2531 = vmatpush1.bf16.msra.mxu0 %v1894
  %2532 = vmatprep.subr.bf16.mxu0 %v1899
  %2533 = vmatpush1.bf16.msra.mxu0 %v1898
  %2534 = vmatprep.subr.bf16.mxu0 %v1903
  %2535 = vmatpush1.bf16.msra.mxu0 %v1902
  %2536 = vmatprep.subr.bf16.mxu0 %v1907
  %2537 = vmatpush1.bf16.msra.mxu0 %v1906
  %2538 = vmatprep.subr.bf16.mxu0 %v1911
  %2539 = vmatpush1.bf16.msra.mxu0 %v1910
  %2540 = vmatprep.subr.bf16.mxu0 %v1915
  %2541 = vmatpush1.bf16.msra.mxu0 %v1914
  %2542 = vmatprep.subr.bf16.mxu0 %v1919
  %2543 = vmatpush1.bf16.msra.mxu0 %v1918
  %2544 = vmatprep.subr.bf16.mxu0 %v1923
  %2545 = vmatpush1.bf16.msra.mxu0 %v1922
  %2546 = vmatprep.subr.bf16.mxu0 %v1927
  %2547 = vmatpush1.bf16.msra.mxu0 %v1926
  %2548 = vmatprep.subr.bf16.mxu0 %v1931
  %2549 = vmatpush1.bf16.msra.mxu0 %v1930
  %2550 = vmatprep.subr.bf16.mxu0 %v1935
  %2551 = vmatpush1.bf16.msra.mxu0 %v1934
  %2552 = vmatprep.subr.bf16.mxu0 %v1939
  %2553 = vmatpush1.bf16.msra.mxu0 %v1938
  %2554 = vmatprep.subr.bf16.mxu0 %v1943
  %2555 = vmatpush1.bf16.msra.mxu0 %v1942
  %2556 = vmatprep.subr.bf16.mxu0 %v1947
  %2557 = vmatpush1.bf16.msra.mxu0 %v1946
  %2558 = vmatprep.mubr.bf16.mxu0 %v1309
  %2559 = vmatmul.mubr.bf16.gmra.mrb[0].mxu0 %v1308
  %v2560 = vpop.f32.mrb[0].mxu0
  %v2561 = vadd.f32 0.0, %v2560
  %v2562 = vpop.f32.mrb[0].mxu0
  %v2563 = vadd.f32 0.0, %v2562
  %v2564 = vpop.f32.mrb[0].mxu0
  %v2565 = vadd.f32 0.0, %v2564
  %v2566 = vpop.f32.mrb[0].mxu0
  %v2567 = vadd.f32 0.0, %v2566
  %2568 = vmatprep.mubr.bf16.mxu0 %v1313
  %2569 = vmatmul.mubr.bf16.gmra.mrb[0].mxu0 %v1312
  %v2570 = vpop.f32.mrb[0].mxu0
  %v2571 = vadd.f32 0.0, %v2570
  %v2572 = vpop.f32.mrb[0].mxu0
  %v2573 = vadd.f32 0.0, %v2572
  %v2574 = vpop.f32.mrb[0].mxu0
  %v2575 = vadd.f32 0.0, %v2574
  %v2576 = vpop.f32.mrb[0].mxu0
  %v2577 = vadd.f32 0.0, %v2576
  %2578 = vmatprep.mubr.bf16.mxu0 %v1317
  %2579 = vmatmul.mubr.bf16.gmra.mrb[0].mxu0 %v1316
  %v2580 = vpop.f32.mrb[0].mxu0
  %v2581 = vadd.f32 0.0, %v2580
  %v2582 = vpop.f32.mrb[0].mxu0
  %v2583 = vadd.f32 0.0, %v2582
  %v2584 = vpop.f32.mrb[0].mxu0
  %v2585 = vadd.f32 0.0, %v2584
  %v2586 = vpop.f32.mrb[0].mxu0
  %v2587 = vadd.f32 0.0, %v2586
  %2588 = vmatprep.mubr.bf16.mxu0 %v1321
  %2589 = vmatmul.mubr.bf16.gmra.mrb[0].mxu0 %v1320
  %v2590 = vpop.f32.mrb[0].mxu0
  %v2591 = vadd.f32 0.0, %v2590
  %v2592 = vpop.f32.mrb[0].mxu0
  %v2593 = vadd.f32 0.0, %v2592
  %v2594 = vpop.f32.mrb[0].mxu0
  %v2595 = vadd.f32 0.0, %v2594
  %v2596 = vpop.f32.mrb[0].mxu0
  %v2597 = vadd.f32 0.0, %v2596
  %2598 = vmatprep.mubr.bf16.mxu0 %v1325
  %2599 = vmatmul.mubr.bf16.gmra.mrb[0].mxu0 %v1324
  %v2600 = vpop.f32.mrb[0].mxu0
  %v2601 = vadd.f32 0.0, %v2600
  %v2602 = vpop.f32.mrb[0].mxu0
  %v2603 = vadd.f32 0.0, %v2602
  %v2604 = vpop.f32.mrb[0].mxu0
  %v2605 = vadd.f32 0.0, %v2604
  %v2606 = vpop.f32.mrb[0].mxu0
  %v2607 = vadd.f32 0.0, %v2606
  %2608 = vmatprep.mubr.bf16.mxu0 %v1329
  %2609 = vmatmul.mubr.bf16.gmra.mrb[0].mxu0 %v1328
  %v2610 = vpop.f32.mrb[0].mxu0
  %v2611 = vadd.f32 0.0, %v2610
  %v2612 = vpop.f32.mrb[0].mxu0
  %v2613 = vadd.f32 0.0, %v2612
  %v2614 = vpop.f32.mrb[0].mxu0
  %v2615 = vadd.f32 0.0, %v2614
  %v2616 = vpop.f32.mrb[0].mxu0
  %v2617 = vadd.f32 0.0, %v2616
  %2618 = vmatprep.mubr.bf16.mxu0 %v1333
  %2619 = vmatmul.mubr.bf16.gmra.mrb[0].mxu0 %v1332
  %v2620 = vpop.f32.mrb[0].mxu0
  %v2621 = vadd.f32 0.0, %v2620
  %v2622 = vpop.f32.mrb[0].mxu0
  %v2623 = vadd.f32 0.0, %v2622
  %v2624 = vpop.f32.mrb[0].mxu0
  %v2625 = vadd.f32 0.0, %v2624
  %v2626 = vpop.f32.mrb[0].mxu0
  %v2627 = vadd.f32 0.0, %v2626
  %2628 = vmatprep.mubr.bf16.mxu0 %v1337
  %2629 = vmatmul.mubr.bf16.gmra.mrb[0].mxu0 %v1336
  %v2630 = vpop.f32.mrb[0].mxu0
  %v2631 = vadd.f32 0.0, %v2630
  %v2632 = vpop.f32.mrb[0].mxu0
  %v2633 = vadd.f32 0.0, %v2632
  %v2634 = vpop.f32.mrb[0].mxu0
  %v2635 = vadd.f32 0.0, %v2634
  %v2636 = vpop.f32.mrb[0].mxu0
  %v2637 = vadd.f32 0.0, %v2636
  %2638 = vmatprep.mubr.bf16.mxu0 %v1341
  %2639 = vmatmul.mubr.bf16.gmra.mrb[0].mxu0 %v1340
  %v2640 = vpop.f32.mrb[0].mxu0
  %v2641 = vadd.f32 0.0, %v2640
  %v2642 = vpop.f32.mrb[0].mxu0
  %v2643 = vadd.f32 0.0, %v2642
  %v2644 = vpop.f32.mrb[0].mxu0
  %v2645 = vadd.f32 0.0, %v2644
  %v2646 = vpop.f32.mrb[0].mxu0
  %v2647 = vadd.f32 0.0, %v2646
  %2648 = vmatprep.mubr.bf16.mxu0 %v1345
  %2649 = vmatmul.mubr.bf16.gmra.mrb[0].mxu0 %v1344
  %v2650 = vpop.f32.mrb[0].mxu0
  %v2651 = vadd.f32 0.0, %v2650
  %v2652 = vpop.f32.mrb[0].mxu0
  %v2653 = vadd.f32 0.0, %v2652
  %v2654 = vpop.f32.mrb[0].mxu0
  %v2655 = vadd.f32 0.0, %v2654
  %v2656 = vpop.f32.mrb[0].mxu0
  %v2657 = vadd.f32 0.0, %v2656
  %2658 = vmatprep.mubr.bf16.mxu0 %v1349
  %2659 = vmatmul.mubr.bf16.gmra.mrb[0].mxu0 %v1348
  %v2660 = vpop.f32.mrb[0].mxu0
  %v2661 = vadd.f32 0.0, %v2660
  %v2662 = vpop.f32.mrb[0].mxu0
  %v2663 = vadd.f32 0.0, %v2662
  %v2664 = vpop.f32.mrb[0].mxu0
  %v2665 = vadd.f32 0.0, %v2664
  %v2666 = vpop.f32.mrb[0].mxu0
  %v2667 = vadd.f32 0.0, %v2666
  %2668 = vmatprep.mubr.bf16.mxu0 %v1353
  %2669 = vmatmul.mubr.bf16.gmra.mrb[0].mxu0 %v1352
  %v2670 = vpop.f32.mrb[0].mxu0
  %v2671 = vadd.f32 0.0, %v2670
  %v2672 = vpop.f32.mrb[0].mxu0
  %v2673 = vadd.f32 0.0, %v2672
  %v2674 = vpop.f32.mrb[0].mxu0
  %v2675 = vadd.f32 0.0, %v2674
  %v2676 = vpop.f32.mrb[0].mxu0
  %v2677 = vadd.f32 0.0, %v2676
  %2678 = vmatprep.mubr.bf16.mxu0 %v1357
  %2679 = vmatmul.mubr.bf16.gmra.mrb[0].mxu0 %v1356
  %v2680 = vpop.f32.mrb[0].mxu0
  %v2681 = vadd.f32 0.0, %v2680
  %v2682 = vpop.f32.mrb[0].mxu0
  %v2683 = vadd.f32 0.0, %v2682
  %v2684 = vpop.f32.mrb[0].mxu0
  %v2685 = vadd.f32 0.0, %v2684
  %v2686 = vpop.f32.mrb[0].mxu0
  %v2687 = vadd.f32 0.0, %v2686
  %2688 = vmatprep.mubr.bf16.mxu0 %v1361
  %2689 = vmatmul.mubr.bf16.gmra.mrb[0].mxu0 %v1360
  %v2690 = vpop.f32.mrb[0].mxu0
  %v2691 = vadd.f32 0.0, %v2690
  %v2692 = vpop.f32.mrb[0].mxu0
  %v2693 = vadd.f32 0.0, %v2692
  %v2694 = vpop.f32.mrb[0].mxu0
  %v2695 = vadd.f32 0.0, %v2694
  %v2696 = vpop.f32.mrb[0].mxu0
  %v2697 = vadd.f32 0.0, %v2696
  %2698 = vmatprep.mubr.bf16.mxu0 %v1365
  %2699 = vmatmul.mubr.bf16.gmra.mrb[0].mxu0 %v1364
  %v2700 = vpop.f32.mrb[0].mxu0
  %v2701 = vadd.f32 0.0, %v2700
  %v2702 = vpop.f32.mrb[0].mxu0
  %v2703 = vadd.f32 0.0, %v2702
  %v2704 = vpop.f32.mrb[0].mxu0
  %v2705 = vadd.f32 0.0, %v2704
  %v2706 = vpop.f32.mrb[0].mxu0
  %v2707 = vadd.f32 0.0, %v2706
  %2708 = vmatprep.mubr.bf16.mxu0 %v1369
  %2709 = vmatmul.mubr.bf16.gmra.mrb[0].mxu0 %v1368
  %v2710 = vpop.f32.mrb[0].mxu0
  %v2711 = vadd.f32 0.0, %v2710
  %v2712 = vpop.f32.mrb[0].mxu0
  %v2713 = vadd.f32 0.0, %v2712
  %v2714 = vpop.f32.mrb[0].mxu0
  %v2715 = vadd.f32 0.0, %v2714
  %v2716 = vpop.f32.mrb[0].mxu0
  %v2717 = vadd.f32 0.0, %v2716
  %2718 = vdwg.mxu0
  %2719 = vmatprep.subr.bf16.mxu0 %v1951
  %2720 = vmatpush1.bf16.msra.mxu0 %v1950
  %2721 = vmatprep.subr.bf16.mxu0 %v1955
  %2722 = vmatpush1.bf16.msra.mxu0 %v1954
  %2723 = vmatprep.subr.bf16.mxu0 %v1959
  %2724 = vmatpush1.bf16.msra.mxu0 %v1958
  %2725 = vmatprep.subr.bf16.mxu0 %v1963
  %2726 = vmatpush1.bf16.msra.mxu0 %v1962
  %2727 = vmatprep.subr.bf16.mxu0 %v1967
  %2728 = vmatpush1.bf16.msra.mxu0 %v1966
  %2729 = vmatprep.subr.bf16.mxu0 %v1971
  %2730 = vmatpush1.bf16.msra.mxu0 %v1970
  %2731 = vmatprep.subr.bf16.mxu0 %v1975
  %2732 = vmatpush1.bf16.msra.mxu0 %v1974
  %2733 = vmatprep.subr.bf16.mxu0 %v1979
  %2734 = vmatpush1.bf16.msra.mxu0 %v1978
  %2735 = vmatprep.subr.bf16.mxu0 %v1983
  %2736 = vmatpush1.bf16.msra.mxu0 %v1982
  %2737 = vmatprep.subr.bf16.mxu0 %v1987
  %2738 = vmatpush1.bf16.msra.mxu0 %v1986
  %2739 = vmatprep.subr.bf16.mxu0 %v1991
  %2740 = vmatpush1.bf16.msra.mxu0 %v1990
  %2741 = vmatprep.subr.bf16.mxu0 %v1995
  %2742 = vmatpush1.bf16.msra.mxu0 %v1994
  %2743 = vmatprep.subr.bf16.mxu0 %v1999
  %2744 = vmatpush1.bf16.msra.mxu0 %v1998
  %2745 = vmatprep.subr.bf16.mxu0 %v2003
  %2746 = vmatpush1.bf16.msra.mxu0 %v2002
  %2747 = vmatprep.subr.bf16.mxu0 %v2007
  %2748 = vmatpush1.bf16.msra.mxu0 %v2006
  %2749 = vmatprep.subr.bf16.mxu0 %v2011
  %2750 = vmatpush1.bf16.msra.mxu0 %v2010
  %2751 = vmatprep.mubr.bf16.mxu0 %v1311
  %2752 = vmatmul.mubr.bf16.gmra.mrb[0].mxu0 %v1310
  %v2753 = vpop.f32.mrb[0].mxu0
  %v2754 = vadd.f32 %v2561, %v2753
  %v2755 = vpop.f32.mrb[0].mxu0
  %v2756 = vadd.f32 %v2563, %v2755
  %v2757 = vpop.f32.mrb[0].mxu0
  %v2758 = vadd.f32 %v2565, %v2757
  %v2759 = vpop.f32.mrb[0].mxu0
  %v2760 = vadd.f32 %v2567, %v2759
  %2761 = vmatprep.mubr.bf16.mxu0 %v1315
  %2762 = vmatmul.mubr.bf16.gmra.mrb[0].mxu0 %v1314
  %v2763 = vpop.f32.mrb[0].mxu0
  %v2764 = vadd.f32 %v2571, %v2763
  %v2765 = vpop.f32.mrb[0].mxu0
  %v2766 = vadd.f32 %v2573, %v2765
  %v2767 = vpop.f32.mrb[0].mxu0
  %v2768 = vadd.f32 %v2575, %v2767
  %v2769 = vpop.f32.mrb[0].mxu0
  %v2770 = vadd.f32 %v2577, %v2769
  %2771 = vmatprep.mubr.bf16.mxu0 %v1319
  %2772 = vmatmul.mubr.bf16.gmra.mrb[0].mxu0 %v1318
  %v2773 = vpop.f32.mrb[0].mxu0
  %v2774 = vadd.f32 %v2581, %v2773
  %v2775 = vpop.f32.mrb[0].mxu0
  %v2776 = vadd.f32 %v2583, %v2775
  %v2777 = vpop.f32.mrb[0].mxu0
  %v2778 = vadd.f32 %v2585, %v2777
  %v2779 = vpop.f32.mrb[0].mxu0
  %v2780 = vadd.f32 %v2587, %v2779
  %2781 = vmatprep.mubr.bf16.mxu0 %v1323
  %2782 = vmatmul.mubr.bf16.gmra.mrb[0].mxu0 %v1322
  %v2783 = vpop.f32.mrb[0].mxu0
  %v2784 = vadd.f32 %v2591, %v2783
  %v2785 = vpop.f32.mrb[0].mxu0
  %v2786 = vadd.f32 %v2593, %v2785
  %v2787 = vpop.f32.mrb[0].mxu0
  %v2788 = vadd.f32 %v2595, %v2787
  %v2789 = vpop.f32.mrb[0].mxu0
  %v2790 = vadd.f32 %v2597, %v2789
  %2791 = vmatprep.mubr.bf16.mxu0 %v1327
  %2792 = vmatmul.mubr.bf16.gmra.mrb[0].mxu0 %v1326
  %v2793 = vpop.f32.mrb[0].mxu0
  %v2794 = vadd.f32 %v2601, %v2793
  %v2795 = vpop.f32.mrb[0].mxu0
  %v2796 = vadd.f32 %v2603, %v2795
  %v2797 = vpop.f32.mrb[0].mxu0
  %v2798 = vadd.f32 %v2605, %v2797
  %v2799 = vpop.f32.mrb[0].mxu0
  %v2800 = vadd.f32 %v2607, %v2799
  %2801 = vmatprep.mubr.bf16.mxu0 %v1331
  %2802 = vmatmul.mubr.bf16.gmra.mrb[0].mxu0 %v1330
  %v2803 = vpop.f32.mrb[0].mxu0
  %v2804 = vadd.f32 %v2611, %v2803
  %v2805 = vpop.f32.mrb[0].mxu0
  %v2806 = vadd.f32 %v2613, %v2805
  %v2807 = vpop.f32.mrb[0].mxu0
  %v2808 = vadd.f32 %v2615, %v2807
  %v2809 = vpop.f32.mrb[0].mxu0
  %v2810 = vadd.f32 %v2617, %v2809
  %2811 = vmatprep.mubr.bf16.mxu0 %v1335
  %2812 = vmatmul.mubr.bf16.gmra.mrb[0].mxu0 %v1334
  %v2813 = vpop.f32.mrb[0].mxu0
  %v2814 = vadd.f32 %v2621, %v2813
  %v2815 = vpop.f32.mrb[0].mxu0
  %v2816 = vadd.f32 %v2623, %v2815
  %v2817 = vpop.f32.mrb[0].mxu0
  %v2818 = vadd.f32 %v2625, %v2817
  %v2819 = vpop.f32.mrb[0].mxu0
  %v2820 = vadd.f32 %v2627, %v2819
  %2821 = vmatprep.mubr.bf16.mxu0 %v1339
  %2822 = vmatmul.mubr.bf16.gmra.mrb[0].mxu0 %v1338
  %v2823 = vpop.f32.mrb[0].mxu0
  %v2824 = vadd.f32 %v2631, %v2823
  %v2825 = vpop.f32.mrb[0].mxu0
  %v2826 = vadd.f32 %v2633, %v2825
  %v2827 = vpop.f32.mrb[0].mxu0
  %v2828 = vadd.f32 %v2635, %v2827
  %v2829 = vpop.f32.mrb[0].mxu0
  %v2830 = vadd.f32 %v2637, %v2829
  %2831 = vmatprep.mubr.bf16.mxu0 %v1343
  %2832 = vmatmul.mubr.bf16.gmra.mrb[0].mxu0 %v1342
  %v2833 = vpop.f32.mrb[0].mxu0
  %v2834 = vadd.f32 %v2641, %v2833
  %v2835 = vpop.f32.mrb[0].mxu0
  %v2836 = vadd.f32 %v2643, %v2835
  %v2837 = vpop.f32.mrb[0].mxu0
  %v2838 = vadd.f32 %v2645, %v2837
  %v2839 = vpop.f32.mrb[0].mxu0
  %v2840 = vadd.f32 %v2647, %v2839
  %2841 = vmatprep.mubr.bf16.mxu0 %v1347
  %2842 = vmatmul.mubr.bf16.gmra.mrb[0].mxu0 %v1346
  %v2843 = vpop.f32.mrb[0].mxu0
  %v2844 = vadd.f32 %v2651, %v2843
  %v2845 = vpop.f32.mrb[0].mxu0
  %v2846 = vadd.f32 %v2653, %v2845
  %v2847 = vpop.f32.mrb[0].mxu0
  %v2848 = vadd.f32 %v2655, %v2847
  %v2849 = vpop.f32.mrb[0].mxu0
  %v2850 = vadd.f32 %v2657, %v2849
  %2851 = vmatprep.mubr.bf16.mxu0 %v1351
  %2852 = vmatmul.mubr.bf16.gmra.mrb[0].mxu0 %v1350
  %v2853 = vpop.f32.mrb[0].mxu0
  %v2854 = vadd.f32 %v2661, %v2853
  %v2855 = vpop.f32.mrb[0].mxu0
  %v2856 = vadd.f32 %v2663, %v2855
  %v2857 = vpop.f32.mrb[0].mxu0
  %v2858 = vadd.f32 %v2665, %v2857
  %v2859 = vpop.f32.mrb[0].mxu0
  %v2860 = vadd.f32 %v2667, %v2859
  %2861 = vmatprep.mubr.bf16.mxu0 %v1355
  %2862 = vmatmul.mubr.bf16.gmra.mrb[0].mxu0 %v1354
  %v2863 = vpop.f32.mrb[0].mxu0
  %v2864 = vadd.f32 %v2671, %v2863
  %v2865 = vpop.f32.mrb[0].mxu0
  %v2866 = vadd.f32 %v2673, %v2865
  %v2867 = vpop.f32.mrb[0].mxu0
  %v2868 = vadd.f32 %v2675, %v2867
  %v2869 = vpop.f32.mrb[0].mxu0
  %v2870 = vadd.f32 %v2677, %v2869
  %2871 = vmatprep.mubr.bf16.mxu0 %v1359
  %2872 = vmatmul.mubr.bf16.gmra.mrb[0].mxu0 %v1358
  %v2873 = vpop.f32.mrb[0].mxu0
  %v2874 = vadd.f32 %v2681, %v2873
  %v2875 = vpop.f32.mrb[0].mxu0
  %v2876 = vadd.f32 %v2683, %v2875
  %v2877 = vpop.f32.mrb[0].mxu0
  %v2878 = vadd.f32 %v2685, %v2877
  %v2879 = vpop.f32.mrb[0].mxu0
  %v2880 = vadd.f32 %v2687, %v2879
  %2881 = vmatprep.mubr.bf16.mxu0 %v1363
  %2882 = vmatmul.mubr.bf16.gmra.mrb[0].mxu0 %v1362
  %v2883 = vpop.f32.mrb[0].mxu0
  %v2884 = vadd.f32 %v2691, %v2883
  %v2885 = vpop.f32.mrb[0].mxu0
  %v2886 = vadd.f32 %v2693, %v2885
  %v2887 = vpop.f32.mrb[0].mxu0
  %v2888 = vadd.f32 %v2695, %v2887
  %v2889 = vpop.f32.mrb[0].mxu0
  %v2890 = vadd.f32 %v2697, %v2889
  %2891 = vmatprep.mubr.bf16.mxu0 %v1367
  %2892 = vmatmul.mubr.bf16.gmra.mrb[0].mxu0 %v1366
  %v2893 = vpop.f32.mrb[0].mxu0
  %v2894 = vadd.f32 %v2701, %v2893
  %v2895 = vpop.f32.mrb[0].mxu0
  %v2896 = vadd.f32 %v2703, %v2895
  %v2897 = vpop.f32.mrb[0].mxu0
  %v2898 = vadd.f32 %v2705, %v2897
  %v2899 = vpop.f32.mrb[0].mxu0
  %v2900 = vadd.f32 %v2707, %v2899
  %2901 = vmatprep.mubr.bf16.mxu0 %v1371
  %2902 = vmatmul.mubr.bf16.gmra.mrb[0].mxu0 %v1370
  %v2903 = vpop.f32.mrb[0].mxu0
  %v2904 = vadd.f32 %v2711, %v2903
  %v2905 = vpop.f32.mrb[0].mxu0
  %v2906 = vadd.f32 %v2713, %v2905
  %v2907 = vpop.f32.mrb[0].mxu0
  %v2908 = vadd.f32 %v2715, %v2907
  %v2909 = vpop.f32.mrb[0].mxu0
  %v2910 = vadd.f32 %v2717, %v2909
  %2911 = vdwg.mxu0
  %v2912 = vmax.f32 %v2368, 0.0
  %v2913 = vmax.f32 %v2370, 0.0
  %v2914 = vmax.f32 %v2754, 0.0
  %v2915 = vmax.f32 %v2756, 0.0
  %v2916 = vmax.f32 %v2372, 0.0
  %v2917 = vmax.f32 %v2374, 0.0
  %v2918 = vmax.f32 %v2758, 0.0
  %v2919 = vmax.f32 %v2760, 0.0
  %v2920 = vmax.f32 %v2378, 0.0
  %v2921 = vmax.f32 %v2380, 0.0
  %v2922 = vmax.f32 %v2764, 0.0
  %v2923 = vmax.f32 %v2766, 0.0
  %v2924 = vmax.f32 %v2382, 0.0
  %v2925 = vmax.f32 %v2384, 0.0
  %v2926 = vmax.f32 %v2768, 0.0
  %v2927 = vmax.f32 %v2770, 0.0
  %v2928 = vmax.f32 %v2388, 0.0
  %v2929 = vmax.f32 %v2390, 0.0
  %v2930 = vmax.f32 %v2774, 0.0
  %v2931 = vmax.f32 %v2776, 0.0
  %v2932 = vmax.f32 %v2392, 0.0
  %v2933 = vmax.f32 %v2394, 0.0
  %v2934 = vmax.f32 %v2778, 0.0
  %v2935 = vmax.f32 %v2780, 0.0
  %v2936 = vmax.f32 %v2398, 0.0
  %v2937 = vmax.f32 %v2400, 0.0
  %v2938 = vmax.f32 %v2784, 0.0
  %v2939 = vmax.f32 %v2786, 0.0
  %v2940 = vmax.f32 %v2402, 0.0
  %v2941 = vmax.f32 %v2404, 0.0
  %v2942 = vmax.f32 %v2788, 0.0
  %v2943 = vmax.f32 %v2790, 0.0
  %v2944 = vmax.f32 %v2408, 0.0
  %v2945 = vmax.f32 %v2410, 0.0
  %v2946 = vmax.f32 %v2794, 0.0
  %v2947 = vmax.f32 %v2796, 0.0
  %v2948 = vmax.f32 %v2412, 0.0
  %v2949 = vmax.f32 %v2414, 0.0
  %v2950 = vmax.f32 %v2798, 0.0
  %v2951 = vmax.f32 %v2800, 0.0
  %v2952 = vmax.f32 %v2418, 0.0
  %v2953 = vmax.f32 %v2420, 0.0
  %v2954 = vmax.f32 %v2804, 0.0
  %v2955 = vmax.f32 %v2806, 0.0
  %v2956 = vmax.f32 %v2422, 0.0
  %v2957 = vmax.f32 %v2424, 0.0
  %v2958 = vmax.f32 %v2808, 0.0
  %v2959 = vmax.f32 %v2810, 0.0
  %v2960 = vmax.f32 %v2428, 0.0
  %v2961 = vmax.f32 %v2430, 0.0
  %v2962 = vmax.f32 %v2814, 0.0
  %v2963 = vmax.f32 %v2816, 0.0
  %v2964 = vmax.f32 %v2432, 0.0
  %v2965 = vmax.f32 %v2434, 0.0
  %v2966 = vmax.f32 %v2818, 0.0
  %v2967 = vmax.f32 %v2820, 0.0
  %v2968 = vmax.f32 %v2438, 0.0
  %v2969 = vmax.f32 %v2440, 0.0
  %v2970 = vmax.f32 %v2824, 0.0
  %v2971 = vmax.f32 %v2826, 0.0
  %v2972 = vmax.f32 %v2442, 0.0
  %v2973 = vmax.f32 %v2444, 0.0
  %v2974 = vmax.f32 %v2828, 0.0
  %v2975 = vmax.f32 %v2830, 0.0
  %v2976 = vmax.f32 %v2448, 0.0
  %v2977 = vmax.f32 %v2450, 0.0
  %v2978 = vmax.f32 %v2834, 0.0
  %v2979 = vmax.f32 %v2836, 0.0
  %v2980 = vmax.f32 %v2452, 0.0
  %v2981 = vmax.f32 %v2454, 0.0
  %v2982 = vmax.f32 %v2838, 0.0
  %v2983 = vmax.f32 %v2840, 0.0
  %v2984 = vmax.f32 %v2458, 0.0
  %v2985 = vmax.f32 %v2460, 0.0
  %v2986 = vmax.f32 %v2844, 0.0
  %v2987 = vmax.f32 %v2846, 0.0
  %v2988 = vmax.f32 %v2462, 0.0
  %v2989 = vmax.f32 %v2464, 0.0
  %v2990 = vmax.f32 %v2848, 0.0
  %v2991 = vmax.f32 %v2850, 0.0
  %v2992 = vmax.f32 %v2468, 0.0
  %v2993 = vmax.f32 %v2470, 0.0
  %v2994 = vmax.f32 %v2854, 0.0
  %v2995 = vmax.f32 %v2856, 0.0
  %v2996 = vmax.f32 %v2472, 0.0
  %v2997 = vmax.f32 %v2474, 0.0
  %v2998 = vmax.f32 %v2858, 0.0
  %v2999 = vmax.f32 %v2860, 0.0
  %v3000 = vmax.f32 %v2478, 0.0
  %v3001 = vmax.f32 %v2480, 0.0
  %v3002 = vmax.f32 %v2864, 0.0
  %v3003 = vmax.f32 %v2866, 0.0
  %v3004 = vmax.f32 %v2482, 0.0
  %v3005 = vmax.f32 %v2484, 0.0
  %v3006 = vmax.f32 %v2868, 0.0
  %v3007 = vmax.f32 %v2870, 0.0
  %v3008 = vmax.f32 %v2488, 0.0
  %v3009 = vmax.f32 %v2490, 0.0
  %v3010 = vmax.f32 %v2874, 0.0
  %v3011 = vmax.f32 %v2876, 0.0
  %v3012 = vmax.f32 %v2492, 0.0
  %v3013 = vmax.f32 %v2494, 0.0
  %v3014 = vmax.f32 %v2878, 0.0
  %v3015 = vmax.f32 %v2880, 0.0
  %v3016 = vmax.f32 %v2498, 0.0
  %v3017 = vmax.f32 %v2500, 0.0
  %v3018 = vmax.f32 %v2884, 0.0
  %v3019 = vmax.f32 %v2886, 0.0
  %v3020 = vmax.f32 %v2502, 0.0
  %v3021 = vmax.f32 %v2504, 0.0
  %v3022 = vmax.f32 %v2888, 0.0
  %v3023 = vmax.f32 %v2890, 0.0
  %v3024 = vmax.f32 %v2508, 0.0
  %v3025 = vmax.f32 %v2510, 0.0
  %v3026 = vmax.f32 %v2894, 0.0
  %v3027 = vmax.f32 %v2896, 0.0
  %v3028 = vmax.f32 %v2512, 0.0
  %v3029 = vmax.f32 %v2514, 0.0
  %v3030 = vmax.f32 %v2898, 0.0
  %v3031 = vmax.f32 %v2900, 0.0
  %v3032 = vmax.f32 %v2518, 0.0
  %v3033 = vmax.f32 %v2520, 0.0
  %v3034 = vmax.f32 %v2904, 0.0
  %v3035 = vmax.f32 %v2906, 0.0
  %v3036 = vmax.f32 %v2522, 0.0
  %v3037 = vmax.f32 %v2524, 0.0
  %v3038 = vmax.f32 %v2908, 0.0
  %v3039 = vmax.f32 %v2910, 0.0
  %v3040 = vpack.c.bf16 %v2916, %v2912
  %v3041 = vpack.c.bf16 %v2917, %v2913
  %v3042 = vpack.c.bf16 %v2918, %v2914
  %v3043 = vpack.c.bf16 %v2919, %v2915
  %v3044 = vpack.c.bf16 %v2924, %v2920
  %v3045 = vpack.c.bf16 %v2925, %v2921
  %v3046 = vpack.c.bf16 %v2926, %v2922
  %v3047 = vpack.c.bf16 %v2927, %v2923
  %v3048 = vpack.c.bf16 %v2932, %v2928
  %v3049 = vpack.c.bf16 %v2933, %v2929
  %v3050 = vpack.c.bf16 %v2934, %v2930
  %v3051 = vpack.c.bf16 %v2935, %v2931
  %v3052 = vpack.c.bf16 %v2940, %v2936
  %v3053 = vpack.c.bf16 %v2941, %v2937
  %v3054 = vpack.c.bf16 %v2942, %v2938
  %v3055 = vpack.c.bf16 %v2943, %v2939
  %v3056 = vpack.c.bf16 %v2948, %v2944
  %v3057 = vpack.c.bf16 %v2949, %v2945
  %v3058 = vpack.c.bf16 %v2950, %v2946
  %v3059 = vpack.c.bf16 %v2951, %v2947
  %v3060 = vpack.c.bf16 %v2956, %v2952
  %v3061 = vpack.c.bf16 %v2957, %v2953
  %v3062 = vpack.c.bf16 %v2958, %v2954
  %v3063 = vpack.c.bf16 %v2959, %v2955
  %v3064 = vpack.c.bf16 %v2964, %v2960
  %v3065 = vpack.c.bf16 %v2965, %v2961
  %v3066 = vpack.c.bf16 %v2966, %v2962
  %v3067 = vpack.c.bf16 %v2967, %v2963
  %v3068 = vpack.c.bf16 %v2972, %v2968
  %v3069 = vpack.c.bf16 %v2973, %v2969
  %v3070 = vpack.c.bf16 %v2974, %v2970
  %v3071 = vpack.c.bf16 %v2975, %v2971
  %v3072 = vpack.c.bf16 %v2980, %v2976
  %v3073 = vpack.c.bf16 %v2981, %v2977
  %v3074 = vpack.c.bf16 %v2982, %v2978
  %v3075 = vpack.c.bf16 %v2983, %v2979
  %v3076 = vpack.c.bf16 %v2988, %v2984
  %v3077 = vpack.c.bf16 %v2989, %v2985
  %v3078 = vpack.c.bf16 %v2990, %v2986
  %v3079 = vpack.c.bf16 %v2991, %v2987
  %v3080 = vpack.c.bf16 %v2996, %v2992
  %v3081 = vpack.c.bf16 %v2997, %v2993
  %v3082 = vpack.c.bf16 %v2998, %v2994
  %v3083 = vpack.c.bf16 %v2999, %v2995
  %v3084 = vpack.c.bf16 %v3004, %v3000
  %v3085 = vpack.c.bf16 %v3005, %v3001
  %v3086 = vpack.c.bf16 %v3006, %v3002
  %v3087 = vpack.c.bf16 %v3007, %v3003
  %v3088 = vpack.c.bf16 %v3012, %v3008
  %v3089 = vpack.c.bf16 %v3013, %v3009
  %v3090 = vpack.c.bf16 %v3014, %v3010
  %v3091 = vpack.c.bf16 %v3015, %v3011
  %v3092 = vpack.c.bf16 %v3020, %v3016
  %v3093 = vpack.c.bf16 %v3021, %v3017
  %v3094 = vpack.c.bf16 %v3022, %v3018
  %v3095 = vpack.c.bf16 %v3023, %v3019
  %v3096 = vpack.c.bf16 %v3028, %v3024
  %v3097 = vpack.c.bf16 %v3029, %v3025
  %v3098 = vpack.c.bf16 %v3030, %v3026
  %v3099 = vpack.c.bf16 %v3031, %v3027
  %v3100 = vpack.c.bf16 %v3036, %v3032
  %v3101 = vpack.c.bf16 %v3037, %v3033
  %v3102 = vpack.c.bf16 %v3038, %v3034
  %v3103 = vpack.c.bf16 %v3039, %v3035
  %s3104 = smul.u32 0, 4
  %s3105 = smul.addr %s3104, 8
  %s3106 = scalar_lea.vmem [#allocation2], %s3105
  %3107 = vst [vmem:[%s3106] sm:$0xff] %v3040
  %3108 = vst [vmem:[%s3106 + $0x8] sm:$0xff] %v3041
  %3109 = vst [vmem:[%s3106 + $0x10] sm:$0xff] %v3042
  %3110 = vst [vmem:[%s3106 + $0x18] sm:$0xff] %v3043
  %3111 = vst [vmem:[%s3106 + $0x20] sm:$0xff] %v3044
  %3112 = vst [vmem:[%s3106 + $0x28] sm:$0xff] %v3045
  %3113 = vst [vmem:[%s3106 + $0x30] sm:$0xff] %v3046
  %3114 = vst [vmem:[%s3106 + $0x38] sm:$0xff] %v3047
  %3115 = vst [vmem:[%s3106 + $0x40] sm:$0xff] %v3048
  %3116 = vst [vmem:[%s3106 + $0x48] sm:$0xff] %v3049
  %3117 = vst [vmem:[%s3106 + $0x50] sm:$0xff] %v3050
  %3118 = vst [vmem:[%s3106 + $0x58] sm:$0xff] %v3051
  %3119 = vst [vmem:[%s3106 + $0x60] sm:$0xff] %v3052
  %3120 = vst [vmem:[%s3106 + $0x68] sm:$0xff] %v3053
  %3121 = vst [vmem:[%s3106 + $0x70] sm:$0xff] %v3054
  %3122 = vst [vmem:[%s3106 + $0x78] sm:$0xff] %v3055
  %3123 = vst [vmem:[%s3106 + $0x80] sm:$0xff] %v3056
  %3124 = vst [vmem:[%s3106 + $0x88] sm:$0xff] %v3057
  %3125 = vst [vmem:[%s3106 + $0x90] sm:$0xff] %v3058
  %3126 = vst [vmem:[%s3106 + $0x98] sm:$0xff] %v3059
  %3127 = vst [vmem:[%s3106 + $0xa0] sm:$0xff] %v3060
  %3128 = vst [vmem:[%s3106 + $0xa8] sm:$0xff] %v3061
  %3129 = vst [vmem:[%s3106 + $0xb0] sm:$0xff] %v3062
  %3130 = vst [vmem:[%s3106 + $0xb8] sm:$0xff] %v3063
  %3131 = vst [vmem:[%s3106 + $0xc0] sm:$0xff] %v3064
  %3132 = vst [vmem:[%s3106 + $0xc8] sm:$0xff] %v3065
  %3133 = vst [vmem:[%s3106 + $0xd0] sm:$0xff] %v3066
  %3134 = vst [vmem:[%s3106 + $0xd8] sm:$0xff] %v3067
  %3135 = vst [vmem:[%s3106 + $0xe0] sm:$0xff] %v3068
  %3136 = vst [vmem:[%s3106 + $0xe8] sm:$0xff] %v3069
  %3137 = vst [vmem:[%s3106 + $0xf0] sm:$0xff] %v3070
  %3138 = vst [vmem:[%s3106 + $0xf8] sm:$0xff] %v3071
  %3139 = vst [vmem:[%s3106 + $0x100] sm:$0xff] %v3072
  %3140 = vst [vmem:[%s3106 + $0x108] sm:$0xff] %v3073
  %3141 = vst [vmem:[%s3106 + $0x110] sm:$0xff] %v3074
  %3142 = vst [vmem:[%s3106 + $0x118] sm:$0xff] %v3075
  %3143 = vst [vmem:[%s3106 + $0x120] sm:$0xff] %v3076
  %3144 = vst [vmem:[%s3106 + $0x128] sm:$0xff] %v3077
  %3145 = vst [vmem:[%s3106 + $0x130] sm:$0xff] %v3078
  %3146 = vst [vmem:[%s3106 + $0x138] sm:$0xff] %v3079
  %3147 = vst [vmem:[%s3106 + $0x140] sm:$0xff] %v3080
  %3148 = vst [vmem:[%s3106 + $0x148] sm:$0xff] %v3081
  %3149 = vst [vmem:[%s3106 + $0x150] sm:$0xff] %v3082
  %3150 = vst [vmem:[%s3106 + $0x158] sm:$0xff] %v3083
  %3151 = vst [vmem:[%s3106 + $0x160] sm:$0xff] %v3084
  %3152 = vst [vmem:[%s3106 + $0x168] sm:$0xff] %v3085
  %3153 = vst [vmem:[%s3106 + $0x170] sm:$0xff] %v3086
  %3154 = vst [vmem:[%s3106 + $0x178] sm:$0xff] %v3087
  %3155 = vst [vmem:[%s3106 + $0x180] sm:$0xff] %v3088
  %3156 = vst [vmem:[%s3106 + $0x188] sm:$0xff] %v3089
  %3157 = vst [vmem:[%s3106 + $0x190] sm:$0xff] %v3090
  %3158 = vst [vmem:[%s3106 + $0x198] sm:$0xff] %v3091
  %3159 = vst [vmem:[%s3106 + $0x1a0] sm:$0xff] %v3092
  %3160 = vst [vmem:[%s3106 + $0x1a8] sm:$0xff] %v3093
  %3161 = vst [vmem:[%s3106 + $0x1b0] sm:$0xff] %v3094
  %3162 = vst [vmem:[%s3106 + $0x1b8] sm:$0xff] %v3095
  %3163 = vst [vmem:[%s3106 + $0x1c0] sm:$0xff] %v3096
  %3164 = vst [vmem:[%s3106 + $0x1c8] sm:$0xff] %v3097
  %3165 = vst [vmem:[%s3106 + $0x1d0] sm:$0xff] %v3098
  %3166 = vst [vmem:[%s3106 + $0x1d8] sm:$0xff] %v3099
  %3167 = vst [vmem:[%s3106 + $0x1e0] sm:$0xff] %v3100
  %3168 = vst [vmem:[%s3106 + $0x1e8] sm:$0xff] %v3101
  %3169 = vst [vmem:[%s3106 + $0x1f0] sm:$0xff] %v3102
  %3170 = vst [vmem:[%s3106 + $0x1f8] sm:$0xff] %v3103
  %v3171 = vld [vmem:[%s22] sm:$0xff]
  %v3172 = vld [vmem:[%s22 + $0x8] sm:$0xff]
  %v3173 = vld [vmem:[%s22 + $0x10] sm:$0xff]
  %v3174 = vld [vmem:[%s22 + $0x18] sm:$0xff]
  %v3175 = vld [vmem:[%s22 + $0x20] sm:$0xff]
  %v3176 = vld [vmem:[%s22 + $0x28] sm:$0xff]
  %v3177 = vld [vmem:[%s22 + $0x30] sm:$0xff]
  %v3178 = vld [vmem:[%s22 + $0x38] sm:$0xff]
  %v3179 = vld [vmem:[%s22 + $0x40] sm:$0xff]
  %v3180 = vld [vmem:[%s22 + $0x48] sm:$0xff]
  %v3181 = vld [vmem:[%s22 + $0x50] sm:$0xff]
  %v3182 = vld [vmem:[%s22 + $0x58] sm:$0xff]
  %v3183 = vld [vmem:[%s22 + $0x60] sm:$0xff]
  %v3184 = vld [vmem:[%s22 + $0x68] sm:$0xff]
  %v3185 = vld [vmem:[%s22 + $0x70] sm:$0xff]
  %v3186 = vld [vmem:[%s22 + $0x78] sm:$0xff]
  %v3187 = vld [vmem:[%s22 + $0x80] sm:$0xff]
  %v3188 = vld [vmem:[%s22 + $0x88] sm:$0xff]
  %v3189 = vld [vmem:[%s22 + $0x90] sm:$0xff]
  %v3190 = vld [vmem:[%s22 + $0x98] sm:$0xff]
  %v3191 = vld [vmem:[%s22 + $0xa0] sm:$0xff]
  %v3192 = vld [vmem:[%s22 + $0xa8] sm:$0xff]
  %v3193 = vld [vmem:[%s22 + $0xb0] sm:$0xff]
  %v3194 = vld [vmem:[%s22 + $0xb8] sm:$0xff]
  %v3195 = vld [vmem:[%s22 + $0xc0] sm:$0xff]
  %v3196 = vld [vmem:[%s22 + $0xc8] sm:$0xff]
  %v3197 = vld [vmem:[%s22 + $0xd0] sm:$0xff]
  %v3198 = vld [vmem:[%s22 + $0xd8] sm:$0xff]
  %v3199 = vld [vmem:[%s22 + $0xe0] sm:$0xff]
  %v3200 = vld [vmem:[%s22 + $0xe8] sm:$0xff]
  %v3201 = vld [vmem:[%s22 + $0xf0] sm:$0xff]
  %v3202 = vld [vmem:[%s22 + $0xf8] sm:$0xff]
  %v3203 = vld [vmem:[#allocation2] sm:$0xff]
  %v3204 = vld [vmem:[#allocation2 + $0x8] sm:$0xff]
  %v3205 = vld [vmem:[#allocation2 + $0x10] sm:$0xff]
  %v3206 = vld [vmem:[#allocation2 + $0x18] sm:$0xff]
  %v3207 = vld [vmem:[#allocation2 + $0x20] sm:$0xff]
  %v3208 = vld [vmem:[#allocation2 + $0x28] sm:$0xff]
  %v3209 = vld [vmem:[#allocation2 + $0x30] sm:$0xff]
  %v3210 = vld [vmem:[#allocation2 + $0x38] sm:$0xff]
  %v3211 = vld [vmem:[#allocation2 + $0x40] sm:$0xff]
  %v3212 = vld [vmem:[#allocation2 + $0x48] sm:$0xff]
  %v3213 = vld [vmem:[#allocation2 + $0x50] sm:$0xff]
  %v3214 = vld [vmem:[#allocation2 + $0x58] sm:$0xff]
  %v3215 = vld [vmem:[#allocation2 + $0x60] sm:$0xff]
  %v3216 = vld [vmem:[#allocation2 + $0x68] sm:$0xff]
  %v3217 = vld [vmem:[#allocation2 + $0x70] sm:$0xff]
  %v3218 = vld [vmem:[#allocation2 + $0x78] sm:$0xff]
  %v3219 = vld [vmem:[#allocation2 + $0x80] sm:$0xff]
  %v3220 = vld [vmem:[#allocation2 + $0x88] sm:$0xff]
  %v3221 = vld [vmem:[#allocation2 + $0x90] sm:$0xff]
  %v3222 = vld [vmem:[#allocation2 + $0x98] sm:$0xff]
  %v3223 = vld [vmem:[#allocation2 + $0xa0] sm:$0xff]
  %v3224 = vld [vmem:[#allocation2 + $0xa8] sm:$0xff]
  %v3225 = vld [vmem:[#allocation2 + $0xb0] sm:$0xff]
  %v3226 = vld [vmem:[#allocation2 + $0xb8] sm:$0xff]
  %v3227 = vld [vmem:[#allocation2 + $0xc0] sm:$0xff]
  %v3228 = vld [vmem:[#allocation2 + $0xc8] sm:$0xff]
  %v3229 = vld [vmem:[#allocation2 + $0xd0] sm:$0xff]
  %v3230 = vld [vmem:[#allocation2 + $0xd8] sm:$0xff]
  %v3231 = vld [vmem:[#allocation2 + $0xe0] sm:$0xff]
  %v3232 = vld [vmem:[#allocation2 + $0xe8] sm:$0xff]
  %v3233 = vld [vmem:[#allocation2 + $0xf0] sm:$0xff]
  %v3234 = vld [vmem:[#allocation2 + $0xf8] sm:$0xff]
  %v3235 = vld [vmem:[#allocation2 + $0x100] sm:$0xff]
  %v3236 = vld [vmem:[#allocation2 + $0x108] sm:$0xff]
  %v3237 = vld [vmem:[#allocation2 + $0x110] sm:$0xff]
  %v3238 = vld [vmem:[#allocation2 + $0x118] sm:$0xff]
  %v3239 = vld [vmem:[#allocation2 + $0x120] sm:$0xff]
  %v3240 = vld [vmem:[#allocation2 + $0x128] sm:$0xff]
  %v3241 = vld [vmem:[#allocation2 + $0x130] sm:$0xff]
  %v3242 = vld [vmem:[#allocation2 + $0x138] sm:$0xff]
  %v3243 = vld [vmem:[#allocation2 + $0x140] sm:$0xff]
  %v3244 = vld [vmem:[#allocation2 + $0x148] sm:$0xff]
  %v3245 = vld [vmem:[#allocation2 + $0x150] sm:$0xff]
  %v3246 = vld [vmem:[#allocation2 + $0x158] sm:$0xff]
  %v3247 = vld [vmem:[#allocation2 + $0x160] sm:$0xff]
  %v3248 = vld [vmem:[#allocation2 + $0x168] sm:$0xff]
  %v3249 = vld [vmem:[#allocation2 + $0x170] sm:$0xff]
  %v3250 = vld [vmem:[#allocation2 + $0x178] sm:$0xff]
  %v3251 = vld [vmem:[#allocation2 + $0x180] sm:$0xff]
  %v3252 = vld [vmem:[#allocation2 + $0x188] sm:$0xff]
  %v3253 = vld [vmem:[#allocation2 + $0x190] sm:$0xff]
  %v3254 = vld [vmem:[#allocation2 + $0x198] sm:$0xff]
  %v3255 = vld [vmem:[#allocation2 + $0x1a0] sm:$0xff]
  %v3256 = vld [vmem:[#allocation2 + $0x1a8] sm:$0xff]
  %v3257 = vld [vmem:[#allocation2 + $0x1b0] sm:$0xff]
  %v3258 = vld [vmem:[#allocation2 + $0x1b8] sm:$0xff]
  %v3259 = vld [vmem:[#allocation2 + $0x1c0] sm:$0xff]
  %v3260 = vld [vmem:[#allocation2 + $0x1c8] sm:$0xff]
  %v3261 = vld [vmem:[#allocation2 + $0x1d0] sm:$0xff]
  %v3262 = vld [vmem:[#allocation2 + $0x1d8] sm:$0xff]
  %v3263 = vld [vmem:[#allocation2 + $0x1e0] sm:$0xff]
  %v3264 = vld [vmem:[#allocation2 + $0x1e8] sm:$0xff]
  %v3265 = vld [vmem:[#allocation2 + $0x1f0] sm:$0xff]
  %v3266 = vld [vmem:[#allocation2 + $0x1f8] sm:$0xff]
  %v3267 = vld [vmem:[%s121] sm:$0xff]
  %v3268 = vld [vmem:[%s121 + $0x8] sm:$0xff]
  %v3269 = vld [vmem:[%s121 + $0x10] sm:$0xff]
  %v3270 = vld [vmem:[%s121 + $0x18] sm:$0xff]
  %v3271 = vld [vmem:[%s121 + $0x20] sm:$0xff]
  %v3272 = vld [vmem:[%s121 + $0x28] sm:$0xff]
  %v3273 = vld [vmem:[%s121 + $0x30] sm:$0xff]
  %v3274 = vld [vmem:[%s121 + $0x38] sm:$0xff]
  %v3275 = vld [vmem:[%s121 + $0x40] sm:$0xff]
  %v3276 = vld [vmem:[%s121 + $0x48] sm:$0xff]
  %v3277 = vld [vmem:[%s121 + $0x50] sm:$0xff]
  %v3278 = vld [vmem:[%s121 + $0x58] sm:$0xff]
  %v3279 = vld [vmem:[%s121 + $0x60] sm:$0xff]
  %v3280 = vld [vmem:[%s121 + $0x68] sm:$0xff]
  %v3281 = vld [vmem:[%s121 + $0x70] sm:$0xff]
  %v3282 = vld [vmem:[%s121 + $0x78] sm:$0xff]
  %v3283 = vld [vmem:[%s121 + $0x80] sm:$0xff]
  %v3284 = vld [vmem:[%s121 + $0x88] sm:$0xff]
  %v3285 = vld [vmem:[%s121 + $0x90] sm:$0xff]
  %v3286 = vld [vmem:[%s121 + $0x98] sm:$0xff]
  %v3287 = vld [vmem:[%s121 + $0xa0] sm:$0xff]
  %v3288 = vld [vmem:[%s121 + $0xa8] sm:$0xff]
  %v3289 = vld [vmem:[%s121 + $0xb0] sm:$0xff]
  %v3290 = vld [vmem:[%s121 + $0xb8] sm:$0xff]
  %v3291 = vld [vmem:[%s121 + $0xc0] sm:$0xff]
  %v3292 = vld [vmem:[%s121 + $0xc8] sm:$0xff]
  %v3293 = vld [vmem:[%s121 + $0xd0] sm:$0xff]
  %v3294 = vld [vmem:[%s121 + $0xd8] sm:$0xff]
  %v3295 = vld [vmem:[%s121 + $0xe0] sm:$0xff]
  %v3296 = vld [vmem:[%s121 + $0xe8] sm:$0xff]
  %v3297 = vld [vmem:[%s121 + $0xf0] sm:$0xff]
  %v3298 = vld [vmem:[%s121 + $0xf8] sm:$0xff]
  %v3299 = vld [vmem:[%s121 + $0x100] sm:$0xff]
  %v3300 = vld [vmem:[%s121 + $0x108] sm:$0xff]
  %v3301 = vld [vmem:[%s121 + $0x110] sm:$0xff]
  %v3302 = vld [vmem:[%s121 + $0x118] sm:$0xff]
  %v3303 = vld [vmem:[%s121 + $0x120] sm:$0xff]
  %v3304 = vld [vmem:[%s121 + $0x128] sm:$0xff]
  %v3305 = vld [vmem:[%s121 + $0x130] sm:$0xff]
  %v3306 = vld [vmem:[%s121 + $0x138] sm:$0xff]
  %v3307 = vld [vmem:[%s121 + $0x140] sm:$0xff]
  %v3308 = vld [vmem:[%s121 + $0x148] sm:$0xff]
  %v3309 = vld [vmem:[%s121 + $0x150] sm:$0xff]
  %v3310 = vld [vmem:[%s121 + $0x158] sm:$0xff]
  %v3311 = vld [vmem:[%s121 + $0x160] sm:$0xff]
  %v3312 = vld [vmem:[%s121 + $0x168] sm:$0xff]
  %v3313 = vld [vmem:[%s121 + $0x170] sm:$0xff]
  %v3314 = vld [vmem:[%s121 + $0x178] sm:$0xff]
  %v3315 = vld [vmem:[%s121 + $0x180] sm:$0xff]
  %v3316 = vld [vmem:[%s121 + $0x188] sm:$0xff]
  %v3317 = vld [vmem:[%s121 + $0x190] sm:$0xff]
  %v3318 = vld [vmem:[%s121 + $0x198] sm:$0xff]
  %v3319 = vld [vmem:[%s121 + $0x1a0] sm:$0xff]
  %v3320 = vld [vmem:[%s121 + $0x1a8] sm:$0xff]
  %v3321 = vld [vmem:[%s121 + $0x1b0] sm:$0xff]
  %v3322 = vld [vmem:[%s121 + $0x1b8] sm:$0xff]
  %v3323 = vld [vmem:[%s121 + $0x1c0] sm:$0xff]
  %v3324 = vld [vmem:[%s121 + $0x1c8] sm:$0xff]
  %v3325 = vld [vmem:[%s121 + $0x1d0] sm:$0xff]
  %v3326 = vld [vmem:[%s121 + $0x1d8] sm:$0xff]
  %v3327 = vld [vmem:[%s121 + $0x1e0] sm:$0xff]
  %v3328 = vld [vmem:[%s121 + $0x1e8] sm:$0xff]
  %v3329 = vld [vmem:[%s121 + $0x1f0] sm:$0xff]
  %v3330 = vld [vmem:[%s121 + $0x1f8] sm:$0xff]
  %v3331 = vunpack.c.l.bf16 %v3267
  %v3332 = vunpack.c.h.bf16 %v3267
  %v3333 = vunpack.c.l.bf16 %v3268
  %v3334 = vunpack.c.h.bf16 %v3268
  %v3335 = vunpack.c.l.bf16 %v3269
  %v3336 = vunpack.c.h.bf16 %v3269
  %v3337 = vunpack.c.l.bf16 %v3270
  %v3338 = vunpack.c.h.bf16 %v3270
  %v3339 = vunpack.c.l.bf16 %v3271
  %v3340 = vunpack.c.h.bf16 %v3271
  %v3341 = vunpack.c.l.bf16 %v3272
  %v3342 = vunpack.c.h.bf16 %v3272
  %v3343 = vunpack.c.l.bf16 %v3273
  %v3344 = vunpack.c.h.bf16 %v3273
  %v3345 = vunpack.c.l.bf16 %v3274
  %v3346 = vunpack.c.h.bf16 %v3274
  %v3347 = vunpack.c.l.bf16 %v3275
  %v3348 = vunpack.c.h.bf16 %v3275
  %v3349 = vunpack.c.l.bf16 %v3276
  %v3350 = vunpack.c.h.bf16 %v3276
  %v3351 = vunpack.c.l.bf16 %v3277
  %v3352 = vunpack.c.h.bf16 %v3277
  %v3353 = vunpack.c.l.bf16 %v3278
  %v3354 = vunpack.c.h.bf16 %v3278
  %v3355 = vunpack.c.l.bf16 %v3279
  %v3356 = vunpack.c.h.bf16 %v3279
  %v3357 = vunpack.c.l.bf16 %v3280
  %v3358 = vunpack.c.h.bf16 %v3280
  %v3359 = vunpack.c.l.bf16 %v3281
  %v3360 = vunpack.c.h.bf16 %v3281
  %v3361 = vunpack.c.l.bf16 %v3282
  %v3362 = vunpack.c.h.bf16 %v3282
  %v3363 = vunpack.c.l.bf16 %v3283
  %v3364 = vunpack.c.h.bf16 %v3283
  %v3365 = vunpack.c.l.bf16 %v3284
  %v3366 = vunpack.c.h.bf16 %v3284
  %v3367 = vunpack.c.l.bf16 %v3285
  %v3368 = vunpack.c.h.bf16 %v3285
  %v3369 = vunpack.c.l.bf16 %v3286
  %v3370 = vunpack.c.h.bf16 %v3286
  %v3371 = vunpack.c.l.bf16 %v3287
  %v3372 = vunpack.c.h.bf16 %v3287
  %v3373 = vunpack.c.l.bf16 %v3288
  %v3374 = vunpack.c.h.bf16 %v3288
  %v3375 = vunpack.c.l.bf16 %v3289
  %v3376 = vunpack.c.h.bf16 %v3289
  %v3377 = vunpack.c.l.bf16 %v3290
  %v3378 = vunpack.c.h.bf16 %v3290
  %v3379 = vunpack.c.l.bf16 %v3291
  %v3380 = vunpack.c.h.bf16 %v3291
  %v3381 = vunpack.c.l.bf16 %v3292
  %v3382 = vunpack.c.h.bf16 %v3292
  %v3383 = vunpack.c.l.bf16 %v3293
  %v3384 = vunpack.c.h.bf16 %v3293
  %v3385 = vunpack.c.l.bf16 %v3294
  %v3386 = vunpack.c.h.bf16 %v3294
  %v3387 = vunpack.c.l.bf16 %v3295
  %v3388 = vunpack.c.h.bf16 %v3295
  %v3389 = vunpack.c.l.bf16 %v3296
  %v3390 = vunpack.c.h.bf16 %v3296
  %v3391 = vunpack.c.l.bf16 %v3297
  %v3392 = vunpack.c.h.bf16 %v3297
  %v3393 = vunpack.c.l.bf16 %v3298
  %v3394 = vunpack.c.h.bf16 %v3298
  %v3395 = vunpack.c.l.bf16 %v3299
  %v3396 = vunpack.c.h.bf16 %v3299
  %v3397 = vunpack.c.l.bf16 %v3300
  %v3398 = vunpack.c.h.bf16 %v3300
  %v3399 = vunpack.c.l.bf16 %v3301
  %v3400 = vunpack.c.h.bf16 %v3301
  %v3401 = vunpack.c.l.bf16 %v3302
  %v3402 = vunpack.c.h.bf16 %v3302
  %v3403 = vunpack.c.l.bf16 %v3303
  %v3404 = vunpack.c.h.bf16 %v3303
  %v3405 = vunpack.c.l.bf16 %v3304
  %v3406 = vunpack.c.h.bf16 %v3304
  %v3407 = vunpack.c.l.bf16 %v3305
  %v3408 = vunpack.c.h.bf16 %v3305
  %v3409 = vunpack.c.l.bf16 %v3306
  %v3410 = vunpack.c.h.bf16 %v3306
  %v3411 = vunpack.c.l.bf16 %v3307
  %v3412 = vunpack.c.h.bf16 %v3307
  %v3413 = vunpack.c.l.bf16 %v3308
  %v3414 = vunpack.c.h.bf16 %v3308
  %v3415 = vunpack.c.l.bf16 %v3309
  %v3416 = vunpack.c.h.bf16 %v3309
  %v3417 = vunpack.c.l.bf16 %v3310
  %v3418 = vunpack.c.h.bf16 %v3310
  %v3419 = vunpack.c.l.bf16 %v3311
  %v3420 = vunpack.c.h.bf16 %v3311
  %v3421 = vunpack.c.l.bf16 %v3312
  %v3422 = vunpack.c.h.bf16 %v3312
  %v3423 = vunpack.c.l.bf16 %v3313
  %v3424 = vunpack.c.h.bf16 %v3313
  %v3425 = vunpack.c.l.bf16 %v3314
  %v3426 = vunpack.c.h.bf16 %v3314
  %v3427 = vunpack.c.l.bf16 %v3315
  %v3428 = vunpack.c.h.bf16 %v3315
  %v3429 = vunpack.c.l.bf16 %v3316
  %v3430 = vunpack.c.h.bf16 %v3316
  %v3431 = vunpack.c.l.bf16 %v3317
  %v3432 = vunpack.c.h.bf16 %v3317
  %v3433 = vunpack.c.l.bf16 %v3318
  %v3434 = vunpack.c.h.bf16 %v3318
  %v3435 = vunpack.c.l.bf16 %v3319
  %v3436 = vunpack.c.h.bf16 %v3319
  %v3437 = vunpack.c.l.bf16 %v3320
  %v3438 = vunpack.c.h.bf16 %v3320
  %v3439 = vunpack.c.l.bf16 %v3321
  %v3440 = vunpack.c.h.bf16 %v3321
  %v3441 = vunpack.c.l.bf16 %v3322
  %v3442 = vunpack.c.h.bf16 %v3322
  %v3443 = vunpack.c.l.bf16 %v3323
  %v3444 = vunpack.c.h.bf16 %v3323
  %v3445 = vunpack.c.l.bf16 %v3324
  %v3446 = vunpack.c.h.bf16 %v3324
  %v3447 = vunpack.c.l.bf16 %v3325
  %v3448 = vunpack.c.h.bf16 %v3325
  %v3449 = vunpack.c.l.bf16 %v3326
  %v3450 = vunpack.c.h.bf16 %v3326
  %v3451 = vunpack.c.l.bf16 %v3327
  %v3452 = vunpack.c.h.bf16 %v3327
  %v3453 = vunpack.c.l.bf16 %v3328
  %v3454 = vunpack.c.h.bf16 %v3328
  %v3455 = vunpack.c.l.bf16 %v3329
  %v3456 = vunpack.c.h.bf16 %v3329
  %v3457 = vunpack.c.l.bf16 %v3330
  %v3458 = vunpack.c.h.bf16 %v3330
  %v3459 = vmul.f32 %v3331, 0.2
  %v3460 = vmul.f32 %v3332, 0.2
  %v3461 = vmul.f32 %v3333, 0.2
  %v3462 = vmul.f32 %v3334, 0.2
  %v3463 = vmul.f32 %v3335, 0.2
  %v3464 = vmul.f32 %v3336, 0.2
  %v3465 = vmul.f32 %v3337, 0.2
  %v3466 = vmul.f32 %v3338, 0.2
  %v3467 = vmul.f32 %v3339, 0.2
  %v3468 = vmul.f32 %v3340, 0.2
  %v3469 = vmul.f32 %v3341, 0.2
  %v3470 = vmul.f32 %v3342, 0.2
  %v3471 = vmul.f32 %v3343, 0.2
  %v3472 = vmul.f32 %v3344, 0.2
  %v3473 = vmul.f32 %v3345, 0.2
  %v3474 = vmul.f32 %v3346, 0.2
  %v3475 = vmul.f32 %v3347, 0.2
  %v3476 = vmul.f32 %v3348, 0.2
  %v3477 = vmul.f32 %v3349, 0.2
  %v3478 = vmul.f32 %v3350, 0.2
  %v3479 = vmul.f32 %v3351, 0.2
  %v3480 = vmul.f32 %v3352, 0.2
  %v3481 = vmul.f32 %v3353, 0.2
  %v3482 = vmul.f32 %v3354, 0.2
  %v3483 = vmul.f32 %v3355, 0.2
  %v3484 = vmul.f32 %v3356, 0.2
  %v3485 = vmul.f32 %v3357, 0.2
  %v3486 = vmul.f32 %v3358, 0.2
  %v3487 = vmul.f32 %v3359, 0.2
  %v3488 = vmul.f32 %v3360, 0.2
  %v3489 = vmul.f32 %v3361, 0.2
  %v3490 = vmul.f32 %v3362, 0.2
  %v3491 = vmul.f32 %v3363, 0.2
  %v3492 = vmul.f32 %v3364, 0.2
  %v3493 = vmul.f32 %v3365, 0.2
  %v3494 = vmul.f32 %v3366, 0.2
  %v3495 = vmul.f32 %v3367, 0.2
  %v3496 = vmul.f32 %v3368, 0.2
  %v3497 = vmul.f32 %v3369, 0.2
  %v3498 = vmul.f32 %v3370, 0.2
  %v3499 = vmul.f32 %v3371, 0.2
  %v3500 = vmul.f32 %v3372, 0.2
  %v3501 = vmul.f32 %v3373, 0.2
  %v3502 = vmul.f32 %v3374, 0.2
  %v3503 = vmul.f32 %v3375, 0.2
  %v3504 = vmul.f32 %v3376, 0.2
  %v3505 = vmul.f32 %v3377, 0.2
  %v3506 = vmul.f32 %v3378, 0.2
  %v3507 = vmul.f32 %v3379, 0.2
  %v3508 = vmul.f32 %v3380, 0.2
  %v3509 = vmul.f32 %v3381, 0.2
  %v3510 = vmul.f32 %v3382, 0.2
  %v3511 = vmul.f32 %v3383, 0.2
  %v3512 = vmul.f32 %v3384, 0.2
  %v3513 = vmul.f32 %v3385, 0.2
  %v3514 = vmul.f32 %v3386, 0.2
  %v3515 = vmul.f32 %v3387, 0.2
  %v3516 = vmul.f32 %v3388, 0.2
  %v3517 = vmul.f32 %v3389, 0.2
  %v3518 = vmul.f32 %v3390, 0.2
  %v3519 = vmul.f32 %v3391, 0.2
  %v3520 = vmul.f32 %v3392, 0.2
  %v3521 = vmul.f32 %v3393, 0.2
  %v3522 = vmul.f32 %v3394, 0.2
  %v3523 = vmul.f32 %v3395, 0.2
  %v3524 = vmul.f32 %v3396, 0.2
  %v3525 = vmul.f32 %v3397, 0.2
  %v3526 = vmul.f32 %v3398, 0.2
  %v3527 = vmul.f32 %v3399, 0.2
  %v3528 = vmul.f32 %v3400, 0.2
  %v3529 = vmul.f32 %v3401, 0.2
  %v3530 = vmul.f32 %v3402, 0.2
  %v3531 = vmul.f32 %v3403, 0.2
  %v3532 = vmul.f32 %v3404, 0.2
  %v3533 = vmul.f32 %v3405, 0.2
  %v3534 = vmul.f32 %v3406, 0.2
  %v3535 = vmul.f32 %v3407, 0.2
  %v3536 = vmul.f32 %v3408, 0.2
  %v3537 = vmul.f32 %v3409, 0.2
  %v3538 = vmul.f32 %v3410, 0.2
  %v3539 = vmul.f32 %v3411, 0.2
  %v3540 = vmul.f32 %v3412, 0.2
  %v3541 = vmul.f32 %v3413, 0.2
  %v3542 = vmul.f32 %v3414, 0.2
  %v3543 = vmul.f32 %v3415, 0.2
  %v3544 = vmul.f32 %v3416, 0.2
  %v3545 = vmul.f32 %v3417, 0.2
  %v3546 = vmul.f32 %v3418, 0.2
  %v3547 = vmul.f32 %v3419, 0.2
  %v3548 = vmul.f32 %v3420, 0.2
  %v3549 = vmul.f32 %v3421, 0.2
  %v3550 = vmul.f32 %v3422, 0.2
  %v3551 = vmul.f32 %v3423, 0.2
  %v3552 = vmul.f32 %v3424, 0.2
  %v3553 = vmul.f32 %v3425, 0.2
  %v3554 = vmul.f32 %v3426, 0.2
  %v3555 = vmul.f32 %v3427, 0.2
  %v3556 = vmul.f32 %v3428, 0.2
  %v3557 = vmul.f32 %v3429, 0.2
  %v3558 = vmul.f32 %v3430, 0.2
  %v3559 = vmul.f32 %v3431, 0.2
  %v3560 = vmul.f32 %v3432, 0.2
  %v3561 = vmul.f32 %v3433, 0.2
  %v3562 = vmul.f32 %v3434, 0.2
  %v3563 = vmul.f32 %v3435, 0.2
  %v3564 = vmul.f32 %v3436, 0.2
  %v3565 = vmul.f32 %v3437, 0.2
  %v3566 = vmul.f32 %v3438, 0.2
  %v3567 = vmul.f32 %v3439, 0.2
  %v3568 = vmul.f32 %v3440, 0.2
  %v3569 = vmul.f32 %v3441, 0.2
  %v3570 = vmul.f32 %v3442, 0.2
  %v3571 = vmul.f32 %v3443, 0.2
  %v3572 = vmul.f32 %v3444, 0.2
  %v3573 = vmul.f32 %v3445, 0.2
  %v3574 = vmul.f32 %v3446, 0.2
  %v3575 = vmul.f32 %v3447, 0.2
  %v3576 = vmul.f32 %v3448, 0.2
  %v3577 = vmul.f32 %v3449, 0.2
  %v3578 = vmul.f32 %v3450, 0.2
  %v3579 = vmul.f32 %v3451, 0.2
  %v3580 = vmul.f32 %v3452, 0.2
  %v3581 = vmul.f32 %v3453, 0.2
  %v3582 = vmul.f32 %v3454, 0.2
  %v3583 = vmul.f32 %v3455, 0.2
  %v3584 = vmul.f32 %v3456, 0.2
  %v3585 = vmul.f32 %v3457, 0.2
  %v3586 = vmul.f32 %v3458, 0.2
  %v3619 = vunpack.c.l.b16 %v3171
  %v3620 = vunpack.c.h.b16 %v3171
  %v3621 = vunpack.c.l.b16 %v3172
  %v3622 = vunpack.c.h.b16 %v3172
  %v3623 = vunpack.c.l.b16 %v3173
  %v3624 = vunpack.c.h.b16 %v3173
  %v3625 = vunpack.c.l.b16 %v3174
  %v3626 = vunpack.c.h.b16 %v3174
  %v3627 = vunpack.c.l.b16 %v3175
  %v3628 = vunpack.c.h.b16 %v3175
  %v3629 = vunpack.c.l.b16 %v3176
  %v3630 = vunpack.c.h.b16 %v3176
  %v3631 = vunpack.c.l.b16 %v3177
  %v3632 = vunpack.c.h.b16 %v3177
  %v3633 = vunpack.c.l.b16 %v3178
  %v3634 = vunpack.c.h.b16 %v3178
  %v3635 = vunpack.c.l.b16 %v3179
  %v3636 = vunpack.c.h.b16 %v3179
  %v3637 = vunpack.c.l.b16 %v3180
  %v3638 = vunpack.c.h.b16 %v3180
  %v3639 = vunpack.c.l.b16 %v3181
  %v3640 = vunpack.c.h.b16 %v3181
  %v3641 = vunpack.c.l.b16 %v3182
  %v3642 = vunpack.c.h.b16 %v3182
  %v3643 = vunpack.c.l.b16 %v3183
  %v3644 = vunpack.c.h.b16 %v3183
  %v3645 = vunpack.c.l.b16 %v3184
  %v3646 = vunpack.c.h.b16 %v3184
  %v3647 = vunpack.c.l.b16 %v3185
  %v3648 = vunpack.c.h.b16 %v3185
  %v3649 = vunpack.c.l.b16 %v3186
  %v3650 = vunpack.c.h.b16 %v3186
  %v3651 = vunpack.c.l.b16 %v3187
  %v3652 = vunpack.c.h.b16 %v3187
  %v3653 = vunpack.c.l.b16 %v3188
  %v3654 = vunpack.c.h.b16 %v3188
  %v3655 = vunpack.c.l.b16 %v3189
  %v3656 = vunpack.c.h.b16 %v3189
  %v3657 = vunpack.c.l.b16 %v3190
  %v3658 = vunpack.c.h.b16 %v3190
  %v3659 = vunpack.c.l.b16 %v3191
  %v3660 = vunpack.c.h.b16 %v3191
  %v3661 = vunpack.c.l.b16 %v3192
  %v3662 = vunpack.c.h.b16 %v3192
  %v3663 = vunpack.c.l.b16 %v3193
  %v3664 = vunpack.c.h.b16 %v3193
  %v3665 = vunpack.c.l.b16 %v3194
  %v3666 = vunpack.c.h.b16 %v3194
  %v3667 = vunpack.c.l.b16 %v3195
  %v3668 = vunpack.c.h.b16 %v3195
  %v3669 = vunpack.c.l.b16 %v3196
  %v3670 = vunpack.c.h.b16 %v3196
  %v3671 = vunpack.c.l.b16 %v3197
  %v3672 = vunpack.c.h.b16 %v3197
  %v3673 = vunpack.c.l.b16 %v3198
  %v3674 = vunpack.c.h.b16 %v3198
  %v3675 = vunpack.c.l.b16 %v3199
  %v3676 = vunpack.c.h.b16 %v3199
  %v3677 = vunpack.c.l.b16 %v3200
  %v3678 = vunpack.c.h.b16 %v3200
  %v3679 = vunpack.c.l.b16 %v3201
  %v3680 = vunpack.c.h.b16 %v3201
  %v3681 = vunpack.c.l.b16 %v3202
  %v3682 = vunpack.c.h.b16 %v3202
  %v3683 = vpack.c.b16 %v3621, %v3619
  %v3684 = vpack.c.b16 %v3622, %v3620
  %v3685 = vpack.c.b16 %v3625, %v3623
  %v3686 = vpack.c.b16 %v3626, %v3624
  %v3687 = vpack.c.b16 %v3629, %v3627
  %v3688 = vpack.c.b16 %v3630, %v3628
  %v3689 = vpack.c.b16 %v3633, %v3631
  %v3690 = vpack.c.b16 %v3634, %v3632
  %v3691 = vpack.c.b16 %v3637, %v3635
  %v3692 = vpack.c.b16 %v3638, %v3636
  %v3693 = vpack.c.b16 %v3641, %v3639
  %v3694 = vpack.c.b16 %v3642, %v3640
  %v3695 = vpack.c.b16 %v3645, %v3643
  %v3696 = vpack.c.b16 %v3646, %v3644
  %v3697 = vpack.c.b16 %v3649, %v3647
  %v3698 = vpack.c.b16 %v3650, %v3648
  %v3699 = vpack.c.b16 %v3653, %v3651
  %v3700 = vpack.c.b16 %v3654, %v3652
  %v3701 = vpack.c.b16 %v3657, %v3655
  %v3702 = vpack.c.b16 %v3658, %v3656
  %v3703 = vpack.c.b16 %v3661, %v3659
  %v3704 = vpack.c.b16 %v3662, %v3660
  %v3705 = vpack.c.b16 %v3665, %v3663
  %v3706 = vpack.c.b16 %v3666, %v3664
  %v3707 = vpack.c.b16 %v3669, %v3667
  %v3708 = vpack.c.b16 %v3670, %v3668
  %v3709 = vpack.c.b16 %v3673, %v3671
  %v3710 = vpack.c.b16 %v3674, %v3672
  %v3711 = vpack.c.b16 %v3677, %v3675
  %v3712 = vpack.c.b16 %v3678, %v3676
  %v3713 = vpack.c.b16 %v3681, %v3679
  %v3714 = vpack.c.b16 %v3682, %v3680
  %3747 = vmatprep.subr.bf16.mxu0 %v3204
  %3748 = vmatpush1.bf16.msra.mxu0 %v3203
  %3749 = vmatprep.subr.bf16.mxu0 %v3208
  %3750 = vmatpush1.bf16.msra.mxu0 %v3207
  %3751 = vmatprep.subr.bf16.mxu0 %v3212
  %3752 = vmatpush1.bf16.msra.mxu0 %v3211
  %3753 = vmatprep.subr.bf16.mxu0 %v3216
  %3754 = vmatpush1.bf16.msra.mxu0 %v3215
  %3755 = vmatprep.subr.bf16.mxu0 %v3220
  %3756 = vmatpush1.bf16.msra.mxu0 %v3219
  %3757 = vmatprep.subr.bf16.mxu0 %v3224
  %3758 = vmatpush1.bf16.msra.mxu0 %v3223
  %3759 = vmatprep.subr.bf16.mxu0 %v3228
  %3760 = vmatpush1.bf16.msra.mxu0 %v3227
  %3761 = vmatprep.subr.bf16.mxu0 %v3232
  %3762 = vmatpush1.bf16.msra.mxu0 %v3231
  %3763 = vmatprep.subr.bf16.mxu0 %v3236
  %3764 = vmatpush1.bf16.msra.mxu0 %v3235
  %3765 = vmatprep.subr.bf16.mxu0 %v3240
  %3766 = vmatpush1.bf16.msra.mxu0 %v3239
  %3767 = vmatprep.subr.bf16.mxu0 %v3244
  %3768 = vmatpush1.bf16.msra.mxu0 %v3243
  %3769 = vmatprep.subr.bf16.mxu0 %v3248
  %3770 = vmatpush1.bf16.msra.mxu0 %v3247
  %3771 = vmatprep.subr.bf16.mxu0 %v3252
  %3772 = vmatpush1.bf16.msra.mxu0 %v3251
  %3773 = vmatprep.subr.bf16.mxu0 %v3256
  %3774 = vmatpush1.bf16.msra.mxu0 %v3255
  %3775 = vmatprep.subr.bf16.mxu0 %v3260
  %3776 = vmatpush1.bf16.msra.mxu0 %v3259
  %3777 = vmatprep.subr.bf16.mxu0 %v3264
  %3778 = vmatpush1.bf16.msra.mxu0 %v3263
  %3779 = vmatprep.mubr.bf16.mxu0 %v3684
  %3780 = vmatmul.mubr.bf16.gmra.mrb[0].mxu0 %v3683
  %v3781 = vpop.f32.mrb[0].mxu0
  %v3782 = vadd.f32 %v3459, %v3781
  %v3783 = vpop.f32.mrb[0].mxu0
  %v3784 = vadd.f32 %v3460, %v3783
  %v3785 = vpop.f32.mrb[0].mxu0
  %v3786 = vadd.f32 %v3463, %v3785
  %v3787 = vpop.f32.mrb[0].mxu0
  %v3788 = vadd.f32 %v3464, %v3787
  %3789 = vmatprep.mubr.bf16.mxu0 %v3686
  %3790 = vmatmul.mubr.bf16.gmra.mrb[0].mxu0 %v3685
  %v3791 = vpop.f32.mrb[0].mxu0
  %v3792 = vadd.f32 %v3467, %v3791
  %v3793 = vpop.f32.mrb[0].mxu0
  %v3794 = vadd.f32 %v3468, %v3793
  %v3795 = vpop.f32.mrb[0].mxu0
  %v3796 = vadd.f32 %v3471, %v3795
  %v3797 = vpop.f32.mrb[0].mxu0
  %v3798 = vadd.f32 %v3472, %v3797
  %3799 = vmatprep.mubr.bf16.mxu0 %v3688
  %3800 = vmatmul.mubr.bf16.gmra.mrb[0].mxu0 %v3687
  %v3801 = vpop.f32.mrb[0].mxu0
  %v3802 = vadd.f32 %v3475, %v3801
  %v3803 = vpop.f32.mrb[0].mxu0
  %v3804 = vadd.f32 %v3476, %v3803
  %v3805 = vpop.f32.mrb[0].mxu0
  %v3806 = vadd.f32 %v3479, %v3805
  %v3807 = vpop.f32.mrb[0].mxu0
  %v3808 = vadd.f32 %v3480, %v3807
  %3809 = vmatprep.mubr.bf16.mxu0 %v3690
  %3810 = vmatmul.mubr.bf16.gmra.mrb[0].mxu0 %v3689
  %v3811 = vpop.f32.mrb[0].mxu0
  %v3812 = vadd.f32 %v3483, %v3811
  %v3813 = vpop.f32.mrb[0].mxu0
  %v3814 = vadd.f32 %v3484, %v3813
  %v3815 = vpop.f32.mrb[0].mxu0
  %v3816 = vadd.f32 %v3487, %v3815
  %v3817 = vpop.f32.mrb[0].mxu0
  %v3818 = vadd.f32 %v3488, %v3817
  %3819 = vmatprep.mubr.bf16.mxu0 %v3692
  %3820 = vmatmul.mubr.bf16.gmra.mrb[0].mxu0 %v3691
  %v3821 = vpop.f32.mrb[0].mxu0
  %v3822 = vadd.f32 %v3491, %v3821
  %v3823 = vpop.f32.mrb[0].mxu0
  %v3824 = vadd.f32 %v3492, %v3823
  %v3825 = vpop.f32.mrb[0].mxu0
  %v3826 = vadd.f32 %v3495, %v3825
  %v3827 = vpop.f32.mrb[0].mxu0
  %v3828 = vadd.f32 %v3496, %v3827
  %3829 = vmatprep.mubr.bf16.mxu0 %v3694
  %3830 = vmatmul.mubr.bf16.gmra.mrb[0].mxu0 %v3693
  %v3831 = vpop.f32.mrb[0].mxu0
  %v3832 = vadd.f32 %v3499, %v3831
  %v3833 = vpop.f32.mrb[0].mxu0
  %v3834 = vadd.f32 %v3500, %v3833
  %v3835 = vpop.f32.mrb[0].mxu0
  %v3836 = vadd.f32 %v3503, %v3835
  %v3837 = vpop.f32.mrb[0].mxu0
  %v3838 = vadd.f32 %v3504, %v3837
  %3839 = vmatprep.mubr.bf16.mxu0 %v3696
  %3840 = vmatmul.mubr.bf16.gmra.mrb[0].mxu0 %v3695
  %v3841 = vpop.f32.mrb[0].mxu0
  %v3842 = vadd.f32 %v3507, %v3841
  %v3843 = vpop.f32.mrb[0].mxu0
  %v3844 = vadd.f32 %v3508, %v3843
  %v3845 = vpop.f32.mrb[0].mxu0
  %v3846 = vadd.f32 %v3511, %v3845
  %v3847 = vpop.f32.mrb[0].mxu0
  %v3848 = vadd.f32 %v3512, %v3847
  %3849 = vmatprep.mubr.bf16.mxu0 %v3698
  %3850 = vmatmul.mubr.bf16.gmra.mrb[0].mxu0 %v3697
  %v3851 = vpop.f32.mrb[0].mxu0
  %v3852 = vadd.f32 %v3515, %v3851
  %v3853 = vpop.f32.mrb[0].mxu0
  %v3854 = vadd.f32 %v3516, %v3853
  %v3855 = vpop.f32.mrb[0].mxu0
  %v3856 = vadd.f32 %v3519, %v3855
  %v3857 = vpop.f32.mrb[0].mxu0
  %v3858 = vadd.f32 %v3520, %v3857
  %3859 = vmatprep.mubr.bf16.mxu0 %v3700
  %3860 = vmatmul.mubr.bf16.gmra.mrb[0].mxu0 %v3699
  %v3861 = vpop.f32.mrb[0].mxu0
  %v3862 = vadd.f32 %v3523, %v3861
  %v3863 = vpop.f32.mrb[0].mxu0
  %v3864 = vadd.f32 %v3524, %v3863
  %v3865 = vpop.f32.mrb[0].mxu0
  %v3866 = vadd.f32 %v3527, %v3865
  %v3867 = vpop.f32.mrb[0].mxu0
  %v3868 = vadd.f32 %v3528, %v3867
  %3869 = vmatprep.mubr.bf16.mxu0 %v3702
  %3870 = vmatmul.mubr.bf16.gmra.mrb[0].mxu0 %v3701
  %v3871 = vpop.f32.mrb[0].mxu0
  %v3872 = vadd.f32 %v3531, %v3871
  %v3873 = vpop.f32.mrb[0].mxu0
  %v3874 = vadd.f32 %v3532, %v3873
  %v3875 = vpop.f32.mrb[0].mxu0
  %v3876 = vadd.f32 %v3535, %v3875
  %v3877 = vpop.f32.mrb[0].mxu0
  %v3878 = vadd.f32 %v3536, %v3877
  %3879 = vmatprep.mubr.bf16.mxu0 %v3704
  %3880 = vmatmul.mubr.bf16.gmra.mrb[0].mxu0 %v3703
  %v3881 = vpop.f32.mrb[0].mxu0
  %v3882 = vadd.f32 %v3539, %v3881
  %v3883 = vpop.f32.mrb[0].mxu0
  %v3884 = vadd.f32 %v3540, %v3883
  %v3885 = vpop.f32.mrb[0].mxu0
  %v3886 = vadd.f32 %v3543, %v3885
  %v3887 = vpop.f32.mrb[0].mxu0
  %v3888 = vadd.f32 %v3544, %v3887
  %3889 = vmatprep.mubr.bf16.mxu0 %v3706
  %3890 = vmatmul.mubr.bf16.gmra.mrb[0].mxu0 %v3705
  %v3891 = vpop.f32.mrb[0].mxu0
  %v3892 = vadd.f32 %v3547, %v3891
  %v3893 = vpop.f32.mrb[0].mxu0
  %v3894 = vadd.f32 %v3548, %v3893
  %v3895 = vpop.f32.mrb[0].mxu0
  %v3896 = vadd.f32 %v3551, %v3895
  %v3897 = vpop.f32.mrb[0].mxu0
  %v3898 = vadd.f32 %v3552, %v3897
  %3899 = vmatprep.mubr.bf16.mxu0 %v3708
  %3900 = vmatmul.mubr.bf16.gmra.mrb[0].mxu0 %v3707
  %v3901 = vpop.f32.mrb[0].mxu0
  %v3902 = vadd.f32 %v3555, %v3901
  %v3903 = vpop.f32.mrb[0].mxu0
  %v3904 = vadd.f32 %v3556, %v3903
  %v3905 = vpop.f32.mrb[0].mxu0
  %v3906 = vadd.f32 %v3559, %v3905
  %v3907 = vpop.f32.mrb[0].mxu0
  %v3908 = vadd.f32 %v3560, %v3907
  %3909 = vmatprep.mubr.bf16.mxu0 %v3710
  %3910 = vmatmul.mubr.bf16.gmra.mrb[0].mxu0 %v3709
  %v3911 = vpop.f32.mrb[0].mxu0
  %v3912 = vadd.f32 %v3563, %v3911
  %v3913 = vpop.f32.mrb[0].mxu0
  %v3914 = vadd.f32 %v3564, %v3913
  %v3915 = vpop.f32.mrb[0].mxu0
  %v3916 = vadd.f32 %v3567, %v3915
  %v3917 = vpop.f32.mrb[0].mxu0
  %v3918 = vadd.f32 %v3568, %v3917
  %3919 = vmatprep.mubr.bf16.mxu0 %v3712
  %3920 = vmatmul.mubr.bf16.gmra.mrb[0].mxu0 %v3711
  %v3921 = vpop.f32.mrb[0].mxu0
  %v3922 = vadd.f32 %v3571, %v3921
  %v3923 = vpop.f32.mrb[0].mxu0
  %v3924 = vadd.f32 %v3572, %v3923
  %v3925 = vpop.f32.mrb[0].mxu0
  %v3926 = vadd.f32 %v3575, %v3925
  %v3927 = vpop.f32.mrb[0].mxu0
  %v3928 = vadd.f32 %v3576, %v3927
  %3929 = vmatprep.mubr.bf16.mxu0 %v3714
  %3930 = vmatmul.mubr.bf16.gmra.mrb[0].mxu0 %v3713
  %v3931 = vpop.f32.mrb[0].mxu0
  %v3932 = vadd.f32 %v3579, %v3931
  %v3933 = vpop.f32.mrb[0].mxu0
  %v3934 = vadd.f32 %v3580, %v3933
  %v3935 = vpop.f32.mrb[0].mxu0
  %v3936 = vadd.f32 %v3583, %v3935
  %v3937 = vpop.f32.mrb[0].mxu0
  %v3938 = vadd.f32 %v3584, %v3937
  %3939 = vdwg.mxu0
  %3940 = vmatprep.subr.bf16.mxu0 %v3206
  %3941 = vmatpush1.bf16.msra.mxu0 %v3205
  %3942 = vmatprep.subr.bf16.mxu0 %v3210
  %3943 = vmatpush1.bf16.msra.mxu0 %v3209
  %3944 = vmatprep.subr.bf16.mxu0 %v3214
  %3945 = vmatpush1.bf16.msra.mxu0 %v3213
  %3946 = vmatprep.subr.bf16.mxu0 %v3218
  %3947 = vmatpush1.bf16.msra.mxu0 %v3217
  %3948 = vmatprep.subr.bf16.mxu0 %v3222
  %3949 = vmatpush1.bf16.msra.mxu0 %v3221
  %3950 = vmatprep.subr.bf16.mxu0 %v3226
  %3951 = vmatpush1.bf16.msra.mxu0 %v3225
  %3952 = vmatprep.subr.bf16.mxu0 %v3230
  %3953 = vmatpush1.bf16.msra.mxu0 %v3229
  %3954 = vmatprep.subr.bf16.mxu0 %v3234
  %3955 = vmatpush1.bf16.msra.mxu0 %v3233
  %3956 = vmatprep.subr.bf16.mxu0 %v3238
  %3957 = vmatpush1.bf16.msra.mxu0 %v3237
  %3958 = vmatprep.subr.bf16.mxu0 %v3242
  %3959 = vmatpush1.bf16.msra.mxu0 %v3241
  %3960 = vmatprep.subr.bf16.mxu0 %v3246
  %3961 = vmatpush1.bf16.msra.mxu0 %v3245
  %3962 = vmatprep.subr.bf16.mxu0 %v3250
  %3963 = vmatpush1.bf16.msra.mxu0 %v3249
  %3964 = vmatprep.subr.bf16.mxu0 %v3254
  %3965 = vmatpush1.bf16.msra.mxu0 %v3253
  %3966 = vmatprep.subr.bf16.mxu0 %v3258
  %3967 = vmatpush1.bf16.msra.mxu0 %v3257
  %3968 = vmatprep.subr.bf16.mxu0 %v3262
  %3969 = vmatpush1.bf16.msra.mxu0 %v3261
  %3970 = vmatprep.subr.bf16.mxu0 %v3266
  %3971 = vmatpush1.bf16.msra.mxu0 %v3265
  %3972 = vmatprep.mubr.bf16.mxu0 %v3684
  %3973 = vmatmul.mubr.bf16.gmra.mrb[0].mxu0 %v3683
  %v3974 = vpop.f32.mrb[0].mxu0
  %v3975 = vadd.f32 %v3461, %v3974
  %v3976 = vpop.f32.mrb[0].mxu0
  %v3977 = vadd.f32 %v3462, %v3976
  %v3978 = vpop.f32.mrb[0].mxu0
  %v3979 = vadd.f32 %v3465, %v3978
  %v3980 = vpop.f32.mrb[0].mxu0
  %v3981 = vadd.f32 %v3466, %v3980
  %3982 = vmatprep.mubr.bf16.mxu0 %v3686
  %3983 = vmatmul.mubr.bf16.gmra.mrb[0].mxu0 %v3685
  %v3984 = vpop.f32.mrb[0].mxu0
  %v3985 = vadd.f32 %v3469, %v3984
  %v3986 = vpop.f32.mrb[0].mxu0
  %v3987 = vadd.f32 %v3470, %v3986
  %v3988 = vpop.f32.mrb[0].mxu0
  %v3989 = vadd.f32 %v3473, %v3988
  %v3990 = vpop.f32.mrb[0].mxu0
  %v3991 = vadd.f32 %v3474, %v3990
  %3992 = vmatprep.mubr.bf16.mxu0 %v3688
  %3993 = vmatmul.mubr.bf16.gmra.mrb[0].mxu0 %v3687
  %v3994 = vpop.f32.mrb[0].mxu0
  %v3995 = vadd.f32 %v3477, %v3994
  %v3996 = vpop.f32.mrb[0].mxu0
  %v3997 = vadd.f32 %v3478, %v3996
  %v3998 = vpop.f32.mrb[0].mxu0
  %v3999 = vadd.f32 %v3481, %v3998
  %v4000 = vpop.f32.mrb[0].mxu0
  %v4001 = vadd.f32 %v3482, %v4000
  %4002 = vmatprep.mubr.bf16.mxu0 %v3690
  %4003 = vmatmul.mubr.bf16.gmra.mrb[0].mxu0 %v3689
  %v4004 = vpop.f32.mrb[0].mxu0
  %v4005 = vadd.f32 %v3485, %v4004
  %v4006 = vpop.f32.mrb[0].mxu0
  %v4007 = vadd.f32 %v3486, %v4006
  %v4008 = vpop.f32.mrb[0].mxu0
  %v4009 = vadd.f32 %v3489, %v4008
  %v4010 = vpop.f32.mrb[0].mxu0
  %v4011 = vadd.f32 %v3490, %v4010
  %4012 = vmatprep.mubr.bf16.mxu0 %v3692
  %4013 = vmatmul.mubr.bf16.gmra.mrb[0].mxu0 %v3691
  %v4014 = vpop.f32.mrb[0].mxu0
  %v4015 = vadd.f32 %v3493, %v4014
  %v4016 = vpop.f32.mrb[0].mxu0
  %v4017 = vadd.f32 %v3494, %v4016
  %v4018 = vpop.f32.mrb[0].mxu0
  %v4019 = vadd.f32 %v3497, %v4018
  %v4020 = vpop.f32.mrb[0].mxu0
  %v4021 = vadd.f32 %v3498, %v4020
  %4022 = vmatprep.mubr.bf16.mxu0 %v3694
  %4023 = vmatmul.mubr.bf16.gmra.mrb[0].mxu0 %v3693
  %v4024 = vpop.f32.mrb[0].mxu0
  %v4025 = vadd.f32 %v3501, %v4024
  %v4026 = vpop.f32.mrb[0].mxu0
  %v4027 = vadd.f32 %v3502, %v4026
  %v4028 = vpop.f32.mrb[0].mxu0
  %v4029 = vadd.f32 %v3505, %v4028
  %v4030 = vpop.f32.mrb[0].mxu0
  %v4031 = vadd.f32 %v3506, %v4030
  %4032 = vmatprep.mubr.bf16.mxu0 %v3696
  %4033 = vmatmul.mubr.bf16.gmra.mrb[0].mxu0 %v3695
  %v4034 = vpop.f32.mrb[0].mxu0
  %v4035 = vadd.f32 %v3509, %v4034
  %v4036 = vpop.f32.mrb[0].mxu0
  %v4037 = vadd.f32 %v3510, %v4036
  %v4038 = vpop.f32.mrb[0].mxu0
  %v4039 = vadd.f32 %v3513, %v4038
  %v4040 = vpop.f32.mrb[0].mxu0
  %v4041 = vadd.f32 %v3514, %v4040
  %4042 = vmatprep.mubr.bf16.mxu0 %v3698
  %4043 = vmatmul.mubr.bf16.gmra.mrb[0].mxu0 %v3697
  %v4044 = vpop.f32.mrb[0].mxu0
  %v4045 = vadd.f32 %v3517, %v4044
  %v4046 = vpop.f32.mrb[0].mxu0
  %v4047 = vadd.f32 %v3518, %v4046
  %v4048 = vpop.f32.mrb[0].mxu0
  %v4049 = vadd.f32 %v3521, %v4048
  %v4050 = vpop.f32.mrb[0].mxu0
  %v4051 = vadd.f32 %v3522, %v4050
  %4052 = vmatprep.mubr.bf16.mxu0 %v3700
  %4053 = vmatmul.mubr.bf16.gmra.mrb[0].mxu0 %v3699
  %v4054 = vpop.f32.mrb[0].mxu0
  %v4055 = vadd.f32 %v3525, %v4054
  %v4056 = vpop.f32.mrb[0].mxu0
  %v4057 = vadd.f32 %v3526, %v4056
  %v4058 = vpop.f32.mrb[0].mxu0
  %v4059 = vadd.f32 %v3529, %v4058
  %v4060 = vpop.f32.mrb[0].mxu0
  %v4061 = vadd.f32 %v3530, %v4060
  %4062 = vmatprep.mubr.bf16.mxu0 %v3702
  %4063 = vmatmul.mubr.bf16.gmra.mrb[0].mxu0 %v3701
  %v4064 = vpop.f32.mrb[0].mxu0
  %v4065 = vadd.f32 %v3533, %v4064
  %v4066 = vpop.f32.mrb[0].mxu0
  %v4067 = vadd.f32 %v3534, %v4066
  %v4068 = vpop.f32.mrb[0].mxu0
  %v4069 = vadd.f32 %v3537, %v4068
  %v4070 = vpop.f32.mrb[0].mxu0
  %v4071 = vadd.f32 %v3538, %v4070
  %4072 = vmatprep.mubr.bf16.mxu0 %v3704
  %4073 = vmatmul.mubr.bf16.gmra.mrb[0].mxu0 %v3703
  %v4074 = vpop.f32.mrb[0].mxu0
  %v4075 = vadd.f32 %v3541, %v4074
  %v4076 = vpop.f32.mrb[0].mxu0
  %v4077 = vadd.f32 %v3542, %v4076
  %v4078 = vpop.f32.mrb[0].mxu0
  %v4079 = vadd.f32 %v3545, %v4078
  %v4080 = vpop.f32.mrb[0].mxu0
  %v4081 = vadd.f32 %v3546, %v4080
  %4082 = vmatprep.mubr.bf16.mxu0 %v3706
  %4083 = vmatmul.mubr.bf16.gmra.mrb[0].mxu0 %v3705
  %v4084 = vpop.f32.mrb[0].mxu0
  %v4085 = vadd.f32 %v3549, %v4084
  %v4086 = vpop.f32.mrb[0].mxu0
  %v4087 = vadd.f32 %v3550, %v4086
  %v4088 = vpop.f32.mrb[0].mxu0
  %v4089 = vadd.f32 %v3553, %v4088
  %v4090 = vpop.f32.mrb[0].mxu0
  %v4091 = vadd.f32 %v3554, %v4090
  %4092 = vmatprep.mubr.bf16.mxu0 %v3708
  %4093 = vmatmul.mubr.bf16.gmra.mrb[0].mxu0 %v3707
  %v4094 = vpop.f32.mrb[0].mxu0
  %v4095 = vadd.f32 %v3557, %v4094
  %v4096 = vpop.f32.mrb[0].mxu0
  %v4097 = vadd.f32 %v3558, %v4096
  %v4098 = vpop.f32.mrb[0].mxu0
  %v4099 = vadd.f32 %v3561, %v4098
  %v4100 = vpop.f32.mrb[0].mxu0
  %v4101 = vadd.f32 %v3562, %v4100
  %4102 = vmatprep.mubr.bf16.mxu0 %v3710
  %4103 = vmatmul.mubr.bf16.gmra.mrb[0].mxu0 %v3709
  %v4104 = vpop.f32.mrb[0].mxu0
  %v4105 = vadd.f32 %v3565, %v4104
  %v4106 = vpop.f32.mrb[0].mxu0
  %v4107 = vadd.f32 %v3566, %v4106
  %v4108 = vpop.f32.mrb[0].mxu0
  %v4109 = vadd.f32 %v3569, %v4108
  %v4110 = vpop.f32.mrb[0].mxu0
  %v4111 = vadd.f32 %v3570, %v4110
  %4112 = vmatprep.mubr.bf16.mxu0 %v3712
  %4113 = vmatmul.mubr.bf16.gmra.mrb[0].mxu0 %v3711
  %v4114 = vpop.f32.mrb[0].mxu0
  %v4115 = vadd.f32 %v3573, %v4114
  %v4116 = vpop.f32.mrb[0].mxu0
  %v4117 = vadd.f32 %v3574, %v4116
  %v4118 = vpop.f32.mrb[0].mxu0
  %v4119 = vadd.f32 %v3577, %v4118
  %v4120 = vpop.f32.mrb[0].mxu0
  %v4121 = vadd.f32 %v3578, %v4120
  %4122 = vmatprep.mubr.bf16.mxu0 %v3714
  %4123 = vmatmul.mubr.bf16.gmra.mrb[0].mxu0 %v3713
  %v4124 = vpop.f32.mrb[0].mxu0
  %v4125 = vadd.f32 %v3581, %v4124
  %v4126 = vpop.f32.mrb[0].mxu0
  %v4127 = vadd.f32 %v3582, %v4126
  %v4128 = vpop.f32.mrb[0].mxu0
  %v4129 = vadd.f32 %v3585, %v4128
  %v4130 = vpop.f32.mrb[0].mxu0
  %v4131 = vadd.f32 %v3586, %v4130
  %4132 = vdwg.mxu0
  %v4133 = vpack.c.bf16 %v3786, %v3782
  %v4134 = vpack.c.bf16 %v3788, %v3784
  %v4135 = vpack.c.bf16 %v3979, %v3975
  %v4136 = vpack.c.bf16 %v3981, %v3977
  %v4137 = vpack.c.bf16 %v3796, %v3792
  %v4138 = vpack.c.bf16 %v3798, %v3794
  %v4139 = vpack.c.bf16 %v3989, %v3985
  %v4140 = vpack.c.bf16 %v3991, %v3987
  %v4141 = vpack.c.bf16 %v3806, %v3802
  %v4142 = vpack.c.bf16 %v3808, %v3804
  %v4143 = vpack.c.bf16 %v3999, %v3995
  %v4144 = vpack.c.bf16 %v4001, %v3997
  %v4145 = vpack.c.bf16 %v3816, %v3812
  %v4146 = vpack.c.bf16 %v3818, %v3814
  %v4147 = vpack.c.bf16 %v4009, %v4005
  %v4148 = vpack.c.bf16 %v4011, %v4007
  %v4149 = vpack.c.bf16 %v3826, %v3822
  %v4150 = vpack.c.bf16 %v3828, %v3824
  %v4151 = vpack.c.bf16 %v4019, %v4015
  %v4152 = vpack.c.bf16 %v4021, %v4017
  %v4153 = vpack.c.bf16 %v3836, %v3832
  %v4154 = vpack.c.bf16 %v3838, %v3834
  %v4155 = vpack.c.bf16 %v4029, %v4025
  %v4156 = vpack.c.bf16 %v4031, %v4027
  %v4157 = vpack.c.bf16 %v3846, %v3842
  %v4158 = vpack.c.bf16 %v3848, %v3844
  %v4159 = vpack.c.bf16 %v4039, %v4035
  %v4160 = vpack.c.bf16 %v4041, %v4037
  %v4161 = vpack.c.bf16 %v3856, %v3852
  %v4162 = vpack.c.bf16 %v3858, %v3854
  %v4163 = vpack.c.bf16 %v4049, %v4045
  %v4164 = vpack.c.bf16 %v4051, %v4047
  %v4165 = vpack.c.bf16 %v3866, %v3862
  %v4166 = vpack.c.bf16 %v3868, %v3864
  %v4167 = vpack.c.bf16 %v4059, %v4055
  %v4168 = vpack.c.bf16 %v4061, %v4057
  %v4169 = vpack.c.bf16 %v3876, %v3872
  %v4170 = vpack.c.bf16 %v3878, %v3874
  %v4171 = vpack.c.bf16 %v4069, %v4065
  %v4172 = vpack.c.bf16 %v4071, %v4067
  %v4173 = vpack.c.bf16 %v3886, %v3882
  %v4174 = vpack.c.bf16 %v3888, %v3884
  %v4175 = vpack.c.bf16 %v4079, %v4075
  %v4176 = vpack.c.bf16 %v4081, %v4077
  %v4177 = vpack.c.bf16 %v3896, %v3892
  %v4178 = vpack.c.bf16 %v3898, %v3894
  %v4179 = vpack.c.bf16 %v4089, %v4085
  %v4180 = vpack.c.bf16 %v4091, %v4087
  %v4181 = vpack.c.bf16 %v3906, %v3902
  %v4182 = vpack.c.bf16 %v3908, %v3904
  %v4183 = vpack.c.bf16 %v4099, %v4095
  %v4184 = vpack.c.bf16 %v4101, %v4097
  %v4185 = vpack.c.bf16 %v3916, %v3912
  %v4186 = vpack.c.bf16 %v3918, %v3914
  %v4187 = vpack.c.bf16 %v4109, %v4105
  %v4188 = vpack.c.bf16 %v4111, %v4107
  %v4189 = vpack.c.bf16 %v3926, %v3922
  %v4190 = vpack.c.bf16 %v3928, %v3924
  %v4191 = vpack.c.bf16 %v4119, %v4115
  %v4192 = vpack.c.bf16 %v4121, %v4117
  %v4193 = vpack.c.bf16 %v3936, %v3932
  %v4194 = vpack.c.bf16 %v3938, %v3934
  %v4195 = vpack.c.bf16 %v4129, %v4125
  %v4196 = vpack.c.bf16 %v4131, %v4127
  %v4197 = vld [vmem:[%s3] sm:$0xff]
  %v4198 = vld [vmem:[%s3 + $0x8] sm:$0xff]
  %v4199 = vld [vmem:[%s3 + $0x10] sm:$0xff]
  %v4200 = vld [vmem:[%s3 + $0x18] sm:$0xff]
  %v4201 = vld [vmem:[%s3 + $0x20] sm:$0xff]
  %v4202 = vld [vmem:[%s3 + $0x28] sm:$0xff]
  %v4203 = vld [vmem:[%s3 + $0x30] sm:$0xff]
  %v4204 = vld [vmem:[%s3 + $0x38] sm:$0xff]
  %v4205 = vld [vmem:[%s3 + $0x40] sm:$0xff]
  %v4206 = vld [vmem:[%s3 + $0x48] sm:$0xff]
  %v4207 = vld [vmem:[%s3 + $0x50] sm:$0xff]
  %v4208 = vld [vmem:[%s3 + $0x58] sm:$0xff]
  %v4209 = vld [vmem:[%s3 + $0x60] sm:$0xff]
  %v4210 = vld [vmem:[%s3 + $0x68] sm:$0xff]
  %v4211 = vld [vmem:[%s3 + $0x70] sm:$0xff]
  %v4212 = vld [vmem:[%s3 + $0x78] sm:$0xff]
  %v4213 = vld [vmem:[%s3 + $0x80] sm:$0xff]
  %v4214 = vld [vmem:[%s3 + $0x88] sm:$0xff]
  %v4215 = vld [vmem:[%s3 + $0x90] sm:$0xff]
  %v4216 = vld [vmem:[%s3 + $0x98] sm:$0xff]
  %v4217 = vld [vmem:[%s3 + $0xa0] sm:$0xff]
  %v4218 = vld [vmem:[%s3 + $0xa8] sm:$0xff]
  %v4219 = vld [vmem:[%s3 + $0xb0] sm:$0xff]
  %v4220 = vld [vmem:[%s3 + $0xb8] sm:$0xff]
  %v4221 = vld [vmem:[%s3 + $0xc0] sm:$0xff]
  %v4222 = vld [vmem:[%s3 + $0xc8] sm:$0xff]
  %v4223 = vld [vmem:[%s3 + $0xd0] sm:$0xff]
  %v4224 = vld [vmem:[%s3 + $0xd8] sm:$0xff]
  %v4225 = vld [vmem:[%s3 + $0xe0] sm:$0xff]
  %v4226 = vld [vmem:[%s3 + $0xe8] sm:$0xff]
  %v4227 = vld [vmem:[%s3 + $0xf0] sm:$0xff]
  %v4228 = vld [vmem:[%s3 + $0xf8] sm:$0xff]
  %v4229 = vld [vmem:[%s3 + $0x100] sm:$0xff]
  %v4230 = vld [vmem:[%s3 + $0x108] sm:$0xff]
  %v4231 = vld [vmem:[%s3 + $0x110] sm:$0xff]
  %v4232 = vld [vmem:[%s3 + $0x118] sm:$0xff]
  %v4233 = vld [vmem:[%s3 + $0x120] sm:$0xff]
  %v4234 = vld [vmem:[%s3 + $0x128] sm:$0xff]
  %v4235 = vld [vmem:[%s3 + $0x130] sm:$0xff]
  %v4236 = vld [vmem:[%s3 + $0x138] sm:$0xff]
  %v4237 = vld [vmem:[%s3 + $0x140] sm:$0xff]
  %v4238 = vld [vmem:[%s3 + $0x148] sm:$0xff]
  %v4239 = vld [vmem:[%s3 + $0x150] sm:$0xff]
  %v4240 = vld [vmem:[%s3 + $0x158] sm:$0xff]
  %v4241 = vld [vmem:[%s3 + $0x160] sm:$0xff]
  %v4242 = vld [vmem:[%s3 + $0x168] sm:$0xff]
  %v4243 = vld [vmem:[%s3 + $0x170] sm:$0xff]
  %v4244 = vld [vmem:[%s3 + $0x178] sm:$0xff]
  %v4245 = vld [vmem:[%s3 + $0x180] sm:$0xff]
  %v4246 = vld [vmem:[%s3 + $0x188] sm:$0xff]
  %v4247 = vld [vmem:[%s3 + $0x190] sm:$0xff]
  %v4248 = vld [vmem:[%s3 + $0x198] sm:$0xff]
  %v4249 = vld [vmem:[%s3 + $0x1a0] sm:$0xff]
  %v4250 = vld [vmem:[%s3 + $0x1a8] sm:$0xff]
  %v4251 = vld [vmem:[%s3 + $0x1b0] sm:$0xff]
  %v4252 = vld [vmem:[%s3 + $0x1b8] sm:$0xff]
  %v4253 = vld [vmem:[%s3 + $0x1c0] sm:$0xff]
  %v4254 = vld [vmem:[%s3 + $0x1c8] sm:$0xff]
  %v4255 = vld [vmem:[%s3 + $0x1d0] sm:$0xff]
  %v4256 = vld [vmem:[%s3 + $0x1d8] sm:$0xff]
  %v4257 = vld [vmem:[%s3 + $0x1e0] sm:$0xff]
  %v4258 = vld [vmem:[%s3 + $0x1e8] sm:$0xff]
  %v4259 = vld [vmem:[%s3 + $0x1f0] sm:$0xff]
  %v4260 = vld [vmem:[%s3 + $0x1f8] sm:$0xff]
  %v4261 = vld [vmem:[%s3 + $0x200] sm:$0xff]
  %v4262 = vld [vmem:[%s3 + $0x208] sm:$0xff]
  %v4263 = vld [vmem:[%s3 + $0x210] sm:$0xff]
  %v4264 = vld [vmem:[%s3 + $0x218] sm:$0xff]
  %v4265 = vld [vmem:[%s3 + $0x220] sm:$0xff]
  %v4266 = vld [vmem:[%s3 + $0x228] sm:$0xff]
  %v4267 = vld [vmem:[%s3 + $0x230] sm:$0xff]
  %v4268 = vld [vmem:[%s3 + $0x238] sm:$0xff]
  %v4269 = vld [vmem:[%s3 + $0x240] sm:$0xff]
  %v4270 = vld [vmem:[%s3 + $0x248] sm:$0xff]
  %v4271 = vld [vmem:[%s3 + $0x250] sm:$0xff]
  %v4272 = vld [vmem:[%s3 + $0x258] sm:$0xff]
  %v4273 = vld [vmem:[%s3 + $0x260] sm:$0xff]
  %v4274 = vld [vmem:[%s3 + $0x268] sm:$0xff]
  %v4275 = vld [vmem:[%s3 + $0x270] sm:$0xff]
  %v4276 = vld [vmem:[%s3 + $0x278] sm:$0xff]
  %v4277 = vld [vmem:[%s3 + $0x280] sm:$0xff]
  %v4278 = vld [vmem:[%s3 + $0x288] sm:$0xff]
  %v4279 = vld [vmem:[%s3 + $0x290] sm:$0xff]
  %v4280 = vld [vmem:[%s3 + $0x298] sm:$0xff]
  %v4281 = vld [vmem:[%s3 + $0x2a0] sm:$0xff]
  %v4282 = vld [vmem:[%s3 + $0x2a8] sm:$0xff]
  %v4283 = vld [vmem:[%s3 + $0x2b0] sm:$0xff]
  %v4284 = vld [vmem:[%s3 + $0x2b8] sm:$0xff]
  %v4285 = vld [vmem:[%s3 + $0x2c0] sm:$0xff]
  %v4286 = vld [vmem:[%s3 + $0x2c8] sm:$0xff]
  %v4287 = vld [vmem:[%s3 + $0x2d0] sm:$0xff]
  %v4288 = vld [vmem:[%s3 + $0x2d8] sm:$0xff]
  %v4289 = vld [vmem:[%s3 + $0x2e0] sm:$0xff]
  %v4290 = vld [vmem:[%s3 + $0x2e8] sm:$0xff]
  %v4291 = vld [vmem:[%s3 + $0x2f0] sm:$0xff]
  %v4292 = vld [vmem:[%s3 + $0x2f8] sm:$0xff]
  %v4293 = vld [vmem:[%s3 + $0x300] sm:$0xff]
  %v4294 = vld [vmem:[%s3 + $0x308] sm:$0xff]
  %v4295 = vld [vmem:[%s3 + $0x310] sm:$0xff]
  %v4296 = vld [vmem:[%s3 + $0x318] sm:$0xff]
  %v4297 = vld [vmem:[%s3 + $0x320] sm:$0xff]
  %v4298 = vld [vmem:[%s3 + $0x328] sm:$0xff]
  %v4299 = vld [vmem:[%s3 + $0x330] sm:$0xff]
  %v4300 = vld [vmem:[%s3 + $0x338] sm:$0xff]
  %v4301 = vld [vmem:[%s3 + $0x340] sm:$0xff]
  %v4302 = vld [vmem:[%s3 + $0x348] sm:$0xff]
  %v4303 = vld [vmem:[%s3 + $0x350] sm:$0xff]
  %v4304 = vld [vmem:[%s3 + $0x358] sm:$0xff]
  %v4305 = vld [vmem:[%s3 + $0x360] sm:$0xff]
  %v4306 = vld [vmem:[%s3 + $0x368] sm:$0xff]
  %v4307 = vld [vmem:[%s3 + $0x370] sm:$0xff]
  %v4308 = vld [vmem:[%s3 + $0x378] sm:$0xff]
  %v4309 = vld [vmem:[%s3 + $0x380] sm:$0xff]
  %v4310 = vld [vmem:[%s3 + $0x388] sm:$0xff]
  %v4311 = vld [vmem:[%s3 + $0x390] sm:$0xff]
  %v4312 = vld [vmem:[%s3 + $0x398] sm:$0xff]
  %v4313 = vld [vmem:[%s3 + $0x3a0] sm:$0xff]
  %v4314 = vld [vmem:[%s3 + $0x3a8] sm:$0xff]
  %v4315 = vld [vmem:[%s3 + $0x3b0] sm:$0xff]
  %v4316 = vld [vmem:[%s3 + $0x3b8] sm:$0xff]
  %v4317 = vld [vmem:[%s3 + $0x3c0] sm:$0xff]
  %v4318 = vld [vmem:[%s3 + $0x3c8] sm:$0xff]
  %v4319 = vld [vmem:[%s3 + $0x3d0] sm:$0xff]
  %v4320 = vld [vmem:[%s3 + $0x3d8] sm:$0xff]
  %v4321 = vld [vmem:[%s3 + $0x3e0] sm:$0xff]
  %v4322 = vld [vmem:[%s3 + $0x3e8] sm:$0xff]
  %v4323 = vld [vmem:[%s3 + $0x3f0] sm:$0xff]
  %v4324 = vld [vmem:[%s3 + $0x3f8] sm:$0xff]
  %v4453 = vunpack.c.l.b16 %v4197
  %v4454 = vunpack.c.h.b16 %v4197
  %v4455 = vunpack.c.l.b16 %v4198
  %v4456 = vunpack.c.h.b16 %v4198
  %v4457 = vunpack.c.l.b16 %v4199
  %v4458 = vunpack.c.h.b16 %v4199
  %v4459 = vunpack.c.l.b16 %v4200
  %v4460 = vunpack.c.h.b16 %v4200
  %v4461 = vunpack.c.l.b16 %v4201
  %v4462 = vunpack.c.h.b16 %v4201
  %v4463 = vunpack.c.l.b16 %v4202
  %v4464 = vunpack.c.h.b16 %v4202
  %v4465 = vunpack.c.l.b16 %v4203
  %v4466 = vunpack.c.h.b16 %v4203
  %v4467 = vunpack.c.l.b16 %v4204
  %v4468 = vunpack.c.h.b16 %v4204
  %v4469 = vunpack.c.l.b16 %v4205
  %v4470 = vunpack.c.h.b16 %v4205
  %v4471 = vunpack.c.l.b16 %v4206
  %v4472 = vunpack.c.h.b16 %v4206
  %v4473 = vunpack.c.l.b16 %v4207
  %v4474 = vunpack.c.h.b16 %v4207
  %v4475 = vunpack.c.l.b16 %v4208
  %v4476 = vunpack.c.h.b16 %v4208
  %v4477 = vunpack.c.l.b16 %v4209
  %v4478 = vunpack.c.h.b16 %v4209
  %v4479 = vunpack.c.l.b16 %v4210
  %v4480 = vunpack.c.h.b16 %v4210
  %v4481 = vunpack.c.l.b16 %v4211
  %v4482 = vunpack.c.h.b16 %v4211
  %v4483 = vunpack.c.l.b16 %v4212
  %v4484 = vunpack.c.h.b16 %v4212
  %v4485 = vunpack.c.l.b16 %v4213
  %v4486 = vunpack.c.h.b16 %v4213
  %v4487 = vunpack.c.l.b16 %v4214
  %v4488 = vunpack.c.h.b16 %v4214
  %v4489 = vunpack.c.l.b16 %v4215
  %v4490 = vunpack.c.h.b16 %v4215
  %v4491 = vunpack.c.l.b16 %v4216
  %v4492 = vunpack.c.h.b16 %v4216
  %v4493 = vunpack.c.l.b16 %v4217
  %v4494 = vunpack.c.h.b16 %v4217
  %v4495 = vunpack.c.l.b16 %v4218
  %v4496 = vunpack.c.h.b16 %v4218
  %v4497 = vunpack.c.l.b16 %v4219
  %v4498 = vunpack.c.h.b16 %v4219
  %v4499 = vunpack.c.l.b16 %v4220
  %v4500 = vunpack.c.h.b16 %v4220
  %v4501 = vunpack.c.l.b16 %v4221
  %v4502 = vunpack.c.h.b16 %v4221
  %v4503 = vunpack.c.l.b16 %v4222
  %v4504 = vunpack.c.h.b16 %v4222
  %v4505 = vunpack.c.l.b16 %v4223
  %v4506 = vunpack.c.h.b16 %v4223
  %v4507 = vunpack.c.l.b16 %v4224
  %v4508 = vunpack.c.h.b16 %v4224
  %v4509 = vunpack.c.l.b16 %v4225
  %v4510 = vunpack.c.h.b16 %v4225
  %v4511 = vunpack.c.l.b16 %v4226
  %v4512 = vunpack.c.h.b16 %v4226
  %v4513 = vunpack.c.l.b16 %v4227
  %v4514 = vunpack.c.h.b16 %v4227
  %v4515 = vunpack.c.l.b16 %v4228
  %v4516 = vunpack.c.h.b16 %v4228
  %v4517 = vunpack.c.l.b16 %v4229
  %v4518 = vunpack.c.h.b16 %v4229
  %v4519 = vunpack.c.l.b16 %v4230
  %v4520 = vunpack.c.h.b16 %v4230
  %v4521 = vunpack.c.l.b16 %v4231
  %v4522 = vunpack.c.h.b16 %v4231
  %v4523 = vunpack.c.l.b16 %v4232
  %v4524 = vunpack.c.h.b16 %v4232
  %v4525 = vunpack.c.l.b16 %v4233
  %v4526 = vunpack.c.h.b16 %v4233
  %v4527 = vunpack.c.l.b16 %v4234
  %v4528 = vunpack.c.h.b16 %v4234
  %v4529 = vunpack.c.l.b16 %v4235
  %v4530 = vunpack.c.h.b16 %v4235
  %v4531 = vunpack.c.l.b16 %v4236
  %v4532 = vunpack.c.h.b16 %v4236
  %v4533 = vunpack.c.l.b16 %v4237
  %v4534 = vunpack.c.h.b16 %v4237
  %v4535 = vunpack.c.l.b16 %v4238
  %v4536 = vunpack.c.h.b16 %v4238
  %v4537 = vunpack.c.l.b16 %v4239
  %v4538 = vunpack.c.h.b16 %v4239
  %v4539 = vunpack.c.l.b16 %v4240
  %v4540 = vunpack.c.h.b16 %v4240
  %v4541 = vunpack.c.l.b16 %v4241
  %v4542 = vunpack.c.h.b16 %v4241
  %v4543 = vunpack.c.l.b16 %v4242
  %v4544 = vunpack.c.h.b16 %v4242
  %v4545 = vunpack.c.l.b16 %v4243
  %v4546 = vunpack.c.h.b16 %v4243
  %v4547 = vunpack.c.l.b16 %v4244
  %v4548 = vunpack.c.h.b16 %v4244
  %v4549 = vunpack.c.l.b16 %v4245
  %v4550 = vunpack.c.h.b16 %v4245
  %v4551 = vunpack.c.l.b16 %v4246
  %v4552 = vunpack.c.h.b16 %v4246
  %v4553 = vunpack.c.l.b16 %v4247
  %v4554 = vunpack.c.h.b16 %v4247
  %v4555 = vunpack.c.l.b16 %v4248
  %v4556 = vunpack.c.h.b16 %v4248
  %v4557 = vunpack.c.l.b16 %v4249
  %v4558 = vunpack.c.h.b16 %v4249
  %v4559 = vunpack.c.l.b16 %v4250
  %v4560 = vunpack.c.h.b16 %v4250
  %v4561 = vunpack.c.l.b16 %v4251
  %v4562 = vunpack.c.h.b16 %v4251
  %v4563 = vunpack.c.l.b16 %v4252
  %v4564 = vunpack.c.h.b16 %v4252
  %v4565 = vunpack.c.l.b16 %v4253
  %v4566 = vunpack.c.h.b16 %v4253
  %v4567 = vunpack.c.l.b16 %v4254
  %v4568 = vunpack.c.h.b16 %v4254
  %v4569 = vunpack.c.l.b16 %v4255
  %v4570 = vunpack.c.h.b16 %v4255
  %v4571 = vunpack.c.l.b16 %v4256
  %v4572 = vunpack.c.h.b16 %v4256
  %v4573 = vunpack.c.l.b16 %v4257
  %v4574 = vunpack.c.h.b16 %v4257
  %v4575 = vunpack.c.l.b16 %v4258
  %v4576 = vunpack.c.h.b16 %v4258
  %v4577 = vunpack.c.l.b16 %v4259
  %v4578 = vunpack.c.h.b16 %v4259
  %v4579 = vunpack.c.l.b16 %v4260
  %v4580 = vunpack.c.h.b16 %v4260
  %v4581 = vunpack.c.l.b16 %v4261
  %v4582 = vunpack.c.h.b16 %v4261
  %v4583 = vunpack.c.l.b16 %v4262
  %v4584 = vunpack.c.h.b16 %v4262
  %v4585 = vunpack.c.l.b16 %v4263
  %v4586 = vunpack.c.h.b16 %v4263
  %v4587 = vunpack.c.l.b16 %v4264
  %v4588 = vunpack.c.h.b16 %v4264
  %v4589 = vunpack.c.l.b16 %v4265
  %v4590 = vunpack.c.h.b16 %v4265
  %v4591 = vunpack.c.l.b16 %v4266
  %v4592 = vunpack.c.h.b16 %v4266
  %v4593 = vunpack.c.l.b16 %v4267
  %v4594 = vunpack.c.h.b16 %v4267
  %v4595 = vunpack.c.l.b16 %v4268
  %v4596 = vunpack.c.h.b16 %v4268
  %v4597 = vunpack.c.l.b16 %v4269
  %v4598 = vunpack.c.h.b16 %v4269
  %v4599 = vunpack.c.l.b16 %v4270
  %v4600 = vunpack.c.h.b16 %v4270
  %v4601 = vunpack.c.l.b16 %v4271
  %v4602 = vunpack.c.h.b16 %v4271
  %v4603 = vunpack.c.l.b16 %v4272
  %v4604 = vunpack.c.h.b16 %v4272
  %v4605 = vunpack.c.l.b16 %v4273
  %v4606 = vunpack.c.h.b16 %v4273
  %v4607 = vunpack.c.l.b16 %v4274
  %v4608 = vunpack.c.h.b16 %v4274
  %v4609 = vunpack.c.l.b16 %v4275
  %v4610 = vunpack.c.h.b16 %v4275
  %v4611 = vunpack.c.l.b16 %v4276
  %v4612 = vunpack.c.h.b16 %v4276
  %v4613 = vunpack.c.l.b16 %v4277
  %v4614 = vunpack.c.h.b16 %v4277
  %v4615 = vunpack.c.l.b16 %v4278
  %v4616 = vunpack.c.h.b16 %v4278
  %v4617 = vunpack.c.l.b16 %v4279
  %v4618 = vunpack.c.h.b16 %v4279
  %v4619 = vunpack.c.l.b16 %v4280
  %v4620 = vunpack.c.h.b16 %v4280
  %v4621 = vunpack.c.l.b16 %v4281
  %v4622 = vunpack.c.h.b16 %v4281
  %v4623 = vunpack.c.l.b16 %v4282
  %v4624 = vunpack.c.h.b16 %v4282
  %v4625 = vunpack.c.l.b16 %v4283
  %v4626 = vunpack.c.h.b16 %v4283
  %v4627 = vunpack.c.l.b16 %v4284
  %v4628 = vunpack.c.h.b16 %v4284
  %v4629 = vunpack.c.l.b16 %v4285
  %v4630 = vunpack.c.h.b16 %v4285
  %v4631 = vunpack.c.l.b16 %v4286
  %v4632 = vunpack.c.h.b16 %v4286
  %v4633 = vunpack.c.l.b16 %v4287
  %v4634 = vunpack.c.h.b16 %v4287
  %v4635 = vunpack.c.l.b16 %v4288
  %v4636 = vunpack.c.h.b16 %v4288
  %v4637 = vunpack.c.l.b16 %v4289
  %v4638 = vunpack.c.h.b16 %v4289
  %v4639 = vunpack.c.l.b16 %v4290
  %v4640 = vunpack.c.h.b16 %v4290
  %v4641 = vunpack.c.l.b16 %v4291
  %v4642 = vunpack.c.h.b16 %v4291
  %v4643 = vunpack.c.l.b16 %v4292
  %v4644 = vunpack.c.h.b16 %v4292
  %v4645 = vunpack.c.l.b16 %v4293
  %v4646 = vunpack.c.h.b16 %v4293
  %v4647 = vunpack.c.l.b16 %v4294
  %v4648 = vunpack.c.h.b16 %v4294
  %v4649 = vunpack.c.l.b16 %v4295
  %v4650 = vunpack.c.h.b16 %v4295
  %v4651 = vunpack.c.l.b16 %v4296
  %v4652 = vunpack.c.h.b16 %v4296
  %v4653 = vunpack.c.l.b16 %v4297
  %v4654 = vunpack.c.h.b16 %v4297
  %v4655 = vunpack.c.l.b16 %v4298
  %v4656 = vunpack.c.h.b16 %v4298
  %v4657 = vunpack.c.l.b16 %v4299
  %v4658 = vunpack.c.h.b16 %v4299
  %v4659 = vunpack.c.l.b16 %v4300
  %v4660 = vunpack.c.h.b16 %v4300
  %v4661 = vunpack.c.l.b16 %v4301
  %v4662 = vunpack.c.h.b16 %v4301
  %v4663 = vunpack.c.l.b16 %v4302
  %v4664 = vunpack.c.h.b16 %v4302
  %v4665 = vunpack.c.l.b16 %v4303
  %v4666 = vunpack.c.h.b16 %v4303
  %v4667 = vunpack.c.l.b16 %v4304
  %v4668 = vunpack.c.h.b16 %v4304
  %v4669 = vunpack.c.l.b16 %v4305
  %v4670 = vunpack.c.h.b16 %v4305
  %v4671 = vunpack.c.l.b16 %v4306
  %v4672 = vunpack.c.h.b16 %v4306
  %v4673 = vunpack.c.l.b16 %v4307
  %v4674 = vunpack.c.h.b16 %v4307
  %v4675 = vunpack.c.l.b16 %v4308
  %v4676 = vunpack.c.h.b16 %v4308
  %v4677 = vunpack.c.l.b16 %v4309
  %v4678 = vunpack.c.h.b16 %v4309
  %v4679 = vunpack.c.l.b16 %v4310
  %v4680 = vunpack.c.h.b16 %v4310
  %v4681 = vunpack.c.l.b16 %v4311
  %v4682 = vunpack.c.h.b16 %v4311
  %v4683 = vunpack.c.l.b16 %v4312
  %v4684 = vunpack.c.h.b16 %v4312
  %v4685 = vunpack.c.l.b16 %v4313
  %v4686 = vunpack.c.h.b16 %v4313
  %v4687 = vunpack.c.l.b16 %v4314
  %v4688 = vunpack.c.h.b16 %v4314
  %v4689 = vunpack.c.l.b16 %v4315
  %v4690 = vunpack.c.h.b16 %v4315
  %v4691 = vunpack.c.l.b16 %v4316
  %v4692 = vunpack.c.h.b16 %v4316
  %v4693 = vunpack.c.l.b16 %v4317
  %v4694 = vunpack.c.h.b16 %v4317
  %v4695 = vunpack.c.l.b16 %v4318
  %v4696 = vunpack.c.h.b16 %v4318
  %v4697 = vunpack.c.l.b16 %v4319
  %v4698 = vunpack.c.h.b16 %v4319
  %v4699 = vunpack.c.l.b16 %v4320
  %v4700 = vunpack.c.h.b16 %v4320
  %v4701 = vunpack.c.l.b16 %v4321
  %v4702 = vunpack.c.h.b16 %v4321
  %v4703 = vunpack.c.l.b16 %v4322
  %v4704 = vunpack.c.h.b16 %v4322
  %v4705 = vunpack.c.l.b16 %v4323
  %v4706 = vunpack.c.h.b16 %v4323
  %v4707 = vunpack.c.l.b16 %v4324
  %v4708 = vunpack.c.h.b16 %v4324
  %v4709 = vpack.c.b16 %v4457, %v4453
  %v4710 = vpack.c.b16 %v4458, %v4454
  %v4711 = vpack.c.b16 %v4459, %v4455
  %v4712 = vpack.c.b16 %v4460, %v4456
  %v4713 = vpack.c.b16 %v4465, %v4461
  %v4714 = vpack.c.b16 %v4466, %v4462
  %v4715 = vpack.c.b16 %v4467, %v4463
  %v4716 = vpack.c.b16 %v4468, %v4464
  %v4717 = vpack.c.b16 %v4473, %v4469
  %v4718 = vpack.c.b16 %v4474, %v4470
  %v4719 = vpack.c.b16 %v4475, %v4471
  %v4720 = vpack.c.b16 %v4476, %v4472
  %v4721 = vpack.c.b16 %v4481, %v4477
  %v4722 = vpack.c.b16 %v4482, %v4478
  %v4723 = vpack.c.b16 %v4483, %v4479
  %v4724 = vpack.c.b16 %v4484, %v4480
  %v4725 = vpack.c.b16 %v4489, %v4485
  %v4726 = vpack.c.b16 %v4490, %v4486
  %v4727 = vpack.c.b16 %v4491, %v4487
  %v4728 = vpack.c.b16 %v4492, %v4488
  %v4729 = vpack.c.b16 %v4497, %v4493
  %v4730 = vpack.c.b16 %v4498, %v4494
  %v4731 = vpack.c.b16 %v4499, %v4495
  %v4732 = vpack.c.b16 %v4500, %v4496
  %v4733 = vpack.c.b16 %v4505, %v4501
  %v4734 = vpack.c.b16 %v4506, %v4502
  %v4735 = vpack.c.b16 %v4507, %v4503
  %v4736 = vpack.c.b16 %v4508, %v4504
  %v4737 = vpack.c.b16 %v4513, %v4509
  %v4738 = vpack.c.b16 %v4514, %v4510
  %v4739 = vpack.c.b16 %v4515, %v4511
  %v4740 = vpack.c.b16 %v4516, %v4512
  %v4741 = vpack.c.b16 %v4521, %v4517
  %v4742 = vpack.c.b16 %v4522, %v4518
  %v4743 = vpack.c.b16 %v4523, %v4519
  %v4744 = vpack.c.b16 %v4524, %v4520
  %v4745 = vpack.c.b16 %v4529, %v4525
  %v4746 = vpack.c.b16 %v4530, %v4526
  %v4747 = vpack.c.b16 %v4531, %v4527
  %v4748 = vpack.c.b16 %v4532, %v4528
  %v4749 = vpack.c.b16 %v4537, %v4533
  %v4750 = vpack.c.b16 %v4538, %v4534
  %v4751 = vpack.c.b16 %v4539, %v4535
  %v4752 = vpack.c.b16 %v4540, %v4536
  %v4753 = vpack.c.b16 %v4545, %v4541
  %v4754 = vpack.c.b16 %v4546, %v4542
  %v4755 = vpack.c.b16 %v4547, %v4543
  %v4756 = vpack.c.b16 %v4548, %v4544
  %v4757 = vpack.c.b16 %v4553, %v4549
  %v4758 = vpack.c.b16 %v4554, %v4550
  %v4759 = vpack.c.b16 %v4555, %v4551
  %v4760 = vpack.c.b16 %v4556, %v4552
  %v4761 = vpack.c.b16 %v4561, %v4557
  %v4762 = vpack.c.b16 %v4562, %v4558
  %v4763 = vpack.c.b16 %v4563, %v4559
  %v4764 = vpack.c.b16 %v4564, %v4560
  %v4765 = vpack.c.b16 %v4569, %v4565
  %v4766 = vpack.c.b16 %v4570, %v4566
  %v4767 = vpack.c.b16 %v4571, %v4567
  %v4768 = vpack.c.b16 %v4572, %v4568
  %v4769 = vpack.c.b16 %v4577, %v4573
  %v4770 = vpack.c.b16 %v4578, %v4574
  %v4771 = vpack.c.b16 %v4579, %v4575
  %v4772 = vpack.c.b16 %v4580, %v4576
  %v4773 = vpack.c.b16 %v4585, %v4581
  %v4774 = vpack.c.b16 %v4586, %v4582
  %v4775 = vpack.c.b16 %v4587, %v4583
  %v4776 = vpack.c.b16 %v4588, %v4584
  %v4777 = vpack.c.b16 %v4593, %v4589
  %v4778 = vpack.c.b16 %v4594, %v4590
  %v4779 = vpack.c.b16 %v4595, %v4591
  %v4780 = vpack.c.b16 %v4596, %v4592
  %v4781 = vpack.c.b16 %v4601, %v4597
  %v4782 = vpack.c.b16 %v4602, %v4598
  %v4783 = vpack.c.b16 %v4603, %v4599
  %v4784 = vpack.c.b16 %v4604, %v4600
  %v4785 = vpack.c.b16 %v4609, %v4605
  %v4786 = vpack.c.b16 %v4610, %v4606
  %v4787 = vpack.c.b16 %v4611, %v4607
  %v4788 = vpack.c.b16 %v4612, %v4608
  %v4789 = vpack.c.b16 %v4617, %v4613
  %v4790 = vpack.c.b16 %v4618, %v4614
  %v4791 = vpack.c.b16 %v4619, %v4615
  %v4792 = vpack.c.b16 %v4620, %v4616
  %v4793 = vpack.c.b16 %v4625, %v4621
  %v4794 = vpack.c.b16 %v4626, %v4622
  %v4795 = vpack.c.b16 %v4627, %v4623
  %v4796 = vpack.c.b16 %v4628, %v4624
  %v4797 = vpack.c.b16 %v4633, %v4629
  %v4798 = vpack.c.b16 %v4634, %v4630
  %v4799 = vpack.c.b16 %v4635, %v4631
  %v4800 = vpack.c.b16 %v4636, %v4632
  %v4801 = vpack.c.b16 %v4641, %v4637
  %v4802 = vpack.c.b16 %v4642, %v4638
  %v4803 = vpack.c.b16 %v4643, %v4639
  %v4804 = vpack.c.b16 %v4644, %v4640
  %v4805 = vpack.c.b16 %v4649, %v4645
  %v4806 = vpack.c.b16 %v4650, %v4646
  %v4807 = vpack.c.b16 %v4651, %v4647
  %v4808 = vpack.c.b16 %v4652, %v4648
  %v4809 = vpack.c.b16 %v4657, %v4653
  %v4810 = vpack.c.b16 %v4658, %v4654
  %v4811 = vpack.c.b16 %v4659, %v4655
  %v4812 = vpack.c.b16 %v4660, %v4656
  %v4813 = vpack.c.b16 %v4665, %v4661
  %v4814 = vpack.c.b16 %v4666, %v4662
  %v4815 = vpack.c.b16 %v4667, %v4663
  %v4816 = vpack.c.b16 %v4668, %v4664
  %v4817 = vpack.c.b16 %v4673, %v4669
  %v4818 = vpack.c.b16 %v4674, %v4670
  %v4819 = vpack.c.b16 %v4675, %v4671
  %v4820 = vpack.c.b16 %v4676, %v4672
  %v4821 = vpack.c.b16 %v4681, %v4677
  %v4822 = vpack.c.b16 %v4682, %v4678
  %v4823 = vpack.c.b16 %v4683, %v4679
  %v4824 = vpack.c.b16 %v4684, %v4680
  %v4825 = vpack.c.b16 %v4689, %v4685
  %v4826 = vpack.c.b16 %v4690, %v4686
  %v4827 = vpack.c.b16 %v4691, %v4687
  %v4828 = vpack.c.b16 %v4692, %v4688
  %v4829 = vpack.c.b16 %v4697, %v4693
  %v4830 = vpack.c.b16 %v4698, %v4694
  %v4831 = vpack.c.b16 %v4699, %v4695
  %v4832 = vpack.c.b16 %v4700, %v4696
  %v4833 = vpack.c.b16 %v4705, %v4701
  %v4834 = vpack.c.b16 %v4706, %v4702
  %v4835 = vpack.c.b16 %v4707, %v4703
  %v4836 = vpack.c.b16 %v4708, %v4704
  %4965 = vmatprep.subr.bf16.mxu0 %v4710
  %4966 = vmatpush1.bf16.msra.mxu0 %v4709
  %4967 = vmatprep.subr.bf16.mxu0 %v4714
  %4968 = vmatpush1.bf16.msra.mxu0 %v4713
  %4969 = vmatprep.subr.bf16.mxu0 %v4718
  %4970 = vmatpush1.bf16.msra.mxu0 %v4717
  %4971 = vmatprep.subr.bf16.mxu0 %v4722
  %4972 = vmatpush1.bf16.msra.mxu0 %v4721
  %4973 = vmatprep.subr.bf16.mxu0 %v4726
  %4974 = vmatpush1.bf16.msra.mxu0 %v4725
  %4975 = vmatprep.subr.bf16.mxu0 %v4730
  %4976 = vmatpush1.bf16.msra.mxu0 %v4729
  %4977 = vmatprep.subr.bf16.mxu0 %v4734
  %4978 = vmatpush1.bf16.msra.mxu0 %v4733
  %4979 = vmatprep.subr.bf16.mxu0 %v4738
  %4980 = vmatpush1.bf16.msra.mxu0 %v4737
  %4981 = vmatprep.subr.bf16.mxu0 %v4742
  %4982 = vmatpush1.bf16.msra.mxu0 %v4741
  %4983 = vmatprep.subr.bf16.mxu0 %v4746
  %4984 = vmatpush1.bf16.msra.mxu0 %v4745
  %4985 = vmatprep.subr.bf16.mxu0 %v4750
  %4986 = vmatpush1.bf16.msra.mxu0 %v4749
  %4987 = vmatprep.subr.bf16.mxu0 %v4754
  %4988 = vmatpush1.bf16.msra.mxu0 %v4753
  %4989 = vmatprep.subr.bf16.mxu0 %v4758
  %4990 = vmatpush1.bf16.msra.mxu0 %v4757
  %4991 = vmatprep.subr.bf16.mxu0 %v4762
  %4992 = vmatpush1.bf16.msra.mxu0 %v4761
  %4993 = vmatprep.subr.bf16.mxu0 %v4766
  %4994 = vmatpush1.bf16.msra.mxu0 %v4765
  %4995 = vmatprep.subr.bf16.mxu0 %v4770
  %4996 = vmatpush1.bf16.msra.mxu0 %v4769
  %4997 = vmatprep.mubr.bf16.mxu0 %v4134
  %4998 = vmatmul.mubr.bf16.gmra.mrb[0].mxu0 %v4133
  %v4999 = vpop.f32.mrb[0].mxu0
  %v5000 = vadd.f32 0.0, %v4999
  %v5001 = vpop.f32.mrb[0].mxu0
  %v5002 = vadd.f32 0.0, %v5001
  %v5003 = vpop.f32.mrb[0].mxu0
  %v5004 = vadd.f32 0.0, %v5003
  %v5005 = vpop.f32.mrb[0].mxu0
  %v5006 = vadd.f32 0.0, %v5005
  %5007 = vmatprep.mubr.bf16.mxu0 %v4138
  %5008 = vmatmul.mubr.bf16.gmra.mrb[0].mxu0 %v4137
  %v5009 = vpop.f32.mrb[0].mxu0
  %v5010 = vadd.f32 0.0, %v5009
  %v5011 = vpop.f32.mrb[0].mxu0
  %v5012 = vadd.f32 0.0, %v5011
  %v5013 = vpop.f32.mrb[0].mxu0
  %v5014 = vadd.f32 0.0, %v5013
  %v5015 = vpop.f32.mrb[0].mxu0
  %v5016 = vadd.f32 0.0, %v5015
  %5017 = vmatprep.mubr.bf16.mxu0 %v4142
  %5018 = vmatmul.mubr.bf16.gmra.mrb[0].mxu0 %v4141
  %v5019 = vpop.f32.mrb[0].mxu0
  %v5020 = vadd.f32 0.0, %v5019
  %v5021 = vpop.f32.mrb[0].mxu0
  %v5022 = vadd.f32 0.0, %v5021
  %v5023 = vpop.f32.mrb[0].mxu0
  %v5024 = vadd.f32 0.0, %v5023
  %v5025 = vpop.f32.mrb[0].mxu0
  %v5026 = vadd.f32 0.0, %v5025
  %5027 = vmatprep.mubr.bf16.mxu0 %v4146
  %5028 = vmatmul.mubr.bf16.gmra.mrb[0].mxu0 %v4145
  %v5029 = vpop.f32.mrb[0].mxu0
  %v5030 = vadd.f32 0.0, %v5029
  %v5031 = vpop.f32.mrb[0].mxu0
  %v5032 = vadd.f32 0.0, %v5031
  %v5033 = vpop.f32.mrb[0].mxu0
  %v5034 = vadd.f32 0.0, %v5033
  %v5035 = vpop.f32.mrb[0].mxu0
  %v5036 = vadd.f32 0.0, %v5035
  %5037 = vmatprep.mubr.bf16.mxu0 %v4150
  %5038 = vmatmul.mubr.bf16.gmra.mrb[0].mxu0 %v4149
  %v5039 = vpop.f32.mrb[0].mxu0
  %v5040 = vadd.f32 0.0, %v5039
  %v5041 = vpop.f32.mrb[0].mxu0
  %v5042 = vadd.f32 0.0, %v5041
  %v5043 = vpop.f32.mrb[0].mxu0
  %v5044 = vadd.f32 0.0, %v5043
  %v5045 = vpop.f32.mrb[0].mxu0
  %v5046 = vadd.f32 0.0, %v5045
  %5047 = vmatprep.mubr.bf16.mxu0 %v4154
  %5048 = vmatmul.mubr.bf16.gmra.mrb[0].mxu0 %v4153
  %v5049 = vpop.f32.mrb[0].mxu0
  %v5050 = vadd.f32 0.0, %v5049
  %v5051 = vpop.f32.mrb[0].mxu0
  %v5052 = vadd.f32 0.0, %v5051
  %v5053 = vpop.f32.mrb[0].mxu0
  %v5054 = vadd.f32 0.0, %v5053
  %v5055 = vpop.f32.mrb[0].mxu0
  %v5056 = vadd.f32 0.0, %v5055
  %5057 = vmatprep.mubr.bf16.mxu0 %v4158
  %5058 = vmatmul.mubr.bf16.gmra.mrb[0].mxu0 %v4157
  %v5059 = vpop.f32.mrb[0].mxu0
  %v5060 = vadd.f32 0.0, %v5059
  %v5061 = vpop.f32.mrb[0].mxu0
  %v5062 = vadd.f32 0.0, %v5061
  %v5063 = vpop.f32.mrb[0].mxu0
  %v5064 = vadd.f32 0.0, %v5063
  %v5065 = vpop.f32.mrb[0].mxu0
  %v5066 = vadd.f32 0.0, %v5065
  %5067 = vmatprep.mubr.bf16.mxu0 %v4162
  %5068 = vmatmul.mubr.bf16.gmra.mrb[0].mxu0 %v4161
  %v5069 = vpop.f32.mrb[0].mxu0
  %v5070 = vadd.f32 0.0, %v5069
  %v5071 = vpop.f32.mrb[0].mxu0
  %v5072 = vadd.f32 0.0, %v5071
  %v5073 = vpop.f32.mrb[0].mxu0
  %v5074 = vadd.f32 0.0, %v5073
  %v5075 = vpop.f32.mrb[0].mxu0
  %v5076 = vadd.f32 0.0, %v5075
  %5077 = vmatprep.mubr.bf16.mxu0 %v4166
  %5078 = vmatmul.mubr.bf16.gmra.mrb[0].mxu0 %v4165
  %v5079 = vpop.f32.mrb[0].mxu0
  %v5080 = vadd.f32 0.0, %v5079
  %v5081 = vpop.f32.mrb[0].mxu0
  %v5082 = vadd.f32 0.0, %v5081
  %v5083 = vpop.f32.mrb[0].mxu0
  %v5084 = vadd.f32 0.0, %v5083
  %v5085 = vpop.f32.mrb[0].mxu0
  %v5086 = vadd.f32 0.0, %v5085
  %5087 = vmatprep.mubr.bf16.mxu0 %v4170
  %5088 = vmatmul.mubr.bf16.gmra.mrb[0].mxu0 %v4169
  %v5089 = vpop.f32.mrb[0].mxu0
  %v5090 = vadd.f32 0.0, %v5089
  %v5091 = vpop.f32.mrb[0].mxu0
  %v5092 = vadd.f32 0.0, %v5091
  %v5093 = vpop.f32.mrb[0].mxu0
  %v5094 = vadd.f32 0.0, %v5093
  %v5095 = vpop.f32.mrb[0].mxu0
  %v5096 = vadd.f32 0.0, %v5095
  %5097 = vmatprep.mubr.bf16.mxu0 %v4174
  %5098 = vmatmul.mubr.bf16.gmra.mrb[0].mxu0 %v4173
  %v5099 = vpop.f32.mrb[0].mxu0
  %v5100 = vadd.f32 0.0, %v5099
  %v5101 = vpop.f32.mrb[0].mxu0
  %v5102 = vadd.f32 0.0, %v5101
  %v5103 = vpop.f32.mrb[0].mxu0
  %v5104 = vadd.f32 0.0, %v5103
  %v5105 = vpop.f32.mrb[0].mxu0
  %v5106 = vadd.f32 0.0, %v5105
  %5107 = vmatprep.mubr.bf16.mxu0 %v4178
  %5108 = vmatmul.mubr.bf16.gmra.mrb[0].mxu0 %v4177
  %v5109 = vpop.f32.mrb[0].mxu0
  %v5110 = vadd.f32 0.0, %v5109
  %v5111 = vpop.f32.mrb[0].mxu0
  %v5112 = vadd.f32 0.0, %v5111
  %v5113 = vpop.f32.mrb[0].mxu0
  %v5114 = vadd.f32 0.0, %v5113
  %v5115 = vpop.f32.mrb[0].mxu0
  %v5116 = vadd.f32 0.0, %v5115
  %5117 = vmatprep.mubr.bf16.mxu0 %v4182
  %5118 = vmatmul.mubr.bf16.gmra.mrb[0].mxu0 %v4181
  %v5119 = vpop.f32.mrb[0].mxu0
  %v5120 = vadd.f32 0.0, %v5119
  %v5121 = vpop.f32.mrb[0].mxu0
  %v5122 = vadd.f32 0.0, %v5121
  %v5123 = vpop.f32.mrb[0].mxu0
  %v5124 = vadd.f32 0.0, %v5123
  %v5125 = vpop.f32.mrb[0].mxu0
  %v5126 = vadd.f32 0.0, %v5125
  %5127 = vmatprep.mubr.bf16.mxu0 %v4186
  %5128 = vmatmul.mubr.bf16.gmra.mrb[0].mxu0 %v4185
  %v5129 = vpop.f32.mrb[0].mxu0
  %v5130 = vadd.f32 0.0, %v5129
  %v5131 = vpop.f32.mrb[0].mxu0
  %v5132 = vadd.f32 0.0, %v5131
  %v5133 = vpop.f32.mrb[0].mxu0
  %v5134 = vadd.f32 0.0, %v5133
  %v5135 = vpop.f32.mrb[0].mxu0
  %v5136 = vadd.f32 0.0, %v5135
  %5137 = vmatprep.mubr.bf16.mxu0 %v4190
  %5138 = vmatmul.mubr.bf16.gmra.mrb[0].mxu0 %v4189
  %v5139 = vpop.f32.mrb[0].mxu0
  %v5140 = vadd.f32 0.0, %v5139
  %v5141 = vpop.f32.mrb[0].mxu0
  %v5142 = vadd.f32 0.0, %v5141
  %v5143 = vpop.f32.mrb[0].mxu0
  %v5144 = vadd.f32 0.0, %v5143
  %v5145 = vpop.f32.mrb[0].mxu0
  %v5146 = vadd.f32 0.0, %v5145
  %5147 = vmatprep.mubr.bf16.mxu0 %v4194
  %5148 = vmatmul.mubr.bf16.gmra.mrb[0].mxu0 %v4193
  %v5149 = vpop.f32.mrb[0].mxu0
  %v5150 = vadd.f32 0.0, %v5149
  %v5151 = vpop.f32.mrb[0].mxu0
  %v5152 = vadd.f32 0.0, %v5151
  %v5153 = vpop.f32.mrb[0].mxu0
  %v5154 = vadd.f32 0.0, %v5153
  %v5155 = vpop.f32.mrb[0].mxu0
  %v5156 = vadd.f32 0.0, %v5155
  %5157 = vdwg.mxu0
  %5158 = vmatprep.subr.bf16.mxu0 %v4774
  %5159 = vmatpush1.bf16.msra.mxu0 %v4773
  %5160 = vmatprep.subr.bf16.mxu0 %v4778
  %5161 = vmatpush1.bf16.msra.mxu0 %v4777
  %5162 = vmatprep.subr.bf16.mxu0 %v4782
  %5163 = vmatpush1.bf16.msra.mxu0 %v4781
  %5164 = vmatprep.subr.bf16.mxu0 %v4786
  %5165 = vmatpush1.bf16.msra.mxu0 %v4785
  %5166 = vmatprep.subr.bf16.mxu0 %v4790
  %5167 = vmatpush1.bf16.msra.mxu0 %v4789
  %5168 = vmatprep.subr.bf16.mxu0 %v4794
  %5169 = vmatpush1.bf16.msra.mxu0 %v4793
  %5170 = vmatprep.subr.bf16.mxu0 %v4798
  %5171 = vmatpush1.bf16.msra.mxu0 %v4797
  %5172 = vmatprep.subr.bf16.mxu0 %v4802
  %5173 = vmatpush1.bf16.msra.mxu0 %v4801
  %5174 = vmatprep.subr.bf16.mxu0 %v4806
  %5175 = vmatpush1.bf16.msra.mxu0 %v4805
  %5176 = vmatprep.subr.bf16.mxu0 %v4810
  %5177 = vmatpush1.bf16.msra.mxu0 %v4809
  %5178 = vmatprep.subr.bf16.mxu0 %v4814
  %5179 = vmatpush1.bf16.msra.mxu0 %v4813
  %5180 = vmatprep.subr.bf16.mxu0 %v4818
  %5181 = vmatpush1.bf16.msra.mxu0 %v4817
  %5182 = vmatprep.subr.bf16.mxu0 %v4822
  %5183 = vmatpush1.bf16.msra.mxu0 %v4821
  %5184 = vmatprep.subr.bf16.mxu0 %v4826
  %5185 = vmatpush1.bf16.msra.mxu0 %v4825
  %5186 = vmatprep.subr.bf16.mxu0 %v4830
  %5187 = vmatpush1.bf16.msra.mxu0 %v4829
  %5188 = vmatprep.subr.bf16.mxu0 %v4834
  %5189 = vmatpush1.bf16.msra.mxu0 %v4833
  %5190 = vmatprep.mubr.bf16.mxu0 %v4136
  %5191 = vmatmul.mubr.bf16.gmra.mrb[0].mxu0 %v4135
  %v5192 = vpop.f32.mrb[0].mxu0
  %v5193 = vadd.f32 %v5000, %v5192
  %v5194 = vpop.f32.mrb[0].mxu0
  %v5195 = vadd.f32 %v5002, %v5194
  %v5196 = vpop.f32.mrb[0].mxu0
  %v5197 = vadd.f32 %v5004, %v5196
  %v5198 = vpop.f32.mrb[0].mxu0
  %v5199 = vadd.f32 %v5006, %v5198
  %5200 = vmatprep.mubr.bf16.mxu0 %v4140
  %5201 = vmatmul.mubr.bf16.gmra.mrb[0].mxu0 %v4139
  %v5202 = vpop.f32.mrb[0].mxu0
  %v5203 = vadd.f32 %v5010, %v5202
  %v5204 = vpop.f32.mrb[0].mxu0
  %v5205 = vadd.f32 %v5012, %v5204
  %v5206 = vpop.f32.mrb[0].mxu0
  %v5207 = vadd.f32 %v5014, %v5206
  %v5208 = vpop.f32.mrb[0].mxu0
  %v5209 = vadd.f32 %v5016, %v5208
  %5210 = vmatprep.mubr.bf16.mxu0 %v4144
  %5211 = vmatmul.mubr.bf16.gmra.mrb[0].mxu0 %v4143
  %v5212 = vpop.f32.mrb[0].mxu0
  %v5213 = vadd.f32 %v5020, %v5212
  %v5214 = vpop.f32.mrb[0].mxu0
  %v5215 = vadd.f32 %v5022, %v5214
  %v5216 = vpop.f32.mrb[0].mxu0
  %v5217 = vadd.f32 %v5024, %v5216
  %v5218 = vpop.f32.mrb[0].mxu0
  %v5219 = vadd.f32 %v5026, %v5218
  %5220 = vmatprep.mubr.bf16.mxu0 %v4148
  %5221 = vmatmul.mubr.bf16.gmra.mrb[0].mxu0 %v4147
  %v5222 = vpop.f32.mrb[0].mxu0
  %v5223 = vadd.f32 %v5030, %v5222
  %v5224 = vpop.f32.mrb[0].mxu0
  %v5225 = vadd.f32 %v5032, %v5224
  %v5226 = vpop.f32.mrb[0].mxu0
  %v5227 = vadd.f32 %v5034, %v5226
  %v5228 = vpop.f32.mrb[0].mxu0
  %v5229 = vadd.f32 %v5036, %v5228
  %5230 = vmatprep.mubr.bf16.mxu0 %v4152
  %5231 = vmatmul.mubr.bf16.gmra.mrb[0].mxu0 %v4151
  %v5232 = vpop.f32.mrb[0].mxu0
  %v5233 = vadd.f32 %v5040, %v5232
  %v5234 = vpop.f32.mrb[0].mxu0
  %v5235 = vadd.f32 %v5042, %v5234
  %v5236 = vpop.f32.mrb[0].mxu0
  %v5237 = vadd.f32 %v5044, %v5236
  %v5238 = vpop.f32.mrb[0].mxu0
  %v5239 = vadd.f32 %v5046, %v5238
  %5240 = vmatprep.mubr.bf16.mxu0 %v4156
  %5241 = vmatmul.mubr.bf16.gmra.mrb[0].mxu0 %v4155
  %v5242 = vpop.f32.mrb[0].mxu0
  %v5243 = vadd.f32 %v5050, %v5242
  %v5244 = vpop.f32.mrb[0].mxu0
  %v5245 = vadd.f32 %v5052, %v5244
  %v5246 = vpop.f32.mrb[0].mxu0
  %v5247 = vadd.f32 %v5054, %v5246
  %v5248 = vpop.f32.mrb[0].mxu0
  %v5249 = vadd.f32 %v5056, %v5248
  %5250 = vmatprep.mubr.bf16.mxu0 %v4160
  %5251 = vmatmul.mubr.bf16.gmra.mrb[0].mxu0 %v4159
  %v5252 = vpop.f32.mrb[0].mxu0
  %v5253 = vadd.f32 %v5060, %v5252
  %v5254 = vpop.f32.mrb[0].mxu0
  %v5255 = vadd.f32 %v5062, %v5254
  %v5256 = vpop.f32.mrb[0].mxu0
  %v5257 = vadd.f32 %v5064, %v5256
  %v5258 = vpop.f32.mrb[0].mxu0
  %v5259 = vadd.f32 %v5066, %v5258
  %5260 = vmatprep.mubr.bf16.mxu0 %v4164
  %5261 = vmatmul.mubr.bf16.gmra.mrb[0].mxu0 %v4163
  %v5262 = vpop.f32.mrb[0].mxu0
  %v5263 = vadd.f32 %v5070, %v5262
  %v5264 = vpop.f32.mrb[0].mxu0
  %v5265 = vadd.f32 %v5072, %v5264
  %v5266 = vpop.f32.mrb[0].mxu0
  %v5267 = vadd.f32 %v5074, %v5266
  %v5268 = vpop.f32.mrb[0].mxu0
  %v5269 = vadd.f32 %v5076, %v5268
  %5270 = vmatprep.mubr.bf16.mxu0 %v4168
  %5271 = vmatmul.mubr.bf16.gmra.mrb[0].mxu0 %v4167
  %v5272 = vpop.f32.mrb[0].mxu0
  %v5273 = vadd.f32 %v5080, %v5272
  %v5274 = vpop.f32.mrb[0].mxu0
  %v5275 = vadd.f32 %v5082, %v5274
  %v5276 = vpop.f32.mrb[0].mxu0
  %v5277 = vadd.f32 %v5084, %v5276
  %v5278 = vpop.f32.mrb[0].mxu0
  %v5279 = vadd.f32 %v5086, %v5278
  %5280 = vmatprep.mubr.bf16.mxu0 %v4172
  %5281 = vmatmul.mubr.bf16.gmra.mrb[0].mxu0 %v4171
  %v5282 = vpop.f32.mrb[0].mxu0
  %v5283 = vadd.f32 %v5090, %v5282
  %v5284 = vpop.f32.mrb[0].mxu0
  %v5285 = vadd.f32 %v5092, %v5284
  %v5286 = vpop.f32.mrb[0].mxu0
  %v5287 = vadd.f32 %v5094, %v5286
  %v5288 = vpop.f32.mrb[0].mxu0
  %v5289 = vadd.f32 %v5096, %v5288
  %5290 = vmatprep.mubr.bf16.mxu0 %v4176
  %5291 = vmatmul.mubr.bf16.gmra.mrb[0].mxu0 %v4175
  %v5292 = vpop.f32.mrb[0].mxu0
  %v5293 = vadd.f32 %v5100, %v5292
  %v5294 = vpop.f32.mrb[0].mxu0
  %v5295 = vadd.f32 %v5102, %v5294
  %v5296 = vpop.f32.mrb[0].mxu0
  %v5297 = vadd.f32 %v5104, %v5296
  %v5298 = vpop.f32.mrb[0].mxu0
  %v5299 = vadd.f32 %v5106, %v5298
  %5300 = vmatprep.mubr.bf16.mxu0 %v4180
  %5301 = vmatmul.mubr.bf16.gmra.mrb[0].mxu0 %v4179
  %v5302 = vpop.f32.mrb[0].mxu0
  %v5303 = vadd.f32 %v5110, %v5302
  %v5304 = vpop.f32.mrb[0].mxu0
  %v5305 = vadd.f32 %v5112, %v5304
  %v5306 = vpop.f32.mrb[0].mxu0
  %v5307 = vadd.f32 %v5114, %v5306
  %v5308 = vpop.f32.mrb[0].mxu0
  %v5309 = vadd.f32 %v5116, %v5308
  %5310 = vmatprep.mubr.bf16.mxu0 %v4184
  %5311 = vmatmul.mubr.bf16.gmra.mrb[0].mxu0 %v4183
  %v5312 = vpop.f32.mrb[0].mxu0
  %v5313 = vadd.f32 %v5120, %v5312
  %v5314 = vpop.f32.mrb[0].mxu0
  %v5315 = vadd.f32 %v5122, %v5314
  %v5316 = vpop.f32.mrb[0].mxu0
  %v5317 = vadd.f32 %v5124, %v5316
  %v5318 = vpop.f32.mrb[0].mxu0
  %v5319 = vadd.f32 %v5126, %v5318
  %5320 = vmatprep.mubr.bf16.mxu0 %v4188
  %5321 = vmatmul.mubr.bf16.gmra.mrb[0].mxu0 %v4187
  %v5322 = vpop.f32.mrb[0].mxu0
  %v5323 = vadd.f32 %v5130, %v5322
  %v5324 = vpop.f32.mrb[0].mxu0
  %v5325 = vadd.f32 %v5132, %v5324
  %v5326 = vpop.f32.mrb[0].mxu0
  %v5327 = vadd.f32 %v5134, %v5326
  %v5328 = vpop.f32.mrb[0].mxu0
  %v5329 = vadd.f32 %v5136, %v5328
  %5330 = vmatprep.mubr.bf16.mxu0 %v4192
  %5331 = vmatmul.mubr.bf16.gmra.mrb[0].mxu0 %v4191
  %v5332 = vpop.f32.mrb[0].mxu0
  %v5333 = vadd.f32 %v5140, %v5332
  %v5334 = vpop.f32.mrb[0].mxu0
  %v5335 = vadd.f32 %v5142, %v5334
  %v5336 = vpop.f32.mrb[0].mxu0
  %v5337 = vadd.f32 %v5144, %v5336
  %v5338 = vpop.f32.mrb[0].mxu0
  %v5339 = vadd.f32 %v5146, %v5338
  %5340 = vmatprep.mubr.bf16.mxu0 %v4196
  %5341 = vmatmul.mubr.bf16.gmra.mrb[0].mxu0 %v4195
  %v5342 = vpop.f32.mrb[0].mxu0
  %v5343 = vadd.f32 %v5150, %v5342
  %v5344 = vpop.f32.mrb[0].mxu0
  %v5345 = vadd.f32 %v5152, %v5344
  %v5346 = vpop.f32.mrb[0].mxu0
  %v5347 = vadd.f32 %v5154, %v5346
  %v5348 = vpop.f32.mrb[0].mxu0
  %v5349 = vadd.f32 %v5156, %v5348
  %5350 = vdwg.mxu0
  %5351 = vmatprep.subr.bf16.mxu0 %v4712
  %5352 = vmatpush1.bf16.msra.mxu0 %v4711
  %5353 = vmatprep.subr.bf16.mxu0 %v4716
  %5354 = vmatpush1.bf16.msra.mxu0 %v4715
  %5355 = vmatprep.subr.bf16.mxu0 %v4720
  %5356 = vmatpush1.bf16.msra.mxu0 %v4719
  %5357 = vmatprep.subr.bf16.mxu0 %v4724
  %5358 = vmatpush1.bf16.msra.mxu0 %v4723
  %5359 = vmatprep.subr.bf16.mxu0 %v4728
  %5360 = vmatpush1.bf16.msra.mxu0 %v4727
  %5361 = vmatprep.subr.bf16.mxu0 %v4732
  %5362 = vmatpush1.bf16.msra.mxu0 %v4731
  %5363 = vmatprep.subr.bf16.mxu0 %v4736
  %5364 = vmatpush1.bf16.msra.mxu0 %v4735
  %5365 = vmatprep.subr.bf16.mxu0 %v4740
  %5366 = vmatpush1.bf16.msra.mxu0 %v4739
  %5367 = vmatprep.subr.bf16.mxu0 %v4744
  %5368 = vmatpush1.bf16.msra.mxu0 %v4743
  %5369 = vmatprep.subr.bf16.mxu0 %v4748
  %5370 = vmatpush1.bf16.msra.mxu0 %v4747
  %5371 = vmatprep.subr.bf16.mxu0 %v4752
  %5372 = vmatpush1.bf16.msra.mxu0 %v4751
  %5373 = vmatprep.subr.bf16.mxu0 %v4756
  %5374 = vmatpush1.bf16.msra.mxu0 %v4755
  %5375 = vmatprep.subr.bf16.mxu0 %v4760
  %5376 = vmatpush1.bf16.msra.mxu0 %v4759
  %5377 = vmatprep.subr.bf16.mxu0 %v4764
  %5378 = vmatpush1.bf16.msra.mxu0 %v4763
  %5379 = vmatprep.subr.bf16.mxu0 %v4768
  %5380 = vmatpush1.bf16.msra.mxu0 %v4767
  %5381 = vmatprep.subr.bf16.mxu0 %v4772
  %5382 = vmatpush1.bf16.msra.mxu0 %v4771
  %5383 = vmatprep.mubr.bf16.mxu0 %v4134
  %5384 = vmatmul.mubr.bf16.gmra.mrb[0].mxu0 %v4133
  %v5385 = vpop.f32.mrb[0].mxu0
  %v5386 = vadd.f32 0.0, %v5385
  %v5387 = vpop.f32.mrb[0].mxu0
  %v5388 = vadd.f32 0.0, %v5387
  %v5389 = vpop.f32.mrb[0].mxu0
  %v5390 = vadd.f32 0.0, %v5389
  %v5391 = vpop.f32.mrb[0].mxu0
  %v5392 = vadd.f32 0.0, %v5391
  %5393 = vmatprep.mubr.bf16.mxu0 %v4138
  %5394 = vmatmul.mubr.bf16.gmra.mrb[0].mxu0 %v4137
  %v5395 = vpop.f32.mrb[0].mxu0
  %v5396 = vadd.f32 0.0, %v5395
  %v5397 = vpop.f32.mrb[0].mxu0
  %v5398 = vadd.f32 0.0, %v5397
  %v5399 = vpop.f32.mrb[0].mxu0
  %v5400 = vadd.f32 0.0, %v5399
  %v5401 = vpop.f32.mrb[0].mxu0
  %v5402 = vadd.f32 0.0, %v5401
  %5403 = vmatprep.mubr.bf16.mxu0 %v4142
  %5404 = vmatmul.mubr.bf16.gmra.mrb[0].mxu0 %v4141
  %v5405 = vpop.f32.mrb[0].mxu0
  %v5406 = vadd.f32 0.0, %v5405
  %v5407 = vpop.f32.mrb[0].mxu0
  %v5408 = vadd.f32 0.0, %v5407
  %v5409 = vpop.f32.mrb[0].mxu0
  %v5410 = vadd.f32 0.0, %v5409
  %v5411 = vpop.f32.mrb[0].mxu0
  %v5412 = vadd.f32 0.0, %v5411
  %5413 = vmatprep.mubr.bf16.mxu0 %v4146
  %5414 = vmatmul.mubr.bf16.gmra.mrb[0].mxu0 %v4145
  %v5415 = vpop.f32.mrb[0].mxu0
  %v5416 = vadd.f32 0.0, %v5415
  %v5417 = vpop.f32.mrb[0].mxu0
  %v5418 = vadd.f32 0.0, %v5417
  %v5419 = vpop.f32.mrb[0].mxu0
  %v5420 = vadd.f32 0.0, %v5419
  %v5421 = vpop.f32.mrb[0].mxu0
  %v5422 = vadd.f32 0.0, %v5421
  %5423 = vmatprep.mubr.bf16.mxu0 %v4150
  %5424 = vmatmul.mubr.bf16.gmra.mrb[0].mxu0 %v4149
  %v5425 = vpop.f32.mrb[0].mxu0
  %v5426 = vadd.f32 0.0, %v5425
  %v5427 = vpop.f32.mrb[0].mxu0
  %v5428 = vadd.f32 0.0, %v5427
  %v5429 = vpop.f32.mrb[0].mxu0
  %v5430 = vadd.f32 0.0, %v5429
  %v5431 = vpop.f32.mrb[0].mxu0
  %v5432 = vadd.f32 0.0, %v5431
  %5433 = vmatprep.mubr.bf16.mxu0 %v4154
  %5434 = vmatmul.mubr.bf16.gmra.mrb[0].mxu0 %v4153
  %v5435 = vpop.f32.mrb[0].mxu0
  %v5436 = vadd.f32 0.0, %v5435
  %v5437 = vpop.f32.mrb[0].mxu0
  %v5438 = vadd.f32 0.0, %v5437
  %v5439 = vpop.f32.mrb[0].mxu0
  %v5440 = vadd.f32 0.0, %v5439
  %v5441 = vpop.f32.mrb[0].mxu0
  %v5442 = vadd.f32 0.0, %v5441
  %5443 = vmatprep.mubr.bf16.mxu0 %v4158
  %5444 = vmatmul.mubr.bf16.gmra.mrb[0].mxu0 %v4157
  %v5445 = vpop.f32.mrb[0].mxu0
  %v5446 = vadd.f32 0.0, %v5445
  %v5447 = vpop.f32.mrb[0].mxu0
  %v5448 = vadd.f32 0.0, %v5447
  %v5449 = vpop.f32.mrb[0].mxu0
  %v5450 = vadd.f32 0.0, %v5449
  %v5451 = vpop.f32.mrb[0].mxu0
  %v5452 = vadd.f32 0.0, %v5451
  %5453 = vmatprep.mubr.bf16.mxu0 %v4162
  %5454 = vmatmul.mubr.bf16.gmra.mrb[0].mxu0 %v4161
  %v5455 = vpop.f32.mrb[0].mxu0
  %v5456 = vadd.f32 0.0, %v5455
  %v5457 = vpop.f32.mrb[0].mxu0
  %v5458 = vadd.f32 0.0, %v5457
  %v5459 = vpop.f32.mrb[0].mxu0
  %v5460 = vadd.f32 0.0, %v5459
  %v5461 = vpop.f32.mrb[0].mxu0
  %v5462 = vadd.f32 0.0, %v5461
  %5463 = vmatprep.mubr.bf16.mxu0 %v4166
  %5464 = vmatmul.mubr.bf16.gmra.mrb[0].mxu0 %v4165
  %v5465 = vpop.f32.mrb[0].mxu0
  %v5466 = vadd.f32 0.0, %v5465
  %v5467 = vpop.f32.mrb[0].mxu0
  %v5468 = vadd.f32 0.0, %v5467
  %v5469 = vpop.f32.mrb[0].mxu0
  %v5470 = vadd.f32 0.0, %v5469
  %v5471 = vpop.f32.mrb[0].mxu0
  %v5472 = vadd.f32 0.0, %v5471
  %5473 = vmatprep.mubr.bf16.mxu0 %v4170
  %5474 = vmatmul.mubr.bf16.gmra.mrb[0].mxu0 %v4169
  %v5475 = vpop.f32.mrb[0].mxu0
  %v5476 = vadd.f32 0.0, %v5475
  %v5477 = vpop.f32.mrb[0].mxu0
  %v5478 = vadd.f32 0.0, %v5477
  %v5479 = vpop.f32.mrb[0].mxu0
  %v5480 = vadd.f32 0.0, %v5479
  %v5481 = vpop.f32.mrb[0].mxu0
  %v5482 = vadd.f32 0.0, %v5481
  %5483 = vmatprep.mubr.bf16.mxu0 %v4174
  %5484 = vmatmul.mubr.bf16.gmra.mrb[0].mxu0 %v4173
  %v5485 = vpop.f32.mrb[0].mxu0
  %v5486 = vadd.f32 0.0, %v5485
  %v5487 = vpop.f32.mrb[0].mxu0
  %v5488 = vadd.f32 0.0, %v5487
  %v5489 = vpop.f32.mrb[0].mxu0
  %v5490 = vadd.f32 0.0, %v5489
  %v5491 = vpop.f32.mrb[0].mxu0
  %v5492 = vadd.f32 0.0, %v5491
  %5493 = vmatprep.mubr.bf16.mxu0 %v4178
  %5494 = vmatmul.mubr.bf16.gmra.mrb[0].mxu0 %v4177
  %v5495 = vpop.f32.mrb[0].mxu0
  %v5496 = vadd.f32 0.0, %v5495
  %v5497 = vpop.f32.mrb[0].mxu0
  %v5498 = vadd.f32 0.0, %v5497
  %v5499 = vpop.f32.mrb[0].mxu0
  %v5500 = vadd.f32 0.0, %v5499
  %v5501 = vpop.f32.mrb[0].mxu0
  %v5502 = vadd.f32 0.0, %v5501
  %5503 = vmatprep.mubr.bf16.mxu0 %v4182
  %5504 = vmatmul.mubr.bf16.gmra.mrb[0].mxu0 %v4181
  %v5505 = vpop.f32.mrb[0].mxu0
  %v5506 = vadd.f32 0.0, %v5505
  %v5507 = vpop.f32.mrb[0].mxu0
  %v5508 = vadd.f32 0.0, %v5507
  %v5509 = vpop.f32.mrb[0].mxu0
  %v5510 = vadd.f32 0.0, %v5509
  %v5511 = vpop.f32.mrb[0].mxu0
  %v5512 = vadd.f32 0.0, %v5511
  %5513 = vmatprep.mubr.bf16.mxu0 %v4186
  %5514 = vmatmul.mubr.bf16.gmra.mrb[0].mxu0 %v4185
  %v5515 = vpop.f32.mrb[0].mxu0
  %v5516 = vadd.f32 0.0, %v5515
  %v5517 = vpop.f32.mrb[0].mxu0
  %v5518 = vadd.f32 0.0, %v5517
  %v5519 = vpop.f32.mrb[0].mxu0
  %v5520 = vadd.f32 0.0, %v5519
  %v5521 = vpop.f32.mrb[0].mxu0
  %v5522 = vadd.f32 0.0, %v5521
  %5523 = vmatprep.mubr.bf16.mxu0 %v4190
  %5524 = vmatmul.mubr.bf16.gmra.mrb[0].mxu0 %v4189
  %v5525 = vpop.f32.mrb[0].mxu0
  %v5526 = vadd.f32 0.0, %v5525
  %v5527 = vpop.f32.mrb[0].mxu0
  %v5528 = vadd.f32 0.0, %v5527
  %v5529 = vpop.f32.mrb[0].mxu0
  %v5530 = vadd.f32 0.0, %v5529
  %v5531 = vpop.f32.mrb[0].mxu0
  %v5532 = vadd.f32 0.0, %v5531
  %5533 = vmatprep.mubr.bf16.mxu0 %v4194
  %5534 = vmatmul.mubr.bf16.gmra.mrb[0].mxu0 %v4193
  %v5535 = vpop.f32.mrb[0].mxu0
  %v5536 = vadd.f32 0.0, %v5535
  %v5537 = vpop.f32.mrb[0].mxu0
  %v5538 = vadd.f32 0.0, %v5537
  %v5539 = vpop.f32.mrb[0].mxu0
  %v5540 = vadd.f32 0.0, %v5539
  %v5541 = vpop.f32.mrb[0].mxu0
  %v5542 = vadd.f32 0.0, %v5541
  %5543 = vdwg.mxu0
  %5544 = vmatprep.subr.bf16.mxu0 %v4776
  %5545 = vmatpush1.bf16.msra.mxu0 %v4775
  %5546 = vmatprep.subr.bf16.mxu0 %v4780
  %5547 = vmatpush1.bf16.msra.mxu0 %v4779
  %5548 = vmatprep.subr.bf16.mxu0 %v4784
  %5549 = vmatpush1.bf16.msra.mxu0 %v4783
  %5550 = vmatprep.subr.bf16.mxu0 %v4788
  %5551 = vmatpush1.bf16.msra.mxu0 %v4787
  %5552 = vmatprep.subr.bf16.mxu0 %v4792
  %5553 = vmatpush1.bf16.msra.mxu0 %v4791
  %5554 = vmatprep.subr.bf16.mxu0 %v4796
  %5555 = vmatpush1.bf16.msra.mxu0 %v4795
  %5556 = vmatprep.subr.bf16.mxu0 %v4800
  %5557 = vmatpush1.bf16.msra.mxu0 %v4799
  %5558 = vmatprep.subr.bf16.mxu0 %v4804
  %5559 = vmatpush1.bf16.msra.mxu0 %v4803
  %5560 = vmatprep.subr.bf16.mxu0 %v4808
  %5561 = vmatpush1.bf16.msra.mxu0 %v4807
  %5562 = vmatprep.subr.bf16.mxu0 %v4812
  %5563 = vmatpush1.bf16.msra.mxu0 %v4811
  %5564 = vmatprep.subr.bf16.mxu0 %v4816
  %5565 = vmatpush1.bf16.msra.mxu0 %v4815
  %5566 = vmatprep.subr.bf16.mxu0 %v4820
  %5567 = vmatpush1.bf16.msra.mxu0 %v4819
  %5568 = vmatprep.subr.bf16.mxu0 %v4824
  %5569 = vmatpush1.bf16.msra.mxu0 %v4823
  %5570 = vmatprep.subr.bf16.mxu0 %v4828
  %5571 = vmatpush1.bf16.msra.mxu0 %v4827
  %5572 = vmatprep.subr.bf16.mxu0 %v4832
  %5573 = vmatpush1.bf16.msra.mxu0 %v4831
  %5574 = vmatprep.subr.bf16.mxu0 %v4836
  %5575 = vmatpush1.bf16.msra.mxu0 %v4835
  %5576 = vmatprep.mubr.bf16.mxu0 %v4136
  %5577 = vmatmul.mubr.bf16.gmra.mrb[0].mxu0 %v4135
  %v5578 = vpop.f32.mrb[0].mxu0
  %v5579 = vadd.f32 %v5386, %v5578
  %v5580 = vpop.f32.mrb[0].mxu0
  %v5581 = vadd.f32 %v5388, %v5580
  %v5582 = vpop.f32.mrb[0].mxu0
  %v5583 = vadd.f32 %v5390, %v5582
  %v5584 = vpop.f32.mrb[0].mxu0
  %v5585 = vadd.f32 %v5392, %v5584
  %5586 = vmatprep.mubr.bf16.mxu0 %v4140
  %5587 = vmatmul.mubr.bf16.gmra.mrb[0].mxu0 %v4139
  %v5588 = vpop.f32.mrb[0].mxu0
  %v5589 = vadd.f32 %v5396, %v5588
  %v5590 = vpop.f32.mrb[0].mxu0
  %v5591 = vadd.f32 %v5398, %v5590
  %v5592 = vpop.f32.mrb[0].mxu0
  %v5593 = vadd.f32 %v5400, %v5592
  %v5594 = vpop.f32.mrb[0].mxu0
  %v5595 = vadd.f32 %v5402, %v5594
  %5596 = vmatprep.mubr.bf16.mxu0 %v4144
  %5597 = vmatmul.mubr.bf16.gmra.mrb[0].mxu0 %v4143
  %v5598 = vpop.f32.mrb[0].mxu0
  %v5599 = vadd.f32 %v5406, %v5598
  %v5600 = vpop.f32.mrb[0].mxu0
  %v5601 = vadd.f32 %v5408, %v5600
  %v5602 = vpop.f32.mrb[0].mxu0
  %v5603 = vadd.f32 %v5410, %v5602
  %v5604 = vpop.f32.mrb[0].mxu0
  %v5605 = vadd.f32 %v5412, %v5604
  %5606 = vmatprep.mubr.bf16.mxu0 %v4148
  %5607 = vmatmul.mubr.bf16.gmra.mrb[0].mxu0 %v4147
  %v5608 = vpop.f32.mrb[0].mxu0
  %v5609 = vadd.f32 %v5416, %v5608
  %v5610 = vpop.f32.mrb[0].mxu0
  %v5611 = vadd.f32 %v5418, %v5610
  %v5612 = vpop.f32.mrb[0].mxu0
  %v5613 = vadd.f32 %v5420, %v5612
  %v5614 = vpop.f32.mrb[0].mxu0
  %v5615 = vadd.f32 %v5422, %v5614
  %5616 = vmatprep.mubr.bf16.mxu0 %v4152
  %5617 = vmatmul.mubr.bf16.gmra.mrb[0].mxu0 %v4151
  %v5618 = vpop.f32.mrb[0].mxu0
  %v5619 = vadd.f32 %v5426, %v5618
  %v5620 = vpop.f32.mrb[0].mxu0
  %v5621 = vadd.f32 %v5428, %v5620
  %v5622 = vpop.f32.mrb[0].mxu0
  %v5623 = vadd.f32 %v5430, %v5622
  %v5624 = vpop.f32.mrb[0].mxu0
  %v5625 = vadd.f32 %v5432, %v5624
  %5626 = vmatprep.mubr.bf16.mxu0 %v4156
  %5627 = vmatmul.mubr.bf16.gmra.mrb[0].mxu0 %v4155
  %v5628 = vpop.f32.mrb[0].mxu0
  %v5629 = vadd.f32 %v5436, %v5628
  %v5630 = vpop.f32.mrb[0].mxu0
  %v5631 = vadd.f32 %v5438, %v5630
  %v5632 = vpop.f32.mrb[0].mxu0
  %v5633 = vadd.f32 %v5440, %v5632
  %v5634 = vpop.f32.mrb[0].mxu0
  %v5635 = vadd.f32 %v5442, %v5634
  %5636 = vmatprep.mubr.bf16.mxu0 %v4160
  %5637 = vmatmul.mubr.bf16.gmra.mrb[0].mxu0 %v4159
  %v5638 = vpop.f32.mrb[0].mxu0
  %v5639 = vadd.f32 %v5446, %v5638
  %v5640 = vpop.f32.mrb[0].mxu0
  %v5641 = vadd.f32 %v5448, %v5640
  %v5642 = vpop.f32.mrb[0].mxu0
  %v5643 = vadd.f32 %v5450, %v5642
  %v5644 = vpop.f32.mrb[0].mxu0
  %v5645 = vadd.f32 %v5452, %v5644
  %5646 = vmatprep.mubr.bf16.mxu0 %v4164
  %5647 = vmatmul.mubr.bf16.gmra.mrb[0].mxu0 %v4163
  %v5648 = vpop.f32.mrb[0].mxu0
  %v5649 = vadd.f32 %v5456, %v5648
  %v5650 = vpop.f32.mrb[0].mxu0
  %v5651 = vadd.f32 %v5458, %v5650
  %v5652 = vpop.f32.mrb[0].mxu0
  %v5653 = vadd.f32 %v5460, %v5652
  %v5654 = vpop.f32.mrb[0].mxu0
  %v5655 = vadd.f32 %v5462, %v5654
  %5656 = vmatprep.mubr.bf16.mxu0 %v4168
  %5657 = vmatmul.mubr.bf16.gmra.mrb[0].mxu0 %v4167
  %v5658 = vpop.f32.mrb[0].mxu0
  %v5659 = vadd.f32 %v5466, %v5658
  %v5660 = vpop.f32.mrb[0].mxu0
  %v5661 = vadd.f32 %v5468, %v5660
  %v5662 = vpop.f32.mrb[0].mxu0
  %v5663 = vadd.f32 %v5470, %v5662
  %v5664 = vpop.f32.mrb[0].mxu0
  %v5665 = vadd.f32 %v5472, %v5664
  %5666 = vmatprep.mubr.bf16.mxu0 %v4172
  %5667 = vmatmul.mubr.bf16.gmra.mrb[0].mxu0 %v4171
  %v5668 = vpop.f32.mrb[0].mxu0
  %v5669 = vadd.f32 %v5476, %v5668
  %v5670 = vpop.f32.mrb[0].mxu0
  %v5671 = vadd.f32 %v5478, %v5670
  %v5672 = vpop.f32.mrb[0].mxu0
  %v5673 = vadd.f32 %v5480, %v5672
  %v5674 = vpop.f32.mrb[0].mxu0
  %v5675 = vadd.f32 %v5482, %v5674
  %5676 = vmatprep.mubr.bf16.mxu0 %v4176
  %5677 = vmatmul.mubr.bf16.gmra.mrb[0].mxu0 %v4175
  %v5678 = vpop.f32.mrb[0].mxu0
  %v5679 = vadd.f32 %v5486, %v5678
  %v5680 = vpop.f32.mrb[0].mxu0
  %v5681 = vadd.f32 %v5488, %v5680
  %v5682 = vpop.f32.mrb[0].mxu0
  %v5683 = vadd.f32 %v5490, %v5682
  %v5684 = vpop.f32.mrb[0].mxu0
  %v5685 = vadd.f32 %v5492, %v5684
  %5686 = vmatprep.mubr.bf16.mxu0 %v4180
  %5687 = vmatmul.mubr.bf16.gmra.mrb[0].mxu0 %v4179
  %v5688 = vpop.f32.mrb[0].mxu0
  %v5689 = vadd.f32 %v5496, %v5688
  %v5690 = vpop.f32.mrb[0].mxu0
  %v5691 = vadd.f32 %v5498, %v5690
  %v5692 = vpop.f32.mrb[0].mxu0
  %v5693 = vadd.f32 %v5500, %v5692
  %v5694 = vpop.f32.mrb[0].mxu0
  %v5695 = vadd.f32 %v5502, %v5694
  %5696 = vmatprep.mubr.bf16.mxu0 %v4184
  %5697 = vmatmul.mubr.bf16.gmra.mrb[0].mxu0 %v4183
  %v5698 = vpop.f32.mrb[0].mxu0
  %v5699 = vadd.f32 %v5506, %v5698
  %v5700 = vpop.f32.mrb[0].mxu0
  %v5701 = vadd.f32 %v5508, %v5700
  %v5702 = vpop.f32.mrb[0].mxu0
  %v5703 = vadd.f32 %v5510, %v5702
  %v5704 = vpop.f32.mrb[0].mxu0
  %v5705 = vadd.f32 %v5512, %v5704
  %5706 = vmatprep.mubr.bf16.mxu0 %v4188
  %5707 = vmatmul.mubr.bf16.gmra.mrb[0].mxu0 %v4187
  %v5708 = vpop.f32.mrb[0].mxu0
  %v5709 = vadd.f32 %v5516, %v5708
  %v5710 = vpop.f32.mrb[0].mxu0
  %v5711 = vadd.f32 %v5518, %v5710
  %v5712 = vpop.f32.mrb[0].mxu0
  %v5713 = vadd.f32 %v5520, %v5712
  %v5714 = vpop.f32.mrb[0].mxu0
  %v5715 = vadd.f32 %v5522, %v5714
  %5716 = vmatprep.mubr.bf16.mxu0 %v4192
  %5717 = vmatmul.mubr.bf16.gmra.mrb[0].mxu0 %v4191
  %v5718 = vpop.f32.mrb[0].mxu0
  %v5719 = vadd.f32 %v5526, %v5718
  %v5720 = vpop.f32.mrb[0].mxu0
  %v5721 = vadd.f32 %v5528, %v5720
  %v5722 = vpop.f32.mrb[0].mxu0
  %v5723 = vadd.f32 %v5530, %v5722
  %v5724 = vpop.f32.mrb[0].mxu0
  %v5725 = vadd.f32 %v5532, %v5724
  %5726 = vmatprep.mubr.bf16.mxu0 %v4196
  %5727 = vmatmul.mubr.bf16.gmra.mrb[0].mxu0 %v4195
  %v5728 = vpop.f32.mrb[0].mxu0
  %v5729 = vadd.f32 %v5536, %v5728
  %v5730 = vpop.f32.mrb[0].mxu0
  %v5731 = vadd.f32 %v5538, %v5730
  %v5732 = vpop.f32.mrb[0].mxu0
  %v5733 = vadd.f32 %v5540, %v5732
  %v5734 = vpop.f32.mrb[0].mxu0
  %v5735 = vadd.f32 %v5542, %v5734
  %5736 = vdwg.mxu0
  %v5737 = vmax.f32 %v5193, 0.0
  %v5738 = vmax.f32 %v5195, 0.0
  %v5739 = vmax.f32 %v5579, 0.0
  %v5740 = vmax.f32 %v5581, 0.0
  %v5741 = vmax.f32 %v5197, 0.0
  %v5742 = vmax.f32 %v5199, 0.0
  %v5743 = vmax.f32 %v5583, 0.0
  %v5744 = vmax.f32 %v5585, 0.0
  %v5745 = vmax.f32 %v5203, 0.0
  %v5746 = vmax.f32 %v5205, 0.0
  %v5747 = vmax.f32 %v5589, 0.0
  %v5748 = vmax.f32 %v5591, 0.0
  %v5749 = vmax.f32 %v5207, 0.0
  %v5750 = vmax.f32 %v5209, 0.0
  %v5751 = vmax.f32 %v5593, 0.0
  %v5752 = vmax.f32 %v5595, 0.0
  %v5753 = vmax.f32 %v5213, 0.0
  %v5754 = vmax.f32 %v5215, 0.0
  %v5755 = vmax.f32 %v5599, 0.0
  %v5756 = vmax.f32 %v5601, 0.0
  %v5757 = vmax.f32 %v5217, 0.0
  %v5758 = vmax.f32 %v5219, 0.0
  %v5759 = vmax.f32 %v5603, 0.0
  %v5760 = vmax.f32 %v5605, 0.0
  %v5761 = vmax.f32 %v5223, 0.0
  %v5762 = vmax.f32 %v5225, 0.0
  %v5763 = vmax.f32 %v5609, 0.0
  %v5764 = vmax.f32 %v5611, 0.0
  %v5765 = vmax.f32 %v5227, 0.0
  %v5766 = vmax.f32 %v5229, 0.0
  %v5767 = vmax.f32 %v5613, 0.0
  %v5768 = vmax.f32 %v5615, 0.0
  %v5769 = vmax.f32 %v5233, 0.0
  %v5770 = vmax.f32 %v5235, 0.0
  %v5771 = vmax.f32 %v5619, 0.0
  %v5772 = vmax.f32 %v5621, 0.0
  %v5773 = vmax.f32 %v5237, 0.0
  %v5774 = vmax.f32 %v5239, 0.0
  %v5775 = vmax.f32 %v5623, 0.0
  %v5776 = vmax.f32 %v5625, 0.0
  %v5777 = vmax.f32 %v5243, 0.0
  %v5778 = vmax.f32 %v5245, 0.0
  %v5779 = vmax.f32 %v5629, 0.0
  %v5780 = vmax.f32 %v5631, 0.0
  %v5781 = vmax.f32 %v5247, 0.0
  %v5782 = vmax.f32 %v5249, 0.0
  %v5783 = vmax.f32 %v5633, 0.0
  %v5784 = vmax.f32 %v5635, 0.0
  %v5785 = vmax.f32 %v5253, 0.0
  %v5786 = vmax.f32 %v5255, 0.0
  %v5787 = vmax.f32 %v5639, 0.0
  %v5788 = vmax.f32 %v5641, 0.0
  %v5789 = vmax.f32 %v5257, 0.0
  %v5790 = vmax.f32 %v5259, 0.0
  %v5791 = vmax.f32 %v5643, 0.0
  %v5792 = vmax.f32 %v5645, 0.0
  %v5793 = vmax.f32 %v5263, 0.0
  %v5794 = vmax.f32 %v5265, 0.0
  %v5795 = vmax.f32 %v5649, 0.0
  %v5796 = vmax.f32 %v5651, 0.0
  %v5797 = vmax.f32 %v5267, 0.0
  %v5798 = vmax.f32 %v5269, 0.0
  %v5799 = vmax.f32 %v5653, 0.0
  %v5800 = vmax.f32 %v5655, 0.0
  %v5801 = vmax.f32 %v5273, 0.0
  %v5802 = vmax.f32 %v5275, 0.0
  %v5803 = vmax.f32 %v5659, 0.0
  %v5804 = vmax.f32 %v5661, 0.0
  %v5805 = vmax.f32 %v5277, 0.0
  %v5806 = vmax.f32 %v5279, 0.0
  %v5807 = vmax.f32 %v5663, 0.0
  %v5808 = vmax.f32 %v5665, 0.0
  %v5809 = vmax.f32 %v5283, 0.0
  %v5810 = vmax.f32 %v5285, 0.0
  %v5811 = vmax.f32 %v5669, 0.0
  %v5812 = vmax.f32 %v5671, 0.0
  %v5813 = vmax.f32 %v5287, 0.0
  %v5814 = vmax.f32 %v5289, 0.0
  %v5815 = vmax.f32 %v5673, 0.0
  %v5816 = vmax.f32 %v5675, 0.0
  %v5817 = vmax.f32 %v5293, 0.0
  %v5818 = vmax.f32 %v5295, 0.0
  %v5819 = vmax.f32 %v5679, 0.0
  %v5820 = vmax.f32 %v5681, 0.0
  %v5821 = vmax.f32 %v5297, 0.0
  %v5822 = vmax.f32 %v5299, 0.0
  %v5823 = vmax.f32 %v5683, 0.0
  %v5824 = vmax.f32 %v5685, 0.0
  %v5825 = vmax.f32 %v5303, 0.0
  %v5826 = vmax.f32 %v5305, 0.0
  %v5827 = vmax.f32 %v5689, 0.0
  %v5828 = vmax.f32 %v5691, 0.0
  %v5829 = vmax.f32 %v5307, 0.0
  %v5830 = vmax.f32 %v5309, 0.0
  %v5831 = vmax.f32 %v5693, 0.0
  %v5832 = vmax.f32 %v5695, 0.0
  %v5833 = vmax.f32 %v5313, 0.0
  %v5834 = vmax.f32 %v5315, 0.0
  %v5835 = vmax.f32 %v5699, 0.0
  %v5836 = vmax.f32 %v5701, 0.0
  %v5837 = vmax.f32 %v5317, 0.0
  %v5838 = vmax.f32 %v5319, 0.0
  %v5839 = vmax.f32 %v5703, 0.0
  %v5840 = vmax.f32 %v5705, 0.0
  %v5841 = vmax.f32 %v5323, 0.0
  %v5842 = vmax.f32 %v5325, 0.0
  %v5843 = vmax.f32 %v5709, 0.0
  %v5844 = vmax.f32 %v5711, 0.0
  %v5845 = vmax.f32 %v5327, 0.0
  %v5846 = vmax.f32 %v5329, 0.0
  %v5847 = vmax.f32 %v5713, 0.0
  %v5848 = vmax.f32 %v5715, 0.0
  %v5849 = vmax.f32 %v5333, 0.0
  %v5850 = vmax.f32 %v5335, 0.0
  %v5851 = vmax.f32 %v5719, 0.0
  %v5852 = vmax.f32 %v5721, 0.0
  %v5853 = vmax.f32 %v5337, 0.0
  %v5854 = vmax.f32 %v5339, 0.0
  %v5855 = vmax.f32 %v5723, 0.0
  %v5856 = vmax.f32 %v5725, 0.0
  %v5857 = vmax.f32 %v5343, 0.0
  %v5858 = vmax.f32 %v5345, 0.0
  %v5859 = vmax.f32 %v5729, 0.0
  %v5860 = vmax.f32 %v5731, 0.0
  %v5861 = vmax.f32 %v5347, 0.0
  %v5862 = vmax.f32 %v5349, 0.0
  %v5863 = vmax.f32 %v5733, 0.0
  %v5864 = vmax.f32 %v5735, 0.0
  %v5865 = vpack.c.bf16 %v5741, %v5737
  %v5866 = vpack.c.bf16 %v5742, %v5738
  %v5867 = vpack.c.bf16 %v5743, %v5739
  %v5868 = vpack.c.bf16 %v5744, %v5740
  %v5869 = vpack.c.bf16 %v5749, %v5745
  %v5870 = vpack.c.bf16 %v5750, %v5746
  %v5871 = vpack.c.bf16 %v5751, %v5747
  %v5872 = vpack.c.bf16 %v5752, %v5748
  %v5873 = vpack.c.bf16 %v5757, %v5753
  %v5874 = vpack.c.bf16 %v5758, %v5754
  %v5875 = vpack.c.bf16 %v5759, %v5755
  %v5876 = vpack.c.bf16 %v5760, %v5756
  %v5877 = vpack.c.bf16 %v5765, %v5761
  %v5878 = vpack.c.bf16 %v5766, %v5762
  %v5879 = vpack.c.bf16 %v5767, %v5763
  %v5880 = vpack.c.bf16 %v5768, %v5764
  %v5881 = vpack.c.bf16 %v5773, %v5769
  %v5882 = vpack.c.bf16 %v5774, %v5770
  %v5883 = vpack.c.bf16 %v5775, %v5771
  %v5884 = vpack.c.bf16 %v5776, %v5772
  %v5885 = vpack.c.bf16 %v5781, %v5777
  %v5886 = vpack.c.bf16 %v5782, %v5778
  %v5887 = vpack.c.bf16 %v5783, %v5779
  %v5888 = vpack.c.bf16 %v5784, %v5780
  %v5889 = vpack.c.bf16 %v5789, %v5785
  %v5890 = vpack.c.bf16 %v5790, %v5786
  %v5891 = vpack.c.bf16 %v5791, %v5787
  %v5892 = vpack.c.bf16 %v5792, %v5788
  %v5893 = vpack.c.bf16 %v5797, %v5793
  %v5894 = vpack.c.bf16 %v5798, %v5794
  %v5895 = vpack.c.bf16 %v5799, %v5795
  %v5896 = vpack.c.bf16 %v5800, %v5796
  %v5897 = vpack.c.bf16 %v5805, %v5801
  %v5898 = vpack.c.bf16 %v5806, %v5802
  %v5899 = vpack.c.bf16 %v5807, %v5803
  %v5900 = vpack.c.bf16 %v5808, %v5804
  %v5901 = vpack.c.bf16 %v5813, %v5809
  %v5902 = vpack.c.bf16 %v5814, %v5810
  %v5903 = vpack.c.bf16 %v5815, %v5811
  %v5904 = vpack.c.bf16 %v5816, %v5812
  %v5905 = vpack.c.bf16 %v5821, %v5817
  %v5906 = vpack.c.bf16 %v5822, %v5818
  %v5907 = vpack.c.bf16 %v5823, %v5819
  %v5908 = vpack.c.bf16 %v5824, %v5820
  %v5909 = vpack.c.bf16 %v5829, %v5825
  %v5910 = vpack.c.bf16 %v5830, %v5826
  %v5911 = vpack.c.bf16 %v5831, %v5827
  %v5912 = vpack.c.bf16 %v5832, %v5828
  %v5913 = vpack.c.bf16 %v5837, %v5833
  %v5914 = vpack.c.bf16 %v5838, %v5834
  %v5915 = vpack.c.bf16 %v5839, %v5835
  %v5916 = vpack.c.bf16 %v5840, %v5836
  %v5917 = vpack.c.bf16 %v5845, %v5841
  %v5918 = vpack.c.bf16 %v5846, %v5842
  %v5919 = vpack.c.bf16 %v5847, %v5843
  %v5920 = vpack.c.bf16 %v5848, %v5844
  %v5921 = vpack.c.bf16 %v5853, %v5849
  %v5922 = vpack.c.bf16 %v5854, %v5850
  %v5923 = vpack.c.bf16 %v5855, %v5851
  %v5924 = vpack.c.bf16 %v5856, %v5852
  %v5925 = vpack.c.bf16 %v5861, %v5857
  %v5926 = vpack.c.bf16 %v5862, %v5858
  %v5927 = vpack.c.bf16 %v5863, %v5859
  %v5928 = vpack.c.bf16 %v5864, %v5860
  %s5929 = smul.addr %s3104, 8
  %s5930 = scalar_lea.vmem [#allocation3], %s5929
  %5931 = vst [vmem:[%s5930] sm:$0xff] %v5865
  %5932 = vst [vmem:[%s5930 + $0x8] sm:$0xff] %v5866
  %5933 = vst [vmem:[%s5930 + $0x10] sm:$0xff] %v5867
  %5934 = vst [vmem:[%s5930 + $0x18] sm:$0xff] %v5868
  %5935 = vst [vmem:[%s5930 + $0x20] sm:$0xff] %v5869
  %5936 = vst [vmem:[%s5930 + $0x28] sm:$0xff] %v5870
  %5937 = vst [vmem:[%s5930 + $0x30] sm:$0xff] %v5871
  %5938 = vst [vmem:[%s5930 + $0x38] sm:$0xff] %v5872
  %5939 = vst [vmem:[%s5930 + $0x40] sm:$0xff] %v5873
  %5940 = vst [vmem:[%s5930 + $0x48] sm:$0xff] %v5874
  %5941 = vst [vmem:[%s5930 + $0x50] sm:$0xff] %v5875
  %5942 = vst [vmem:[%s5930 + $0x58] sm:$0xff] %v5876
  %5943 = vst [vmem:[%s5930 + $0x60] sm:$0xff] %v5877
  %5944 = vst [vmem:[%s5930 + $0x68] sm:$0xff] %v5878
  %5945 = vst [vmem:[%s5930 + $0x70] sm:$0xff] %v5879
  %5946 = vst [vmem:[%s5930 + $0x78] sm:$0xff] %v5880
  %5947 = vst [vmem:[%s5930 + $0x80] sm:$0xff] %v5881
  %5948 = vst [vmem:[%s5930 + $0x88] sm:$0xff] %v5882
  %5949 = vst [vmem:[%s5930 + $0x90] sm:$0xff] %v5883
  %5950 = vst [vmem:[%s5930 + $0x98] sm:$0xff] %v5884
  %5951 = vst [vmem:[%s5930 + $0xa0] sm:$0xff] %v5885
  %5952 = vst [vmem:[%s5930 + $0xa8] sm:$0xff] %v5886
  %5953 = vst [vmem:[%s5930 + $0xb0] sm:$0xff] %v5887
  %5954 = vst [vmem:[%s5930 + $0xb8] sm:$0xff] %v5888
  %5955 = vst [vmem:[%s5930 + $0xc0] sm:$0xff] %v5889
  %5956 = vst [vmem:[%s5930 + $0xc8] sm:$0xff] %v5890
  %5957 = vst [vmem:[%s5930 + $0xd0] sm:$0xff] %v5891
  %5958 = vst [vmem:[%s5930 + $0xd8] sm:$0xff] %v5892
  %5959 = vst [vmem:[%s5930 + $0xe0] sm:$0xff] %v5893
  %5960 = vst [vmem:[%s5930 + $0xe8] sm:$0xff] %v5894
  %5961 = vst [vmem:[%s5930 + $0xf0] sm:$0xff] %v5895
  %5962 = vst [vmem:[%s5930 + $0xf8] sm:$0xff] %v5896
  %5963 = vst [vmem:[%s5930 + $0x100] sm:$0xff] %v5897
  %5964 = vst [vmem:[%s5930 + $0x108] sm:$0xff] %v5898
  %5965 = vst [vmem:[%s5930 + $0x110] sm:$0xff] %v5899
  %5966 = vst [vmem:[%s5930 + $0x118] sm:$0xff] %v5900
  %5967 = vst [vmem:[%s5930 + $0x120] sm:$0xff] %v5901
  %5968 = vst [vmem:[%s5930 + $0x128] sm:$0xff] %v5902
  %5969 = vst [vmem:[%s5930 + $0x130] sm:$0xff] %v5903
  %5970 = vst [vmem:[%s5930 + $0x138] sm:$0xff] %v5904
  %5971 = vst [vmem:[%s5930 + $0x140] sm:$0xff] %v5905
  %5972 = vst [vmem:[%s5930 + $0x148] sm:$0xff] %v5906
  %5973 = vst [vmem:[%s5930 + $0x150] sm:$0xff] %v5907
  %5974 = vst [vmem:[%s5930 + $0x158] sm:$0xff] %v5908
  %5975 = vst [vmem:[%s5930 + $0x160] sm:$0xff] %v5909
  %5976 = vst [vmem:[%s5930 + $0x168] sm:$0xff] %v5910
  %5977 = vst [vmem:[%s5930 + $0x170] sm:$0xff] %v5911
  %5978 = vst [vmem:[%s5930 + $0x178] sm:$0xff] %v5912
  %5979 = vst [vmem:[%s5930 + $0x180] sm:$0xff] %v5913
  %5980 = vst [vmem:[%s5930 + $0x188] sm:$0xff] %v5914
  %5981 = vst [vmem:[%s5930 + $0x190] sm:$0xff] %v5915
  %5982 = vst [vmem:[%s5930 + $0x198] sm:$0xff] %v5916
  %5983 = vst [vmem:[%s5930 + $0x1a0] sm:$0xff] %v5917
  %5984 = vst [vmem:[%s5930 + $0x1a8] sm:$0xff] %v5918
  %5985 = vst [vmem:[%s5930 + $0x1b0] sm:$0xff] %v5919
  %5986 = vst [vmem:[%s5930 + $0x1b8] sm:$0xff] %v5920
  %5987 = vst [vmem:[%s5930 + $0x1c0] sm:$0xff] %v5921
  %5988 = vst [vmem:[%s5930 + $0x1c8] sm:$0xff] %v5922
  %5989 = vst [vmem:[%s5930 + $0x1d0] sm:$0xff] %v5923
  %5990 = vst [vmem:[%s5930 + $0x1d8] sm:$0xff] %v5924
  %5991 = vst [vmem:[%s5930 + $0x1e0] sm:$0xff] %v5925
  %5992 = vst [vmem:[%s5930 + $0x1e8] sm:$0xff] %v5926
  %5993 = vst [vmem:[%s5930 + $0x1f0] sm:$0xff] %v5927
  %5994 = vst [vmem:[%s5930 + $0x1f8] sm:$0xff] %v5928
  %v5995 = vld [vmem:[%s22] sm:$0xff]
  %v5996 = vld [vmem:[%s22 + $0x8] sm:$0xff]
  %v5997 = vld [vmem:[%s22 + $0x10] sm:$0xff]
  %v5998 = vld [vmem:[%s22 + $0x18] sm:$0xff]
  %v5999 = vld [vmem:[%s22 + $0x20] sm:$0xff]
  %v6000 = vld [vmem:[%s22 + $0x28] sm:$0xff]
  %v6001 = vld [vmem:[%s22 + $0x30] sm:$0xff]
  %v6002 = vld [vmem:[%s22 + $0x38] sm:$0xff]
  %v6003 = vld [vmem:[%s22 + $0x40] sm:$0xff]
  %v6004 = vld [vmem:[%s22 + $0x48] sm:$0xff]
  %v6005 = vld [vmem:[%s22 + $0x50] sm:$0xff]
  %v6006 = vld [vmem:[%s22 + $0x58] sm:$0xff]
  %v6007 = vld [vmem:[%s22 + $0x60] sm:$0xff]
  %v6008 = vld [vmem:[%s22 + $0x68] sm:$0xff]
  %v6009 = vld [vmem:[%s22 + $0x70] sm:$0xff]
  %v6010 = vld [vmem:[%s22 + $0x78] sm:$0xff]
  %v6011 = vld [vmem:[%s22 + $0x80] sm:$0xff]
  %v6012 = vld [vmem:[%s22 + $0x88] sm:$0xff]
  %v6013 = vld [vmem:[%s22 + $0x90] sm:$0xff]
  %v6014 = vld [vmem:[%s22 + $0x98] sm:$0xff]
  %v6015 = vld [vmem:[%s22 + $0xa0] sm:$0xff]
  %v6016 = vld [vmem:[%s22 + $0xa8] sm:$0xff]
  %v6017 = vld [vmem:[%s22 + $0xb0] sm:$0xff]
  %v6018 = vld [vmem:[%s22 + $0xb8] sm:$0xff]
  %v6019 = vld [vmem:[%s22 + $0xc0] sm:$0xff]
  %v6020 = vld [vmem:[%s22 + $0xc8] sm:$0xff]
  %v6021 = vld [vmem:[%s22 + $0xd0] sm:$0xff]
  %v6022 = vld [vmem:[%s22 + $0xd8] sm:$0xff]
  %v6023 = vld [vmem:[%s22 + $0xe0] sm:$0xff]
  %v6024 = vld [vmem:[%s22 + $0xe8] sm:$0xff]
  %v6025 = vld [vmem:[%s22 + $0xf0] sm:$0xff]
  %v6026 = vld [vmem:[%s22 + $0xf8] sm:$0xff]
  %v6027 = vld [vmem:[#allocation3] sm:$0xff]
  %v6028 = vld [vmem:[#allocation3 + $0x8] sm:$0xff]
  %v6029 = vld [vmem:[#allocation3 + $0x10] sm:$0xff]
  %v6030 = vld [vmem:[#allocation3 + $0x18] sm:$0xff]
  %v6031 = vld [vmem:[#allocation3 + $0x20] sm:$0xff]
  %v6032 = vld [vmem:[#allocation3 + $0x28] sm:$0xff]
  %v6033 = vld [vmem:[#allocation3 + $0x30] sm:$0xff]
  %v6034 = vld [vmem:[#allocation3 + $0x38] sm:$0xff]
  %v6035 = vld [vmem:[#allocation3 + $0x40] sm:$0xff]
  %v6036 = vld [vmem:[#allocation3 + $0x48] sm:$0xff]
  %v6037 = vld [vmem:[#allocation3 + $0x50] sm:$0xff]
  %v6038 = vld [vmem:[#allocation3 + $0x58] sm:$0xff]
  %v6039 = vld [vmem:[#allocation3 + $0x60] sm:$0xff]
  %v6040 = vld [vmem:[#allocation3 + $0x68] sm:$0xff]
  %v6041 = vld [vmem:[#allocation3 + $0x70] sm:$0xff]
  %v6042 = vld [vmem:[#allocation3 + $0x78] sm:$0xff]
  %v6043 = vld [vmem:[#allocation3 + $0x80] sm:$0xff]
  %v6044 = vld [vmem:[#allocation3 + $0x88] sm:$0xff]
  %v6045 = vld [vmem:[#allocation3 + $0x90] sm:$0xff]
  %v6046 = vld [vmem:[#allocation3 + $0x98] sm:$0xff]
  %v6047 = vld [vmem:[#allocation3 + $0xa0] sm:$0xff]
  %v6048 = vld [vmem:[#allocation3 + $0xa8] sm:$0xff]
  %v6049 = vld [vmem:[#allocation3 + $0xb0] sm:$0xff]
  %v6050 = vld [vmem:[#allocation3 + $0xb8] sm:$0xff]
  %v6051 = vld [vmem:[#allocation3 + $0xc0] sm:$0xff]
  %v6052 = vld [vmem:[#allocation3 + $0xc8] sm:$0xff]
  %v6053 = vld [vmem:[#allocation3 + $0xd0] sm:$0xff]
  %v6054 = vld [vmem:[#allocation3 + $0xd8] sm:$0xff]
  %v6055 = vld [vmem:[#allocation3 + $0xe0] sm:$0xff]
  %v6056 = vld [vmem:[#allocation3 + $0xe8] sm:$0xff]
  %v6057 = vld [vmem:[#allocation3 + $0xf0] sm:$0xff]
  %v6058 = vld [vmem:[#allocation3 + $0xf8] sm:$0xff]
  %v6059 = vld [vmem:[#allocation3 + $0x100] sm:$0xff]
  %v6060 = vld [vmem:[#allocation3 + $0x108] sm:$0xff]
  %v6061 = vld [vmem:[#allocation3 + $0x110] sm:$0xff]
  %v6062 = vld [vmem:[#allocation3 + $0x118] sm:$0xff]
  %v6063 = vld [vmem:[#allocation3 + $0x120] sm:$0xff]
  %v6064 = vld [vmem:[#allocation3 + $0x128] sm:$0xff]
  %v6065 = vld [vmem:[#allocation3 + $0x130] sm:$0xff]
  %v6066 = vld [vmem:[#allocation3 + $0x138] sm:$0xff]
  %v6067 = vld [vmem:[#allocation3 + $0x140] sm:$0xff]
  %v6068 = vld [vmem:[#allocation3 + $0x148] sm:$0xff]
  %v6069 = vld [vmem:[#allocation3 + $0x150] sm:$0xff]
  %v6070 = vld [vmem:[#allocation3 + $0x158] sm:$0xff]
  %v6071 = vld [vmem:[#allocation3 + $0x160] sm:$0xff]
  %v6072 = vld [vmem:[#allocation3 + $0x168] sm:$0xff]
  %v6073 = vld [vmem:[#allocation3 + $0x170] sm:$0xff]
  %v6074 = vld [vmem:[#allocation3 + $0x178] sm:$0xff]
  %v6075 = vld [vmem:[#allocation3 + $0x180] sm:$0xff]
  %v6076 = vld [vmem:[#allocation3 + $0x188] sm:$0xff]
  %v6077 = vld [vmem:[#allocation3 + $0x190] sm:$0xff]
  %v6078 = vld [vmem:[#allocation3 + $0x198] sm:$0xff]
  %v6079 = vld [vmem:[#allocation3 + $0x1a0] sm:$0xff]
  %v6080 = vld [vmem:[#allocation3 + $0x1a8] sm:$0xff]
  %v6081 = vld [vmem:[#allocation3 + $0x1b0] sm:$0xff]
  %v6082 = vld [vmem:[#allocation3 + $0x1b8] sm:$0xff]
  %v6083 = vld [vmem:[#allocation3 + $0x1c0] sm:$0xff]
  %v6084 = vld [vmem:[#allocation3 + $0x1c8] sm:$0xff]
  %v6085 = vld [vmem:[#allocation3 + $0x1d0] sm:$0xff]
  %v6086 = vld [vmem:[#allocation3 + $0x1d8] sm:$0xff]
  %v6087 = vld [vmem:[#allocation3 + $0x1e0] sm:$0xff]
  %v6088 = vld [vmem:[#allocation3 + $0x1e8] sm:$0xff]
  %v6089 = vld [vmem:[#allocation3 + $0x1f0] sm:$0xff]
  %v6090 = vld [vmem:[#allocation3 + $0x1f8] sm:$0xff]
  %v6091 = vld [vmem:[%s121] sm:$0xff]
  %v6092 = vld [vmem:[%s121 + $0x8] sm:$0xff]
  %v6093 = vld [vmem:[%s121 + $0x10] sm:$0xff]
  %v6094 = vld [vmem:[%s121 + $0x18] sm:$0xff]
  %v6095 = vld [vmem:[%s121 + $0x20] sm:$0xff]
  %v6096 = vld [vmem:[%s121 + $0x28] sm:$0xff]
  %v6097 = vld [vmem:[%s121 + $0x30] sm:$0xff]
  %v6098 = vld [vmem:[%s121 + $0x38] sm:$0xff]
  %v6099 = vld [vmem:[%s121 + $0x40] sm:$0xff]
  %v6100 = vld [vmem:[%s121 + $0x48] sm:$0xff]
  %v6101 = vld [vmem:[%s121 + $0x50] sm:$0xff]
  %v6102 = vld [vmem:[%s121 + $0x58] sm:$0xff]
  %v6103 = vld [vmem:[%s121 + $0x60] sm:$0xff]
  %v6104 = vld [vmem:[%s121 + $0x68] sm:$0xff]
  %v6105 = vld [vmem:[%s121 + $0x70] sm:$0xff]
  %v6106 = vld [vmem:[%s121 + $0x78] sm:$0xff]
  %v6107 = vld [vmem:[%s121 + $0x80] sm:$0xff]
  %v6108 = vld [vmem:[%s121 + $0x88] sm:$0xff]
  %v6109 = vld [vmem:[%s121 + $0x90] sm:$0xff]
  %v6110 = vld [vmem:[%s121 + $0x98] sm:$0xff]
  %v6111 = vld [vmem:[%s121 + $0xa0] sm:$0xff]
  %v6112 = vld [vmem:[%s121 + $0xa8] sm:$0xff]
  %v6113 = vld [vmem:[%s121 + $0xb0] sm:$0xff]
  %v6114 = vld [vmem:[%s121 + $0xb8] sm:$0xff]
  %v6115 = vld [vmem:[%s121 + $0xc0] sm:$0xff]
  %v6116 = vld [vmem:[%s121 + $0xc8] sm:$0xff]
  %v6117 = vld [vmem:[%s121 + $0xd0] sm:$0xff]
  %v6118 = vld [vmem:[%s121 + $0xd8] sm:$0xff]
  %v6119 = vld [vmem:[%s121 + $0xe0] sm:$0xff]
  %v6120 = vld [vmem:[%s121 + $0xe8] sm:$0xff]
  %v6121 = vld [vmem:[%s121 + $0xf0] sm:$0xff]
  %v6122 = vld [vmem:[%s121 + $0xf8] sm:$0xff]
  %v6123 = vld [vmem:[%s121 + $0x100] sm:$0xff]
  %v6124 = vld [vmem:[%s121 + $0x108] sm:$0xff]
  %v6125 = vld [vmem:[%s121 + $0x110] sm:$0xff]
  %v6126 = vld [vmem:[%s121 + $0x118] sm:$0xff]
  %v6127 = vld [vmem:[%s121 + $0x120] sm:$0xff]
  %v6128 = vld [vmem:[%s121 + $0x128] sm:$0xff]
  %v6129 = vld [vmem:[%s121 + $0x130] sm:$0xff]
  %v6130 = vld [vmem:[%s121 + $0x138] sm:$0xff]
  %v6131 = vld [vmem:[%s121 + $0x140] sm:$0xff]
  %v6132 = vld [vmem:[%s121 + $0x148] sm:$0xff]
  %v6133 = vld [vmem:[%s121 + $0x150] sm:$0xff]
  %v6134 = vld [vmem:[%s121 + $0x158] sm:$0xff]
  %v6135 = vld [vmem:[%s121 + $0x160] sm:$0xff]
  %v6136 = vld [vmem:[%s121 + $0x168] sm:$0xff]
  %v6137 = vld [vmem:[%s121 + $0x170] sm:$0xff]
  %v6138 = vld [vmem:[%s121 + $0x178] sm:$0xff]
  %v6139 = vld [vmem:[%s121 + $0x180] sm:$0xff]
  %v6140 = vld [vmem:[%s121 + $0x188] sm:$0xff]
  %v6141 = vld [vmem:[%s121 + $0x190] sm:$0xff]
  %v6142 = vld [vmem:[%s121 + $0x198] sm:$0xff]
  %v6143 = vld [vmem:[%s121 + $0x1a0] sm:$0xff]
  %v6144 = vld [vmem:[%s121 + $0x1a8] sm:$0xff]
  %v6145 = vld [vmem:[%s121 + $0x1b0] sm:$0xff]
  %v6146 = vld [vmem:[%s121 + $0x1b8] sm:$0xff]
  %v6147 = vld [vmem:[%s121 + $0x1c0] sm:$0xff]
  %v6148 = vld [vmem:[%s121 + $0x1c8] sm:$0xff]
  %v6149 = vld [vmem:[%s121 + $0x1d0] sm:$0xff]
  %v6150 = vld [vmem:[%s121 + $0x1d8] sm:$0xff]
  %v6151 = vld [vmem:[%s121 + $0x1e0] sm:$0xff]
  %v6152 = vld [vmem:[%s121 + $0x1e8] sm:$0xff]
  %v6153 = vld [vmem:[%s121 + $0x1f0] sm:$0xff]
  %v6154 = vld [vmem:[%s121 + $0x1f8] sm:$0xff]
  %v6155 = vunpack.c.l.bf16 %v6091
  %v6156 = vunpack.c.h.bf16 %v6091
  %v6157 = vunpack.c.l.bf16 %v6092
  %v6158 = vunpack.c.h.bf16 %v6092
  %v6159 = vunpack.c.l.bf16 %v6093
  %v6160 = vunpack.c.h.bf16 %v6093
  %v6161 = vunpack.c.l.bf16 %v6094
  %v6162 = vunpack.c.h.bf16 %v6094
  %v6163 = vunpack.c.l.bf16 %v6095
  %v6164 = vunpack.c.h.bf16 %v6095
  %v6165 = vunpack.c.l.bf16 %v6096
  %v6166 = vunpack.c.h.bf16 %v6096
  %v6167 = vunpack.c.l.bf16 %v6097
  %v6168 = vunpack.c.h.bf16 %v6097
  %v6169 = vunpack.c.l.bf16 %v6098
  %v6170 = vunpack.c.h.bf16 %v6098
  %v6171 = vunpack.c.l.bf16 %v6099
  %v6172 = vunpack.c.h.bf16 %v6099
  %v6173 = vunpack.c.l.bf16 %v6100
  %v6174 = vunpack.c.h.bf16 %v6100
  %v6175 = vunpack.c.l.bf16 %v6101
  %v6176 = vunpack.c.h.bf16 %v6101
  %v6177 = vunpack.c.l.bf16 %v6102
  %v6178 = vunpack.c.h.bf16 %v6102
  %v6179 = vunpack.c.l.bf16 %v6103
  %v6180 = vunpack.c.h.bf16 %v6103
  %v6181 = vunpack.c.l.bf16 %v6104
  %v6182 = vunpack.c.h.bf16 %v6104
  %v6183 = vunpack.c.l.bf16 %v6105
  %v6184 = vunpack.c.h.bf16 %v6105
  %v6185 = vunpack.c.l.bf16 %v6106
  %v6186 = vunpack.c.h.bf16 %v6106
  %v6187 = vunpack.c.l.bf16 %v6107
  %v6188 = vunpack.c.h.bf16 %v6107
  %v6189 = vunpack.c.l.bf16 %v6108
  %v6190 = vunpack.c.h.bf16 %v6108
  %v6191 = vunpack.c.l.bf16 %v6109
  %v6192 = vunpack.c.h.bf16 %v6109
  %v6193 = vunpack.c.l.bf16 %v6110
  %v6194 = vunpack.c.h.bf16 %v6110
  %v6195 = vunpack.c.l.bf16 %v6111
  %v6196 = vunpack.c.h.bf16 %v6111
  %v6197 = vunpack.c.l.bf16 %v6112
  %v6198 = vunpack.c.h.bf16 %v6112
  %v6199 = vunpack.c.l.bf16 %v6113
  %v6200 = vunpack.c.h.bf16 %v6113
  %v6201 = vunpack.c.l.bf16 %v6114
  %v6202 = vunpack.c.h.bf16 %v6114
  %v6203 = vunpack.c.l.bf16 %v6115
  %v6204 = vunpack.c.h.bf16 %v6115
  %v6205 = vunpack.c.l.bf16 %v6116
  %v6206 = vunpack.c.h.bf16 %v6116
  %v6207 = vunpack.c.l.bf16 %v6117
  %v6208 = vunpack.c.h.bf16 %v6117
  %v6209 = vunpack.c.l.bf16 %v6118
  %v6210 = vunpack.c.h.bf16 %v6118
  %v6211 = vunpack.c.l.bf16 %v6119
  %v6212 = vunpack.c.h.bf16 %v6119
  %v6213 = vunpack.c.l.bf16 %v6120
  %v6214 = vunpack.c.h.bf16 %v6120
  %v6215 = vunpack.c.l.bf16 %v6121
  %v6216 = vunpack.c.h.bf16 %v6121
  %v6217 = vunpack.c.l.bf16 %v6122
  %v6218 = vunpack.c.h.bf16 %v6122
  %v6219 = vunpack.c.l.bf16 %v6123
  %v6220 = vunpack.c.h.bf16 %v6123
  %v6221 = vunpack.c.l.bf16 %v6124
  %v6222 = vunpack.c.h.bf16 %v6124
  %v6223 = vunpack.c.l.bf16 %v6125
  %v6224 = vunpack.c.h.bf16 %v6125
  %v6225 = vunpack.c.l.bf16 %v6126
  %v6226 = vunpack.c.h.bf16 %v6126
  %v6227 = vunpack.c.l.bf16 %v6127
  %v6228 = vunpack.c.h.bf16 %v6127
  %v6229 = vunpack.c.l.bf16 %v6128
  %v6230 = vunpack.c.h.bf16 %v6128
  %v6231 = vunpack.c.l.bf16 %v6129
  %v6232 = vunpack.c.h.bf16 %v6129
  %v6233 = vunpack.c.l.bf16 %v6130
  %v6234 = vunpack.c.h.bf16 %v6130
  %v6235 = vunpack.c.l.bf16 %v6131
  %v6236 = vunpack.c.h.bf16 %v6131
  %v6237 = vunpack.c.l.bf16 %v6132
  %v6238 = vunpack.c.h.bf16 %v6132
  %v6239 = vunpack.c.l.bf16 %v6133
  %v6240 = vunpack.c.h.bf16 %v6133
  %v6241 = vunpack.c.l.bf16 %v6134
  %v6242 = vunpack.c.h.bf16 %v6134
  %v6243 = vunpack.c.l.bf16 %v6135
  %v6244 = vunpack.c.h.bf16 %v6135
  %v6245 = vunpack.c.l.bf16 %v6136
  %v6246 = vunpack.c.h.bf16 %v6136
  %v6247 = vunpack.c.l.bf16 %v6137
  %v6248 = vunpack.c.h.bf16 %v6137
  %v6249 = vunpack.c.l.bf16 %v6138
  %v6250 = vunpack.c.h.bf16 %v6138
  %v6251 = vunpack.c.l.bf16 %v6139
  %v6252 = vunpack.c.h.bf16 %v6139
  %v6253 = vunpack.c.l.bf16 %v6140
  %v6254 = vunpack.c.h.bf16 %v6140
  %v6255 = vunpack.c.l.bf16 %v6141
  %v6256 = vunpack.c.h.bf16 %v6141
  %v6257 = vunpack.c.l.bf16 %v6142
  %v6258 = vunpack.c.h.bf16 %v6142
  %v6259 = vunpack.c.l.bf16 %v6143
  %v6260 = vunpack.c.h.bf16 %v6143
  %v6261 = vunpack.c.l.bf16 %v6144
  %v6262 = vunpack.c.h.bf16 %v6144
  %v6263 = vunpack.c.l.bf16 %v6145
  %v6264 = vunpack.c.h.bf16 %v6145
  %v6265 = vunpack.c.l.bf16 %v6146
  %v6266 = vunpack.c.h.bf16 %v6146
  %v6267 = vunpack.c.l.bf16 %v6147
  %v6268 = vunpack.c.h.bf16 %v6147
  %v6269 = vunpack.c.l.bf16 %v6148
  %v6270 = vunpack.c.h.bf16 %v6148
  %v6271 = vunpack.c.l.bf16 %v6149
  %v6272 = vunpack.c.h.bf16 %v6149
  %v6273 = vunpack.c.l.bf16 %v6150
  %v6274 = vunpack.c.h.bf16 %v6150
  %v6275 = vunpack.c.l.bf16 %v6151
  %v6276 = vunpack.c.h.bf16 %v6151
  %v6277 = vunpack.c.l.bf16 %v6152
  %v6278 = vunpack.c.h.bf16 %v6152
  %v6279 = vunpack.c.l.bf16 %v6153
  %v6280 = vunpack.c.h.bf16 %v6153
  %v6281 = vunpack.c.l.bf16 %v6154
  %v6282 = vunpack.c.h.bf16 %v6154
  %v6283 = vmul.f32 %v6155, 0.2
  %v6284 = vmul.f32 %v6156, 0.2
  %v6285 = vmul.f32 %v6157, 0.2
  %v6286 = vmul.f32 %v6158, 0.2
  %v6287 = vmul.f32 %v6159, 0.2
  %v6288 = vmul.f32 %v6160, 0.2
  %v6289 = vmul.f32 %v6161, 0.2
  %v6290 = vmul.f32 %v6162, 0.2
  %v6291 = vmul.f32 %v6163, 0.2
  %v6292 = vmul.f32 %v6164, 0.2
  %v6293 = vmul.f32 %v6165, 0.2
  %v6294 = vmul.f32 %v6166, 0.2
  %v6295 = vmul.f32 %v6167, 0.2
  %v6296 = vmul.f32 %v6168, 0.2
  %v6297 = vmul.f32 %v6169, 0.2
  %v6298 = vmul.f32 %v6170, 0.2
  %v6299 = vmul.f32 %v6171, 0.2
  %v6300 = vmul.f32 %v6172, 0.2
  %v6301 = vmul.f32 %v6173, 0.2
  %v6302 = vmul.f32 %v6174, 0.2
  %v6303 = vmul.f32 %v6175, 0.2
  %v6304 = vmul.f32 %v6176, 0.2
  %v6305 = vmul.f32 %v6177, 0.2
  %v6306 = vmul.f32 %v6178, 0.2
  %v6307 = vmul.f32 %v6179, 0.2
  %v6308 = vmul.f32 %v6180, 0.2
  %v6309 = vmul.f32 %v6181, 0.2
  %v6310 = vmul.f32 %v6182, 0.2
  %v6311 = vmul.f32 %v6183, 0.2
  %v6312 = vmul.f32 %v6184, 0.2
  %v6313 = vmul.f32 %v6185, 0.2
  %v6314 = vmul.f32 %v6186, 0.2
  %v6315 = vmul.f32 %v6187, 0.2
  %v6316 = vmul.f32 %v6188, 0.2
  %v6317 = vmul.f32 %v6189, 0.2
  %v6318 = vmul.f32 %v6190, 0.2
  %v6319 = vmul.f32 %v6191, 0.2
  %v6320 = vmul.f32 %v6192, 0.2
  %v6321 = vmul.f32 %v6193, 0.2
  %v6322 = vmul.f32 %v6194, 0.2
  %v6323 = vmul.f32 %v6195, 0.2
  %v6324 = vmul.f32 %v6196, 0.2
  %v6325 = vmul.f32 %v6197, 0.2
  %v6326 = vmul.f32 %v6198, 0.2
  %v6327 = vmul.f32 %v6199, 0.2
  %v6328 = vmul.f32 %v6200, 0.2
  %v6329 = vmul.f32 %v6201, 0.2
  %v6330 = vmul.f32 %v6202, 0.2
  %v6331 = vmul.f32 %v6203, 0.2
  %v6332 = vmul.f32 %v6204, 0.2
  %v6333 = vmul.f32 %v6205, 0.2
  %v6334 = vmul.f32 %v6206, 0.2
  %v6335 = vmul.f32 %v6207, 0.2
  %v6336 = vmul.f32 %v6208, 0.2
  %v6337 = vmul.f32 %v6209, 0.2
  %v6338 = vmul.f32 %v6210, 0.2
  %v6339 = vmul.f32 %v6211, 0.2
  %v6340 = vmul.f32 %v6212, 0.2
  %v6341 = vmul.f32 %v6213, 0.2
  %v6342 = vmul.f32 %v6214, 0.2
  %v6343 = vmul.f32 %v6215, 0.2
  %v6344 = vmul.f32 %v6216, 0.2
  %v6345 = vmul.f32 %v6217, 0.2
  %v6346 = vmul.f32 %v6218, 0.2
  %v6347 = vmul.f32 %v6219, 0.2
  %v6348 = vmul.f32 %v6220, 0.2
  %v6349 = vmul.f32 %v6221, 0.2
  %v6350 = vmul.f32 %v6222, 0.2
  %v6351 = vmul.f32 %v6223, 0.2
  %v6352 = vmul.f32 %v6224, 0.2
  %v6353 = vmul.f32 %v6225, 0.2
  %v6354 = vmul.f32 %v6226, 0.2
  %v6355 = vmul.f32 %v6227, 0.2
  %v6356 = vmul.f32 %v6228, 0.2
  %v6357 = vmul.f32 %v6229, 0.2
  %v6358 = vmul.f32 %v6230, 0.2
  %v6359 = vmul.f32 %v6231, 0.2
  %v6360 = vmul.f32 %v6232, 0.2
  %v6361 = vmul.f32 %v6233, 0.2
  %v6362 = vmul.f32 %v6234, 0.2
  %v6363 = vmul.f32 %v6235, 0.2
  %v6364 = vmul.f32 %v6236, 0.2
  %v6365 = vmul.f32 %v6237, 0.2
  %v6366 = vmul.f32 %v6238, 0.2
  %v6367 = vmul.f32 %v6239, 0.2
  %v6368 = vmul.f32 %v6240, 0.2
  %v6369 = vmul.f32 %v6241, 0.2
  %v6370 = vmul.f32 %v6242, 0.2
  %v6371 = vmul.f32 %v6243, 0.2
  %v6372 = vmul.f32 %v6244, 0.2
  %v6373 = vmul.f32 %v6245, 0.2
  %v6374 = vmul.f32 %v6246, 0.2
  %v6375 = vmul.f32 %v6247, 0.2
  %v6376 = vmul.f32 %v6248, 0.2
  %v6377 = vmul.f32 %v6249, 0.2
  %v6378 = vmul.f32 %v6250, 0.2
  %v6379 = vmul.f32 %v6251, 0.2
  %v6380 = vmul.f32 %v6252, 0.2
  %v6381 = vmul.f32 %v6253, 0.2
  %v6382 = vmul.f32 %v6254, 0.2
  %v6383 = vmul.f32 %v6255, 0.2
  %v6384 = vmul.f32 %v6256, 0.2
  %v6385 = vmul.f32 %v6257, 0.2
  %v6386 = vmul.f32 %v6258, 0.2
  %v6387 = vmul.f32 %v6259, 0.2
  %v6388 = vmul.f32 %v6260, 0.2
  %v6389 = vmul.f32 %v6261, 0.2
  %v6390 = vmul.f32 %v6262, 0.2
  %v6391 = vmul.f32 %v6263, 0.2
  %v6392 = vmul.f32 %v6264, 0.2
  %v6393 = vmul.f32 %v6265, 0.2
  %v6394 = vmul.f32 %v6266, 0.2
  %v6395 = vmul.f32 %v6267, 0.2
  %v6396 = vmul.f32 %v6268, 0.2
  %v6397 = vmul.f32 %v6269, 0.2
  %v6398 = vmul.f32 %v6270, 0.2
  %v6399 = vmul.f32 %v6271, 0.2
  %v6400 = vmul.f32 %v6272, 0.2
  %v6401 = vmul.f32 %v6273, 0.2
  %v6402 = vmul.f32 %v6274, 0.2
  %v6403 = vmul.f32 %v6275, 0.2
  %v6404 = vmul.f32 %v6276, 0.2
  %v6405 = vmul.f32 %v6277, 0.2
  %v6406 = vmul.f32 %v6278, 0.2
  %v6407 = vmul.f32 %v6279, 0.2
  %v6408 = vmul.f32 %v6280, 0.2
  %v6409 = vmul.f32 %v6281, 0.2
  %v6410 = vmul.f32 %v6282, 0.2
  %v6443 = vunpack.c.l.b16 %v5995
  %v6444 = vunpack.c.h.b16 %v5995
  %v6445 = vunpack.c.l.b16 %v5996
  %v6446 = vunpack.c.h.b16 %v5996
  %v6447 = vunpack.c.l.b16 %v5997
  %v6448 = vunpack.c.h.b16 %v5997
  %v6449 = vunpack.c.l.b16 %v5998
  %v6450 = vunpack.c.h.b16 %v5998
  %v6451 = vunpack.c.l.b16 %v5999
  %v6452 = vunpack.c.h.b16 %v5999
  %v6453 = vunpack.c.l.b16 %v6000
  %v6454 = vunpack.c.h.b16 %v6000
  %v6455 = vunpack.c.l.b16 %v6001
  %v6456 = vunpack.c.h.b16 %v6001
  %v6457 = vunpack.c.l.b16 %v6002
  %v6458 = vunpack.c.h.b16 %v6002
  %v6459 = vunpack.c.l.b16 %v6003
  %v6460 = vunpack.c.h.b16 %v6003
  %v6461 = vunpack.c.l.b16 %v6004
  %v6462 = vunpack.c.h.b16 %v6004
  %v6463 = vunpack.c.l.b16 %v6005
  %v6464 = vunpack.c.h.b16 %v6005
  %v6465 = vunpack.c.l.b16 %v6006
  %v6466 = vunpack.c.h.b16 %v6006
  %v6467 = vunpack.c.l.b16 %v6007
  %v6468 = vunpack.c.h.b16 %v6007
  %v6469 = vunpack.c.l.b16 %v6008
  %v6470 = vunpack.c.h.b16 %v6008
  %v6471 = vunpack.c.l.b16 %v6009
  %v6472 = vunpack.c.h.b16 %v6009
  %v6473 = vunpack.c.l.b16 %v6010
  %v6474 = vunpack.c.h.b16 %v6010
  %v6475 = vunpack.c.l.b16 %v6011
  %v6476 = vunpack.c.h.b16 %v6011
  %v6477 = vunpack.c.l.b16 %v6012
  %v6478 = vunpack.c.h.b16 %v6012
  %v6479 = vunpack.c.l.b16 %v6013
  %v6480 = vunpack.c.h.b16 %v6013
  %v6481 = vunpack.c.l.b16 %v6014
  %v6482 = vunpack.c.h.b16 %v6014
  %v6483 = vunpack.c.l.b16 %v6015
  %v6484 = vunpack.c.h.b16 %v6015
  %v6485 = vunpack.c.l.b16 %v6016
  %v6486 = vunpack.c.h.b16 %v6016
  %v6487 = vunpack.c.l.b16 %v6017
  %v6488 = vunpack.c.h.b16 %v6017
  %v6489 = vunpack.c.l.b16 %v6018
  %v6490 = vunpack.c.h.b16 %v6018
  %v6491 = vunpack.c.l.b16 %v6019
  %v6492 = vunpack.c.h.b16 %v6019
  %v6493 = vunpack.c.l.b16 %v6020
  %v6494 = vunpack.c.h.b16 %v6020
  %v6495 = vunpack.c.l.b16 %v6021
  %v6496 = vunpack.c.h.b16 %v6021
  %v6497 = vunpack.c.l.b16 %v6022
  %v6498 = vunpack.c.h.b16 %v6022
  %v6499 = vunpack.c.l.b16 %v6023
  %v6500 = vunpack.c.h.b16 %v6023
  %v6501 = vunpack.c.l.b16 %v6024
  %v6502 = vunpack.c.h.b16 %v6024
  %v6503 = vunpack.c.l.b16 %v6025
  %v6504 = vunpack.c.h.b16 %v6025
  %v6505 = vunpack.c.l.b16 %v6026
  %v6506 = vunpack.c.h.b16 %v6026
  %v6507 = vpack.c.b16 %v6445, %v6443
  %v6508 = vpack.c.b16 %v6446, %v6444
  %v6509 = vpack.c.b16 %v6449, %v6447
  %v6510 = vpack.c.b16 %v6450, %v6448
  %v6511 = vpack.c.b16 %v6453, %v6451
  %v6512 = vpack.c.b16 %v6454, %v6452
  %v6513 = vpack.c.b16 %v6457, %v6455
  %v6514 = vpack.c.b16 %v6458, %v6456
  %v6515 = vpack.c.b16 %v6461, %v6459
  %v6516 = vpack.c.b16 %v6462, %v6460
  %v6517 = vpack.c.b16 %v6465, %v6463
  %v6518 = vpack.c.b16 %v6466, %v6464
  %v6519 = vpack.c.b16 %v6469, %v6467
  %v6520 = vpack.c.b16 %v6470, %v6468
  %v6521 = vpack.c.b16 %v6473, %v6471
  %v6522 = vpack.c.b16 %v6474, %v6472
  %v6523 = vpack.c.b16 %v6477, %v6475
  %v6524 = vpack.c.b16 %v6478, %v6476
  %v6525 = vpack.c.b16 %v6481, %v6479
  %v6526 = vpack.c.b16 %v6482, %v6480
  %v6527 = vpack.c.b16 %v6485, %v6483
  %v6528 = vpack.c.b16 %v6486, %v6484
  %v6529 = vpack.c.b16 %v6489, %v6487
  %v6530 = vpack.c.b16 %v6490, %v6488
  %v6531 = vpack.c.b16 %v6493, %v6491
  %v6532 = vpack.c.b16 %v6494, %v6492
  %v6533 = vpack.c.b16 %v6497, %v6495
  %v6534 = vpack.c.b16 %v6498, %v6496
  %v6535 = vpack.c.b16 %v6501, %v6499
  %v6536 = vpack.c.b16 %v6502, %v6500
  %v6537 = vpack.c.b16 %v6505, %v6503
  %v6538 = vpack.c.b16 %v6506, %v6504
  %6571 = vmatprep.subr.bf16.mxu0 %v6028
  %6572 = vmatpush1.bf16.msra.mxu0 %v6027
  %6573 = vmatprep.subr.bf16.mxu0 %v6032
  %6574 = vmatpush1.bf16.msra.mxu0 %v6031
  %6575 = vmatprep.subr.bf16.mxu0 %v6036
  %6576 = vmatpush1.bf16.msra.mxu0 %v6035
  %6577 = vmatprep.subr.bf16.mxu0 %v6040
  %6578 = vmatpush1.bf16.msra.mxu0 %v6039
  %6579 = vmatprep.subr.bf16.mxu0 %v6044
  %6580 = vmatpush1.bf16.msra.mxu0 %v6043
  %6581 = vmatprep.subr.bf16.mxu0 %v6048
  %6582 = vmatpush1.bf16.msra.mxu0 %v6047
  %6583 = vmatprep.subr.bf16.mxu0 %v6052
  %6584 = vmatpush1.bf16.msra.mxu0 %v6051
  %6585 = vmatprep.subr.bf16.mxu0 %v6056
  %6586 = vmatpush1.bf16.msra.mxu0 %v6055
  %6587 = vmatprep.subr.bf16.mxu0 %v6060
  %6588 = vmatpush1.bf16.msra.mxu0 %v6059
  %6589 = vmatprep.subr.bf16.mxu0 %v6064
  %6590 = vmatpush1.bf16.msra.mxu0 %v6063
  %6591 = vmatprep.subr.bf16.mxu0 %v6068
  %6592 = vmatpush1.bf16.msra.mxu0 %v6067
  %6593 = vmatprep.subr.bf16.mxu0 %v6072
  %6594 = vmatpush1.bf16.msra.mxu0 %v6071
  %6595 = vmatprep.subr.bf16.mxu0 %v6076
  %6596 = vmatpush1.bf16.msra.mxu0 %v6075
  %6597 = vmatprep.subr.bf16.mxu0 %v6080
  %6598 = vmatpush1.bf16.msra.mxu0 %v6079
  %6599 = vmatprep.subr.bf16.mxu0 %v6084
  %6600 = vmatpush1.bf16.msra.mxu0 %v6083
  %6601 = vmatprep.subr.bf16.mxu0 %v6088
  %6602 = vmatpush1.bf16.msra.mxu0 %v6087
  %6603 = vmatprep.mubr.bf16.mxu0 %v6508
  %6604 = vmatmul.mubr.bf16.gmra.mrb[0].mxu0 %v6507
  %v6605 = vpop.f32.mrb[0].mxu0
  %v6606 = vadd.f32 %v6283, %v6605
  %v6607 = vpop.f32.mrb[0].mxu0
  %v6608 = vadd.f32 %v6284, %v6607
  %v6609 = vpop.f32.mrb[0].mxu0
  %v6610 = vadd.f32 %v6287, %v6609
  %v6611 = vpop.f32.mrb[0].mxu0
  %v6612 = vadd.f32 %v6288, %v6611
  %6613 = vmatprep.mubr.bf16.mxu0 %v6510
  %6614 = vmatmul.mubr.bf16.gmra.mrb[0].mxu0 %v6509
  %v6615 = vpop.f32.mrb[0].mxu0
  %v6616 = vadd.f32 %v6291, %v6615
  %v6617 = vpop.f32.mrb[0].mxu0
  %v6618 = vadd.f32 %v6292, %v6617
  %v6619 = vpop.f32.mrb[0].mxu0
  %v6620 = vadd.f32 %v6295, %v6619
  %v6621 = vpop.f32.mrb[0].mxu0
  %v6622 = vadd.f32 %v6296, %v6621
  %6623 = vmatprep.mubr.bf16.mxu0 %v6512
  %6624 = vmatmul.mubr.bf16.gmra.mrb[0].mxu0 %v6511
  %v6625 = vpop.f32.mrb[0].mxu0
  %v6626 = vadd.f32 %v6299, %v6625
  %v6627 = vpop.f32.mrb[0].mxu0
  %v6628 = vadd.f32 %v6300, %v6627
  %v6629 = vpop.f32.mrb[0].mxu0
  %v6630 = vadd.f32 %v6303, %v6629
  %v6631 = vpop.f32.mrb[0].mxu0
  %v6632 = vadd.f32 %v6304, %v6631
  %6633 = vmatprep.mubr.bf16.mxu0 %v6514
  %6634 = vmatmul.mubr.bf16.gmra.mrb[0].mxu0 %v6513
  %v6635 = vpop.f32.mrb[0].mxu0
  %v6636 = vadd.f32 %v6307, %v6635
  %v6637 = vpop.f32.mrb[0].mxu0
  %v6638 = vadd.f32 %v6308, %v6637
  %v6639 = vpop.f32.mrb[0].mxu0
  %v6640 = vadd.f32 %v6311, %v6639
  %v6641 = vpop.f32.mrb[0].mxu0
  %v6642 = vadd.f32 %v6312, %v6641
  %6643 = vmatprep.mubr.bf16.mxu0 %v6516
  %6644 = vmatmul.mubr.bf16.gmra.mrb[0].mxu0 %v6515
  %v6645 = vpop.f32.mrb[0].mxu0
  %v6646 = vadd.f32 %v6315, %v6645
  %v6647 = vpop.f32.mrb[0].mxu0
  %v6648 = vadd.f32 %v6316, %v6647
  %v6649 = vpop.f32.mrb[0].mxu0
  %v6650 = vadd.f32 %v6319, %v6649
  %v6651 = vpop.f32.mrb[0].mxu0
  %v6652 = vadd.f32 %v6320, %v6651
  %6653 = vmatprep.mubr.bf16.mxu0 %v6518
  %6654 = vmatmul.mubr.bf16.gmra.mrb[0].mxu0 %v6517
  %v6655 = vpop.f32.mrb[0].mxu0
  %v6656 = vadd.f32 %v6323, %v6655
  %v6657 = vpop.f32.mrb[0].mxu0
  %v6658 = vadd.f32 %v6324, %v6657
  %v6659 = vpop.f32.mrb[0].mxu0
  %v6660 = vadd.f32 %v6327, %v6659
  %v6661 = vpop.f32.mrb[0].mxu0
  %v6662 = vadd.f32 %v6328, %v6661
  %6663 = vmatprep.mubr.bf16.mxu0 %v6520
  %6664 = vmatmul.mubr.bf16.gmra.mrb[0].mxu0 %v6519
  %v6665 = vpop.f32.mrb[0].mxu0
  %v6666 = vadd.f32 %v6331, %v6665
  %v6667 = vpop.f32.mrb[0].mxu0
  %v6668 = vadd.f32 %v6332, %v6667
  %v6669 = vpop.f32.mrb[0].mxu0
  %v6670 = vadd.f32 %v6335, %v6669
  %v6671 = vpop.f32.mrb[0].mxu0
  %v6672 = vadd.f32 %v6336, %v6671
  %6673 = vmatprep.mubr.bf16.mxu0 %v6522
  %6674 = vmatmul.mubr.bf16.gmra.mrb[0].mxu0 %v6521
  %v6675 = vpop.f32.mrb[0].mxu0
  %v6676 = vadd.f32 %v6339, %v6675
  %v6677 = vpop.f32.mrb[0].mxu0
  %v6678 = vadd.f32 %v6340, %v6677
  %v6679 = vpop.f32.mrb[0].mxu0
  %v6680 = vadd.f32 %v6343, %v6679
  %v6681 = vpop.f32.mrb[0].mxu0
  %v6682 = vadd.f32 %v6344, %v6681
  %6683 = vmatprep.mubr.bf16.mxu0 %v6524
  %6684 = vmatmul.mubr.bf16.gmra.mrb[0].mxu0 %v6523
  %v6685 = vpop.f32.mrb[0].mxu0
  %v6686 = vadd.f32 %v6347, %v6685
  %v6687 = vpop.f32.mrb[0].mxu0
  %v6688 = vadd.f32 %v6348, %v6687
  %v6689 = vpop.f32.mrb[0].mxu0
  %v6690 = vadd.f32 %v6351, %v6689
  %v6691 = vpop.f32.mrb[0].mxu0
  %v6692 = vadd.f32 %v6352, %v6691
  %6693 = vmatprep.mubr.bf16.mxu0 %v6526
  %6694 = vmatmul.mubr.bf16.gmra.mrb[0].mxu0 %v6525
  %v6695 = vpop.f32.mrb[0].mxu0
  %v6696 = vadd.f32 %v6355, %v6695
  %v6697 = vpop.f32.mrb[0].mxu0
  %v6698 = vadd.f32 %v6356, %v6697
  %v6699 = vpop.f32.mrb[0].mxu0
  %v6700 = vadd.f32 %v6359, %v6699
  %v6701 = vpop.f32.mrb[0].mxu0
  %v6702 = vadd.f32 %v6360, %v6701
  %6703 = vmatprep.mubr.bf16.mxu0 %v6528
  %6704 = vmatmul.mubr.bf16.gmra.mrb[0].mxu0 %v6527
  %v6705 = vpop.f32.mrb[0].mxu0
  %v6706 = vadd.f32 %v6363, %v6705
  %v6707 = vpop.f32.mrb[0].mxu0
  %v6708 = vadd.f32 %v6364, %v6707
  %v6709 = vpop.f32.mrb[0].mxu0
  %v6710 = vadd.f32 %v6367, %v6709
  %v6711 = vpop.f32.mrb[0].mxu0
  %v6712 = vadd.f32 %v6368, %v6711
  %6713 = vmatprep.mubr.bf16.mxu0 %v6530
  %6714 = vmatmul.mubr.bf16.gmra.mrb[0].mxu0 %v6529
  %v6715 = vpop.f32.mrb[0].mxu0
  %v6716 = vadd.f32 %v6371, %v6715
  %v6717 = vpop.f32.mrb[0].mxu0
  %v6718 = vadd.f32 %v6372, %v6717
  %v6719 = vpop.f32.mrb[0].mxu0
  %v6720 = vadd.f32 %v6375, %v6719
  %v6721 = vpop.f32.mrb[0].mxu0
  %v6722 = vadd.f32 %v6376, %v6721
  %6723 = vmatprep.mubr.bf16.mxu0 %v6532
  %6724 = vmatmul.mubr.bf16.gmra.mrb[0].mxu0 %v6531
  %v6725 = vpop.f32.mrb[0].mxu0
  %v6726 = vadd.f32 %v6379, %v6725
  %v6727 = vpop.f32.mrb[0].mxu0
  %v6728 = vadd.f32 %v6380, %v6727
  %v6729 = vpop.f32.mrb[0].mxu0
  %v6730 = vadd.f32 %v6383, %v6729
  %v6731 = vpop.f32.mrb[0].mxu0
  %v6732 = vadd.f32 %v6384, %v6731
  %6733 = vmatprep.mubr.bf16.mxu0 %v6534
  %6734 = vmatmul.mubr.bf16.gmra.mrb[0].mxu0 %v6533
  %v6735 = vpop.f32.mrb[0].mxu0
  %v6736 = vadd.f32 %v6387, %v6735
  %v6737 = vpop.f32.mrb[0].mxu0
  %v6738 = vadd.f32 %v6388, %v6737
  %v6739 = vpop.f32.mrb[0].mxu0
  %v6740 = vadd.f32 %v6391, %v6739
  %v6741 = vpop.f32.mrb[0].mxu0
  %v6742 = vadd.f32 %v6392, %v6741
  %6743 = vmatprep.mubr.bf16.mxu0 %v6536
  %6744 = vmatmul.mubr.bf16.gmra.mrb[0].mxu0 %v6535
  %v6745 = vpop.f32.mrb[0].mxu0
  %v6746 = vadd.f32 %v6395, %v6745
  %v6747 = vpop.f32.mrb[0].mxu0
  %v6748 = vadd.f32 %v6396, %v6747
  %v6749 = vpop.f32.mrb[0].mxu0
  %v6750 = vadd.f32 %v6399, %v6749
  %v6751 = vpop.f32.mrb[0].mxu0
  %v6752 = vadd.f32 %v6400, %v6751
  %6753 = vmatprep.mubr.bf16.mxu0 %v6538
  %6754 = vmatmul.mubr.bf16.gmra.mrb[0].mxu0 %v6537
  %v6755 = vpop.f32.mrb[0].mxu0
  %v6756 = vadd.f32 %v6403, %v6755
  %v6757 = vpop.f32.mrb[0].mxu0
  %v6758 = vadd.f32 %v6404, %v6757
  %v6759 = vpop.f32.mrb[0].mxu0
  %v6760 = vadd.f32 %v6407, %v6759
  %v6761 = vpop.f32.mrb[0].mxu0
  %v6762 = vadd.f32 %v6408, %v6761
  %6763 = vdwg.mxu0
  %6764 = vmatprep.subr.bf16.mxu0 %v6030
  %6765 = vmatpush1.bf16.msra.mxu0 %v6029
  %6766 = vmatprep.subr.bf16.mxu0 %v6034
  %6767 = vmatpush1.bf16.msra.mxu0 %v6033
  %6768 = vmatprep.subr.bf16.mxu0 %v6038
  %6769 = vmatpush1.bf16.msra.mxu0 %v6037
  %6770 = vmatprep.subr.bf16.mxu0 %v6042
  %6771 = vmatpush1.bf16.msra.mxu0 %v6041
  %6772 = vmatprep.subr.bf16.mxu0 %v6046
  %6773 = vmatpush1.bf16.msra.mxu0 %v6045
  %6774 = vmatprep.subr.bf16.mxu0 %v6050
  %6775 = vmatpush1.bf16.msra.mxu0 %v6049
  %6776 = vmatprep.subr.bf16.mxu0 %v6054
  %6777 = vmatpush1.bf16.msra.mxu0 %v6053
  %6778 = vmatprep.subr.bf16.mxu0 %v6058
  %6779 = vmatpush1.bf16.msra.mxu0 %v6057
  %6780 = vmatprep.subr.bf16.mxu0 %v6062
  %6781 = vmatpush1.bf16.msra.mxu0 %v6061
  %6782 = vmatprep.subr.bf16.mxu0 %v6066
  %6783 = vmatpush1.bf16.msra.mxu0 %v6065
  %6784 = vmatprep.subr.bf16.mxu0 %v6070
  %6785 = vmatpush1.bf16.msra.mxu0 %v6069
  %6786 = vmatprep.subr.bf16.mxu0 %v6074
  %6787 = vmatpush1.bf16.msra.mxu0 %v6073
  %6788 = vmatprep.subr.bf16.mxu0 %v6078
  %6789 = vmatpush1.bf16.msra.mxu0 %v6077
  %6790 = vmatprep.subr.bf16.mxu0 %v6082
  %6791 = vmatpush1.bf16.msra.mxu0 %v6081
  %6792 = vmatprep.subr.bf16.mxu0 %v6086
  %6793 = vmatpush1.bf16.msra.mxu0 %v6085
  %6794 = vmatprep.subr.bf16.mxu0 %v6090
  %6795 = vmatpush1.bf16.msra.mxu0 %v6089
  %6796 = vmatprep.mubr.bf16.mxu0 %v6508
  %6797 = vmatmul.mubr.bf16.gmra.mrb[0].mxu0 %v6507
  %v6798 = vpop.f32.mrb[0].mxu0
  %v6799 = vadd.f32 %v6285, %v6798
  %v6800 = vpop.f32.mrb[0].mxu0
  %v6801 = vadd.f32 %v6286, %v6800
  %v6802 = vpop.f32.mrb[0].mxu0
  %v6803 = vadd.f32 %v6289, %v6802
  %v6804 = vpop.f32.mrb[0].mxu0
  %v6805 = vadd.f32 %v6290, %v6804
  %6806 = vmatprep.mubr.bf16.mxu0 %v6510
  %6807 = vmatmul.mubr.bf16.gmra.mrb[0].mxu0 %v6509
  %v6808 = vpop.f32.mrb[0].mxu0
  %v6809 = vadd.f32 %v6293, %v6808
  %v6810 = vpop.f32.mrb[0].mxu0
  %v6811 = vadd.f32 %v6294, %v6810
  %v6812 = vpop.f32.mrb[0].mxu0
  %v6813 = vadd.f32 %v6297, %v6812
  %v6814 = vpop.f32.mrb[0].mxu0
  %v6815 = vadd.f32 %v6298, %v6814
  %6816 = vmatprep.mubr.bf16.mxu0 %v6512
  %6817 = vmatmul.mubr.bf16.gmra.mrb[0].mxu0 %v6511
  %v6818 = vpop.f32.mrb[0].mxu0
  %v6819 = vadd.f32 %v6301, %v6818
  %v6820 = vpop.f32.mrb[0].mxu0
  %v6821 = vadd.f32 %v6302, %v6820
  %v6822 = vpop.f32.mrb[0].mxu0
  %v6823 = vadd.f32 %v6305, %v6822
  %v6824 = vpop.f32.mrb[0].mxu0
  %v6825 = vadd.f32 %v6306, %v6824
  %6826 = vmatprep.mubr.bf16.mxu0 %v6514
  %6827 = vmatmul.mubr.bf16.gmra.mrb[0].mxu0 %v6513
  %v6828 = vpop.f32.mrb[0].mxu0
  %v6829 = vadd.f32 %v6309, %v6828
  %v6830 = vpop.f32.mrb[0].mxu0
  %v6831 = vadd.f32 %v6310, %v6830
  %v6832 = vpop.f32.mrb[0].mxu0
  %v6833 = vadd.f32 %v6313, %v6832
  %v6834 = vpop.f32.mrb[0].mxu0
  %v6835 = vadd.f32 %v6314, %v6834
  %6836 = vmatprep.mubr.bf16.mxu0 %v6516
  %6837 = vmatmul.mubr.bf16.gmra.mrb[0].mxu0 %v6515
  %v6838 = vpop.f32.mrb[0].mxu0
  %v6839 = vadd.f32 %v6317, %v6838
  %v6840 = vpop.f32.mrb[0].mxu0
  %v6841 = vadd.f32 %v6318, %v6840
  %v6842 = vpop.f32.mrb[0].mxu0
  %v6843 = vadd.f32 %v6321, %v6842
  %v6844 = vpop.f32.mrb[0].mxu0
  %v6845 = vadd.f32 %v6322, %v6844
  %6846 = vmatprep.mubr.bf16.mxu0 %v6518
  %6847 = vmatmul.mubr.bf16.gmra.mrb[0].mxu0 %v6517
  %v6848 = vpop.f32.mrb[0].mxu0
  %v6849 = vadd.f32 %v6325, %v6848
  %v6850 = vpop.f32.mrb[0].mxu0
  %v6851 = vadd.f32 %v6326, %v6850
  %v6852 = vpop.f32.mrb[0].mxu0
  %v6853 = vadd.f32 %v6329, %v6852
  %v6854 = vpop.f32.mrb[0].mxu0
  %v6855 = vadd.f32 %v6330, %v6854
  %6856 = vmatprep.mubr.bf16.mxu0 %v6520
  %6857 = vmatmul.mubr.bf16.gmra.mrb[0].mxu0 %v6519
  %v6858 = vpop.f32.mrb[0].mxu0
  %v6859 = vadd.f32 %v6333, %v6858
  %v6860 = vpop.f32.mrb[0].mxu0
  %v6861 = vadd.f32 %v6334, %v6860
  %v6862 = vpop.f32.mrb[0].mxu0
  %v6863 = vadd.f32 %v6337, %v6862
  %v6864 = vpop.f32.mrb[0].mxu0
  %v6865 = vadd.f32 %v6338, %v6864
  %6866 = vmatprep.mubr.bf16.mxu0 %v6522
  %6867 = vmatmul.mubr.bf16.gmra.mrb[0].mxu0 %v6521
  %v6868 = vpop.f32.mrb[0].mxu0
  %v6869 = vadd.f32 %v6341, %v6868
  %v6870 = vpop.f32.mrb[0].mxu0
  %v6871 = vadd.f32 %v6342, %v6870
  %v6872 = vpop.f32.mrb[0].mxu0
  %v6873 = vadd.f32 %v6345, %v6872
  %v6874 = vpop.f32.mrb[0].mxu0
  %v6875 = vadd.f32 %v6346, %v6874
  %6876 = vmatprep.mubr.bf16.mxu0 %v6524
  %6877 = vmatmul.mubr.bf16.gmra.mrb[0].mxu0 %v6523
  %v6878 = vpop.f32.mrb[0].mxu0
  %v6879 = vadd.f32 %v6349, %v6878
  %v6880 = vpop.f32.mrb[0].mxu0
  %v6881 = vadd.f32 %v6350, %v6880
  %v6882 = vpop.f32.mrb[0].mxu0
  %v6883 = vadd.f32 %v6353, %v6882
  %v6884 = vpop.f32.mrb[0].mxu0
  %v6885 = vadd.f32 %v6354, %v6884
  %6886 = vmatprep.mubr.bf16.mxu0 %v6526
  %6887 = vmatmul.mubr.bf16.gmra.mrb[0].mxu0 %v6525
  %v6888 = vpop.f32.mrb[0].mxu0
  %v6889 = vadd.f32 %v6357, %v6888
  %v6890 = vpop.f32.mrb[0].mxu0
  %v6891 = vadd.f32 %v6358, %v6890
  %v6892 = vpop.f32.mrb[0].mxu0
  %v6893 = vadd.f32 %v6361, %v6892
  %v6894 = vpop.f32.mrb[0].mxu0
  %v6895 = vadd.f32 %v6362, %v6894
  %6896 = vmatprep.mubr.bf16.mxu0 %v6528
  %6897 = vmatmul.mubr.bf16.gmra.mrb[0].mxu0 %v6527
  %v6898 = vpop.f32.mrb[0].mxu0
  %v6899 = vadd.f32 %v6365, %v6898
  %v6900 = vpop.f32.mrb[0].mxu0
  %v6901 = vadd.f32 %v6366, %v6900
  %v6902 = vpop.f32.mrb[0].mxu0
  %v6903 = vadd.f32 %v6369, %v6902
  %v6904 = vpop.f32.mrb[0].mxu0
  %v6905 = vadd.f32 %v6370, %v6904
  %6906 = vmatprep.mubr.bf16.mxu0 %v6530
  %6907 = vmatmul.mubr.bf16.gmra.mrb[0].mxu0 %v6529
  %v6908 = vpop.f32.mrb[0].mxu0
  %v6909 = vadd.f32 %v6373, %v6908
  %v6910 = vpop.f32.mrb[0].mxu0
  %v6911 = vadd.f32 %v6374, %v6910
  %v6912 = vpop.f32.mrb[0].mxu0
  %v6913 = vadd.f32 %v6377, %v6912
  %v6914 = vpop.f32.mrb[0].mxu0
  %v6915 = vadd.f32 %v6378, %v6914
  %6916 = vmatprep.mubr.bf16.mxu0 %v6532
  %6917 = vmatmul.mubr.bf16.gmra.mrb[0].mxu0 %v6531
  %v6918 = vpop.f32.mrb[0].mxu0
  %v6919 = vadd.f32 %v6381, %v6918
  %v6920 = vpop.f32.mrb[0].mxu0
  %v6921 = vadd.f32 %v6382, %v6920
  %v6922 = vpop.f32.mrb[0].mxu0
  %v6923 = vadd.f32 %v6385, %v6922
  %v6924 = vpop.f32.mrb[0].mxu0
  %v6925 = vadd.f32 %v6386, %v6924
  %6926 = vmatprep.mubr.bf16.mxu0 %v6534
  %6927 = vmatmul.mubr.bf16.gmra.mrb[0].mxu0 %v6533
  %v6928 = vpop.f32.mrb[0].mxu0
  %v6929 = vadd.f32 %v6389, %v6928
  %v6930 = vpop.f32.mrb[0].mxu0
  %v6931 = vadd.f32 %v6390, %v6930
  %v6932 = vpop.f32.mrb[0].mxu0
  %v6933 = vadd.f32 %v6393, %v6932
  %v6934 = vpop.f32.mrb[0].mxu0
  %v6935 = vadd.f32 %v6394, %v6934
  %6936 = vmatprep.mubr.bf16.mxu0 %v6536
  %6937 = vmatmul.mubr.bf16.gmra.mrb[0].mxu0 %v6535
  %v6938 = vpop.f32.mrb[0].mxu0
  %v6939 = vadd.f32 %v6397, %v6938
  %v6940 = vpop.f32.mrb[0].mxu0
  %v6941 = vadd.f32 %v6398, %v6940
  %v6942 = vpop.f32.mrb[0].mxu0
  %v6943 = vadd.f32 %v6401, %v6942
  %v6944 = vpop.f32.mrb[0].mxu0
  %v6945 = vadd.f32 %v6402, %v6944
  %6946 = vmatprep.mubr.bf16.mxu0 %v6538
  %6947 = vmatmul.mubr.bf16.gmra.mrb[0].mxu0 %v6537
  %v6948 = vpop.f32.mrb[0].mxu0
  %v6949 = vadd.f32 %v6405, %v6948
  %v6950 = vpop.f32.mrb[0].mxu0
  %v6951 = vadd.f32 %v6406, %v6950
  %v6952 = vpop.f32.mrb[0].mxu0
  %v6953 = vadd.f32 %v6409, %v6952
  %v6954 = vpop.f32.mrb[0].mxu0
  %v6955 = vadd.f32 %v6410, %v6954
  %6956 = vdwg.mxu0
  %v6957 = vpack.c.bf16 %v6610, %v6606
  %v6958 = vpack.c.bf16 %v6612, %v6608
  %v6959 = vpack.c.bf16 %v6803, %v6799
  %v6960 = vpack.c.bf16 %v6805, %v6801
  %v6961 = vpack.c.bf16 %v6620, %v6616
  %v6962 = vpack.c.bf16 %v6622, %v6618
  %v6963 = vpack.c.bf16 %v6813, %v6809
  %v6964 = vpack.c.bf16 %v6815, %v6811
  %v6965 = vpack.c.bf16 %v6630, %v6626
  %v6966 = vpack.c.bf16 %v6632, %v6628
  %v6967 = vpack.c.bf16 %v6823, %v6819
  %v6968 = vpack.c.bf16 %v6825, %v6821
  %v6969 = vpack.c.bf16 %v6640, %v6636
  %v6970 = vpack.c.bf16 %v6642, %v6638
  %v6971 = vpack.c.bf16 %v6833, %v6829
  %v6972 = vpack.c.bf16 %v6835, %v6831
  %v6973 = vpack.c.bf16 %v6650, %v6646
  %v6974 = vpack.c.bf16 %v6652, %v6648
  %v6975 = vpack.c.bf16 %v6843, %v6839
  %v6976 = vpack.c.bf16 %v6845, %v6841
  %v6977 = vpack.c.bf16 %v6660, %v6656
  %v6978 = vpack.c.bf16 %v6662, %v6658
  %v6979 = vpack.c.bf16 %v6853, %v6849
  %v6980 = vpack.c.bf16 %v6855, %v6851
  %v6981 = vpack.c.bf16 %v6670, %v6666
  %v6982 = vpack.c.bf16 %v6672, %v6668
  %v6983 = vpack.c.bf16 %v6863, %v6859
  %v6984 = vpack.c.bf16 %v6865, %v6861
  %v6985 = vpack.c.bf16 %v6680, %v6676
  %v6986 = vpack.c.bf16 %v6682, %v6678
  %v6987 = vpack.c.bf16 %v6873, %v6869
  %v6988 = vpack.c.bf16 %v6875, %v6871
  %v6989 = vpack.c.bf16 %v6690, %v6686
  %v6990 = vpack.c.bf16 %v6692, %v6688
  %v6991 = vpack.c.bf16 %v6883, %v6879
  %v6992 = vpack.c.bf16 %v6885, %v6881
  %v6993 = vpack.c.bf16 %v6700, %v6696
  %v6994 = vpack.c.bf16 %v6702, %v6698
  %v6995 = vpack.c.bf16 %v6893, %v6889
  %v6996 = vpack.c.bf16 %v6895, %v6891
  %v6997 = vpack.c.bf16 %v6710, %v6706
  %v6998 = vpack.c.bf16 %v6712, %v6708
  %v6999 = vpack.c.bf16 %v6903, %v6899
  %v7000 = vpack.c.bf16 %v6905, %v6901
  %v7001 = vpack.c.bf16 %v6720, %v6716
  %v7002 = vpack.c.bf16 %v6722, %v6718
  %v7003 = vpack.c.bf16 %v6913, %v6909
  %v7004 = vpack.c.bf16 %v6915, %v6911
  %v7005 = vpack.c.bf16 %v6730, %v6726
  %v7006 = vpack.c.bf16 %v6732, %v6728
  %v7007 = vpack.c.bf16 %v6923, %v6919
  %v7008 = vpack.c.bf16 %v6925, %v6921
  %v7009 = vpack.c.bf16 %v6740, %v6736
  %v7010 = vpack.c.bf16 %v6742, %v6738
  %v7011 = vpack.c.bf16 %v6933, %v6929
  %v7012 = vpack.c.bf16 %v6935, %v6931
  %v7013 = vpack.c.bf16 %v6750, %v6746
  %v7014 = vpack.c.bf16 %v6752, %v6748
  %v7015 = vpack.c.bf16 %v6943, %v6939
  %v7016 = vpack.c.bf16 %v6945, %v6941
  %v7017 = vpack.c.bf16 %v6760, %v6756
  %v7018 = vpack.c.bf16 %v6762, %v6758
  %v7019 = vpack.c.bf16 %v6953, %v6949
  %v7020 = vpack.c.bf16 %v6955, %v6951
  %v7021 = vld [vmem:[%s4] sm:$0xff]
  %v7022 = vld [vmem:[%s4 + $0x8] sm:$0xff]
  %v7023 = vld [vmem:[%s4 + $0x10] sm:$0xff]
  %v7024 = vld [vmem:[%s4 + $0x18] sm:$0xff]
  %v7025 = vld [vmem:[%s4 + $0x20] sm:$0xff]
  %v7026 = vld [vmem:[%s4 + $0x28] sm:$0xff]
  %v7027 = vld [vmem:[%s4 + $0x30] sm:$0xff]
  %v7028 = vld [vmem:[%s4 + $0x38] sm:$0xff]
  %v7029 = vld [vmem:[%s4 + $0x40] sm:$0xff]
  %v7030 = vld [vmem:[%s4 + $0x48] sm:$0xff]
  %v7031 = vld [vmem:[%s4 + $0x50] sm:$0xff]
  %v7032 = vld [vmem:[%s4 + $0x58] sm:$0xff]
  %v7033 = vld [vmem:[%s4 + $0x60] sm:$0xff]
  %v7034 = vld [vmem:[%s4 + $0x68] sm:$0xff]
  %v7035 = vld [vmem:[%s4 + $0x70] sm:$0xff]
  %v7036 = vld [vmem:[%s4 + $0x78] sm:$0xff]
  %v7037 = vld [vmem:[%s4 + $0x80] sm:$0xff]
  %v7038 = vld [vmem:[%s4 + $0x88] sm:$0xff]
  %v7039 = vld [vmem:[%s4 + $0x90] sm:$0xff]
  %v7040 = vld [vmem:[%s4 + $0x98] sm:$0xff]
  %v7041 = vld [vmem:[%s4 + $0xa0] sm:$0xff]
  %v7042 = vld [vmem:[%s4 + $0xa8] sm:$0xff]
  %v7043 = vld [vmem:[%s4 + $0xb0] sm:$0xff]
  %v7044 = vld [vmem:[%s4 + $0xb8] sm:$0xff]
  %v7045 = vld [vmem:[%s4 + $0xc0] sm:$0xff]
  %v7046 = vld [vmem:[%s4 + $0xc8] sm:$0xff]
  %v7047 = vld [vmem:[%s4 + $0xd0] sm:$0xff]
  %v7048 = vld [vmem:[%s4 + $0xd8] sm:$0xff]
  %v7049 = vld [vmem:[%s4 + $0xe0] sm:$0xff]
  %v7050 = vld [vmem:[%s4 + $0xe8] sm:$0xff]
  %v7051 = vld [vmem:[%s4 + $0xf0] sm:$0xff]
  %v7052 = vld [vmem:[%s4 + $0xf8] sm:$0xff]
  %v7053 = vld [vmem:[%s4 + $0x100] sm:$0xff]
  %v7054 = vld [vmem:[%s4 + $0x108] sm:$0xff]
  %v7055 = vld [vmem:[%s4 + $0x110] sm:$0xff]
  %v7056 = vld [vmem:[%s4 + $0x118] sm:$0xff]
  %v7057 = vld [vmem:[%s4 + $0x120] sm:$0xff]
  %v7058 = vld [vmem:[%s4 + $0x128] sm:$0xff]
  %v7059 = vld [vmem:[%s4 + $0x130] sm:$0xff]
  %v7060 = vld [vmem:[%s4 + $0x138] sm:$0xff]
  %v7061 = vld [vmem:[%s4 + $0x140] sm:$0xff]
  %v7062 = vld [vmem:[%s4 + $0x148] sm:$0xff]
  %v7063 = vld [vmem:[%s4 + $0x150] sm:$0xff]
  %v7064 = vld [vmem:[%s4 + $0x158] sm:$0xff]
  %v7065 = vld [vmem:[%s4 + $0x160] sm:$0xff]
  %v7066 = vld [vmem:[%s4 + $0x168] sm:$0xff]
  %v7067 = vld [vmem:[%s4 + $0x170] sm:$0xff]
  %v7068 = vld [vmem:[%s4 + $0x178] sm:$0xff]
  %v7069 = vld [vmem:[%s4 + $0x180] sm:$0xff]
  %v7070 = vld [vmem:[%s4 + $0x188] sm:$0xff]
  %v7071 = vld [vmem:[%s4 + $0x190] sm:$0xff]
  %v7072 = vld [vmem:[%s4 + $0x198] sm:$0xff]
  %v7073 = vld [vmem:[%s4 + $0x1a0] sm:$0xff]
  %v7074 = vld [vmem:[%s4 + $0x1a8] sm:$0xff]
  %v7075 = vld [vmem:[%s4 + $0x1b0] sm:$0xff]
  %v7076 = vld [vmem:[%s4 + $0x1b8] sm:$0xff]
  %v7077 = vld [vmem:[%s4 + $0x1c0] sm:$0xff]
  %v7078 = vld [vmem:[%s4 + $0x1c8] sm:$0xff]
  %v7079 = vld [vmem:[%s4 + $0x1d0] sm:$0xff]
  %v7080 = vld [vmem:[%s4 + $0x1d8] sm:$0xff]
  %v7081 = vld [vmem:[%s4 + $0x1e0] sm:$0xff]
  %v7082 = vld [vmem:[%s4 + $0x1e8] sm:$0xff]
  %v7083 = vld [vmem:[%s4 + $0x1f0] sm:$0xff]
  %v7084 = vld [vmem:[%s4 + $0x1f8] sm:$0xff]
  %v7085 = vld [vmem:[%s4 + $0x200] sm:$0xff]
  %v7086 = vld [vmem:[%s4 + $0x208] sm:$0xff]
  %v7087 = vld [vmem:[%s4 + $0x210] sm:$0xff]
  %v7088 = vld [vmem:[%s4 + $0x218] sm:$0xff]
  %v7089 = vld [vmem:[%s4 + $0x220] sm:$0xff]
  %v7090 = vld [vmem:[%s4 + $0x228] sm:$0xff]
  %v7091 = vld [vmem:[%s4 + $0x230] sm:$0xff]
  %v7092 = vld [vmem:[%s4 + $0x238] sm:$0xff]
  %v7093 = vld [vmem:[%s4 + $0x240] sm:$0xff]
  %v7094 = vld [vmem:[%s4 + $0x248] sm:$0xff]
  %v7095 = vld [vmem:[%s4 + $0x250] sm:$0xff]
  %v7096 = vld [vmem:[%s4 + $0x258] sm:$0xff]
  %v7097 = vld [vmem:[%s4 + $0x260] sm:$0xff]
  %v7098 = vld [vmem:[%s4 + $0x268] sm:$0xff]
  %v7099 = vld [vmem:[%s4 + $0x270] sm:$0xff]
  %v7100 = vld [vmem:[%s4 + $0x278] sm:$0xff]
  %v7101 = vld [vmem:[%s4 + $0x280] sm:$0xff]
  %v7102 = vld [vmem:[%s4 + $0x288] sm:$0xff]
  %v7103 = vld [vmem:[%s4 + $0x290] sm:$0xff]
  %v7104 = vld [vmem:[%s4 + $0x298] sm:$0xff]
  %v7105 = vld [vmem:[%s4 + $0x2a0] sm:$0xff]
  %v7106 = vld [vmem:[%s4 + $0x2a8] sm:$0xff]
  %v7107 = vld [vmem:[%s4 + $0x2b0] sm:$0xff]
  %v7108 = vld [vmem:[%s4 + $0x2b8] sm:$0xff]
  %v7109 = vld [vmem:[%s4 + $0x2c0] sm:$0xff]
  %v7110 = vld [vmem:[%s4 + $0x2c8] sm:$0xff]
  %v7111 = vld [vmem:[%s4 + $0x2d0] sm:$0xff]
  %v7112 = vld [vmem:[%s4 + $0x2d8] sm:$0xff]
  %v7113 = vld [vmem:[%s4 + $0x2e0] sm:$0xff]
  %v7114 = vld [vmem:[%s4 + $0x2e8] sm:$0xff]
  %v7115 = vld [vmem:[%s4 + $0x2f0] sm:$0xff]
  %v7116 = vld [vmem:[%s4 + $0x2f8] sm:$0xff]
  %v7117 = vld [vmem:[%s4 + $0x300] sm:$0xff]
  %v7118 = vld [vmem:[%s4 + $0x308] sm:$0xff]
  %v7119 = vld [vmem:[%s4 + $0x310] sm:$0xff]
  %v7120 = vld [vmem:[%s4 + $0x318] sm:$0xff]
  %v7121 = vld [vmem:[%s4 + $0x320] sm:$0xff]
  %v7122 = vld [vmem:[%s4 + $0x328] sm:$0xff]
  %v7123 = vld [vmem:[%s4 + $0x330] sm:$0xff]
  %v7124 = vld [vmem:[%s4 + $0x338] sm:$0xff]
  %v7125 = vld [vmem:[%s4 + $0x340] sm:$0xff]
  %v7126 = vld [vmem:[%s4 + $0x348] sm:$0xff]
  %v7127 = vld [vmem:[%s4 + $0x350] sm:$0xff]
  %v7128 = vld [vmem:[%s4 + $0x358] sm:$0xff]
  %v7129 = vld [vmem:[%s4 + $0x360] sm:$0xff]
  %v7130 = vld [vmem:[%s4 + $0x368] sm:$0xff]
  %v7131 = vld [vmem:[%s4 + $0x370] sm:$0xff]
  %v7132 = vld [vmem:[%s4 + $0x378] sm:$0xff]
  %v7133 = vld [vmem:[%s4 + $0x380] sm:$0xff]
  %v7134 = vld [vmem:[%s4 + $0x388] sm:$0xff]
  %v7135 = vld [vmem:[%s4 + $0x390] sm:$0xff]
  %v7136 = vld [vmem:[%s4 + $0x398] sm:$0xff]
  %v7137 = vld [vmem:[%s4 + $0x3a0] sm:$0xff]
  %v7138 = vld [vmem:[%s4 + $0x3a8] sm:$0xff]
  %v7139 = vld [vmem:[%s4 + $0x3b0] sm:$0xff]
  %v7140 = vld [vmem:[%s4 + $0x3b8] sm:$0xff]
  %v7141 = vld [vmem:[%s4 + $0x3c0] sm:$0xff]
  %v7142 = vld [vmem:[%s4 + $0x3c8] sm:$0xff]
  %v7143 = vld [vmem:[%s4 + $0x3d0] sm:$0xff]
  %v7144 = vld [vmem:[%s4 + $0x3d8] sm:$0xff]
  %v7145 = vld [vmem:[%s4 + $0x3e0] sm:$0xff]
  %v7146 = vld [vmem:[%s4 + $0x3e8] sm:$0xff]
  %v7147 = vld [vmem:[%s4 + $0x3f0] sm:$0xff]
  %v7148 = vld [vmem:[%s4 + $0x3f8] sm:$0xff]
  %v7277 = vunpack.c.l.b16 %v7021
  %v7278 = vunpack.c.h.b16 %v7021
  %v7279 = vunpack.c.l.b16 %v7022
  %v7280 = vunpack.c.h.b16 %v7022
  %v7281 = vunpack.c.l.b16 %v7023
  %v7282 = vunpack.c.h.b16 %v7023
  %v7283 = vunpack.c.l.b16 %v7024
  %v7284 = vunpack.c.h.b16 %v7024
  %v7285 = vunpack.c.l.b16 %v7025
  %v7286 = vunpack.c.h.b16 %v7025
  %v7287 = vunpack.c.l.b16 %v7026
  %v7288 = vunpack.c.h.b16 %v7026
  %v7289 = vunpack.c.l.b16 %v7027
  %v7290 = vunpack.c.h.b16 %v7027
  %v7291 = vunpack.c.l.b16 %v7028
  %v7292 = vunpack.c.h.b16 %v7028
  %v7293 = vunpack.c.l.b16 %v7029
  %v7294 = vunpack.c.h.b16 %v7029
  %v7295 = vunpack.c.l.b16 %v7030
  %v7296 = vunpack.c.h.b16 %v7030
  %v7297 = vunpack.c.l.b16 %v7031
  %v7298 = vunpack.c.h.b16 %v7031
  %v7299 = vunpack.c.l.b16 %v7032
  %v7300 = vunpack.c.h.b16 %v7032
  %v7301 = vunpack.c.l.b16 %v7033
  %v7302 = vunpack.c.h.b16 %v7033
  %v7303 = vunpack.c.l.b16 %v7034
  %v7304 = vunpack.c.h.b16 %v7034
  %v7305 = vunpack.c.l.b16 %v7035
  %v7306 = vunpack.c.h.b16 %v7035
  %v7307 = vunpack.c.l.b16 %v7036
  %v7308 = vunpack.c.h.b16 %v7036
  %v7309 = vunpack.c.l.b16 %v7037
  %v7310 = vunpack.c.h.b16 %v7037
  %v7311 = vunpack.c.l.b16 %v7038
  %v7312 = vunpack.c.h.b16 %v7038
  %v7313 = vunpack.c.l.b16 %v7039
  %v7314 = vunpack.c.h.b16 %v7039
  %v7315 = vunpack.c.l.b16 %v7040
  %v7316 = vunpack.c.h.b16 %v7040
  %v7317 = vunpack.c.l.b16 %v7041
  %v7318 = vunpack.c.h.b16 %v7041
  %v7319 = vunpack.c.l.b16 %v7042
  %v7320 = vunpack.c.h.b16 %v7042
  %v7321 = vunpack.c.l.b16 %v7043
  %v7322 = vunpack.c.h.b16 %v7043
  %v7323 = vunpack.c.l.b16 %v7044
  %v7324 = vunpack.c.h.b16 %v7044
  %v7325 = vunpack.c.l.b16 %v7045
  %v7326 = vunpack.c.h.b16 %v7045
  %v7327 = vunpack.c.l.b16 %v7046
  %v7328 = vunpack.c.h.b16 %v7046
  %v7329 = vunpack.c.l.b16 %v7047
  %v7330 = vunpack.c.h.b16 %v7047
  %v7331 = vunpack.c.l.b16 %v7048
  %v7332 = vunpack.c.h.b16 %v7048
  %v7333 = vunpack.c.l.b16 %v7049
  %v7334 = vunpack.c.h.b16 %v7049
  %v7335 = vunpack.c.l.b16 %v7050
  %v7336 = vunpack.c.h.b16 %v7050
  %v7337 = vunpack.c.l.b16 %v7051
  %v7338 = vunpack.c.h.b16 %v7051
  %v7339 = vunpack.c.l.b16 %v7052
  %v7340 = vunpack.c.h.b16 %v7052
  %v7341 = vunpack.c.l.b16 %v7053
  %v7342 = vunpack.c.h.b16 %v7053
  %v7343 = vunpack.c.l.b16 %v7054
  %v7344 = vunpack.c.h.b16 %v7054
  %v7345 = vunpack.c.l.b16 %v7055
  %v7346 = vunpack.c.h.b16 %v7055
  %v7347 = vunpack.c.l.b16 %v7056
  %v7348 = vunpack.c.h.b16 %v7056
  %v7349 = vunpack.c.l.b16 %v7057
  %v7350 = vunpack.c.h.b16 %v7057
  %v7351 = vunpack.c.l.b16 %v7058
  %v7352 = vunpack.c.h.b16 %v7058
  %v7353 = vunpack.c.l.b16 %v7059
  %v7354 = vunpack.c.h.b16 %v7059
  %v7355 = vunpack.c.l.b16 %v7060
  %v7356 = vunpack.c.h.b16 %v7060
  %v7357 = vunpack.c.l.b16 %v7061
  %v7358 = vunpack.c.h.b16 %v7061
  %v7359 = vunpack.c.l.b16 %v7062
  %v7360 = vunpack.c.h.b16 %v7062
  %v7361 = vunpack.c.l.b16 %v7063
  %v7362 = vunpack.c.h.b16 %v7063
  %v7363 = vunpack.c.l.b16 %v7064
  %v7364 = vunpack.c.h.b16 %v7064
  %v7365 = vunpack.c.l.b16 %v7065
  %v7366 = vunpack.c.h.b16 %v7065
  %v7367 = vunpack.c.l.b16 %v7066
  %v7368 = vunpack.c.h.b16 %v7066
  %v7369 = vunpack.c.l.b16 %v7067
  %v7370 = vunpack.c.h.b16 %v7067
  %v7371 = vunpack.c.l.b16 %v7068
  %v7372 = vunpack.c.h.b16 %v7068
  %v7373 = vunpack.c.l.b16 %v7069
  %v7374 = vunpack.c.h.b16 %v7069
  %v7375 = vunpack.c.l.b16 %v7070
  %v7376 = vunpack.c.h.b16 %v7070
  %v7377 = vunpack.c.l.b16 %v7071
  %v7378 = vunpack.c.h.b16 %v7071
  %v7379 = vunpack.c.l.b16 %v7072
  %v7380 = vunpack.c.h.b16 %v7072
  %v7381 = vunpack.c.l.b16 %v7073
  %v7382 = vunpack.c.h.b16 %v7073
  %v7383 = vunpack.c.l.b16 %v7074
  %v7384 = vunpack.c.h.b16 %v7074
  %v7385 = vunpack.c.l.b16 %v7075
  %v7386 = vunpack.c.h.b16 %v7075
  %v7387 = vunpack.c.l.b16 %v7076
  %v7388 = vunpack.c.h.b16 %v7076
  %v7389 = vunpack.c.l.b16 %v7077
  %v7390 = vunpack.c.h.b16 %v7077
  %v7391 = vunpack.c.l.b16 %v7078
  %v7392 = vunpack.c.h.b16 %v7078
  %v7393 = vunpack.c.l.b16 %v7079
  %v7394 = vunpack.c.h.b16 %v7079
  %v7395 = vunpack.c.l.b16 %v7080
  %v7396 = vunpack.c.h.b16 %v7080
  %v7397 = vunpack.c.l.b16 %v7081
  %v7398 = vunpack.c.h.b16 %v7081
  %v7399 = vunpack.c.l.b16 %v7082
  %v7400 = vunpack.c.h.b16 %v7082
  %v7401 = vunpack.c.l.b16 %v7083
  %v7402 = vunpack.c.h.b16 %v7083
  %v7403 = vunpack.c.l.b16 %v7084
  %v7404 = vunpack.c.h.b16 %v7084
  %v7405 = vunpack.c.l.b16 %v7085
  %v7406 = vunpack.c.h.b16 %v7085
  %v7407 = vunpack.c.l.b16 %v7086
  %v7408 = vunpack.c.h.b16 %v7086
  %v7409 = vunpack.c.l.b16 %v7087
  %v7410 = vunpack.c.h.b16 %v7087
  %v7411 = vunpack.c.l.b16 %v7088
  %v7412 = vunpack.c.h.b16 %v7088
  %v7413 = vunpack.c.l.b16 %v7089
  %v7414 = vunpack.c.h.b16 %v7089
  %v7415 = vunpack.c.l.b16 %v7090
  %v7416 = vunpack.c.h.b16 %v7090
  %v7417 = vunpack.c.l.b16 %v7091
  %v7418 = vunpack.c.h.b16 %v7091
  %v7419 = vunpack.c.l.b16 %v7092
  %v7420 = vunpack.c.h.b16 %v7092
  %v7421 = vunpack.c.l.b16 %v7093
  %v7422 = vunpack.c.h.b16 %v7093
  %v7423 = vunpack.c.l.b16 %v7094
  %v7424 = vunpack.c.h.b16 %v7094
  %v7425 = vunpack.c.l.b16 %v7095
  %v7426 = vunpack.c.h.b16 %v7095
  %v7427 = vunpack.c.l.b16 %v7096
  %v7428 = vunpack.c.h.b16 %v7096
  %v7429 = vunpack.c.l.b16 %v7097
  %v7430 = vunpack.c.h.b16 %v7097
  %v7431 = vunpack.c.l.b16 %v7098
  %v7432 = vunpack.c.h.b16 %v7098
  %v7433 = vunpack.c.l.b16 %v7099
  %v7434 = vunpack.c.h.b16 %v7099
  %v7435 = vunpack.c.l.b16 %v7100
  %v7436 = vunpack.c.h.b16 %v7100
  %v7437 = vunpack.c.l.b16 %v7101
  %v7438 = vunpack.c.h.b16 %v7101
  %v7439 = vunpack.c.l.b16 %v7102
  %v7440 = vunpack.c.h.b16 %v7102
  %v7441 = vunpack.c.l.b16 %v7103
  %v7442 = vunpack.c.h.b16 %v7103
  %v7443 = vunpack.c.l.b16 %v7104
  %v7444 = vunpack.c.h.b16 %v7104
  %v7445 = vunpack.c.l.b16 %v7105
  %v7446 = vunpack.c.h.b16 %v7105
  %v7447 = vunpack.c.l.b16 %v7106
  %v7448 = vunpack.c.h.b16 %v7106
  %v7449 = vunpack.c.l.b16 %v7107
  %v7450 = vunpack.c.h.b16 %v7107
  %v7451 = vunpack.c.l.b16 %v7108
  %v7452 = vunpack.c.h.b16 %v7108
  %v7453 = vunpack.c.l.b16 %v7109
  %v7454 = vunpack.c.h.b16 %v7109
  %v7455 = vunpack.c.l.b16 %v7110
  %v7456 = vunpack.c.h.b16 %v7110
  %v7457 = vunpack.c.l.b16 %v7111
  %v7458 = vunpack.c.h.b16 %v7111
  %v7459 = vunpack.c.l.b16 %v7112
  %v7460 = vunpack.c.h.b16 %v7112
  %v7461 = vunpack.c.l.b16 %v7113
  %v7462 = vunpack.c.h.b16 %v7113
  %v7463 = vunpack.c.l.b16 %v7114
  %v7464 = vunpack.c.h.b16 %v7114
  %v7465 = vunpack.c.l.b16 %v7115
  %v7466 = vunpack.c.h.b16 %v7115
  %v7467 = vunpack.c.l.b16 %v7116
  %v7468 = vunpack.c.h.b16 %v7116
  %v7469 = vunpack.c.l.b16 %v7117
  %v7470 = vunpack.c.h.b16 %v7117
  %v7471 = vunpack.c.l.b16 %v7118
  %v7472 = vunpack.c.h.b16 %v7118
  %v7473 = vunpack.c.l.b16 %v7119
  %v7474 = vunpack.c.h.b16 %v7119
  %v7475 = vunpack.c.l.b16 %v7120
  %v7476 = vunpack.c.h.b16 %v7120
  %v7477 = vunpack.c.l.b16 %v7121
  %v7478 = vunpack.c.h.b16 %v7121
  %v7479 = vunpack.c.l.b16 %v7122
  %v7480 = vunpack.c.h.b16 %v7122
  %v7481 = vunpack.c.l.b16 %v7123
  %v7482 = vunpack.c.h.b16 %v7123
  %v7483 = vunpack.c.l.b16 %v7124
  %v7484 = vunpack.c.h.b16 %v7124
  %v7485 = vunpack.c.l.b16 %v7125
  %v7486 = vunpack.c.h.b16 %v7125
  %v7487 = vunpack.c.l.b16 %v7126
  %v7488 = vunpack.c.h.b16 %v7126
  %v7489 = vunpack.c.l.b16 %v7127
  %v7490 = vunpack.c.h.b16 %v7127
  %v7491 = vunpack.c.l.b16 %v7128
  %v7492 = vunpack.c.h.b16 %v7128
  %v7493 = vunpack.c.l.b16 %v7129
  %v7494 = vunpack.c.h.b16 %v7129
  %v7495 = vunpack.c.l.b16 %v7130
  %v7496 = vunpack.c.h.b16 %v7130
  %v7497 = vunpack.c.l.b16 %v7131
  %v7498 = vunpack.c.h.b16 %v7131
  %v7499 = vunpack.c.l.b16 %v7132
  %v7500 = vunpack.c.h.b16 %v7132
  %v7501 = vunpack.c.l.b16 %v7133
  %v7502 = vunpack.c.h.b16 %v7133
  %v7503 = vunpack.c.l.b16 %v7134
  %v7504 = vunpack.c.h.b16 %v7134
  %v7505 = vunpack.c.l.b16 %v7135
  %v7506 = vunpack.c.h.b16 %v7135
  %v7507 = vunpack.c.l.b16 %v7136
  %v7508 = vunpack.c.h.b16 %v7136
  %v7509 = vunpack.c.l.b16 %v7137
  %v7510 = vunpack.c.h.b16 %v7137
  %v7511 = vunpack.c.l.b16 %v7138
  %v7512 = vunpack.c.h.b16 %v7138
  %v7513 = vunpack.c.l.b16 %v7139
  %v7514 = vunpack.c.h.b16 %v7139
  %v7515 = vunpack.c.l.b16 %v7140
  %v7516 = vunpack.c.h.b16 %v7140
  %v7517 = vunpack.c.l.b16 %v7141
  %v7518 = vunpack.c.h.b16 %v7141
  %v7519 = vunpack.c.l.b16 %v7142
  %v7520 = vunpack.c.h.b16 %v7142
  %v7521 = vunpack.c.l.b16 %v7143
  %v7522 = vunpack.c.h.b16 %v7143
  %v7523 = vunpack.c.l.b16 %v7144
  %v7524 = vunpack.c.h.b16 %v7144
  %v7525 = vunpack.c.l.b16 %v7145
  %v7526 = vunpack.c.h.b16 %v7145
  %v7527 = vunpack.c.l.b16 %v7146
  %v7528 = vunpack.c.h.b16 %v7146
  %v7529 = vunpack.c.l.b16 %v7147
  %v7530 = vunpack.c.h.b16 %v7147
  %v7531 = vunpack.c.l.b16 %v7148
  %v7532 = vunpack.c.h.b16 %v7148
  %v7533 = vpack.c.b16 %v7281, %v7277
  %v7534 = vpack.c.b16 %v7282, %v7278
  %v7535 = vpack.c.b16 %v7283, %v7279
  %v7536 = vpack.c.b16 %v7284, %v7280
  %v7537 = vpack.c.b16 %v7289, %v7285
  %v7538 = vpack.c.b16 %v7290, %v7286
  %v7539 = vpack.c.b16 %v7291, %v7287
  %v7540 = vpack.c.b16 %v7292, %v7288
  %v7541 = vpack.c.b16 %v7297, %v7293
  %v7542 = vpack.c.b16 %v7298, %v7294
  %v7543 = vpack.c.b16 %v7299, %v7295
  %v7544 = vpack.c.b16 %v7300, %v7296
  %v7545 = vpack.c.b16 %v7305, %v7301
  %v7546 = vpack.c.b16 %v7306, %v7302
  %v7547 = vpack.c.b16 %v7307, %v7303
  %v7548 = vpack.c.b16 %v7308, %v7304
  %v7549 = vpack.c.b16 %v7313, %v7309
  %v7550 = vpack.c.b16 %v7314, %v7310
  %v7551 = vpack.c.b16 %v7315, %v7311
  %v7552 = vpack.c.b16 %v7316, %v7312
  %v7553 = vpack.c.b16 %v7321, %v7317
  %v7554 = vpack.c.b16 %v7322, %v7318
  %v7555 = vpack.c.b16 %v7323, %v7319
  %v7556 = vpack.c.b16 %v7324, %v7320
  %v7557 = vpack.c.b16 %v7329, %v7325
  %v7558 = vpack.c.b16 %v7330, %v7326
  %v7559 = vpack.c.b16 %v7331, %v7327
  %v7560 = vpack.c.b16 %v7332, %v7328
  %v7561 = vpack.c.b16 %v7337, %v7333
  %v7562 = vpack.c.b16 %v7338, %v7334
  %v7563 = vpack.c.b16 %v7339, %v7335
  %v7564 = vpack.c.b16 %v7340, %v7336
  %v7565 = vpack.c.b16 %v7345, %v7341
  %v7566 = vpack.c.b16 %v7346, %v7342
  %v7567 = vpack.c.b16 %v7347, %v7343
  %v7568 = vpack.c.b16 %v7348, %v7344
  %v7569 = vpack.c.b16 %v7353, %v7349
  %v7570 = vpack.c.b16 %v7354, %v7350
  %v7571 = vpack.c.b16 %v7355, %v7351
  %v7572 = vpack.c.b16 %v7356, %v7352
  %v7573 = vpack.c.b16 %v7361, %v7357
  %v7574 = vpack.c.b16 %v7362, %v7358
  %v7575 = vpack.c.b16 %v7363, %v7359
  %v7576 = vpack.c.b16 %v7364, %v7360
  %v7577 = vpack.c.b16 %v7369, %v7365
  %v7578 = vpack.c.b16 %v7370, %v7366
  %v7579 = vpack.c.b16 %v7371, %v7367
  %v7580 = vpack.c.b16 %v7372, %v7368
  %v7581 = vpack.c.b16 %v7377, %v7373
  %v7582 = vpack.c.b16 %v7378, %v7374
  %v7583 = vpack.c.b16 %v7379, %v7375
  %v7584 = vpack.c.b16 %v7380, %v7376
  %v7585 = vpack.c.b16 %v7385, %v7381
  %v7586 = vpack.c.b16 %v7386, %v7382
  %v7587 = vpack.c.b16 %v7387, %v7383
  %v7588 = vpack.c.b16 %v7388, %v7384
  %v7589 = vpack.c.b16 %v7393, %v7389
  %v7590 = vpack.c.b16 %v7394, %v7390
  %v7591 = vpack.c.b16 %v7395, %v7391
  %v7592 = vpack.c.b16 %v7396, %v7392
  %v7593 = vpack.c.b16 %v7401, %v7397
  %v7594 = vpack.c.b16 %v7402, %v7398
  %v7595 = vpack.c.b16 %v7403, %v7399
  %v7596 = vpack.c.b16 %v7404, %v7400
  %v7597 = vpack.c.b16 %v7409, %v7405
  %v7598 = vpack.c.b16 %v7410, %v7406
  %v7599 = vpack.c.b16 %v7411, %v7407
  %v7600 = vpack.c.b16 %v7412, %v7408
  %v7601 = vpack.c.b16 %v7417, %v7413
  %v7602 = vpack.c.b16 %v7418, %v7414
  %v7603 = vpack.c.b16 %v7419, %v7415
  %v7604 = vpack.c.b16 %v7420, %v7416
  %v7605 = vpack.c.b16 %v7425, %v7421
  %v7606 = vpack.c.b16 %v7426, %v7422
  %v7607 = vpack.c.b16 %v7427, %v7423
  %v7608 = vpack.c.b16 %v7428, %v7424
  %v7609 = vpack.c.b16 %v7433, %v7429
  %v7610 = vpack.c.b16 %v7434, %v7430
  %v7611 = vpack.c.b16 %v7435, %v7431
  %v7612 = vpack.c.b16 %v7436, %v7432
  %v7613 = vpack.c.b16 %v7441, %v7437
  %v7614 = vpack.c.b16 %v7442, %v7438
  %v7615 = vpack.c.b16 %v7443, %v7439
  %v7616 = vpack.c.b16 %v7444, %v7440
  %v7617 = vpack.c.b16 %v7449, %v7445
  %v7618 = vpack.c.b16 %v7450, %v7446
  %v7619 = vpack.c.b16 %v7451, %v7447
  %v7620 = vpack.c.b16 %v7452, %v7448
  %v7621 = vpack.c.b16 %v7457, %v7453
  %v7622 = vpack.c.b16 %v7458, %v7454
  %v7623 = vpack.c.b16 %v7459, %v7455
  %v7624 = vpack.c.b16 %v7460, %v7456
  %v7625 = vpack.c.b16 %v7465, %v7461
  %v7626 = vpack.c.b16 %v7466, %v7462
  %v7627 = vpack.c.b16 %v7467, %v7463
  %v7628 = vpack.c.b16 %v7468, %v7464
  %v7629 = vpack.c.b16 %v7473, %v7469
  %v7630 = vpack.c.b16 %v7474, %v7470
  %v7631 = vpack.c.b16 %v7475, %v7471
  %v7632 = vpack.c.b16 %v7476, %v7472
  %v7633 = vpack.c.b16 %v7481, %v7477
  %v7634 = vpack.c.b16 %v7482, %v7478
  %v7635 = vpack.c.b16 %v7483, %v7479
  %v7636 = vpack.c.b16 %v7484, %v7480
  %v7637 = vpack.c.b16 %v7489, %v7485
  %v7638 = vpack.c.b16 %v7490, %v7486
  %v7639 = vpack.c.b16 %v7491, %v7487
  %v7640 = vpack.c.b16 %v7492, %v7488
  %v7641 = vpack.c.b16 %v7497, %v7493
  %v7642 = vpack.c.b16 %v7498, %v7494
  %v7643 = vpack.c.b16 %v7499, %v7495
  %v7644 = vpack.c.b16 %v7500, %v7496
  %v7645 = vpack.c.b16 %v7505, %v7501
  %v7646 = vpack.c.b16 %v7506, %v7502
  %v7647 = vpack.c.b16 %v7507, %v7503
  %v7648 = vpack.c.b16 %v7508, %v7504
  %v7649 = vpack.c.b16 %v7513, %v7509
  %v7650 = vpack.c.b16 %v7514, %v7510
  %v7651 = vpack.c.b16 %v7515, %v7511
  %v7652 = vpack.c.b16 %v7516, %v7512
  %v7653 = vpack.c.b16 %v7521, %v7517
  %v7654 = vpack.c.b16 %v7522, %v7518
  %v7655 = vpack.c.b16 %v7523, %v7519
  %v7656 = vpack.c.b16 %v7524, %v7520
  %v7657 = vpack.c.b16 %v7529, %v7525
  %v7658 = vpack.c.b16 %v7530, %v7526
  %v7659 = vpack.c.b16 %v7531, %v7527
  %v7660 = vpack.c.b16 %v7532, %v7528
  %7789 = vmatprep.subr.bf16.mxu0 %v7534
  %7790 = vmatpush1.bf16.msra.mxu0 %v7533
  %7791 = vmatprep.subr.bf16.mxu0 %v7538
  %7792 = vmatpush1.bf16.msra.mxu0 %v7537
  %7793 = vmatprep.subr.bf16.mxu0 %v7542
  %7794 = vmatpush1.bf16.msra.mxu0 %v7541
  %7795 = vmatprep.subr.bf16.mxu0 %v7546
  %7796 = vmatpush1.bf16.msra.mxu0 %v7545
  %7797 = vmatprep.subr.bf16.mxu0 %v7550
  %7798 = vmatpush1.bf16.msra.mxu0 %v7549
  %7799 = vmatprep.subr.bf16.mxu0 %v7554
  %7800 = vmatpush1.bf16.msra.mxu0 %v7553
  %7801 = vmatprep.subr.bf16.mxu0 %v7558
  %7802 = vmatpush1.bf16.msra.mxu0 %v7557
  %7803 = vmatprep.subr.bf16.mxu0 %v7562
  %7804 = vmatpush1.bf16.msra.mxu0 %v7561
  %7805 = vmatprep.subr.bf16.mxu0 %v7566
  %7806 = vmatpush1.bf16.msra.mxu0 %v7565
  %7807 = vmatprep.subr.bf16.mxu0 %v7570
  %7808 = vmatpush1.bf16.msra.mxu0 %v7569
  %7809 = vmatprep.subr.bf16.mxu0 %v7574
  %7810 = vmatpush1.bf16.msra.mxu0 %v7573
  %7811 = vmatprep.subr.bf16.mxu0 %v7578
  %7812 = vmatpush1.bf16.msra.mxu0 %v7577
  %7813 = vmatprep.subr.bf16.mxu0 %v7582
  %7814 = vmatpush1.bf16.msra.mxu0 %v7581
  %7815 = vmatprep.subr.bf16.mxu0 %v7586
  %7816 = vmatpush1.bf16.msra.mxu0 %v7585
  %7817 = vmatprep.subr.bf16.mxu0 %v7590
  %7818 = vmatpush1.bf16.msra.mxu0 %v7589
  %7819 = vmatprep.subr.bf16.mxu0 %v7594
  %7820 = vmatpush1.bf16.msra.mxu0 %v7593
  %7821 = vmatprep.mubr.bf16.mxu0 %v6958
  %7822 = vmatmul.mubr.bf16.gmra.mrb[0].mxu0 %v6957
  %v7823 = vpop.f32.mrb[0].mxu0
  %v7824 = vadd.f32 0.0, %v7823
  %v7825 = vpop.f32.mrb[0].mxu0
  %v7826 = vadd.f32 0.0, %v7825
  %v7827 = vpop.f32.mrb[0].mxu0
  %v7828 = vadd.f32 0.0, %v7827
  %v7829 = vpop.f32.mrb[0].mxu0
  %v7830 = vadd.f32 0.0, %v7829
  %7831 = vmatprep.mubr.bf16.mxu0 %v6962
  %7832 = vmatmul.mubr.bf16.gmra.mrb[0].mxu0 %v6961
  %v7833 = vpop.f32.mrb[0].mxu0
  %v7834 = vadd.f32 0.0, %v7833
  %v7835 = vpop.f32.mrb[0].mxu0
  %v7836 = vadd.f32 0.0, %v7835
  %v7837 = vpop.f32.mrb[0].mxu0
  %v7838 = vadd.f32 0.0, %v7837
  %v7839 = vpop.f32.mrb[0].mxu0
  %v7840 = vadd.f32 0.0, %v7839
  %7841 = vmatprep.mubr.bf16.mxu0 %v6966
  %7842 = vmatmul.mubr.bf16.gmra.mrb[0].mxu0 %v6965
  %v7843 = vpop.f32.mrb[0].mxu0
  %v7844 = vadd.f32 0.0, %v7843
  %v7845 = vpop.f32.mrb[0].mxu0
  %v7846 = vadd.f32 0.0, %v7845
  %v7847 = vpop.f32.mrb[0].mxu0
  %v7848 = vadd.f32 0.0, %v7847
  %v7849 = vpop.f32.mrb[0].mxu0
  %v7850 = vadd.f32 0.0, %v7849
  %7851 = vmatprep.mubr.bf16.mxu0 %v6970
  %7852 = vmatmul.mubr.bf16.gmra.mrb[0].mxu0 %v6969
  %v7853 = vpop.f32.mrb[0].mxu0
  %v7854 = vadd.f32 0.0, %v7853
  %v7855 = vpop.f32.mrb[0].mxu0
  %v7856 = vadd.f32 0.0, %v7855
  %v7857 = vpop.f32.mrb[0].mxu0
  %v7858 = vadd.f32 0.0, %v7857
  %v7859 = vpop.f32.mrb[0].mxu0
  %v7860 = vadd.f32 0.0, %v7859
  %7861 = vmatprep.mubr.bf16.mxu0 %v6974
  %7862 = vmatmul.mubr.bf16.gmra.mrb[0].mxu0 %v6973
  %v7863 = vpop.f32.mrb[0].mxu0
  %v7864 = vadd.f32 0.0, %v7863
  %v7865 = vpop.f32.mrb[0].mxu0
  %v7866 = vadd.f32 0.0, %v7865
  %v7867 = vpop.f32.mrb[0].mxu0
  %v7868 = vadd.f32 0.0, %v7867
  %v7869 = vpop.f32.mrb[0].mxu0
  %v7870 = vadd.f32 0.0, %v7869
  %7871 = vmatprep.mubr.bf16.mxu0 %v6978
  %7872 = vmatmul.mubr.bf16.gmra.mrb[0].mxu0 %v6977
  %v7873 = vpop.f32.mrb[0].mxu0
  %v7874 = vadd.f32 0.0, %v7873
  %v7875 = vpop.f32.mrb[0].mxu0
  %v7876 = vadd.f32 0.0, %v7875
  %v7877 = vpop.f32.mrb[0].mxu0
  %v7878 = vadd.f32 0.0, %v7877
  %v7879 = vpop.f32.mrb[0].mxu0
  %v7880 = vadd.f32 0.0, %v7879
  %7881 = vmatprep.mubr.bf16.mxu0 %v6982
  %7882 = vmatmul.mubr.bf16.gmra.mrb[0].mxu0 %v6981
  %v7883 = vpop.f32.mrb[0].mxu0
  %v7884 = vadd.f32 0.0, %v7883
  %v7885 = vpop.f32.mrb[0].mxu0
  %v7886 = vadd.f32 0.0, %v7885
  %v7887 = vpop.f32.mrb[0].mxu0
  %v7888 = vadd.f32 0.0, %v7887
  %v7889 = vpop.f32.mrb[0].mxu0
  %v7890 = vadd.f32 0.0, %v7889
  %7891 = vmatprep.mubr.bf16.mxu0 %v6986
  %7892 = vmatmul.mubr.bf16.gmra.mrb[0].mxu0 %v6985
  %v7893 = vpop.f32.mrb[0].mxu0
  %v7894 = vadd.f32 0.0, %v7893
  %v7895 = vpop.f32.mrb[0].mxu0
  %v7896 = vadd.f32 0.0, %v7895
  %v7897 = vpop.f32.mrb[0].mxu0
  %v7898 = vadd.f32 0.0, %v7897
  %v7899 = vpop.f32.mrb[0].mxu0
  %v7900 = vadd.f32 0.0, %v7899
  %7901 = vmatprep.mubr.bf16.mxu0 %v6990
  %7902 = vmatmul.mubr.bf16.gmra.mrb[0].mxu0 %v6989
  %v7903 = vpop.f32.mrb[0].mxu0
  %v7904 = vadd.f32 0.0, %v7903
  %v7905 = vpop.f32.mrb[0].mxu0
  %v7906 = vadd.f32 0.0, %v7905
  %v7907 = vpop.f32.mrb[0].mxu0
  %v7908 = vadd.f32 0.0, %v7907
  %v7909 = vpop.f32.mrb[0].mxu0
  %v7910 = vadd.f32 0.0, %v7909
  %7911 = vmatprep.mubr.bf16.mxu0 %v6994
  %7912 = vmatmul.mubr.bf16.gmra.mrb[0].mxu0 %v6993
  %v7913 = vpop.f32.mrb[0].mxu0
  %v7914 = vadd.f32 0.0, %v7913
  %v7915 = vpop.f32.mrb[0].mxu0
  %v7916 = vadd.f32 0.0, %v7915
  %v7917 = vpop.f32.mrb[0].mxu0
  %v7918 = vadd.f32 0.0, %v7917
  %v7919 = vpop.f32.mrb[0].mxu0
  %v7920 = vadd.f32 0.0, %v7919
  %7921 = vmatprep.mubr.bf16.mxu0 %v6998
  %7922 = vmatmul.mubr.bf16.gmra.mrb[0].mxu0 %v6997
  %v7923 = vpop.f32.mrb[0].mxu0
  %v7924 = vadd.f32 0.0, %v7923
  %v7925 = vpop.f32.mrb[0].mxu0
  %v7926 = vadd.f32 0.0, %v7925
  %v7927 = vpop.f32.mrb[0].mxu0
  %v7928 = vadd.f32 0.0, %v7927
  %v7929 = vpop.f32.mrb[0].mxu0
  %v7930 = vadd.f32 0.0, %v7929
  %7931 = vmatprep.mubr.bf16.mxu0 %v7002
  %7932 = vmatmul.mubr.bf16.gmra.mrb[0].mxu0 %v7001
  %v7933 = vpop.f32.mrb[0].mxu0
  %v7934 = vadd.f32 0.0, %v7933
  %v7935 = vpop.f32.mrb[0].mxu0
  %v7936 = vadd.f32 0.0, %v7935
  %v7937 = vpop.f32.mrb[0].mxu0
  %v7938 = vadd.f32 0.0, %v7937
  %v7939 = vpop.f32.mrb[0].mxu0
  %v7940 = vadd.f32 0.0, %v7939
  %7941 = vmatprep.mubr.bf16.mxu0 %v7006
  %7942 = vmatmul.mubr.bf16.gmra.mrb[0].mxu0 %v7005
  %v7943 = vpop.f32.mrb[0].mxu0
  %v7944 = vadd.f32 0.0, %v7943
  %v7945 = vpop.f32.mrb[0].mxu0
  %v7946 = vadd.f32 0.0, %v7945
  %v7947 = vpop.f32.mrb[0].mxu0
  %v7948 = vadd.f32 0.0, %v7947
  %v7949 = vpop.f32.mrb[0].mxu0
  %v7950 = vadd.f32 0.0, %v7949
  %7951 = vmatprep.mubr.bf16.mxu0 %v7010
  %7952 = vmatmul.mubr.bf16.gmra.mrb[0].mxu0 %v7009
  %v7953 = vpop.f32.mrb[0].mxu0
  %v7954 = vadd.f32 0.0, %v7953
  %v7955 = vpop.f32.mrb[0].mxu0
  %v7956 = vadd.f32 0.0, %v7955
  %v7957 = vpop.f32.mrb[0].mxu0
  %v7958 = vadd.f32 0.0, %v7957
  %v7959 = vpop.f32.mrb[0].mxu0
  %v7960 = vadd.f32 0.0, %v7959
  %7961 = vmatprep.mubr.bf16.mxu0 %v7014
  %7962 = vmatmul.mubr.bf16.gmra.mrb[0].mxu0 %v7013
  %v7963 = vpop.f32.mrb[0].mxu0
  %v7964 = vadd.f32 0.0, %v7963
  %v7965 = vpop.f32.mrb[0].mxu0
  %v7966 = vadd.f32 0.0, %v7965
  %v7967 = vpop.f32.mrb[0].mxu0
  %v7968 = vadd.f32 0.0, %v7967
  %v7969 = vpop.f32.mrb[0].mxu0
  %v7970 = vadd.f32 0.0, %v7969
  %7971 = vmatprep.mubr.bf16.mxu0 %v7018
  %7972 = vmatmul.mubr.bf16.gmra.mrb[0].mxu0 %v7017
  %v7973 = vpop.f32.mrb[0].mxu0
  %v7974 = vadd.f32 0.0, %v7973
  %v7975 = vpop.f32.mrb[0].mxu0
  %v7976 = vadd.f32 0.0, %v7975
  %v7977 = vpop.f32.mrb[0].mxu0
  %v7978 = vadd.f32 0.0, %v7977
  %v7979 = vpop.f32.mrb[0].mxu0
  %v7980 = vadd.f32 0.0, %v7979
  %7981 = vdwg.mxu0
  %7982 = vmatprep.subr.bf16.mxu0 %v7598
  %7983 = vmatpush1.bf16.msra.mxu0 %v7597
  %7984 = vmatprep.subr.bf16.mxu0 %v7602
  %7985 = vmatpush1.bf16.msra.mxu0 %v7601
  %7986 = vmatprep.subr.bf16.mxu0 %v7606
  %7987 = vmatpush1.bf16.msra.mxu0 %v7605
  %7988 = vmatprep.subr.bf16.mxu0 %v7610
  %7989 = vmatpush1.bf16.msra.mxu0 %v7609
  %7990 = vmatprep.subr.bf16.mxu0 %v7614
  %7991 = vmatpush1.bf16.msra.mxu0 %v7613
  %7992 = vmatprep.subr.bf16.mxu0 %v7618
  %7993 = vmatpush1.bf16.msra.mxu0 %v7617
  %7994 = vmatprep.subr.bf16.mxu0 %v7622
  %7995 = vmatpush1.bf16.msra.mxu0 %v7621
  %7996 = vmatprep.subr.bf16.mxu0 %v7626
  %7997 = vmatpush1.bf16.msra.mxu0 %v7625
  %7998 = vmatprep.subr.bf16.mxu0 %v7630
  %7999 = vmatpush1.bf16.msra.mxu0 %v7629
  %8000 = vmatprep.subr.bf16.mxu0 %v7634
  %8001 = vmatpush1.bf16.msra.mxu0 %v7633
  %8002 = vmatprep.subr.bf16.mxu0 %v7638
  %8003 = vmatpush1.bf16.msra.mxu0 %v7637
  %8004 = vmatprep.subr.bf16.mxu0 %v7642
  %8005 = vmatpush1.bf16.msra.mxu0 %v7641
  %8006 = vmatprep.subr.bf16.mxu0 %v7646
  %8007 = vmatpush1.bf16.msra.mxu0 %v7645
  %8008 = vmatprep.subr.bf16.mxu0 %v7650
  %8009 = vmatpush1.bf16.msra.mxu0 %v7649
  %8010 = vmatprep.subr.bf16.mxu0 %v7654
  %8011 = vmatpush1.bf16.msra.mxu0 %v7653
  %8012 = vmatprep.subr.bf16.mxu0 %v7658
  %8013 = vmatpush1.bf16.msra.mxu0 %v7657
  %8014 = vmatprep.mubr.bf16.mxu0 %v6960
  %8015 = vmatmul.mubr.bf16.gmra.mrb[0].mxu0 %v6959
  %v8016 = vpop.f32.mrb[0].mxu0
  %v8017 = vadd.f32 %v7824, %v8016
  %v8018 = vpop.f32.mrb[0].mxu0
  %v8019 = vadd.f32 %v7826, %v8018
  %v8020 = vpop.f32.mrb[0].mxu0
  %v8021 = vadd.f32 %v7828, %v8020
  %v8022 = vpop.f32.mrb[0].mxu0
  %v8023 = vadd.f32 %v7830, %v8022
  %8024 = vmatprep.mubr.bf16.mxu0 %v6964
  %8025 = vmatmul.mubr.bf16.gmra.mrb[0].mxu0 %v6963
  %v8026 = vpop.f32.mrb[0].mxu0
  %v8027 = vadd.f32 %v7834, %v8026
  %v8028 = vpop.f32.mrb[0].mxu0
  %v8029 = vadd.f32 %v7836, %v8028
  %v8030 = vpop.f32.mrb[0].mxu0
  %v8031 = vadd.f32 %v7838, %v8030
  %v8032 = vpop.f32.mrb[0].mxu0
  %v8033 = vadd.f32 %v7840, %v8032
  %8034 = vmatprep.mubr.bf16.mxu0 %v6968
  %8035 = vmatmul.mubr.bf16.gmra.mrb[0].mxu0 %v6967
  %v8036 = vpop.f32.mrb[0].mxu0
  %v8037 = vadd.f32 %v7844, %v8036
  %v8038 = vpop.f32.mrb[0].mxu0
  %v8039 = vadd.f32 %v7846, %v8038
  %v8040 = vpop.f32.mrb[0].mxu0
  %v8041 = vadd.f32 %v7848, %v8040
  %v8042 = vpop.f32.mrb[0].mxu0
  %v8043 = vadd.f32 %v7850, %v8042
  %8044 = vmatprep.mubr.bf16.mxu0 %v6972
  %8045 = vmatmul.mubr.bf16.gmra.mrb[0].mxu0 %v6971
  %v8046 = vpop.f32.mrb[0].mxu0
  %v8047 = vadd.f32 %v7854, %v8046
  %v8048 = vpop.f32.mrb[0].mxu0
  %v8049 = vadd.f32 %v7856, %v8048
  %v8050 = vpop.f32.mrb[0].mxu0
  %v8051 = vadd.f32 %v7858, %v8050
  %v8052 = vpop.f32.mrb[0].mxu0
  %v8053 = vadd.f32 %v7860, %v8052
  %8054 = vmatprep.mubr.bf16.mxu0 %v6976
  %8055 = vmatmul.mubr.bf16.gmra.mrb[0].mxu0 %v6975
  %v8056 = vpop.f32.mrb[0].mxu0
  %v8057 = vadd.f32 %v7864, %v8056
  %v8058 = vpop.f32.mrb[0].mxu0
  %v8059 = vadd.f32 %v7866, %v8058
  %v8060 = vpop.f32.mrb[0].mxu0
  %v8061 = vadd.f32 %v7868, %v8060
  %v8062 = vpop.f32.mrb[0].mxu0
  %v8063 = vadd.f32 %v7870, %v8062
  %8064 = vmatprep.mubr.bf16.mxu0 %v6980
  %8065 = vmatmul.mubr.bf16.gmra.mrb[0].mxu0 %v6979
  %v8066 = vpop.f32.mrb[0].mxu0
  %v8067 = vadd.f32 %v7874, %v8066
  %v8068 = vpop.f32.mrb[0].mxu0
  %v8069 = vadd.f32 %v7876, %v8068
  %v8070 = vpop.f32.mrb[0].mxu0
  %v8071 = vadd.f32 %v7878, %v8070
  %v8072 = vpop.f32.mrb[0].mxu0
  %v8073 = vadd.f32 %v7880, %v8072
  %8074 = vmatprep.mubr.bf16.mxu0 %v6984
  %8075 = vmatmul.mubr.bf16.gmra.mrb[0].mxu0 %v6983
  %v8076 = vpop.f32.mrb[0].mxu0
  %v8077 = vadd.f32 %v7884, %v8076
  %v8078 = vpop.f32.mrb[0].mxu0
  %v8079 = vadd.f32 %v7886, %v8078
  %v8080 = vpop.f32.mrb[0].mxu0
  %v8081 = vadd.f32 %v7888, %v8080
  %v8082 = vpop.f32.mrb[0].mxu0
  %v8083 = vadd.f32 %v7890, %v8082
  %8084 = vmatprep.mubr.bf16.mxu0 %v6988
  %8085 = vmatmul.mubr.bf16.gmra.mrb[0].mxu0 %v6987
  %v8086 = vpop.f32.mrb[0].mxu0
  %v8087 = vadd.f32 %v7894, %v8086
  %v8088 = vpop.f32.mrb[0].mxu0
  %v8089 = vadd.f32 %v7896, %v8088
  %v8090 = vpop.f32.mrb[0].mxu0
  %v8091 = vadd.f32 %v7898, %v8090
  %v8092 = vpop.f32.mrb[0].mxu0
  %v8093 = vadd.f32 %v7900, %v8092
  %8094 = vmatprep.mubr.bf16.mxu0 %v6992
  %8095 = vmatmul.mubr.bf16.gmra.mrb[0].mxu0 %v6991
  %v8096 = vpop.f32.mrb[0].mxu0
  %v8097 = vadd.f32 %v7904, %v8096
  %v8098 = vpop.f32.mrb[0].mxu0
  %v8099 = vadd.f32 %v7906, %v8098
  %v8100 = vpop.f32.mrb[0].mxu0
  %v8101 = vadd.f32 %v7908, %v8100
  %v8102 = vpop.f32.mrb[0].mxu0
  %v8103 = vadd.f32 %v7910, %v8102
  %8104 = vmatprep.mubr.bf16.mxu0 %v6996
  %8105 = vmatmul.mubr.bf16.gmra.mrb[0].mxu0 %v6995
  %v8106 = vpop.f32.mrb[0].mxu0
  %v8107 = vadd.f32 %v7914, %v8106
  %v8108 = vpop.f32.mrb[0].mxu0
  %v8109 = vadd.f32 %v7916, %v8108
  %v8110 = vpop.f32.mrb[0].mxu0
  %v8111 = vadd.f32 %v7918, %v8110
  %v8112 = vpop.f32.mrb[0].mxu0
  %v8113 = vadd.f32 %v7920, %v8112
  %8114 = vmatprep.mubr.bf16.mxu0 %v7000
  %8115 = vmatmul.mubr.bf16.gmra.mrb[0].mxu0 %v6999
  %v8116 = vpop.f32.mrb[0].mxu0
  %v8117 = vadd.f32 %v7924, %v8116
  %v8118 = vpop.f32.mrb[0].mxu0
  %v8119 = vadd.f32 %v7926, %v8118
  %v8120 = vpop.f32.mrb[0].mxu0
  %v8121 = vadd.f32 %v7928, %v8120
  %v8122 = vpop.f32.mrb[0].mxu0
  %v8123 = vadd.f32 %v7930, %v8122
  %8124 = vmatprep.mubr.bf16.mxu0 %v7004
  %8125 = vmatmul.mubr.bf16.gmra.mrb[0].mxu0 %v7003
  %v8126 = vpop.f32.mrb[0].mxu0
  %v8127 = vadd.f32 %v7934, %v8126
  %v8128 = vpop.f32.mrb[0].mxu0
  %v8129 = vadd.f32 %v7936, %v8128
  %v8130 = vpop.f32.mrb[0].mxu0
  %v8131 = vadd.f32 %v7938, %v8130
  %v8132 = vpop.f32.mrb[0].mxu0
  %v8133 = vadd.f32 %v7940, %v8132
  %8134 = vmatprep.mubr.bf16.mxu0 %v7008
  %8135 = vmatmul.mubr.bf16.gmra.mrb[0].mxu0 %v7007
  %v8136 = vpop.f32.mrb[0].mxu0
  %v8137 = vadd.f32 %v7944, %v8136
  %v8138 = vpop.f32.mrb[0].mxu0
  %v8139 = vadd.f32 %v7946, %v8138
  %v8140 = vpop.f32.mrb[0].mxu0
  %v8141 = vadd.f32 %v7948, %v8140
  %v8142 = vpop.f32.mrb[0].mxu0
  %v8143 = vadd.f32 %v7950, %v8142
  %8144 = vmatprep.mubr.bf16.mxu0 %v7012
  %8145 = vmatmul.mubr.bf16.gmra.mrb[0].mxu0 %v7011
  %v8146 = vpop.f32.mrb[0].mxu0
  %v8147 = vadd.f32 %v7954, %v8146
  %v8148 = vpop.f32.mrb[0].mxu0
  %v8149 = vadd.f32 %v7956, %v8148
  %v8150 = vpop.f32.mrb[0].mxu0
  %v8151 = vadd.f32 %v7958, %v8150
  %v8152 = vpop.f32.mrb[0].mxu0
  %v8153 = vadd.f32 %v7960, %v8152
  %8154 = vmatprep.mubr.bf16.mxu0 %v7016
  %8155 = vmatmul.mubr.bf16.gmra.mrb[0].mxu0 %v7015
  %v8156 = vpop.f32.mrb[0].mxu0
  %v8157 = vadd.f32 %v7964, %v8156
  %v8158 = vpop.f32.mrb[0].mxu0
  %v8159 = vadd.f32 %v7966, %v8158
  %v8160 = vpop.f32.mrb[0].mxu0
  %v8161 = vadd.f32 %v7968, %v8160
  %v8162 = vpop.f32.mrb[0].mxu0
  %v8163 = vadd.f32 %v7970, %v8162
  %8164 = vmatprep.mubr.bf16.mxu0 %v7020
  %8165 = vmatmul.mubr.bf16.gmra.mrb[0].mxu0 %v7019
  %v8166 = vpop.f32.mrb[0].mxu0
  %v8167 = vadd.f32 %v7974, %v8166
  %v8168 = vpop.f32.mrb[0].mxu0
  %v8169 = vadd.f32 %v7976, %v8168
  %v8170 = vpop.f32.mrb[0].mxu0
  %v8171 = vadd.f32 %v7978, %v8170
  %v8172 = vpop.f32.mrb[0].mxu0
  %v8173 = vadd.f32 %v7980, %v8172
  %8174 = vdwg.mxu0
  %8175 = vmatprep.subr.bf16.mxu0 %v7536
  %8176 = vmatpush1.bf16.msra.mxu0 %v7535
  %8177 = vmatprep.subr.bf16.mxu0 %v7540
  %8178 = vmatpush1.bf16.msra.mxu0 %v7539
  %8179 = vmatprep.subr.bf16.mxu0 %v7544
  %8180 = vmatpush1.bf16.msra.mxu0 %v7543
  %8181 = vmatprep.subr.bf16.mxu0 %v7548
  %8182 = vmatpush1.bf16.msra.mxu0 %v7547
  %8183 = vmatprep.subr.bf16.mxu0 %v7552
  %8184 = vmatpush1.bf16.msra.mxu0 %v7551
  %8185 = vmatprep.subr.bf16.mxu0 %v7556
  %8186 = vmatpush1.bf16.msra.mxu0 %v7555
  %8187 = vmatprep.subr.bf16.mxu0 %v7560
  %8188 = vmatpush1.bf16.msra.mxu0 %v7559
  %8189 = vmatprep.subr.bf16.mxu0 %v7564
  %8190 = vmatpush1.bf16.msra.mxu0 %v7563
  %8191 = vmatprep.subr.bf16.mxu0 %v7568
  %8192 = vmatpush1.bf16.msra.mxu0 %v7567
  %8193 = vmatprep.subr.bf16.mxu0 %v7572
  %8194 = vmatpush1.bf16.msra.mxu0 %v7571
  %8195 = vmatprep.subr.bf16.mxu0 %v7576
  %8196 = vmatpush1.bf16.msra.mxu0 %v7575
  %8197 = vmatprep.subr.bf16.mxu0 %v7580
  %8198 = vmatpush1.bf16.msra.mxu0 %v7579
  %8199 = vmatprep.subr.bf16.mxu0 %v7584
  %8200 = vmatpush1.bf16.msra.mxu0 %v7583
  %8201 = vmatprep.subr.bf16.mxu0 %v7588
  %8202 = vmatpush1.bf16.msra.mxu0 %v7587
  %8203 = vmatprep.subr.bf16.mxu0 %v7592
  %8204 = vmatpush1.bf16.msra.mxu0 %v7591
  %8205 = vmatprep.subr.bf16.mxu0 %v7596
  %8206 = vmatpush1.bf16.msra.mxu0 %v7595
  %8207 = vmatprep.mubr.bf16.mxu0 %v6958
  %8208 = vmatmul.mubr.bf16.gmra.mrb[0].mxu0 %v6957
  %v8209 = vpop.f32.mrb[0].mxu0
  %v8210 = vadd.f32 0.0, %v8209
  %v8211 = vpop.f32.mrb[0].mxu0
  %v8212 = vadd.f32 0.0, %v8211
  %v8213 = vpop.f32.mrb[0].mxu0
  %v8214 = vadd.f32 0.0, %v8213
  %v8215 = vpop.f32.mrb[0].mxu0
  %v8216 = vadd.f32 0.0, %v8215
  %8217 = vmatprep.mubr.bf16.mxu0 %v6962
  %8218 = vmatmul.mubr.bf16.gmra.mrb[0].mxu0 %v6961
  %v8219 = vpop.f32.mrb[0].mxu0
  %v8220 = vadd.f32 0.0, %v8219
  %v8221 = vpop.f32.mrb[0].mxu0
  %v8222 = vadd.f32 0.0, %v8221
  %v8223 = vpop.f32.mrb[0].mxu0
  %v8224 = vadd.f32 0.0, %v8223
  %v8225 = vpop.f32.mrb[0].mxu0
  %v8226 = vadd.f32 0.0, %v8225
  %8227 = vmatprep.mubr.bf16.mxu0 %v6966
  %8228 = vmatmul.mubr.bf16.gmra.mrb[0].mxu0 %v6965
  %v8229 = vpop.f32.mrb[0].mxu0
  %v8230 = vadd.f32 0.0, %v8229
  %v8231 = vpop.f32.mrb[0].mxu0
  %v8232 = vadd.f32 0.0, %v8231
  %v8233 = vpop.f32.mrb[0].mxu0
  %v8234 = vadd.f32 0.0, %v8233
  %v8235 = vpop.f32.mrb[0].mxu0
  %v8236 = vadd.f32 0.0, %v8235
  %8237 = vmatprep.mubr.bf16.mxu0 %v6970
  %8238 = vmatmul.mubr.bf16.gmra.mrb[0].mxu0 %v6969
  %v8239 = vpop.f32.mrb[0].mxu0
  %v8240 = vadd.f32 0.0, %v8239
  %v8241 = vpop.f32.mrb[0].mxu0
  %v8242 = vadd.f32 0.0, %v8241
  %v8243 = vpop.f32.mrb[0].mxu0
  %v8244 = vadd.f32 0.0, %v8243
  %v8245 = vpop.f32.mrb[0].mxu0
  %v8246 = vadd.f32 0.0, %v8245
  %8247 = vmatprep.mubr.bf16.mxu0 %v6974
  %8248 = vmatmul.mubr.bf16.gmra.mrb[0].mxu0 %v6973
  %v8249 = vpop.f32.mrb[0].mxu0
  %v8250 = vadd.f32 0.0, %v8249
  %v8251 = vpop.f32.mrb[0].mxu0
  %v8252 = vadd.f32 0.0, %v8251
  %v8253 = vpop.f32.mrb[0].mxu0
  %v8254 = vadd.f32 0.0, %v8253
  %v8255 = vpop.f32.mrb[0].mxu0
  %v8256 = vadd.f32 0.0, %v8255
  %8257 = vmatprep.mubr.bf16.mxu0 %v6978
  %8258 = vmatmul.mubr.bf16.gmra.mrb[0].mxu0 %v6977
  %v8259 = vpop.f32.mrb[0].mxu0
  %v8260 = vadd.f32 0.0, %v8259
  %v8261 = vpop.f32.mrb[0].mxu0
  %v8262 = vadd.f32 0.0, %v8261
  %v8263 = vpop.f32.mrb[0].mxu0
  %v8264 = vadd.f32 0.0, %v8263
  %v8265 = vpop.f32.mrb[0].mxu0
  %v8266 = vadd.f32 0.0, %v8265
  %8267 = vmatprep.mubr.bf16.mxu0 %v6982
  %8268 = vmatmul.mubr.bf16.gmra.mrb[0].mxu0 %v6981
  %v8269 = vpop.f32.mrb[0].mxu0
  %v8270 = vadd.f32 0.0, %v8269
  %v8271 = vpop.f32.mrb[0].mxu0
  %v8272 = vadd.f32 0.0, %v8271
  %v8273 = vpop.f32.mrb[0].mxu0
  %v8274 = vadd.f32 0.0, %v8273
  %v8275 = vpop.f32.mrb[0].mxu0
  %v8276 = vadd.f32 0.0, %v8275
  %8277 = vmatprep.mubr.bf16.mxu0 %v6986
  %8278 = vmatmul.mubr.bf16.gmra.mrb[0].mxu0 %v6985
  %v8279 = vpop.f32.mrb[0].mxu0
  %v8280 = vadd.f32 0.0, %v8279
  %v8281 = vpop.f32.mrb[0].mxu0
  %v8282 = vadd.f32 0.0, %v8281
  %v8283 = vpop.f32.mrb[0].mxu0
  %v8284 = vadd.f32 0.0, %v8283
  %v8285 = vpop.f32.mrb[0].mxu0
  %v8286 = vadd.f32 0.0, %v8285
  %8287 = vmatprep.mubr.bf16.mxu0 %v6990
  %8288 = vmatmul.mubr.bf16.gmra.mrb[0].mxu0 %v6989
  %v8289 = vpop.f32.mrb[0].mxu0
  %v8290 = vadd.f32 0.0, %v8289
  %v8291 = vpop.f32.mrb[0].mxu0
  %v8292 = vadd.f32 0.0, %v8291
  %v8293 = vpop.f32.mrb[0].mxu0
  %v8294 = vadd.f32 0.0, %v8293
  %v8295 = vpop.f32.mrb[0].mxu0
  %v8296 = vadd.f32 0.0, %v8295
  %8297 = vmatprep.mubr.bf16.mxu0 %v6994
  %8298 = vmatmul.mubr.bf16.gmra.mrb[0].mxu0 %v6993
  %v8299 = vpop.f32.mrb[0].mxu0
  %v8300 = vadd.f32 0.0, %v8299
  %v8301 = vpop.f32.mrb[0].mxu0
  %v8302 = vadd.f32 0.0, %v8301
  %v8303 = vpop.f32.mrb[0].mxu0
  %v8304 = vadd.f32 0.0, %v8303
  %v8305 = vpop.f32.mrb[0].mxu0
  %v8306 = vadd.f32 0.0, %v8305
  %8307 = vmatprep.mubr.bf16.mxu0 %v6998
  %8308 = vmatmul.mubr.bf16.gmra.mrb[0].mxu0 %v6997
  %v8309 = vpop.f32.mrb[0].mxu0
  %v8310 = vadd.f32 0.0, %v8309
  %v8311 = vpop.f32.mrb[0].mxu0
  %v8312 = vadd.f32 0.0, %v8311
  %v8313 = vpop.f32.mrb[0].mxu0
  %v8314 = vadd.f32 0.0, %v8313
  %v8315 = vpop.f32.mrb[0].mxu0
  %v8316 = vadd.f32 0.0, %v8315
  %8317 = vmatprep.mubr.bf16.mxu0 %v7002
  %8318 = vmatmul.mubr.bf16.gmra.mrb[0].mxu0 %v7001
  %v8319 = vpop.f32.mrb[0].mxu0
  %v8320 = vadd.f32 0.0, %v8319
  %v8321 = vpop.f32.mrb[0].mxu0
  %v8322 = vadd.f32 0.0, %v8321
  %v8323 = vpop.f32.mrb[0].mxu0
  %v8324 = vadd.f32 0.0, %v8323
  %v8325 = vpop.f32.mrb[0].mxu0
  %v8326 = vadd.f32 0.0, %v8325
  %8327 = vmatprep.mubr.bf16.mxu0 %v7006
  %8328 = vmatmul.mubr.bf16.gmra.mrb[0].mxu0 %v7005
  %v8329 = vpop.f32.mrb[0].mxu0
  %v8330 = vadd.f32 0.0, %v8329
  %v8331 = vpop.f32.mrb[0].mxu0
  %v8332 = vadd.f32 0.0, %v8331
  %v8333 = vpop.f32.mrb[0].mxu0
  %v8334 = vadd.f32 0.0, %v8333
  %v8335 = vpop.f32.mrb[0].mxu0
  %v8336 = vadd.f32 0.0, %v8335
  %8337 = vmatprep.mubr.bf16.mxu0 %v7010
  %8338 = vmatmul.mubr.bf16.gmra.mrb[0].mxu0 %v7009
  %v8339 = vpop.f32.mrb[0].mxu0
  %v8340 = vadd.f32 0.0, %v8339
  %v8341 = vpop.f32.mrb[0].mxu0
  %v8342 = vadd.f32 0.0, %v8341
  %v8343 = vpop.f32.mrb[0].mxu0
  %v8344 = vadd.f32 0.0, %v8343
  %v8345 = vpop.f32.mrb[0].mxu0
  %v8346 = vadd.f32 0.0, %v8345
  %8347 = vmatprep.mubr.bf16.mxu0 %v7014
  %8348 = vmatmul.mubr.bf16.gmra.mrb[0].mxu0 %v7013
  %v8349 = vpop.f32.mrb[0].mxu0
  %v8350 = vadd.f32 0.0, %v8349
  %v8351 = vpop.f32.mrb[0].mxu0
  %v8352 = vadd.f32 0.0, %v8351
  %v8353 = vpop.f32.mrb[0].mxu0
  %v8354 = vadd.f32 0.0, %v8353
  %v8355 = vpop.f32.mrb[0].mxu0
  %v8356 = vadd.f32 0.0, %v8355
  %8357 = vmatprep.mubr.bf16.mxu0 %v7018
  %8358 = vmatmul.mubr.bf16.gmra.mrb[0].mxu0 %v7017
  %v8359 = vpop.f32.mrb[0].mxu0
  %v8360 = vadd.f32 0.0, %v8359
  %v8361 = vpop.f32.mrb[0].mxu0
  %v8362 = vadd.f32 0.0, %v8361
  %v8363 = vpop.f32.mrb[0].mxu0
  %v8364 = vadd.f32 0.0, %v8363
  %v8365 = vpop.f32.mrb[0].mxu0
  %v8366 = vadd.f32 0.0, %v8365
  %8367 = vdwg.mxu0
  %8368 = vmatprep.subr.bf16.mxu0 %v7600
  %8369 = vmatpush1.bf16.msra.mxu0 %v7599
  %8370 = vmatprep.subr.bf16.mxu0 %v7604
  %8371 = vmatpush1.bf16.msra.mxu0 %v7603
  %8372 = vmatprep.subr.bf16.mxu0 %v7608
  %8373 = vmatpush1.bf16.msra.mxu0 %v7607
  %8374 = vmatprep.subr.bf16.mxu0 %v7612
  %8375 = vmatpush1.bf16.msra.mxu0 %v7611
  %8376 = vmatprep.subr.bf16.mxu0 %v7616
  %8377 = vmatpush1.bf16.msra.mxu0 %v7615
  %8378 = vmatprep.subr.bf16.mxu0 %v7620
  %8379 = vmatpush1.bf16.msra.mxu0 %v7619
  %8380 = vmatprep.subr.bf16.mxu0 %v7624
  %8381 = vmatpush1.bf16.msra.mxu0 %v7623
  %8382 = vmatprep.subr.bf16.mxu0 %v7628
  %8383 = vmatpush1.bf16.msra.mxu0 %v7627
  %8384 = vmatprep.subr.bf16.mxu0 %v7632
  %8385 = vmatpush1.bf16.msra.mxu0 %v7631
  %8386 = vmatprep.subr.bf16.mxu0 %v7636
  %8387 = vmatpush1.bf16.msra.mxu0 %v7635
  %8388 = vmatprep.subr.bf16.mxu0 %v7640
  %8389 = vmatpush1.bf16.msra.mxu0 %v7639
  %8390 = vmatprep.subr.bf16.mxu0 %v7644
  %8391 = vmatpush1.bf16.msra.mxu0 %v7643
  %8392 = vmatprep.subr.bf16.mxu0 %v7648
  %8393 = vmatpush1.bf16.msra.mxu0 %v7647
  %8394 = vmatprep.subr.bf16.mxu0 %v7652
  %8395 = vmatpush1.bf16.msra.mxu0 %v7651
  %8396 = vmatprep.subr.bf16.mxu0 %v7656
  %8397 = vmatpush1.bf16.msra.mxu0 %v7655
  %8398 = vmatprep.subr.bf16.mxu0 %v7660
  %8399 = vmatpush1.bf16.msra.mxu0 %v7659
  %8400 = vmatprep.mubr.bf16.mxu0 %v6960
  %8401 = vmatmul.mubr.bf16.gmra.mrb[0].mxu0 %v6959
  %v8402 = vpop.f32.mrb[0].mxu0
  %v8403 = vadd.f32 %v8210, %v8402
  %v8404 = vpop.f32.mrb[0].mxu0
  %v8405 = vadd.f32 %v8212, %v8404
  %v8406 = vpop.f32.mrb[0].mxu0
  %v8407 = vadd.f32 %v8214, %v8406
  %v8408 = vpop.f32.mrb[0].mxu0
  %v8409 = vadd.f32 %v8216, %v8408
  %8410 = vmatprep.mubr.bf16.mxu0 %v6964
  %8411 = vmatmul.mubr.bf16.gmra.mrb[0].mxu0 %v6963
  %v8412 = vpop.f32.mrb[0].mxu0
  %v8413 = vadd.f32 %v8220, %v8412
  %v8414 = vpop.f32.mrb[0].mxu0
  %v8415 = vadd.f32 %v8222, %v8414
  %v8416 = vpop.f32.mrb[0].mxu0
  %v8417 = vadd.f32 %v8224, %v8416
  %v8418 = vpop.f32.mrb[0].mxu0
  %v8419 = vadd.f32 %v8226, %v8418
  %8420 = vmatprep.mubr.bf16.mxu0 %v6968
  %8421 = vmatmul.mubr.bf16.gmra.mrb[0].mxu0 %v6967
  %v8422 = vpop.f32.mrb[0].mxu0
  %v8423 = vadd.f32 %v8230, %v8422
  %v8424 = vpop.f32.mrb[0].mxu0
  %v8425 = vadd.f32 %v8232, %v8424
  %v8426 = vpop.f32.mrb[0].mxu0
  %v8427 = vadd.f32 %v8234, %v8426
  %v8428 = vpop.f32.mrb[0].mxu0
  %v8429 = vadd.f32 %v8236, %v8428
  %8430 = vmatprep.mubr.bf16.mxu0 %v6972
  %8431 = vmatmul.mubr.bf16.gmra.mrb[0].mxu0 %v6971
  %v8432 = vpop.f32.mrb[0].mxu0
  %v8433 = vadd.f32 %v8240, %v8432
  %v8434 = vpop.f32.mrb[0].mxu0
  %v8435 = vadd.f32 %v8242, %v8434
  %v8436 = vpop.f32.mrb[0].mxu0
  %v8437 = vadd.f32 %v8244, %v8436
  %v8438 = vpop.f32.mrb[0].mxu0
  %v8439 = vadd.f32 %v8246, %v8438
  %8440 = vmatprep.mubr.bf16.mxu0 %v6976
  %8441 = vmatmul.mubr.bf16.gmra.mrb[0].mxu0 %v6975
  %v8442 = vpop.f32.mrb[0].mxu0
  %v8443 = vadd.f32 %v8250, %v8442
  %v8444 = vpop.f32.mrb[0].mxu0
  %v8445 = vadd.f32 %v8252, %v8444
  %v8446 = vpop.f32.mrb[0].mxu0
  %v8447 = vadd.f32 %v8254, %v8446
  %v8448 = vpop.f32.mrb[0].mxu0
  %v8449 = vadd.f32 %v8256, %v8448
  %8450 = vmatprep.mubr.bf16.mxu0 %v6980
  %8451 = vmatmul.mubr.bf16.gmra.mrb[0].mxu0 %v6979
  %v8452 = vpop.f32.mrb[0].mxu0
  %v8453 = vadd.f32 %v8260, %v8452
  %v8454 = vpop.f32.mrb[0].mxu0
  %v8455 = vadd.f32 %v8262, %v8454
  %v8456 = vpop.f32.mrb[0].mxu0
  %v8457 = vadd.f32 %v8264, %v8456
  %v8458 = vpop.f32.mrb[0].mxu0
  %v8459 = vadd.f32 %v8266, %v8458
  %8460 = vmatprep.mubr.bf16.mxu0 %v6984
  %8461 = vmatmul.mubr.bf16.gmra.mrb[0].mxu0 %v6983
  %v8462 = vpop.f32.mrb[0].mxu0
  %v8463 = vadd.f32 %v8270, %v8462
  %v8464 = vpop.f32.mrb[0].mxu0
  %v8465 = vadd.f32 %v8272, %v8464
  %v8466 = vpop.f32.mrb[0].mxu0
  %v8467 = vadd.f32 %v8274, %v8466
  %v8468 = vpop.f32.mrb[0].mxu0
  %v8469 = vadd.f32 %v8276, %v8468
  %8470 = vmatprep.mubr.bf16.mxu0 %v6988
  %8471 = vmatmul.mubr.bf16.gmra.mrb[0].mxu0 %v6987
  %v8472 = vpop.f32.mrb[0].mxu0
  %v8473 = vadd.f32 %v8280, %v8472
  %v8474 = vpop.f32.mrb[0].mxu0
  %v8475 = vadd.f32 %v8282, %v8474
  %v8476 = vpop.f32.mrb[0].mxu0
  %v8477 = vadd.f32 %v8284, %v8476
  %v8478 = vpop.f32.mrb[0].mxu0
  %v8479 = vadd.f32 %v8286, %v8478
  %8480 = vmatprep.mubr.bf16.mxu0 %v6992
  %8481 = vmatmul.mubr.bf16.gmra.mrb[0].mxu0 %v6991
  %v8482 = vpop.f32.mrb[0].mxu0
  %v8483 = vadd.f32 %v8290, %v8482
  %v8484 = vpop.f32.mrb[0].mxu0
  %v8485 = vadd.f32 %v8292, %v8484
  %v8486 = vpop.f32.mrb[0].mxu0
  %v8487 = vadd.f32 %v8294, %v8486
  %v8488 = vpop.f32.mrb[0].mxu0
  %v8489 = vadd.f32 %v8296, %v8488
  %8490 = vmatprep.mubr.bf16.mxu0 %v6996
  %8491 = vmatmul.mubr.bf16.gmra.mrb[0].mxu0 %v6995
  %v8492 = vpop.f32.mrb[0].mxu0
  %v8493 = vadd.f32 %v8300, %v8492
  %v8494 = vpop.f32.mrb[0].mxu0
  %v8495 = vadd.f32 %v8302, %v8494
  %v8496 = vpop.f32.mrb[0].mxu0
  %v8497 = vadd.f32 %v8304, %v8496
  %v8498 = vpop.f32.mrb[0].mxu0
  %v8499 = vadd.f32 %v8306, %v8498
  %8500 = vmatprep.mubr.bf16.mxu0 %v7000
  %8501 = vmatmul.mubr.bf16.gmra.mrb[0].mxu0 %v6999
  %v8502 = vpop.f32.mrb[0].mxu0
  %v8503 = vadd.f32 %v8310, %v8502
  %v8504 = vpop.f32.mrb[0].mxu0
  %v8505 = vadd.f32 %v8312, %v8504
  %v8506 = vpop.f32.mrb[0].mxu0
  %v8507 = vadd.f32 %v8314, %v8506
  %v8508 = vpop.f32.mrb[0].mxu0
  %v8509 = vadd.f32 %v8316, %v8508
  %8510 = vmatprep.mubr.bf16.mxu0 %v7004
  %8511 = vmatmul.mubr.bf16.gmra.mrb[0].mxu0 %v7003
  %v8512 = vpop.f32.mrb[0].mxu0
  %v8513 = vadd.f32 %v8320, %v8512
  %v8514 = vpop.f32.mrb[0].mxu0
  %v8515 = vadd.f32 %v8322, %v8514
  %v8516 = vpop.f32.mrb[0].mxu0
  %v8517 = vadd.f32 %v8324, %v8516
  %v8518 = vpop.f32.mrb[0].mxu0
  %v8519 = vadd.f32 %v8326, %v8518
  %8520 = vmatprep.mubr.bf16.mxu0 %v7008
  %8521 = vmatmul.mubr.bf16.gmra.mrb[0].mxu0 %v7007
  %v8522 = vpop.f32.mrb[0].mxu0
  %v8523 = vadd.f32 %v8330, %v8522
  %v8524 = vpop.f32.mrb[0].mxu0
  %v8525 = vadd.f32 %v8332, %v8524
  %v8526 = vpop.f32.mrb[0].mxu0
  %v8527 = vadd.f32 %v8334, %v8526
  %v8528 = vpop.f32.mrb[0].mxu0
  %v8529 = vadd.f32 %v8336, %v8528
  %8530 = vmatprep.mubr.bf16.mxu0 %v7012
  %8531 = vmatmul.mubr.bf16.gmra.mrb[0].mxu0 %v7011
  %v8532 = vpop.f32.mrb[0].mxu0
  %v8533 = vadd.f32 %v8340, %v8532
  %v8534 = vpop.f32.mrb[0].mxu0
  %v8535 = vadd.f32 %v8342, %v8534
  %v8536 = vpop.f32.mrb[0].mxu0
  %v8537 = vadd.f32 %v8344, %v8536
  %v8538 = vpop.f32.mrb[0].mxu0
  %v8539 = vadd.f32 %v8346, %v8538
  %8540 = vmatprep.mubr.bf16.mxu0 %v7016
  %8541 = vmatmul.mubr.bf16.gmra.mrb[0].mxu0 %v7015
  %v8542 = vpop.f32.mrb[0].mxu0
  %v8543 = vadd.f32 %v8350, %v8542
  %v8544 = vpop.f32.mrb[0].mxu0
  %v8545 = vadd.f32 %v8352, %v8544
  %v8546 = vpop.f32.mrb[0].mxu0
  %v8547 = vadd.f32 %v8354, %v8546
  %v8548 = vpop.f32.mrb[0].mxu0
  %v8549 = vadd.f32 %v8356, %v8548
  %8550 = vmatprep.mubr.bf16.mxu0 %v7020
  %8551 = vmatmul.mubr.bf16.gmra.mrb[0].mxu0 %v7019
  %v8552 = vpop.f32.mrb[0].mxu0
  %v8553 = vadd.f32 %v8360, %v8552
  %v8554 = vpop.f32.mrb[0].mxu0
  %v8555 = vadd.f32 %v8362, %v8554
  %v8556 = vpop.f32.mrb[0].mxu0
  %v8557 = vadd.f32 %v8364, %v8556
  %v8558 = vpop.f32.mrb[0].mxu0
  %v8559 = vadd.f32 %v8366, %v8558
  %8560 = vdwg.mxu0
  %v8561 = vmax.f32 %v8017, 0.0
  %v8562 = vmax.f32 %v8019, 0.0
  %v8563 = vmax.f32 %v8403, 0.0
  %v8564 = vmax.f32 %v8405, 0.0
  %v8565 = vmax.f32 %v8021, 0.0
  %v8566 = vmax.f32 %v8023, 0.0
  %v8567 = vmax.f32 %v8407, 0.0
  %v8568 = vmax.f32 %v8409, 0.0
  %v8569 = vmax.f32 %v8027, 0.0
  %v8570 = vmax.f32 %v8029, 0.0
  %v8571 = vmax.f32 %v8413, 0.0
  %v8572 = vmax.f32 %v8415, 0.0
  %v8573 = vmax.f32 %v8031, 0.0
  %v8574 = vmax.f32 %v8033, 0.0
  %v8575 = vmax.f32 %v8417, 0.0
  %v8576 = vmax.f32 %v8419, 0.0
  %v8577 = vmax.f32 %v8037, 0.0
  %v8578 = vmax.f32 %v8039, 0.0
  %v8579 = vmax.f32 %v8423, 0.0
  %v8580 = vmax.f32 %v8425, 0.0
  %v8581 = vmax.f32 %v8041, 0.0
  %v8582 = vmax.f32 %v8043, 0.0
  %v8583 = vmax.f32 %v8427, 0.0
  %v8584 = vmax.f32 %v8429, 0.0
  %v8585 = vmax.f32 %v8047, 0.0
  %v8586 = vmax.f32 %v8049, 0.0
  %v8587 = vmax.f32 %v8433, 0.0
  %v8588 = vmax.f32 %v8435, 0.0
  %v8589 = vmax.f32 %v8051, 0.0
  %v8590 = vmax.f32 %v8053, 0.0
  %v8591 = vmax.f32 %v8437, 0.0
  %v8592 = vmax.f32 %v8439, 0.0
  %v8593 = vmax.f32 %v8057, 0.0
  %v8594 = vmax.f32 %v8059, 0.0
  %v8595 = vmax.f32 %v8443, 0.0
  %v8596 = vmax.f32 %v8445, 0.0
  %v8597 = vmax.f32 %v8061, 0.0
  %v8598 = vmax.f32 %v8063, 0.0
  %v8599 = vmax.f32 %v8447, 0.0
  %v8600 = vmax.f32 %v8449, 0.0
  %v8601 = vmax.f32 %v8067, 0.0
  %v8602 = vmax.f32 %v8069, 0.0
  %v8603 = vmax.f32 %v8453, 0.0
  %v8604 = vmax.f32 %v8455, 0.0
  %v8605 = vmax.f32 %v8071, 0.0
  %v8606 = vmax.f32 %v8073, 0.0
  %v8607 = vmax.f32 %v8457, 0.0
  %v8608 = vmax.f32 %v8459, 0.0
  %v8609 = vmax.f32 %v8077, 0.0
  %v8610 = vmax.f32 %v8079, 0.0
  %v8611 = vmax.f32 %v8463, 0.0
  %v8612 = vmax.f32 %v8465, 0.0
  %v8613 = vmax.f32 %v8081, 0.0
  %v8614 = vmax.f32 %v8083, 0.0
  %v8615 = vmax.f32 %v8467, 0.0
  %v8616 = vmax.f32 %v8469, 0.0
  %v8617 = vmax.f32 %v8087, 0.0
  %v8618 = vmax.f32 %v8089, 0.0
  %v8619 = vmax.f32 %v8473, 0.0
  %v8620 = vmax.f32 %v8475, 0.0
  %v8621 = vmax.f32 %v8091, 0.0
  %v8622 = vmax.f32 %v8093, 0.0
  %v8623 = vmax.f32 %v8477, 0.0
  %v8624 = vmax.f32 %v8479, 0.0
  %v8625 = vmax.f32 %v8097, 0.0
  %v8626 = vmax.f32 %v8099, 0.0
  %v8627 = vmax.f32 %v8483, 0.0
  %v8628 = vmax.f32 %v8485, 0.0
  %v8629 = vmax.f32 %v8101, 0.0
  %v8630 = vmax.f32 %v8103, 0.0
  %v8631 = vmax.f32 %v8487, 0.0
  %v8632 = vmax.f32 %v8489, 0.0
  %v8633 = vmax.f32 %v8107, 0.0
  %v8634 = vmax.f32 %v8109, 0.0
  %v8635 = vmax.f32 %v8493, 0.0
  %v8636 = vmax.f32 %v8495, 0.0
  %v8637 = vmax.f32 %v8111, 0.0
  %v8638 = vmax.f32 %v8113, 0.0
  %v8639 = vmax.f32 %v8497, 0.0
  %v8640 = vmax.f32 %v8499, 0.0
  %v8641 = vmax.f32 %v8117, 0.0
  %v8642 = vmax.f32 %v8119, 0.0
  %v8643 = vmax.f32 %v8503, 0.0
  %v8644 = vmax.f32 %v8505, 0.0
  %v8645 = vmax.f32 %v8121, 0.0
  %v8646 = vmax.f32 %v8123, 0.0
  %v8647 = vmax.f32 %v8507, 0.0
  %v8648 = vmax.f32 %v8509, 0.0
  %v8649 = vmax.f32 %v8127, 0.0
  %v8650 = vmax.f32 %v8129, 0.0
  %v8651 = vmax.f32 %v8513, 0.0
  %v8652 = vmax.f32 %v8515, 0.0
  %v8653 = vmax.f32 %v8131, 0.0
  %v8654 = vmax.f32 %v8133, 0.0
  %v8655 = vmax.f32 %v8517, 0.0
  %v8656 = vmax.f32 %v8519, 0.0
  %v8657 = vmax.f32 %v8137, 0.0
  %v8658 = vmax.f32 %v8139, 0.0
  %v8659 = vmax.f32 %v8523, 0.0
  %v8660 = vmax.f32 %v8525, 0.0
  %v8661 = vmax.f32 %v8141, 0.0
  %v8662 = vmax.f32 %v8143, 0.0
  %v8663 = vmax.f32 %v8527, 0.0
  %v8664 = vmax.f32 %v8529, 0.0
  %v8665 = vmax.f32 %v8147, 0.0
  %v8666 = vmax.f32 %v8149, 0.0
  %v8667 = vmax.f32 %v8533, 0.0
  %v8668 = vmax.f32 %v8535, 0.0
  %v8669 = vmax.f32 %v8151, 0.0
  %v8670 = vmax.f32 %v8153, 0.0
  %v8671 = vmax.f32 %v8537, 0.0
  %v8672 = vmax.f32 %v8539, 0.0
  %v8673 = vmax.f32 %v8157, 0.0
  %v8674 = vmax.f32 %v8159, 0.0
  %v8675 = vmax.f32 %v8543, 0.0
  %v8676 = vmax.f32 %v8545, 0.0
  %v8677 = vmax.f32 %v8161, 0.0
  %v8678 = vmax.f32 %v8163, 0.0
  %v8679 = vmax.f32 %v8547, 0.0
  %v8680 = vmax.f32 %v8549, 0.0
  %v8681 = vmax.f32 %v8167, 0.0
  %v8682 = vmax.f32 %v8169, 0.0
  %v8683 = vmax.f32 %v8553, 0.0
  %v8684 = vmax.f32 %v8555, 0.0
  %v8685 = vmax.f32 %v8171, 0.0
  %v8686 = vmax.f32 %v8173, 0.0
  %v8687 = vmax.f32 %v8557, 0.0
  %v8688 = vmax.f32 %v8559, 0.0
  %s8689 = smul.addr %s119, 8
  %s8690 = scalar_lea.vmem %s5, %s8689
  %8691 = vst [vmem:[%s8690] sm:$0xff] %v8561
  %8692 = vst [vmem:[%s8690 + $0x8] sm:$0xff] %v8562
  %8693 = vst [vmem:[%s8690 + $0x10] sm:$0xff] %v8563
  %8694 = vst [vmem:[%s8690 + $0x18] sm:$0xff] %v8564
  %8695 = vst [vmem:[%s8690 + $0x20] sm:$0xff] %v8565
  %8696 = vst [vmem:[%s8690 + $0x28] sm:$0xff] %v8566
  %8697 = vst [vmem:[%s8690 + $0x30] sm:$0xff] %v8567
  %8698 = vst [vmem:[%s8690 + $0x38] sm:$0xff] %v8568
  %8699 = vst [vmem:[%s8690 + $0x40] sm:$0xff] %v8569
  %8700 = vst [vmem:[%s8690 + $0x48] sm:$0xff] %v8570
  %8701 = vst [vmem:[%s8690 + $0x50] sm:$0xff] %v8571
  %8702 = vst [vmem:[%s8690 + $0x58] sm:$0xff] %v8572
  %8703 = vst [vmem:[%s8690 + $0x60] sm:$0xff] %v8573
  %8704 = vst [vmem:[%s8690 + $0x68] sm:$0xff] %v8574
  %8705 = vst [vmem:[%s8690 + $0x70] sm:$0xff] %v8575
  %8706 = vst [vmem:[%s8690 + $0x78] sm:$0xff] %v8576
  %8707 = vst [vmem:[%s8690 + $0x80] sm:$0xff] %v8577
  %8708 = vst [vmem:[%s8690 + $0x88] sm:$0xff] %v8578
  %8709 = vst [vmem:[%s8690 + $0x90] sm:$0xff] %v8579
  %8710 = vst [vmem:[%s8690 + $0x98] sm:$0xff] %v8580
  %8711 = vst [vmem:[%s8690 + $0xa0] sm:$0xff] %v8581
  %8712 = vst [vmem:[%s8690 + $0xa8] sm:$0xff] %v8582
  %8713 = vst [vmem:[%s8690 + $0xb0] sm:$0xff] %v8583
  %8714 = vst [vmem:[%s8690 + $0xb8] sm:$0xff] %v8584
  %8715 = vst [vmem:[%s8690 + $0xc0] sm:$0xff] %v8585
  %8716 = vst [vmem:[%s8690 + $0xc8] sm:$0xff] %v8586
  %8717 = vst [vmem:[%s8690 + $0xd0] sm:$0xff] %v8587
  %8718 = vst [vmem:[%s8690 + $0xd8] sm:$0xff] %v8588
  %8719 = vst [vmem:[%s8690 + $0xe0] sm:$0xff] %v8589
  %8720 = vst [vmem:[%s8690 + $0xe8] sm:$0xff] %v8590
  %8721 = vst [vmem:[%s8690 + $0xf0] sm:$0xff] %v8591
  %8722 = vst [vmem:[%s8690 + $0xf8] sm:$0xff] %v8592
  %8723 = vst [vmem:[%s8690 + $0x100] sm:$0xff] %v8593
  %8724 = vst [vmem:[%s8690 + $0x108] sm:$0xff] %v8594
  %8725 = vst [vmem:[%s8690 + $0x110] sm:$0xff] %v8595
  %8726 = vst [vmem:[%s8690 + $0x118] sm:$0xff] %v8596
  %8727 = vst [vmem:[%s8690 + $0x120] sm:$0xff] %v8597
  %8728 = vst [vmem:[%s8690 + $0x128] sm:$0xff] %v8598
  %8729 = vst [vmem:[%s8690 + $0x130] sm:$0xff] %v8599
  %8730 = vst [vmem:[%s8690 + $0x138] sm:$0xff] %v8600
  %8731 = vst [vmem:[%s8690 + $0x140] sm:$0xff] %v8601
  %8732 = vst [vmem:[%s8690 + $0x148] sm:$0xff] %v8602
  %8733 = vst [vmem:[%s8690 + $0x150] sm:$0xff] %v8603
  %8734 = vst [vmem:[%s8690 + $0x158] sm:$0xff] %v8604
  %8735 = vst [vmem:[%s8690 + $0x160] sm:$0xff] %v8605
  %8736 = vst [vmem:[%s8690 + $0x168] sm:$0xff] %v8606
  %8737 = vst [vmem:[%s8690 + $0x170] sm:$0xff] %v8607
  %8738 = vst [vmem:[%s8690 + $0x178] sm:$0xff] %v8608
  %8739 = vst [vmem:[%s8690 + $0x180] sm:$0xff] %v8609
  %8740 = vst [vmem:[%s8690 + $0x188] sm:$0xff] %v8610
  %8741 = vst [vmem:[%s8690 + $0x190] sm:$0xff] %v8611
  %8742 = vst [vmem:[%s8690 + $0x198] sm:$0xff] %v8612
  %8743 = vst [vmem:[%s8690 + $0x1a0] sm:$0xff] %v8613
  %8744 = vst [vmem:[%s8690 + $0x1a8] sm:$0xff] %v8614
  %8745 = vst [vmem:[%s8690 + $0x1b0] sm:$0xff] %v8615
  %8746 = vst [vmem:[%s8690 + $0x1b8] sm:$0xff] %v8616
  %8747 = vst [vmem:[%s8690 + $0x1c0] sm:$0xff] %v8617
  %8748 = vst [vmem:[%s8690 + $0x1c8] sm:$0xff] %v8618
  %8749 = vst [vmem:[%s8690 + $0x1d0] sm:$0xff] %v8619
  %8750 = vst [vmem:[%s8690 + $0x1d8] sm:$0xff] %v8620
  %8751 = vst [vmem:[%s8690 + $0x1e0] sm:$0xff] %v8621
  %8752 = vst [vmem:[%s8690 + $0x1e8] sm:$0xff] %v8622
  %8753 = vst [vmem:[%s8690 + $0x1f0] sm:$0xff] %v8623
  %8754 = vst [vmem:[%s8690 + $0x1f8] sm:$0xff] %v8624
  %8755 = vst [vmem:[%s8690 + $0x200] sm:$0xff] %v8625
  %8756 = vst [vmem:[%s8690 + $0x208] sm:$0xff] %v8626
  %8757 = vst [vmem:[%s8690 + $0x210] sm:$0xff] %v8627
  %8758 = vst [vmem:[%s8690 + $0x218] sm:$0xff] %v8628
  %8759 = vst [vmem:[%s8690 + $0x220] sm:$0xff] %v8629
  %8760 = vst [vmem:[%s8690 + $0x228] sm:$0xff] %v8630
  %8761 = vst [vmem:[%s8690 + $0x230] sm:$0xff] %v8631
  %8762 = vst [vmem:[%s8690 + $0x238] sm:$0xff] %v8632
  %8763 = vst [vmem:[%s8690 + $0x240] sm:$0xff] %v8633
  %8764 = vst [vmem:[%s8690 + $0x248] sm:$0xff] %v8634
  %8765 = vst [vmem:[%s8690 + $0x250] sm:$0xff] %v8635
  %8766 = vst [vmem:[%s8690 + $0x258] sm:$0xff] %v8636
  %8767 = vst [vmem:[%s8690 + $0x260] sm:$0xff] %v8637
  %8768 = vst [vmem:[%s8690 + $0x268] sm:$0xff] %v8638
  %8769 = vst [vmem:[%s8690 + $0x270] sm:$0xff] %v8639
  %8770 = vst [vmem:[%s8690 + $0x278] sm:$0xff] %v8640
  %8771 = vst [vmem:[%s8690 + $0x280] sm:$0xff] %v8641
  %8772 = vst [vmem:[%s8690 + $0x288] sm:$0xff] %v8642
  %8773 = vst [vmem:[%s8690 + $0x290] sm:$0xff] %v8643
  %8774 = vst [vmem:[%s8690 + $0x298] sm:$0xff] %v8644
  %8775 = vst [vmem:[%s8690 + $0x2a0] sm:$0xff] %v8645
  %8776 = vst [vmem:[%s8690 + $0x2a8] sm:$0xff] %v8646
  %8777 = vst [vmem:[%s8690 + $0x2b0] sm:$0xff] %v8647
  %8778 = vst [vmem:[%s8690 + $0x2b8] sm:$0xff] %v8648
  %8779 = vst [vmem:[%s8690 + $0x2c0] sm:$0xff] %v8649
  %8780 = vst [vmem:[%s8690 + $0x2c8] sm:$0xff] %v8650
  %8781 = vst [vmem:[%s8690 + $0x2d0] sm:$0xff] %v8651
  %8782 = vst [vmem:[%s8690 + $0x2d8] sm:$0xff] %v8652
  %8783 = vst [vmem:[%s8690 + $0x2e0] sm:$0xff] %v8653
  %8784 = vst [vmem:[%s8690 + $0x2e8] sm:$0xff] %v8654
  %8785 = vst [vmem:[%s8690 + $0x2f0] sm:$0xff] %v8655
  %8786 = vst [vmem:[%s8690 + $0x2f8] sm:$0xff] %v8656
  %8787 = vst [vmem:[%s8690 + $0x300] sm:$0xff] %v8657
  %8788 = vst [vmem:[%s8690 + $0x308] sm:$0xff] %v8658
  %8789 = vst [vmem:[%s8690 + $0x310] sm:$0xff] %v8659
  %8790 = vst [vmem:[%s8690 + $0x318] sm:$0xff] %v8660
  %8791 = vst [vmem:[%s8690 + $0x320] sm:$0xff] %v8661
  %8792 = vst [vmem:[%s8690 + $0x328] sm:$0xff] %v8662
  %8793 = vst [vmem:[%s8690 + $0x330] sm:$0xff] %v8663
  %8794 = vst [vmem:[%s8690 + $0x338] sm:$0xff] %v8664
  %8795 = vst [vmem:[%s8690 + $0x340] sm:$0xff] %v8665
  %8796 = vst [vmem:[%s8690 + $0x348] sm:$0xff] %v8666
  %8797 = vst [vmem:[%s8690 + $0x350] sm:$0xff] %v8667
  %8798 = vst [vmem:[%s8690 + $0x358] sm:$0xff] %v8668
  %8799 = vst [vmem:[%s8690 + $0x360] sm:$0xff] %v8669
  %8800 = vst [vmem:[%s8690 + $0x368] sm:$0xff] %v8670
  %8801 = vst [vmem:[%s8690 + $0x370] sm:$0xff] %v8671
  %8802 = vst [vmem:[%s8690 + $0x378] sm:$0xff] %v8672
  %8803 = vst [vmem:[%s8690 + $0x380] sm:$0xff] %v8673
  %8804 = vst [vmem:[%s8690 + $0x388] sm:$0xff] %v8674
  %8805 = vst [vmem:[%s8690 + $0x390] sm:$0xff] %v8675
  %8806 = vst [vmem:[%s8690 + $0x398] sm:$0xff] %v8676
  %8807 = vst [vmem:[%s8690 + $0x3a0] sm:$0xff] %v8677
  %8808 = vst [vmem:[%s8690 + $0x3a8] sm:$0xff] %v8678
  %8809 = vst [vmem:[%s8690 + $0x3b0] sm:$0xff] %v8679
  %8810 = vst [vmem:[%s8690 + $0x3b8] sm:$0xff] %v8680
  %8811 = vst [vmem:[%s8690 + $0x3c0] sm:$0xff] %v8681
  %8812 = vst [vmem:[%s8690 + $0x3c8] sm:$0xff] %v8682
  %8813 = vst [vmem:[%s8690 + $0x3d0] sm:$0xff] %v8683
  %8814 = vst [vmem:[%s8690 + $0x3d8] sm:$0xff] %v8684
  %8815 = vst [vmem:[%s8690 + $0x3e0] sm:$0xff] %v8685
  %8816 = vst [vmem:[%s8690 + $0x3e8] sm:$0xff] %v8686
  %8817 = vst [vmem:[%s8690 + $0x3f0] sm:$0xff] %v8687
  %8818 = vst [vmem:[%s8690 + $0x3f8] sm:$0xff] %v8688
  // Predicated region
  $region22: #{gcn_forward.1} parent=0 // pred_check
    _
  $region23: #{gcn_forward.1} parent=0 // pred_check_branch
    %8820 = sbr.rel (0) target = $region25
  $region24: #{gcn_forward.1} parent=0 // pred_region
    _
  $region25: #{gcn_forward.1} parent=0 // pred_fallthru
    _
  // Predicated region
  $region26: #{gcn_forward.1} parent=0 // pred_check
    _
  $region27: #{gcn_forward.1} parent=0 // pred_check_branch
    %8822 = sbr.rel (0) target = $region29
  $region28: #{gcn_forward.1} parent=0 // pred_region
    _
  $region29: #{gcn_forward.1} parent=0 // pred_fallthru
    _

</llo_original>
